<compile_context>
chip_gen: v7x
topology: tpu7x:2x2x1
jax: 0.10.0
libtpu: 0.0.40
codegen_flags: <defaults>
</compile_context>

<pallas_src>
import functools

import jax
import jax.numpy as jnp
import numpy as np
from jax.experimental import pallas as pl
from jax.experimental.pallas import tpu as pltpu

KSIZE = 4
STRIDE = 2
PAD = 1
LANE = 128


def _round_up(x, m):
    return (x + m - 1) // m * m


# --------------------------- one-time preparation -------------------------- #
def _gather_onehot(h, w, dtype=np.float32):
    """0/1 matrices implementing the k=4,s=2,p=1 window gather.

    Returns (G, OH, OW) with G of shape (16, OH*OW, H*W) and
      G[kh*4+kw, oh*OW+ow, ih*W+iw] = 1  iff  ih = 2*oh+kh-1, iw = 2*ow+kw-1
    falls inside the un-padded image (padding taps -> all-zero rows).
    """
    oh_n = (h + 2 * PAD - KSIZE) // STRIDE + 1
    ow_n = (w + 2 * PAD - KSIZE) // STRIDE + 1
    g = np.zeros((KSIZE * KSIZE, oh_n * ow_n, h * w), dtype)
    for kh in range(KSIZE):
        for kw in range(KSIZE):
            t = kh * KSIZE + kw
            for oh in range(oh_n):
                ih = STRIDE * oh + kh - PAD
                if not 0 <= ih < h:
                    continue
                for ow in range(ow_n):
                    iw = STRIDE * ow + kw - PAD
                    if not 0 <= iw < w:
                        continue
                    g[t, oh * ow_n + ow, ih * w + iw] = 1.0
    return g, oh_n, ow_n


def init_encoder_params(in_channels, latent_dim, key):
    """Deterministic synthetic init matching the PyTorch layer shapes (OIHW)."""
    specs = [(64, in_channels), (128, 64), (latent_dim, 128)]
    params = []
    for i, (cout, cin) in enumerate(specs):
        kw_key, kb_key = jax.random.split(jax.random.fold_in(key, i))
        fan_in = cin * KSIZE * KSIZE
        bound = 1.0 / np.sqrt(fan_in)
        w = jax.random.uniform(kw_key, (cout, cin, KSIZE, KSIZE), jnp.float32,
                               -bound, bound)
        b = jax.random.uniform(kb_key, (cout,), jnp.float32, -bound, bound)
        params.append((w, b))
    return params


def prepare_encoder_params(params, in_channels, height, width):
    """Hoisted prep: gather matrices + lane-padded bf16 weights, f32 biases."""
    layers = []
    h, w = height, width
    cin_carried = in_channels          # channels actually carried by the activation
    for (wt, bt) in params:
        cout, cin, kh, kw = wt.shape
        assert (kh, kw) == (KSIZE, KSIZE)
        g, oh_n, ow_n = _gather_onehot(h, w)
        cout_p = _round_up(cout, LANE)
        # OIHW -> (KH, KW, Cin, Cout) -> (16, Cin, Cout); zero-pad Cin/Cout.
        wm = jnp.transpose(wt, (2, 3, 1, 0)).reshape(KSIZE * KSIZE, cin, cout)
        wm = jnp.pad(wm, ((0, 0), (0, cin_carried - cin), (0, cout_p - cout)))
        bm = jnp.pad(bt, (0, cout_p - cout)).reshape(1, cout_p)
        layers.append((jnp.asarray(g, jnp.bfloat16),
                       wm.astype(jnp.bfloat16),
                       bm.astype(jnp.float32)))
        h, w, cin_carried = oh_n, ow_n, cout_p
    return tuple(layers)


# ------------------------------ fused kernel ------------------------------- #
def _encoder_fused_kernel(x_ref,
                          g1_ref, w1_ref, b1_ref,
                          g2_ref, w2_ref, b2_ref,
                          g3_ref, w3_ref, b3_ref,
                          o_ref):
    """One grid step = one image; all three layers stay in VMEM."""

    def conv_relu(act_bf16, g_ref, w_ref, b_ref):
        n_taps, m, _ = g_ref.shape
        cout = w_ref.shape[-1]
        acc = jnp.zeros((m, cout), jnp.float32)
        for k in range(n_taps):                         # static unroll: 16 taps
            # MXU "gather": one-hot selection of the rows needed by tap k
            # (exact -- values are copied or zeroed, never scaled).
            gathered = jnp.dot(g_ref[k], act_bf16,
                               preferred_element_type=jnp.float32)
            acc = acc + jnp.dot(gathered.astype(jnp.bfloat16), w_ref[k],
                                preferred_element_type=jnp.float32)
        # Bias + ReLU once per layer, in f32.
        return jnp.maximum(acc + b_ref[...], 0.0)

    a0 = x_ref[0].astype(jnp.bfloat16)                  # (H*W, Cin)
    a1 = conv_relu(a0, g1_ref, w1_ref, b1_ref).astype(jnp.bfloat16)  # (64, 128)
    a2 = conv_relu(a1, g2_ref, w2_ref, b2_ref).astype(jnp.bfloat16)  # (16, 128)
    a3 = conv_relu(a2, g3_ref, w3_ref, b3_ref)                       # (4, 256) f32
    o_ref[0] = a3.astype(o_ref.dtype)


@functools.partial(jax.jit, static_argnums=(2,))
def encoder_forward(x_nchw, layers, out_channels):
    """Full fused Encoder forward. Input/output are NCHW (PyTorch convention)."""
    n, cin, h, w = x_nchw.shape
    x_flat = jnp.transpose(x_nchw, (0, 2, 3, 1)).reshape(n, h * w, cin)

    (g1, w1, b1), (g2, w2, b2), (g3, w3, b3) = layers
    m_out = g3.shape[1]
    cout_p = w3.shape[-1]
    oh, ow = h // 8, w // 8

    def full_spec(arr):
        zeros = (0,) * arr.ndim
        return pl.BlockSpec(arr.shape, lambda b, _z=zeros: _z)

    out = pl.pallas_call(
        _encoder_fused_kernel,
        out_shape=jax.ShapeDtypeStruct((n, m_out, cout_p), jnp.float32),
        grid=(n,),
        in_specs=[
            pl.BlockSpec((1, h * w, cin), lambda b: (b, 0, 0)),
            full_spec(g1), full_spec(w1), full_spec(b1),
            full_spec(g2), full_spec(w2), full_spec(b2),
            full_spec(g3), full_spec(w3), full_spec(b3),
        ],
        out_specs=pl.BlockSpec((1, m_out, cout_p), lambda b: (b, 0, 0)),
        compiler_params=pltpu.CompilerParams(
            dimension_semantics=("parallel",)),   # megacore: split batch on v7x
    )(x_flat, g1, w1, b1, g2, w2, b2, g3, w3, b3)

    out = out.reshape(n, oh, ow, cout_p)[..., :out_channels]
    return jnp.transpose(out, (0, 3, 1, 2))               # -> NCHW


# Pure-JAX reference (lax conv, f32) for a correctness check.
def encoder_forward_ref(x_nchw, params):
    x = x_nchw
    for (w, b) in params:
        x = jax.lax.conv_general_dilated(
            x, w, window_strides=(STRIDE, STRIDE),
            padding=((PAD, PAD), (PAD, PAD)),
            dimension_numbers=("NCHW", "OIHW", "NCHW"),
        )
        x = jnp.maximum(x + b[None, :, None, None], 0.0)
    return x


if __name__ == "__main__":
    latent_dim = 256
    in_channels = 4
    batch, spatial = 2, 16

    key = jax.random.PRNGKey(0)
    x_key, p_key = jax.random.split(key)
    x = jax.random.normal(x_key, (batch, in_channels, spatial, spatial), jnp.float32)
    params = init_encoder_params(in_channels, latent_dim, p_key)
    layers = prepare_encoder_params(params, in_channels, spatial, spatial)

    out = jax.block_until_ready(encoder_forward(x, layers, latent_dim))
    ref = jax.block_until_ready(encoder_forward_ref(x, params))

    assert out.shape == (batch, latent_dim, spatial // 8, spatial // 8), out.shape
    # bf16 MXU inputs with f32 accumulation -> a relaxed (but tight enough)
    # tolerance against the f32 reference.
    np.testing.assert_allclose(np.asarray(out), np.asarray(ref), rtol=2e-2, atol=2e-2)
    print("KERNEL_OK")
</pallas_src>

<mosaic_0001>
module attributes {stable_mosaic.version = 11 : i64} {
  func.func @_encoder_fused_kernel(%arg0: i32, %arg1: memref<1x256x4xf32, #tpu.memory_space<vmem>>, %arg2: memref<16x64x256xbf16, #tpu.memory_space<vmem>>, %arg3: memref<16x4x128xbf16, #tpu.memory_space<vmem>>, %arg4: memref<1x128xf32, #tpu.memory_space<vmem>>, %arg5: memref<16x16x64xbf16, #tpu.memory_space<vmem>>, %arg6: memref<16x128x128xbf16, #tpu.memory_space<vmem>>, %arg7: memref<1x128xf32, #tpu.memory_space<vmem>>, %arg8: memref<16x4x16xbf16, #tpu.memory_space<vmem>>, %arg9: memref<16x128x256xbf16, #tpu.memory_space<vmem>>, %arg10: memref<1x256xf32, #tpu.memory_space<vmem>>, %arg11: memref<1x4x256xf32, #tpu.memory_space<vmem>>) attributes {dimension_semantics = [#tpu.dimension_semantics<parallel>], iteration_bounds = array<i64: 2>, scalar_prefetch = 0 : i64, scratch_operands = 0 : i64, tpu.core_type = #tpu.core_type<tc>, window_params = [{transform_indices = @transform_0, window_bounds = array<i64: 1, 256, 4>}, {pipeline_mode = #tpu.pipeline_mode<synchronous>, transform_indices = @transform_1, window_bounds = array<i64: 16, 64, 256>}, {pipeline_mode = #tpu.pipeline_mode<synchronous>, transform_indices = @transform_2, window_bounds = array<i64: 16, 4, 128>}, {pipeline_mode = #tpu.pipeline_mode<synchronous>, transform_indices = @transform_3, window_bounds = array<i64: 1, 128>}, {pipeline_mode = #tpu.pipeline_mode<synchronous>, transform_indices = @transform_4, window_bounds = array<i64: 16, 16, 64>}, {pipeline_mode = #tpu.pipeline_mode<synchronous>, transform_indices = @transform_5, window_bounds = array<i64: 16, 128, 128>}, {pipeline_mode = #tpu.pipeline_mode<synchronous>, transform_indices = @transform_6, window_bounds = array<i64: 1, 128>}, {pipeline_mode = #tpu.pipeline_mode<synchronous>, transform_indices = @transform_7, window_bounds = array<i64: 16, 4, 16>}, {pipeline_mode = #tpu.pipeline_mode<synchronous>, transform_indices = @transform_8, window_bounds = array<i64: 16, 128, 256>}, {pipeline_mode = #tpu.pipeline_mode<synchronous>, transform_indices = @transform_9, window_bounds = array<i64: 1, 256>}, {transform_indices = @transform_10, window_bounds = array<i64: 1, 4, 256>}]} {
    %c0 = arith.constant 0 : index
    %c0_0 = arith.constant 0 : index
    %c0_1 = arith.constant 0 : index
    %0 = vector.load %arg1[%c0, %c0_0, %c0_1] : memref<1x256x4xf32, #tpu.memory_space<vmem>>, vector<1x256x4xf32>
    %1 = vector.shape_cast %0 : vector<1x256x4xf32> to vector<256x4xf32>
    %2 = arith.truncf %1 : vector<256x4xf32> to vector<256x4xbf16>
    %cst = arith.constant 0.000000e+00 : f32
    %3 = vector.broadcast %cst : f32 to vector<64x128xf32>
    %c0_2 = arith.constant 0 : index
    %c0_3 = arith.constant 0 : index
    %c0_4 = arith.constant 0 : index
    %4 = vector.load %arg2[%c0_2, %c0_3, %c0_4] : memref<16x64x256xbf16, #tpu.memory_space<vmem>>, vector<1x64x256xbf16>
    %5 = vector.shape_cast %4 : vector<1x64x256xbf16> to vector<64x256xbf16>
    %cst_5 = arith.constant dense<0.000000e+00> : vector<64x4xf32>
    %6 = tpu.matmul %5, %2, %cst_5 {dimension_numbers = #tpu.dot_dimension_numbers<[1], [0], [0], [1], [0, 0, 1, 1], [], []>} : vector<64x256xbf16>, vector<256x4xbf16>, vector<64x4xf32> -> vector<64x4xf32>
    %7 = arith.truncf %6 : vector<64x4xf32> to vector<64x4xbf16>
    %c0_6 = arith.constant 0 : index
    %c0_7 = arith.constant 0 : index
    %c0_8 = arith.constant 0 : index
    %8 = vector.load %arg3[%c0_6, %c0_7, %c0_8] : memref<16x4x128xbf16, #tpu.memory_space<vmem>>, vector<1x4x128xbf16>
    %9 = vector.shape_cast %8 : vector<1x4x128xbf16> to vector<4x128xbf16>
    %cst_9 = arith.constant dense<0.000000e+00> : vector<64x128xf32>
    %10 = tpu.matmul %7, %9, %cst_9 {dimension_numbers = #tpu.dot_dimension_numbers<[1], [0], [0], [1], [0, 0, 1, 1], [], []>} : vector<64x4xbf16>, vector<4x128xbf16>, vector<64x128xf32> -> vector<64x128xf32>
    %11 = arith.addf %3, %10 : vector<64x128xf32>
    %c1 = arith.constant 1 : index
    %c0_10 = arith.constant 0 : index
    %c0_11 = arith.constant 0 : index
    %12 = vector.load %arg2[%c1, %c0_10, %c0_11] : memref<16x64x256xbf16, #tpu.memory_space<vmem>>, vector<1x64x256xbf16>
    %13 = vector.shape_cast %12 : vector<1x64x256xbf16> to vector<64x256xbf16>
    %cst_12 = arith.constant dense<0.000000e+00> : vector<64x4xf32>
    %14 = tpu.matmul %13, %2, %cst_12 {dimension_numbers = #tpu.dot_dimension_numbers<[1], [0], [0], [1], [0, 0, 1, 1], [], []>} : vector<64x256xbf16>, vector<256x4xbf16>, vector<64x4xf32> -> vector<64x4xf32>
    %15 = arith.truncf %14 : vector<64x4xf32> to vector<64x4xbf16>
    %c1_13 = arith.constant 1 : index
    %c0_14 = arith.constant 0 : index
    %c0_15 = arith.constant 0 : index
    %16 = vector.load %arg3[%c1_13, %c0_14, %c0_15] : memref<16x4x128xbf16, #tpu.memory_space<vmem>>, vector<1x4x128xbf16>
    %17 = vector.shape_cast %16 : vector<1x4x128xbf16> to vector<4x128xbf16>
    %cst_16 = arith.constant dense<0.000000e+00> : vector<64x128xf32>
    %18 = tpu.matmul %15, %17, %cst_16 {dimension_numbers = #tpu.dot_dimension_numbers<[1], [0], [0], [1], [0, 0, 1, 1], [], []>} : vector<64x4xbf16>, vector<4x128xbf16>, vector<64x128xf32> -> vector<64x128xf32>
    %19 = arith.addf %11, %18 : vector<64x128xf32>
    %c2 = arith.constant 2 : index
    %c0_17 = arith.constant 0 : index
    %c0_18 = arith.constant 0 : index
    %20 = vector.load %arg2[%c2, %c0_17, %c0_18] : memref<16x64x256xbf16, #tpu.memory_space<vmem>>, vector<1x64x256xbf16>
    %21 = vector.shape_cast %20 : vector<1x64x256xbf16> to vector<64x256xbf16>
    %cst_19 = arith.constant dense<0.000000e+00> : vector<64x4xf32>
    %22 = tpu.matmul %21, %2, %cst_19 {dimension_numbers = #tpu.dot_dimension_numbers<[1], [0], [0], [1], [0, 0, 1, 1], [], []>} : vector<64x256xbf16>, vector<256x4xbf16>, vector<64x4xf32> -> vector<64x4xf32>
    %23 = arith.truncf %22 : vector<64x4xf32> to vector<64x4xbf16>
    %c2_20 = arith.constant 2 : index
    %c0_21 = arith.constant 0 : index
    %c0_22 = arith.constant 0 : index
    %24 = vector.load %arg3[%c2_20, %c0_21, %c0_22] : memref<16x4x128xbf16, #tpu.memory_space<vmem>>, vector<1x4x128xbf16>
    %25 = vector.shape_cast %24 : vector<1x4x128xbf16> to vector<4x128xbf16>
    %cst_23 = arith.constant dense<0.000000e+00> : vector<64x128xf32>
    %26 = tpu.matmul %23, %25, %cst_23 {dimension_numbers = #tpu.dot_dimension_numbers<[1], [0], [0], [1], [0, 0, 1, 1], [], []>} : vector<64x4xbf16>, vector<4x128xbf16>, vector<64x128xf32> -> vector<64x128xf32>
    %27 = arith.addf %19, %26 : vector<64x128xf32>
    %c3 = arith.constant 3 : index
    %c0_24 = arith.constant 0 : index
    %c0_25 = arith.constant 0 : index
    %28 = vector.load %arg2[%c3, %c0_24, %c0_25] : memref<16x64x256xbf16, #tpu.memory_space<vmem>>, vector<1x64x256xbf16>
    %29 = vector.shape_cast %28 : vector<1x64x256xbf16> to vector<64x256xbf16>
    %cst_26 = arith.constant dense<0.000000e+00> : vector<64x4xf32>
    %30 = tpu.matmul %29, %2, %cst_26 {dimension_numbers = #tpu.dot_dimension_numbers<[1], [0], [0], [1], [0, 0, 1, 1], [], []>} : vector<64x256xbf16>, vector<256x4xbf16>, vector<64x4xf32> -> vector<64x4xf32>
    %31 = arith.truncf %30 : vector<64x4xf32> to vector<64x4xbf16>
    %c3_27 = arith.constant 3 : index
    %c0_28 = arith.constant 0 : index
    %c0_29 = arith.constant 0 : index
    %32 = vector.load %arg3[%c3_27, %c0_28, %c0_29] : memref<16x4x128xbf16, #tpu.memory_space<vmem>>, vector<1x4x128xbf16>
    %33 = vector.shape_cast %32 : vector<1x4x128xbf16> to vector<4x128xbf16>
    %cst_30 = arith.constant dense<0.000000e+00> : vector<64x128xf32>
    %34 = tpu.matmul %31, %33, %cst_30 {dimension_numbers = #tpu.dot_dimension_numbers<[1], [0], [0], [1], [0, 0, 1, 1], [], []>} : vector<64x4xbf16>, vector<4x128xbf16>, vector<64x128xf32> -> vector<64x128xf32>
    %35 = arith.addf %27, %34 : vector<64x128xf32>
    %c4 = arith.constant 4 : index
    %c0_31 = arith.constant 0 : index
    %c0_32 = arith.constant 0 : index
    %36 = vector.load %arg2[%c4, %c0_31, %c0_32] : memref<16x64x256xbf16, #tpu.memory_space<vmem>>, vector<1x64x256xbf16>
    %37 = vector.shape_cast %36 : vector<1x64x256xbf16> to vector<64x256xbf16>
    %cst_33 = arith.constant dense<0.000000e+00> : vector<64x4xf32>
    %38 = tpu.matmul %37, %2, %cst_33 {dimension_numbers = #tpu.dot_dimension_numbers<[1], [0], [0], [1], [0, 0, 1, 1], [], []>} : vector<64x256xbf16>, vector<256x4xbf16>, vector<64x4xf32> -> vector<64x4xf32>
    %39 = arith.truncf %38 : vector<64x4xf32> to vector<64x4xbf16>
    %c4_34 = arith.constant 4 : index
    %c0_35 = arith.constant 0 : index
    %c0_36 = arith.constant 0 : index
    %40 = vector.load %arg3[%c4_34, %c0_35, %c0_36] : memref<16x4x128xbf16, #tpu.memory_space<vmem>>, vector<1x4x128xbf16>
    %41 = vector.shape_cast %40 : vector<1x4x128xbf16> to vector<4x128xbf16>
    %cst_37 = arith.constant dense<0.000000e+00> : vector<64x128xf32>
    %42 = tpu.matmul %39, %41, %cst_37 {dimension_numbers = #tpu.dot_dimension_numbers<[1], [0], [0], [1], [0, 0, 1, 1], [], []>} : vector<64x4xbf16>, vector<4x128xbf16>, vector<64x128xf32> -> vector<64x128xf32>
    %43 = arith.addf %35, %42 : vector<64x128xf32>
    %c5 = arith.constant 5 : index
    %c0_38 = arith.constant 0 : index
    %c0_39 = arith.constant 0 : index
    %44 = vector.load %arg2[%c5, %c0_38, %c0_39] : memref<16x64x256xbf16, #tpu.memory_space<vmem>>, vector<1x64x256xbf16>
    %45 = vector.shape_cast %44 : vector<1x64x256xbf16> to vector<64x256xbf16>
    %cst_40 = arith.constant dense<0.000000e+00> : vector<64x4xf32>
    %46 = tpu.matmul %45, %2, %cst_40 {dimension_numbers = #tpu.dot_dimension_numbers<[1], [0], [0], [1], [0, 0, 1, 1], [], []>} : vector<64x256xbf16>, vector<256x4xbf16>, vector<64x4xf32> -> vector<64x4xf32>
    %47 = arith.truncf %46 : vector<64x4xf32> to vector<64x4xbf16>
    %c5_41 = arith.constant 5 : index
    %c0_42 = arith.constant 0 : index
    %c0_43 = arith.constant 0 : index
    %48 = vector.load %arg3[%c5_41, %c0_42, %c0_43] : memref<16x4x128xbf16, #tpu.memory_space<vmem>>, vector<1x4x128xbf16>
    %49 = vector.shape_cast %48 : vector<1x4x128xbf16> to vector<4x128xbf16>
    %cst_44 = arith.constant dense<0.000000e+00> : vector<64x128xf32>
    %50 = tpu.matmul %47, %49, %cst_44 {dimension_numbers = #tpu.dot_dimension_numbers<[1], [0], [0], [1], [0, 0, 1, 1], [], []>} : vector<64x4xbf16>, vector<4x128xbf16>, vector<64x128xf32> -> vector<64x128xf32>
    %51 = arith.addf %43, %50 : vector<64x128xf32>
    %c6 = arith.constant 6 : index
    %c0_45 = arith.constant 0 : index
    %c0_46 = arith.constant 0 : index
    %52 = vector.load %arg2[%c6, %c0_45, %c0_46] : memref<16x64x256xbf16, #tpu.memory_space<vmem>>, vector<1x64x256xbf16>
    %53 = vector.shape_cast %52 : vector<1x64x256xbf16> to vector<64x256xbf16>
    %cst_47 = arith.constant dense<0.000000e+00> : vector<64x4xf32>
    %54 = tpu.matmul %53, %2, %cst_47 {dimension_numbers = #tpu.dot_dimension_numbers<[1], [0], [0], [1], [0, 0, 1, 1], [], []>} : vector<64x256xbf16>, vector<256x4xbf16>, vector<64x4xf32> -> vector<64x4xf32>
    %55 = arith.truncf %54 : vector<64x4xf32> to vector<64x4xbf16>
    %c6_48 = arith.constant 6 : index
    %c0_49 = arith.constant 0 : index
    %c0_50 = arith.constant 0 : index
    %56 = vector.load %arg3[%c6_48, %c0_49, %c0_50] : memref<16x4x128xbf16, #tpu.memory_space<vmem>>, vector<1x4x128xbf16>
    %57 = vector.shape_cast %56 : vector<1x4x128xbf16> to vector<4x128xbf16>
    %cst_51 = arith.constant dense<0.000000e+00> : vector<64x128xf32>
    %58 = tpu.matmul %55, %57, %cst_51 {dimension_numbers = #tpu.dot_dimension_numbers<[1], [0], [0], [1], [0, 0, 1, 1], [], []>} : vector<64x4xbf16>, vector<4x128xbf16>, vector<64x128xf32> -> vector<64x128xf32>
    %59 = arith.addf %51, %58 : vector<64x128xf32>
    %c7 = arith.constant 7 : index
    %c0_52 = arith.constant 0 : index
    %c0_53 = arith.constant 0 : index
    %60 = vector.load %arg2[%c7, %c0_52, %c0_53] : memref<16x64x256xbf16, #tpu.memory_space<vmem>>, vector<1x64x256xbf16>
    %61 = vector.shape_cast %60 : vector<1x64x256xbf16> to vector<64x256xbf16>
    %cst_54 = arith.constant dense<0.000000e+00> : vector<64x4xf32>
    %62 = tpu.matmul %61, %2, %cst_54 {dimension_numbers = #tpu.dot_dimension_numbers<[1], [0], [0], [1], [0, 0, 1, 1], [], []>} : vector<64x256xbf16>, vector<256x4xbf16>, vector<64x4xf32> -> vector<64x4xf32>
    %63 = arith.truncf %62 : vector<64x4xf32> to vector<64x4xbf16>
    %c7_55 = arith.constant 7 : index
    %c0_56 = arith.constant 0 : index
    %c0_57 = arith.constant 0 : index
    %64 = vector.load %arg3[%c7_55, %c0_56, %c0_57] : memref<16x4x128xbf16, #tpu.memory_space<vmem>>, vector<1x4x128xbf16>
    %65 = vector.shape_cast %64 : vector<1x4x128xbf16> to vector<4x128xbf16>
    %cst_58 = arith.constant dense<0.000000e+00> : vector<64x128xf32>
    %66 = tpu.matmul %63, %65, %cst_58 {dimension_numbers = #tpu.dot_dimension_numbers<[1], [0], [0], [1], [0, 0, 1, 1], [], []>} : vector<64x4xbf16>, vector<4x128xbf16>, vector<64x128xf32> -> vector<64x128xf32>
    %67 = arith.addf %59, %66 : vector<64x128xf32>
    %c8 = arith.constant 8 : index
    %c0_59 = arith.constant 0 : index
    %c0_60 = arith.constant 0 : index
    %68 = vector.load %arg2[%c8, %c0_59, %c0_60] : memref<16x64x256xbf16, #tpu.memory_space<vmem>>, vector<1x64x256xbf16>
    %69 = vector.shape_cast %68 : vector<1x64x256xbf16> to vector<64x256xbf16>
    %cst_61 = arith.constant dense<0.000000e+00> : vector<64x4xf32>
    %70 = tpu.matmul %69, %2, %cst_61 {dimension_numbers = #tpu.dot_dimension_numbers<[1], [0], [0], [1], [0, 0, 1, 1], [], []>} : vector<64x256xbf16>, vector<256x4xbf16>, vector<64x4xf32> -> vector<64x4xf32>
    %71 = arith.truncf %70 : vector<64x4xf32> to vector<64x4xbf16>
    %c8_62 = arith.constant 8 : index
    %c0_63 = arith.constant 0 : index
    %c0_64 = arith.constant 0 : index
    %72 = vector.load %arg3[%c8_62, %c0_63, %c0_64] : memref<16x4x128xbf16, #tpu.memory_space<vmem>>, vector<1x4x128xbf16>
    %73 = vector.shape_cast %72 : vector<1x4x128xbf16> to vector<4x128xbf16>
    %cst_65 = arith.constant dense<0.000000e+00> : vector<64x128xf32>
    %74 = tpu.matmul %71, %73, %cst_65 {dimension_numbers = #tpu.dot_dimension_numbers<[1], [0], [0], [1], [0, 0, 1, 1], [], []>} : vector<64x4xbf16>, vector<4x128xbf16>, vector<64x128xf32> -> vector<64x128xf32>
    %75 = arith.addf %67, %74 : vector<64x128xf32>
    %c9 = arith.constant 9 : index
    %c0_66 = arith.constant 0 : index
    %c0_67 = arith.constant 0 : index
    %76 = vector.load %arg2[%c9, %c0_66, %c0_67] : memref<16x64x256xbf16, #tpu.memory_space<vmem>>, vector<1x64x256xbf16>
    %77 = vector.shape_cast %76 : vector<1x64x256xbf16> to vector<64x256xbf16>
    %cst_68 = arith.constant dense<0.000000e+00> : vector<64x4xf32>
    %78 = tpu.matmul %77, %2, %cst_68 {dimension_numbers = #tpu.dot_dimension_numbers<[1], [0], [0], [1], [0, 0, 1, 1], [], []>} : vector<64x256xbf16>, vector<256x4xbf16>, vector<64x4xf32> -> vector<64x4xf32>
    %79 = arith.truncf %78 : vector<64x4xf32> to vector<64x4xbf16>
    %c9_69 = arith.constant 9 : index
    %c0_70 = arith.constant 0 : index
    %c0_71 = arith.constant 0 : index
    %80 = vector.load %arg3[%c9_69, %c0_70, %c0_71] : memref<16x4x128xbf16, #tpu.memory_space<vmem>>, vector<1x4x128xbf16>
    %81 = vector.shape_cast %80 : vector<1x4x128xbf16> to vector<4x128xbf16>
    %cst_72 = arith.constant dense<0.000000e+00> : vector<64x128xf32>
    %82 = tpu.matmul %79, %81, %cst_72 {dimension_numbers = #tpu.dot_dimension_numbers<[1], [0], [0], [1], [0, 0, 1, 1], [], []>} : vector<64x4xbf16>, vector<4x128xbf16>, vector<64x128xf32> -> vector<64x128xf32>
    %83 = arith.addf %75, %82 : vector<64x128xf32>
    %c10 = arith.constant 10 : index
    %c0_73 = arith.constant 0 : index
    %c0_74 = arith.constant 0 : index
    %84 = vector.load %arg2[%c10, %c0_73, %c0_74] : memref<16x64x256xbf16, #tpu.memory_space<vmem>>, vector<1x64x256xbf16>
    %85 = vector.shape_cast %84 : vector<1x64x256xbf16> to vector<64x256xbf16>
    %cst_75 = arith.constant dense<0.000000e+00> : vector<64x4xf32>
    %86 = tpu.matmul %85, %2, %cst_75 {dimension_numbers = #tpu.dot_dimension_numbers<[1], [0], [0], [1], [0, 0, 1, 1], [], []>} : vector<64x256xbf16>, vector<256x4xbf16>, vector<64x4xf32> -> vector<64x4xf32>
    %87 = arith.truncf %86 : vector<64x4xf32> to vector<64x4xbf16>
    %c10_76 = arith.constant 10 : index
    %c0_77 = arith.constant 0 : index
    %c0_78 = arith.constant 0 : index
    %88 = vector.load %arg3[%c10_76, %c0_77, %c0_78] : memref<16x4x128xbf16, #tpu.memory_space<vmem>>, vector<1x4x128xbf16>
    %89 = vector.shape_cast %88 : vector<1x4x128xbf16> to vector<4x128xbf16>
    %cst_79 = arith.constant dense<0.000000e+00> : vector<64x128xf32>
    %90 = tpu.matmul %87, %89, %cst_79 {dimension_numbers = #tpu.dot_dimension_numbers<[1], [0], [0], [1], [0, 0, 1, 1], [], []>} : vector<64x4xbf16>, vector<4x128xbf16>, vector<64x128xf32> -> vector<64x128xf32>
    %91 = arith.addf %83, %90 : vector<64x128xf32>
    %c11 = arith.constant 11 : index
    %c0_80 = arith.constant 0 : index
    %c0_81 = arith.constant 0 : index
    %92 = vector.load %arg2[%c11, %c0_80, %c0_81] : memref<16x64x256xbf16, #tpu.memory_space<vmem>>, vector<1x64x256xbf16>
    %93 = vector.shape_cast %92 : vector<1x64x256xbf16> to vector<64x256xbf16>
    %cst_82 = arith.constant dense<0.000000e+00> : vector<64x4xf32>
    %94 = tpu.matmul %93, %2, %cst_82 {dimension_numbers = #tpu.dot_dimension_numbers<[1], [0], [0], [1], [0, 0, 1, 1], [], []>} : vector<64x256xbf16>, vector<256x4xbf16>, vector<64x4xf32> -> vector<64x4xf32>
    %95 = arith.truncf %94 : vector<64x4xf32> to vector<64x4xbf16>
    %c11_83 = arith.constant 11 : index
    %c0_84 = arith.constant 0 : index
    %c0_85 = arith.constant 0 : index
    %96 = vector.load %arg3[%c11_83, %c0_84, %c0_85] : memref<16x4x128xbf16, #tpu.memory_space<vmem>>, vector<1x4x128xbf16>
    %97 = vector.shape_cast %96 : vector<1x4x128xbf16> to vector<4x128xbf16>
    %cst_86 = arith.constant dense<0.000000e+00> : vector<64x128xf32>
    %98 = tpu.matmul %95, %97, %cst_86 {dimension_numbers = #tpu.dot_dimension_numbers<[1], [0], [0], [1], [0, 0, 1, 1], [], []>} : vector<64x4xbf16>, vector<4x128xbf16>, vector<64x128xf32> -> vector<64x128xf32>
    %99 = arith.addf %91, %98 : vector<64x128xf32>
    %c12 = arith.constant 12 : index
    %c0_87 = arith.constant 0 : index
    %c0_88 = arith.constant 0 : index
    %100 = vector.load %arg2[%c12, %c0_87, %c0_88] : memref<16x64x256xbf16, #tpu.memory_space<vmem>>, vector<1x64x256xbf16>
    %101 = vector.shape_cast %100 : vector<1x64x256xbf16> to vector<64x256xbf16>
    %cst_89 = arith.constant dense<0.000000e+00> : vector<64x4xf32>
    %102 = tpu.matmul %101, %2, %cst_89 {dimension_numbers = #tpu.dot_dimension_numbers<[1], [0], [0], [1], [0, 0, 1, 1], [], []>} : vector<64x256xbf16>, vector<256x4xbf16>, vector<64x4xf32> -> vector<64x4xf32>
    %103 = arith.truncf %102 : vector<64x4xf32> to vector<64x4xbf16>
    %c12_90 = arith.constant 12 : index
    %c0_91 = arith.constant 0 : index
    %c0_92 = arith.constant 0 : index
    %104 = vector.load %arg3[%c12_90, %c0_91, %c0_92] : memref<16x4x128xbf16, #tpu.memory_space<vmem>>, vector<1x4x128xbf16>
    %105 = vector.shape_cast %104 : vector<1x4x128xbf16> to vector<4x128xbf16>
    %cst_93 = arith.constant dense<0.000000e+00> : vector<64x128xf32>
    %106 = tpu.matmul %103, %105, %cst_93 {dimension_numbers = #tpu.dot_dimension_numbers<[1], [0], [0], [1], [0, 0, 1, 1], [], []>} : vector<64x4xbf16>, vector<4x128xbf16>, vector<64x128xf32> -> vector<64x128xf32>
    %107 = arith.addf %99, %106 : vector<64x128xf32>
    %c13 = arith.constant 13 : index
    %c0_94 = arith.constant 0 : index
    %c0_95 = arith.constant 0 : index
    %108 = vector.load %arg2[%c13, %c0_94, %c0_95] : memref<16x64x256xbf16, #tpu.memory_space<vmem>>, vector<1x64x256xbf16>
    %109 = vector.shape_cast %108 : vector<1x64x256xbf16> to vector<64x256xbf16>
    %cst_96 = arith.constant dense<0.000000e+00> : vector<64x4xf32>
    %110 = tpu.matmul %109, %2, %cst_96 {dimension_numbers = #tpu.dot_dimension_numbers<[1], [0], [0], [1], [0, 0, 1, 1], [], []>} : vector<64x256xbf16>, vector<256x4xbf16>, vector<64x4xf32> -> vector<64x4xf32>
    %111 = arith.truncf %110 : vector<64x4xf32> to vector<64x4xbf16>
    %c13_97 = arith.constant 13 : index
    %c0_98 = arith.constant 0 : index
    %c0_99 = arith.constant 0 : index
    %112 = vector.load %arg3[%c13_97, %c0_98, %c0_99] : memref<16x4x128xbf16, #tpu.memory_space<vmem>>, vector<1x4x128xbf16>
    %113 = vector.shape_cast %112 : vector<1x4x128xbf16> to vector<4x128xbf16>
    %cst_100 = arith.constant dense<0.000000e+00> : vector<64x128xf32>
    %114 = tpu.matmul %111, %113, %cst_100 {dimension_numbers = #tpu.dot_dimension_numbers<[1], [0], [0], [1], [0, 0, 1, 1], [], []>} : vector<64x4xbf16>, vector<4x128xbf16>, vector<64x128xf32> -> vector<64x128xf32>
    %115 = arith.addf %107, %114 : vector<64x128xf32>
    %c14 = arith.constant 14 : index
    %c0_101 = arith.constant 0 : index
    %c0_102 = arith.constant 0 : index
    %116 = vector.load %arg2[%c14, %c0_101, %c0_102] : memref<16x64x256xbf16, #tpu.memory_space<vmem>>, vector<1x64x256xbf16>
    %117 = vector.shape_cast %116 : vector<1x64x256xbf16> to vector<64x256xbf16>
    %cst_103 = arith.constant dense<0.000000e+00> : vector<64x4xf32>
    %118 = tpu.matmul %117, %2, %cst_103 {dimension_numbers = #tpu.dot_dimension_numbers<[1], [0], [0], [1], [0, 0, 1, 1], [], []>} : vector<64x256xbf16>, vector<256x4xbf16>, vector<64x4xf32> -> vector<64x4xf32>
    %119 = arith.truncf %118 : vector<64x4xf32> to vector<64x4xbf16>
    %c14_104 = arith.constant 14 : index
    %c0_105 = arith.constant 0 : index
    %c0_106 = arith.constant 0 : index
    %120 = vector.load %arg3[%c14_104, %c0_105, %c0_106] : memref<16x4x128xbf16, #tpu.memory_space<vmem>>, vector<1x4x128xbf16>
    %121 = vector.shape_cast %120 : vector<1x4x128xbf16> to vector<4x128xbf16>
    %cst_107 = arith.constant dense<0.000000e+00> : vector<64x128xf32>
    %122 = tpu.matmul %119, %121, %cst_107 {dimension_numbers = #tpu.dot_dimension_numbers<[1], [0], [0], [1], [0, 0, 1, 1], [], []>} : vector<64x4xbf16>, vector<4x128xbf16>, vector<64x128xf32> -> vector<64x128xf32>
    %123 = arith.addf %115, %122 : vector<64x128xf32>
    %c15 = arith.constant 15 : index
    %c0_108 = arith.constant 0 : index
    %c0_109 = arith.constant 0 : index
    %124 = vector.load %arg2[%c15, %c0_108, %c0_109] : memref<16x64x256xbf16, #tpu.memory_space<vmem>>, vector<1x64x256xbf16>
    %125 = vector.shape_cast %124 : vector<1x64x256xbf16> to vector<64x256xbf16>
    %cst_110 = arith.constant dense<0.000000e+00> : vector<64x4xf32>
    %126 = tpu.matmul %125, %2, %cst_110 {dimension_numbers = #tpu.dot_dimension_numbers<[1], [0], [0], [1], [0, 0, 1, 1], [], []>} : vector<64x256xbf16>, vector<256x4xbf16>, vector<64x4xf32> -> vector<64x4xf32>
    %127 = arith.truncf %126 : vector<64x4xf32> to vector<64x4xbf16>
    %c15_111 = arith.constant 15 : index
    %c0_112 = arith.constant 0 : index
    %c0_113 = arith.constant 0 : index
    %128 = vector.load %arg3[%c15_111, %c0_112, %c0_113] : memref<16x4x128xbf16, #tpu.memory_space<vmem>>, vector<1x4x128xbf16>
    %129 = vector.shape_cast %128 : vector<1x4x128xbf16> to vector<4x128xbf16>
    %cst_114 = arith.constant dense<0.000000e+00> : vector<64x128xf32>
    %130 = tpu.matmul %127, %129, %cst_114 {dimension_numbers = #tpu.dot_dimension_numbers<[1], [0], [0], [1], [0, 0, 1, 1], [], []>} : vector<64x4xbf16>, vector<4x128xbf16>, vector<64x128xf32> -> vector<64x128xf32>
    %131 = arith.addf %123, %130 : vector<64x128xf32>
    %c0_115 = arith.constant 0 : index
    %c0_116 = arith.constant 0 : index
    %132 = vector.load %arg4[%c0_115, %c0_116] : memref<1x128xf32, #tpu.memory_space<vmem>>, vector<1x128xf32>
    %133 = vector.broadcast %132 : vector<1x128xf32> to vector<64x128xf32>
    %134 = arith.addf %131, %133 : vector<64x128xf32>
    %cst_117 = arith.constant 0.000000e+00 : f32
    %135 = vector.broadcast %cst_117 : f32 to vector<64x128xf32>
    %136 = arith.maximumf %134, %135 : vector<64x128xf32>
    %137 = arith.truncf %136 : vector<64x128xf32> to vector<64x128xbf16>
    %cst_118 = arith.constant 0.000000e+00 : f32
    %138 = vector.broadcast %cst_118 : f32 to vector<16x128xf32>
    %c0_119 = arith.constant 0 : index
    %c0_120 = arith.constant 0 : index
    %c0_121 = arith.constant 0 : index
    %139 = vector.load %arg5[%c0_119, %c0_120, %c0_121] : memref<16x16x64xbf16, #tpu.memory_space<vmem>>, vector<1x16x64xbf16>
    %140 = vector.shape_cast %139 : vector<1x16x64xbf16> to vector<16x64xbf16>
    %cst_122 = arith.constant dense<0.000000e+00> : vector<16x128xf32>
    %141 = tpu.matmul %140, %137, %cst_122 {dimension_numbers = #tpu.dot_dimension_numbers<[1], [0], [0], [1], [0, 0, 1, 1], [], []>} : vector<16x64xbf16>, vector<64x128xbf16>, vector<16x128xf32> -> vector<16x128xf32>
    %142 = arith.truncf %141 : vector<16x128xf32> to vector<16x128xbf16>
    %c0_123 = arith.constant 0 : index
    %c0_124 = arith.constant 0 : index
    %c0_125 = arith.constant 0 : index
    %143 = vector.load %arg6[%c0_123, %c0_124, %c0_125] : memref<16x128x128xbf16, #tpu.memory_space<vmem>>, vector<1x128x128xbf16>
    %144 = vector.shape_cast %143 : vector<1x128x128xbf16> to vector<128x128xbf16>
    %cst_126 = arith.constant dense<0.000000e+00> : vector<16x128xf32>
    %145 = tpu.matmul %142, %144, %cst_126 {dimension_numbers = #tpu.dot_dimension_numbers<[1], [0], [0], [1], [0, 0, 1, 1], [], []>} : vector<16x128xbf16>, vector<128x128xbf16>, vector<16x128xf32> -> vector<16x128xf32>
    %146 = arith.addf %138, %145 : vector<16x128xf32>
    %c1_127 = arith.constant 1 : index
    %c0_128 = arith.constant 0 : index
    %c0_129 = arith.constant 0 : index
    %147 = vector.load %arg5[%c1_127, %c0_128, %c0_129] : memref<16x16x64xbf16, #tpu.memory_space<vmem>>, vector<1x16x64xbf16>
    %148 = vector.shape_cast %147 : vector<1x16x64xbf16> to vector<16x64xbf16>
    %cst_130 = arith.constant dense<0.000000e+00> : vector<16x128xf32>
    %149 = tpu.matmul %148, %137, %cst_130 {dimension_numbers = #tpu.dot_dimension_numbers<[1], [0], [0], [1], [0, 0, 1, 1], [], []>} : vector<16x64xbf16>, vector<64x128xbf16>, vector<16x128xf32> -> vector<16x128xf32>
    %150 = arith.truncf %149 : vector<16x128xf32> to vector<16x128xbf16>
    %c1_131 = arith.constant 1 : index
    %c0_132 = arith.constant 0 : index
    %c0_133 = arith.constant 0 : index
    %151 = vector.load %arg6[%c1_131, %c0_132, %c0_133] : memref<16x128x128xbf16, #tpu.memory_space<vmem>>, vector<1x128x128xbf16>
    %152 = vector.shape_cast %151 : vector<1x128x128xbf16> to vector<128x128xbf16>
    %cst_134 = arith.constant dense<0.000000e+00> : vector<16x128xf32>
    %153 = tpu.matmul %150, %152, %cst_134 {dimension_numbers = #tpu.dot_dimension_numbers<[1], [0], [0], [1], [0, 0, 1, 1], [], []>} : vector<16x128xbf16>, vector<128x128xbf16>, vector<16x128xf32> -> vector<16x128xf32>
    %154 = arith.addf %146, %153 : vector<16x128xf32>
    %c2_135 = arith.constant 2 : index
    %c0_136 = arith.constant 0 : index
    %c0_137 = arith.constant 0 : index
    %155 = vector.load %arg5[%c2_135, %c0_136, %c0_137] : memref<16x16x64xbf16, #tpu.memory_space<vmem>>, vector<1x16x64xbf16>
    %156 = vector.shape_cast %155 : vector<1x16x64xbf16> to vector<16x64xbf16>
    %cst_138 = arith.constant dense<0.000000e+00> : vector<16x128xf32>
    %157 = tpu.matmul %156, %137, %cst_138 {dimension_numbers = #tpu.dot_dimension_numbers<[1], [0], [0], [1], [0, 0, 1, 1], [], []>} : vector<16x64xbf16>, vector<64x128xbf16>, vector<16x128xf32> -> vector<16x128xf32>
    %158 = arith.truncf %157 : vector<16x128xf32> to vector<16x128xbf16>
    %c2_139 = arith.constant 2 : index
    %c0_140 = arith.constant 0 : index
    %c0_141 = arith.constant 0 : index
    %159 = vector.load %arg6[%c2_139, %c0_140, %c0_141] : memref<16x128x128xbf16, #tpu.memory_space<vmem>>, vector<1x128x128xbf16>
    %160 = vector.shape_cast %159 : vector<1x128x128xbf16> to vector<128x128xbf16>
    %cst_142 = arith.constant dense<0.000000e+00> : vector<16x128xf32>
    %161 = tpu.matmul %158, %160, %cst_142 {dimension_numbers = #tpu.dot_dimension_numbers<[1], [0], [0], [1], [0, 0, 1, 1], [], []>} : vector<16x128xbf16>, vector<128x128xbf16>, vector<16x128xf32> -> vector<16x128xf32>
    %162 = arith.addf %154, %161 : vector<16x128xf32>
    %c3_143 = arith.constant 3 : index
    %c0_144 = arith.constant 0 : index
    %c0_145 = arith.constant 0 : index
    %163 = vector.load %arg5[%c3_143, %c0_144, %c0_145] : memref<16x16x64xbf16, #tpu.memory_space<vmem>>, vector<1x16x64xbf16>
    %164 = vector.shape_cast %163 : vector<1x16x64xbf16> to vector<16x64xbf16>
    %cst_146 = arith.constant dense<0.000000e+00> : vector<16x128xf32>
    %165 = tpu.matmul %164, %137, %cst_146 {dimension_numbers = #tpu.dot_dimension_numbers<[1], [0], [0], [1], [0, 0, 1, 1], [], []>} : vector<16x64xbf16>, vector<64x128xbf16>, vector<16x128xf32> -> vector<16x128xf32>
    %166 = arith.truncf %165 : vector<16x128xf32> to vector<16x128xbf16>
    %c3_147 = arith.constant 3 : index
    %c0_148 = arith.constant 0 : index
    %c0_149 = arith.constant 0 : index
    %167 = vector.load %arg6[%c3_147, %c0_148, %c0_149] : memref<16x128x128xbf16, #tpu.memory_space<vmem>>, vector<1x128x128xbf16>
    %168 = vector.shape_cast %167 : vector<1x128x128xbf16> to vector<128x128xbf16>
    %cst_150 = arith.constant dense<0.000000e+00> : vector<16x128xf32>
    %169 = tpu.matmul %166, %168, %cst_150 {dimension_numbers = #tpu.dot_dimension_numbers<[1], [0], [0], [1], [0, 0, 1, 1], [], []>} : vector<16x128xbf16>, vector<128x128xbf16>, vector<16x128xf32> -> vector<16x128xf32>
    %170 = arith.addf %162, %169 : vector<16x128xf32>
    %c4_151 = arith.constant 4 : index
    %c0_152 = arith.constant 0 : index
    %c0_153 = arith.constant 0 : index
    %171 = vector.load %arg5[%c4_151, %c0_152, %c0_153] : memref<16x16x64xbf16, #tpu.memory_space<vmem>>, vector<1x16x64xbf16>
    %172 = vector.shape_cast %171 : vector<1x16x64xbf16> to vector<16x64xbf16>
    %cst_154 = arith.constant dense<0.000000e+00> : vector<16x128xf32>
    %173 = tpu.matmul %172, %137, %cst_154 {dimension_numbers = #tpu.dot_dimension_numbers<[1], [0], [0], [1], [0, 0, 1, 1], [], []>} : vector<16x64xbf16>, vector<64x128xbf16>, vector<16x128xf32> -> vector<16x128xf32>
    %174 = arith.truncf %173 : vector<16x128xf32> to vector<16x128xbf16>
    %c4_155 = arith.constant 4 : index
    %c0_156 = arith.constant 0 : index
    %c0_157 = arith.constant 0 : index
    %175 = vector.load %arg6[%c4_155, %c0_156, %c0_157] : memref<16x128x128xbf16, #tpu.memory_space<vmem>>, vector<1x128x128xbf16>
    %176 = vector.shape_cast %175 : vector<1x128x128xbf16> to vector<128x128xbf16>
    %cst_158 = arith.constant dense<0.000000e+00> : vector<16x128xf32>
    %177 = tpu.matmul %174, %176, %cst_158 {dimension_numbers = #tpu.dot_dimension_numbers<[1], [0], [0], [1], [0, 0, 1, 1], [], []>} : vector<16x128xbf16>, vector<128x128xbf16>, vector<16x128xf32> -> vector<16x128xf32>
    %178 = arith.addf %170, %177 : vector<16x128xf32>
    %c5_159 = arith.constant 5 : index
    %c0_160 = arith.constant 0 : index
    %c0_161 = arith.constant 0 : index
    %179 = vector.load %arg5[%c5_159, %c0_160, %c0_161] : memref<16x16x64xbf16, #tpu.memory_space<vmem>>, vector<1x16x64xbf16>
    %180 = vector.shape_cast %179 : vector<1x16x64xbf16> to vector<16x64xbf16>
    %cst_162 = arith.constant dense<0.000000e+00> : vector<16x128xf32>
    %181 = tpu.matmul %180, %137, %cst_162 {dimension_numbers = #tpu.dot_dimension_numbers<[1], [0], [0], [1], [0, 0, 1, 1], [], []>} : vector<16x64xbf16>, vector<64x128xbf16>, vector<16x128xf32> -> vector<16x128xf32>
    %182 = arith.truncf %181 : vector<16x128xf32> to vector<16x128xbf16>
    %c5_163 = arith.constant 5 : index
    %c0_164 = arith.constant 0 : index
    %c0_165 = arith.constant 0 : index
    %183 = vector.load %arg6[%c5_163, %c0_164, %c0_165] : memref<16x128x128xbf16, #tpu.memory_space<vmem>>, vector<1x128x128xbf16>
    %184 = vector.shape_cast %183 : vector<1x128x128xbf16> to vector<128x128xbf16>
    %cst_166 = arith.constant dense<0.000000e+00> : vector<16x128xf32>
    %185 = tpu.matmul %182, %184, %cst_166 {dimension_numbers = #tpu.dot_dimension_numbers<[1], [0], [0], [1], [0, 0, 1, 1], [], []>} : vector<16x128xbf16>, vector<128x128xbf16>, vector<16x128xf32> -> vector<16x128xf32>
    %186 = arith.addf %178, %185 : vector<16x128xf32>
    %c6_167 = arith.constant 6 : index
    %c0_168 = arith.constant 0 : index
    %c0_169 = arith.constant 0 : index
    %187 = vector.load %arg5[%c6_167, %c0_168, %c0_169] : memref<16x16x64xbf16, #tpu.memory_space<vmem>>, vector<1x16x64xbf16>
    %188 = vector.shape_cast %187 : vector<1x16x64xbf16> to vector<16x64xbf16>
    %cst_170 = arith.constant dense<0.000000e+00> : vector<16x128xf32>
    %189 = tpu.matmul %188, %137, %cst_170 {dimension_numbers = #tpu.dot_dimension_numbers<[1], [0], [0], [1], [0, 0, 1, 1], [], []>} : vector<16x64xbf16>, vector<64x128xbf16>, vector<16x128xf32> -> vector<16x128xf32>
    %190 = arith.truncf %189 : vector<16x128xf32> to vector<16x128xbf16>
    %c6_171 = arith.constant 6 : index
    %c0_172 = arith.constant 0 : index
    %c0_173 = arith.constant 0 : index
    %191 = vector.load %arg6[%c6_171, %c0_172, %c0_173] : memref<16x128x128xbf16, #tpu.memory_space<vmem>>, vector<1x128x128xbf16>
    %192 = vector.shape_cast %191 : vector<1x128x128xbf16> to vector<128x128xbf16>
    %cst_174 = arith.constant dense<0.000000e+00> : vector<16x128xf32>
    %193 = tpu.matmul %190, %192, %cst_174 {dimension_numbers = #tpu.dot_dimension_numbers<[1], [0], [0], [1], [0, 0, 1, 1], [], []>} : vector<16x128xbf16>, vector<128x128xbf16>, vector<16x128xf32> -> vector<16x128xf32>
    %194 = arith.addf %186, %193 : vector<16x128xf32>
    %c7_175 = arith.constant 7 : index
    %c0_176 = arith.constant 0 : index
    %c0_177 = arith.constant 0 : index
    %195 = vector.load %arg5[%c7_175, %c0_176, %c0_177] : memref<16x16x64xbf16, #tpu.memory_space<vmem>>, vector<1x16x64xbf16>
    %196 = vector.shape_cast %195 : vector<1x16x64xbf16> to vector<16x64xbf16>
    %cst_178 = arith.constant dense<0.000000e+00> : vector<16x128xf32>
    %197 = tpu.matmul %196, %137, %cst_178 {dimension_numbers = #tpu.dot_dimension_numbers<[1], [0], [0], [1], [0, 0, 1, 1], [], []>} : vector<16x64xbf16>, vector<64x128xbf16>, vector<16x128xf32> -> vector<16x128xf32>
    %198 = arith.truncf %197 : vector<16x128xf32> to vector<16x128xbf16>
    %c7_179 = arith.constant 7 : index
    %c0_180 = arith.constant 0 : index
    %c0_181 = arith.constant 0 : index
    %199 = vector.load %arg6[%c7_179, %c0_180, %c0_181] : memref<16x128x128xbf16, #tpu.memory_space<vmem>>, vector<1x128x128xbf16>
    %200 = vector.shape_cast %199 : vector<1x128x128xbf16> to vector<128x128xbf16>
    %cst_182 = arith.constant dense<0.000000e+00> : vector<16x128xf32>
    %201 = tpu.matmul %198, %200, %cst_182 {dimension_numbers = #tpu.dot_dimension_numbers<[1], [0], [0], [1], [0, 0, 1, 1], [], []>} : vector<16x128xbf16>, vector<128x128xbf16>, vector<16x128xf32> -> vector<16x128xf32>
    %202 = arith.addf %194, %201 : vector<16x128xf32>
    %c8_183 = arith.constant 8 : index
    %c0_184 = arith.constant 0 : index
    %c0_185 = arith.constant 0 : index
    %203 = vector.load %arg5[%c8_183, %c0_184, %c0_185] : memref<16x16x64xbf16, #tpu.memory_space<vmem>>, vector<1x16x64xbf16>
    %204 = vector.shape_cast %203 : vector<1x16x64xbf16> to vector<16x64xbf16>
    %cst_186 = arith.constant dense<0.000000e+00> : vector<16x128xf32>
    %205 = tpu.matmul %204, %137, %cst_186 {dimension_numbers = #tpu.dot_dimension_numbers<[1], [0], [0], [1], [0, 0, 1, 1], [], []>} : vector<16x64xbf16>, vector<64x128xbf16>, vector<16x128xf32> -> vector<16x128xf32>
    %206 = arith.truncf %205 : vector<16x128xf32> to vector<16x128xbf16>
    %c8_187 = arith.constant 8 : index
    %c0_188 = arith.constant 0 : index
    %c0_189 = arith.constant 0 : index
    %207 = vector.load %arg6[%c8_187, %c0_188, %c0_189] : memref<16x128x128xbf16, #tpu.memory_space<vmem>>, vector<1x128x128xbf16>
    %208 = vector.shape_cast %207 : vector<1x128x128xbf16> to vector<128x128xbf16>
    %cst_190 = arith.constant dense<0.000000e+00> : vector<16x128xf32>
    %209 = tpu.matmul %206, %208, %cst_190 {dimension_numbers = #tpu.dot_dimension_numbers<[1], [0], [0], [1], [0, 0, 1, 1], [], []>} : vector<16x128xbf16>, vector<128x128xbf16>, vector<16x128xf32> -> vector<16x128xf32>
    %210 = arith.addf %202, %209 : vector<16x128xf32>
    %c9_191 = arith.constant 9 : index
    %c0_192 = arith.constant 0 : index
    %c0_193 = arith.constant 0 : index
    %211 = vector.load %arg5[%c9_191, %c0_192, %c0_193] : memref<16x16x64xbf16, #tpu.memory_space<vmem>>, vector<1x16x64xbf16>
    %212 = vector.shape_cast %211 : vector<1x16x64xbf16> to vector<16x64xbf16>
    %cst_194 = arith.constant dense<0.000000e+00> : vector<16x128xf32>
    %213 = tpu.matmul %212, %137, %cst_194 {dimension_numbers = #tpu.dot_dimension_numbers<[1], [0], [0], [1], [0, 0, 1, 1], [], []>} : vector<16x64xbf16>, vector<64x128xbf16>, vector<16x128xf32> -> vector<16x128xf32>
    %214 = arith.truncf %213 : vector<16x128xf32> to vector<16x128xbf16>
    %c9_195 = arith.constant 9 : index
    %c0_196 = arith.constant 0 : index
    %c0_197 = arith.constant 0 : index
    %215 = vector.load %arg6[%c9_195, %c0_196, %c0_197] : memref<16x128x128xbf16, #tpu.memory_space<vmem>>, vector<1x128x128xbf16>
    %216 = vector.shape_cast %215 : vector<1x128x128xbf16> to vector<128x128xbf16>
    %cst_198 = arith.constant dense<0.000000e+00> : vector<16x128xf32>
    %217 = tpu.matmul %214, %216, %cst_198 {dimension_numbers = #tpu.dot_dimension_numbers<[1], [0], [0], [1], [0, 0, 1, 1], [], []>} : vector<16x128xbf16>, vector<128x128xbf16>, vector<16x128xf32> -> vector<16x128xf32>
    %218 = arith.addf %210, %217 : vector<16x128xf32>
    %c10_199 = arith.constant 10 : index
    %c0_200 = arith.constant 0 : index
    %c0_201 = arith.constant 0 : index
    %219 = vector.load %arg5[%c10_199, %c0_200, %c0_201] : memref<16x16x64xbf16, #tpu.memory_space<vmem>>, vector<1x16x64xbf16>
    %220 = vector.shape_cast %219 : vector<1x16x64xbf16> to vector<16x64xbf16>
    %cst_202 = arith.constant dense<0.000000e+00> : vector<16x128xf32>
    %221 = tpu.matmul %220, %137, %cst_202 {dimension_numbers = #tpu.dot_dimension_numbers<[1], [0], [0], [1], [0, 0, 1, 1], [], []>} : vector<16x64xbf16>, vector<64x128xbf16>, vector<16x128xf32> -> vector<16x128xf32>
    %222 = arith.truncf %221 : vector<16x128xf32> to vector<16x128xbf16>
    %c10_203 = arith.constant 10 : index
    %c0_204 = arith.constant 0 : index
    %c0_205 = arith.constant 0 : index
    %223 = vector.load %arg6[%c10_203, %c0_204, %c0_205] : memref<16x128x128xbf16, #tpu.memory_space<vmem>>, vector<1x128x128xbf16>
    %224 = vector.shape_cast %223 : vector<1x128x128xbf16> to vector<128x128xbf16>
    %cst_206 = arith.constant dense<0.000000e+00> : vector<16x128xf32>
    %225 = tpu.matmul %222, %224, %cst_206 {dimension_numbers = #tpu.dot_dimension_numbers<[1], [0], [0], [1], [0, 0, 1, 1], [], []>} : vector<16x128xbf16>, vector<128x128xbf16>, vector<16x128xf32> -> vector<16x128xf32>
    %226 = arith.addf %218, %225 : vector<16x128xf32>
    %c11_207 = arith.constant 11 : index
    %c0_208 = arith.constant 0 : index
    %c0_209 = arith.constant 0 : index
    %227 = vector.load %arg5[%c11_207, %c0_208, %c0_209] : memref<16x16x64xbf16, #tpu.memory_space<vmem>>, vector<1x16x64xbf16>
    %228 = vector.shape_cast %227 : vector<1x16x64xbf16> to vector<16x64xbf16>
    %cst_210 = arith.constant dense<0.000000e+00> : vector<16x128xf32>
    %229 = tpu.matmul %228, %137, %cst_210 {dimension_numbers = #tpu.dot_dimension_numbers<[1], [0], [0], [1], [0, 0, 1, 1], [], []>} : vector<16x64xbf16>, vector<64x128xbf16>, vector<16x128xf32> -> vector<16x128xf32>
    %230 = arith.truncf %229 : vector<16x128xf32> to vector<16x128xbf16>
    %c11_211 = arith.constant 11 : index
    %c0_212 = arith.constant 0 : index
    %c0_213 = arith.constant 0 : index
    %231 = vector.load %arg6[%c11_211, %c0_212, %c0_213] : memref<16x128x128xbf16, #tpu.memory_space<vmem>>, vector<1x128x128xbf16>
    %232 = vector.shape_cast %231 : vector<1x128x128xbf16> to vector<128x128xbf16>
    %cst_214 = arith.constant dense<0.000000e+00> : vector<16x128xf32>
    %233 = tpu.matmul %230, %232, %cst_214 {dimension_numbers = #tpu.dot_dimension_numbers<[1], [0], [0], [1], [0, 0, 1, 1], [], []>} : vector<16x128xbf16>, vector<128x128xbf16>, vector<16x128xf32> -> vector<16x128xf32>
    %234 = arith.addf %226, %233 : vector<16x128xf32>
    %c12_215 = arith.constant 12 : index
    %c0_216 = arith.constant 0 : index
    %c0_217 = arith.constant 0 : index
    %235 = vector.load %arg5[%c12_215, %c0_216, %c0_217] : memref<16x16x64xbf16, #tpu.memory_space<vmem>>, vector<1x16x64xbf16>
    %236 = vector.shape_cast %235 : vector<1x16x64xbf16> to vector<16x64xbf16>
    %cst_218 = arith.constant dense<0.000000e+00> : vector<16x128xf32>
    %237 = tpu.matmul %236, %137, %cst_218 {dimension_numbers = #tpu.dot_dimension_numbers<[1], [0], [0], [1], [0, 0, 1, 1], [], []>} : vector<16x64xbf16>, vector<64x128xbf16>, vector<16x128xf32> -> vector<16x128xf32>
    %238 = arith.truncf %237 : vector<16x128xf32> to vector<16x128xbf16>
    %c12_219 = arith.constant 12 : index
    %c0_220 = arith.constant 0 : index
    %c0_221 = arith.constant 0 : index
    %239 = vector.load %arg6[%c12_219, %c0_220, %c0_221] : memref<16x128x128xbf16, #tpu.memory_space<vmem>>, vector<1x128x128xbf16>
    %240 = vector.shape_cast %239 : vector<1x128x128xbf16> to vector<128x128xbf16>
    %cst_222 = arith.constant dense<0.000000e+00> : vector<16x128xf32>
    %241 = tpu.matmul %238, %240, %cst_222 {dimension_numbers = #tpu.dot_dimension_numbers<[1], [0], [0], [1], [0, 0, 1, 1], [], []>} : vector<16x128xbf16>, vector<128x128xbf16>, vector<16x128xf32> -> vector<16x128xf32>
    %242 = arith.addf %234, %241 : vector<16x128xf32>
    %c13_223 = arith.constant 13 : index
    %c0_224 = arith.constant 0 : index
    %c0_225 = arith.constant 0 : index
    %243 = vector.load %arg5[%c13_223, %c0_224, %c0_225] : memref<16x16x64xbf16, #tpu.memory_space<vmem>>, vector<1x16x64xbf16>
    %244 = vector.shape_cast %243 : vector<1x16x64xbf16> to vector<16x64xbf16>
    %cst_226 = arith.constant dense<0.000000e+00> : vector<16x128xf32>
    %245 = tpu.matmul %244, %137, %cst_226 {dimension_numbers = #tpu.dot_dimension_numbers<[1], [0], [0], [1], [0, 0, 1, 1], [], []>} : vector<16x64xbf16>, vector<64x128xbf16>, vector<16x128xf32> -> vector<16x128xf32>
    %246 = arith.truncf %245 : vector<16x128xf32> to vector<16x128xbf16>
    %c13_227 = arith.constant 13 : index
    %c0_228 = arith.constant 0 : index
    %c0_229 = arith.constant 0 : index
    %247 = vector.load %arg6[%c13_227, %c0_228, %c0_229] : memref<16x128x128xbf16, #tpu.memory_space<vmem>>, vector<1x128x128xbf16>
    %248 = vector.shape_cast %247 : vector<1x128x128xbf16> to vector<128x128xbf16>
    %cst_230 = arith.constant dense<0.000000e+00> : vector<16x128xf32>
    %249 = tpu.matmul %246, %248, %cst_230 {dimension_numbers = #tpu.dot_dimension_numbers<[1], [0], [0], [1], [0, 0, 1, 1], [], []>} : vector<16x128xbf16>, vector<128x128xbf16>, vector<16x128xf32> -> vector<16x128xf32>
    %250 = arith.addf %242, %249 : vector<16x128xf32>
    %c14_231 = arith.constant 14 : index
    %c0_232 = arith.constant 0 : index
    %c0_233 = arith.constant 0 : index
    %251 = vector.load %arg5[%c14_231, %c0_232, %c0_233] : memref<16x16x64xbf16, #tpu.memory_space<vmem>>, vector<1x16x64xbf16>
    %252 = vector.shape_cast %251 : vector<1x16x64xbf16> to vector<16x64xbf16>
    %cst_234 = arith.constant dense<0.000000e+00> : vector<16x128xf32>
    %253 = tpu.matmul %252, %137, %cst_234 {dimension_numbers = #tpu.dot_dimension_numbers<[1], [0], [0], [1], [0, 0, 1, 1], [], []>} : vector<16x64xbf16>, vector<64x128xbf16>, vector<16x128xf32> -> vector<16x128xf32>
    %254 = arith.truncf %253 : vector<16x128xf32> to vector<16x128xbf16>
    %c14_235 = arith.constant 14 : index
    %c0_236 = arith.constant 0 : index
    %c0_237 = arith.constant 0 : index
    %255 = vector.load %arg6[%c14_235, %c0_236, %c0_237] : memref<16x128x128xbf16, #tpu.memory_space<vmem>>, vector<1x128x128xbf16>
    %256 = vector.shape_cast %255 : vector<1x128x128xbf16> to vector<128x128xbf16>
    %cst_238 = arith.constant dense<0.000000e+00> : vector<16x128xf32>
    %257 = tpu.matmul %254, %256, %cst_238 {dimension_numbers = #tpu.dot_dimension_numbers<[1], [0], [0], [1], [0, 0, 1, 1], [], []>} : vector<16x128xbf16>, vector<128x128xbf16>, vector<16x128xf32> -> vector<16x128xf32>
    %258 = arith.addf %250, %257 : vector<16x128xf32>
    %c15_239 = arith.constant 15 : index
    %c0_240 = arith.constant 0 : index
    %c0_241 = arith.constant 0 : index
    %259 = vector.load %arg5[%c15_239, %c0_240, %c0_241] : memref<16x16x64xbf16, #tpu.memory_space<vmem>>, vector<1x16x64xbf16>
    %260 = vector.shape_cast %259 : vector<1x16x64xbf16> to vector<16x64xbf16>
    %cst_242 = arith.constant dense<0.000000e+00> : vector<16x128xf32>
    %261 = tpu.matmul %260, %137, %cst_242 {dimension_numbers = #tpu.dot_dimension_numbers<[1], [0], [0], [1], [0, 0, 1, 1], [], []>} : vector<16x64xbf16>, vector<64x128xbf16>, vector<16x128xf32> -> vector<16x128xf32>
    %262 = arith.truncf %261 : vector<16x128xf32> to vector<16x128xbf16>
    %c15_243 = arith.constant 15 : index
    %c0_244 = arith.constant 0 : index
    %c0_245 = arith.constant 0 : index
    %263 = vector.load %arg6[%c15_243, %c0_244, %c0_245] : memref<16x128x128xbf16, #tpu.memory_space<vmem>>, vector<1x128x128xbf16>
    %264 = vector.shape_cast %263 : vector<1x128x128xbf16> to vector<128x128xbf16>
    %cst_246 = arith.constant dense<0.000000e+00> : vector<16x128xf32>
    %265 = tpu.matmul %262, %264, %cst_246 {dimension_numbers = #tpu.dot_dimension_numbers<[1], [0], [0], [1], [0, 0, 1, 1], [], []>} : vector<16x128xbf16>, vector<128x128xbf16>, vector<16x128xf32> -> vector<16x128xf32>
    %266 = arith.addf %258, %265 : vector<16x128xf32>
    %c0_247 = arith.constant 0 : index
    %c0_248 = arith.constant 0 : index
    %267 = vector.load %arg7[%c0_247, %c0_248] : memref<1x128xf32, #tpu.memory_space<vmem>>, vector<1x128xf32>
    %268 = vector.broadcast %267 : vector<1x128xf32> to vector<16x128xf32>
    %269 = arith.addf %266, %268 : vector<16x128xf32>
    %cst_249 = arith.constant 0.000000e+00 : f32
    %270 = vector.broadcast %cst_249 : f32 to vector<16x128xf32>
    %271 = arith.maximumf %269, %270 : vector<16x128xf32>
    %272 = arith.truncf %271 : vector<16x128xf32> to vector<16x128xbf16>
    %cst_250 = arith.constant 0.000000e+00 : f32
    %273 = vector.broadcast %cst_250 : f32 to vector<4x256xf32>
    %c0_251 = arith.constant 0 : index
    %c0_252 = arith.constant 0 : index
    %c0_253 = arith.constant 0 : index
    %274 = vector.load %arg8[%c0_251, %c0_252, %c0_253] : memref<16x4x16xbf16, #tpu.memory_space<vmem>>, vector<1x4x16xbf16>
    %275 = vector.shape_cast %274 : vector<1x4x16xbf16> to vector<4x16xbf16>
    %cst_254 = arith.constant dense<0.000000e+00> : vector<4x128xf32>
    %276 = tpu.matmul %275, %272, %cst_254 {dimension_numbers = #tpu.dot_dimension_numbers<[1], [0], [0], [1], [0, 0, 1, 1], [], []>} : vector<4x16xbf16>, vector<16x128xbf16>, vector<4x128xf32> -> vector<4x128xf32>
    %277 = arith.truncf %276 : vector<4x128xf32> to vector<4x128xbf16>
    %c0_255 = arith.constant 0 : index
    %c0_256 = arith.constant 0 : index
    %c0_257 = arith.constant 0 : index
    %278 = vector.load %arg9[%c0_255, %c0_256, %c0_257] : memref<16x128x256xbf16, #tpu.memory_space<vmem>>, vector<1x128x256xbf16>
    %279 = vector.shape_cast %278 : vector<1x128x256xbf16> to vector<128x256xbf16>
    %cst_258 = arith.constant dense<0.000000e+00> : vector<4x256xf32>
    %280 = tpu.matmul %277, %279, %cst_258 {dimension_numbers = #tpu.dot_dimension_numbers<[1], [0], [0], [1], [0, 0, 1, 1], [], []>} : vector<4x128xbf16>, vector<128x256xbf16>, vector<4x256xf32> -> vector<4x256xf32>
    %281 = arith.addf %273, %280 : vector<4x256xf32>
    %c1_259 = arith.constant 1 : index
    %c0_260 = arith.constant 0 : index
    %c0_261 = arith.constant 0 : index
    %282 = vector.load %arg8[%c1_259, %c0_260, %c0_261] : memref<16x4x16xbf16, #tpu.memory_space<vmem>>, vector<1x4x16xbf16>
    %283 = vector.shape_cast %282 : vector<1x4x16xbf16> to vector<4x16xbf16>
    %cst_262 = arith.constant dense<0.000000e+00> : vector<4x128xf32>
    %284 = tpu.matmul %283, %272, %cst_262 {dimension_numbers = #tpu.dot_dimension_numbers<[1], [0], [0], [1], [0, 0, 1, 1], [], []>} : vector<4x16xbf16>, vector<16x128xbf16>, vector<4x128xf32> -> vector<4x128xf32>
    %285 = arith.truncf %284 : vector<4x128xf32> to vector<4x128xbf16>
    %c1_263 = arith.constant 1 : index
    %c0_264 = arith.constant 0 : index
    %c0_265 = arith.constant 0 : index
    %286 = vector.load %arg9[%c1_263, %c0_264, %c0_265] : memref<16x128x256xbf16, #tpu.memory_space<vmem>>, vector<1x128x256xbf16>
    %287 = vector.shape_cast %286 : vector<1x128x256xbf16> to vector<128x256xbf16>
    %cst_266 = arith.constant dense<0.000000e+00> : vector<4x256xf32>
    %288 = tpu.matmul %285, %287, %cst_266 {dimension_numbers = #tpu.dot_dimension_numbers<[1], [0], [0], [1], [0, 0, 1, 1], [], []>} : vector<4x128xbf16>, vector<128x256xbf16>, vector<4x256xf32> -> vector<4x256xf32>
    %289 = arith.addf %281, %288 : vector<4x256xf32>
    %c2_267 = arith.constant 2 : index
    %c0_268 = arith.constant 0 : index
    %c0_269 = arith.constant 0 : index
    %290 = vector.load %arg8[%c2_267, %c0_268, %c0_269] : memref<16x4x16xbf16, #tpu.memory_space<vmem>>, vector<1x4x16xbf16>
    %291 = vector.shape_cast %290 : vector<1x4x16xbf16> to vector<4x16xbf16>
    %cst_270 = arith.constant dense<0.000000e+00> : vector<4x128xf32>
    %292 = tpu.matmul %291, %272, %cst_270 {dimension_numbers = #tpu.dot_dimension_numbers<[1], [0], [0], [1], [0, 0, 1, 1], [], []>} : vector<4x16xbf16>, vector<16x128xbf16>, vector<4x128xf32> -> vector<4x128xf32>
    %293 = arith.truncf %292 : vector<4x128xf32> to vector<4x128xbf16>
    %c2_271 = arith.constant 2 : index
    %c0_272 = arith.constant 0 : index
    %c0_273 = arith.constant 0 : index
    %294 = vector.load %arg9[%c2_271, %c0_272, %c0_273] : memref<16x128x256xbf16, #tpu.memory_space<vmem>>, vector<1x128x256xbf16>
    %295 = vector.shape_cast %294 : vector<1x128x256xbf16> to vector<128x256xbf16>
    %cst_274 = arith.constant dense<0.000000e+00> : vector<4x256xf32>
    %296 = tpu.matmul %293, %295, %cst_274 {dimension_numbers = #tpu.dot_dimension_numbers<[1], [0], [0], [1], [0, 0, 1, 1], [], []>} : vector<4x128xbf16>, vector<128x256xbf16>, vector<4x256xf32> -> vector<4x256xf32>
    %297 = arith.addf %289, %296 : vector<4x256xf32>
    %c3_275 = arith.constant 3 : index
    %c0_276 = arith.constant 0 : index
    %c0_277 = arith.constant 0 : index
    %298 = vector.load %arg8[%c3_275, %c0_276, %c0_277] : memref<16x4x16xbf16, #tpu.memory_space<vmem>>, vector<1x4x16xbf16>
    %299 = vector.shape_cast %298 : vector<1x4x16xbf16> to vector<4x16xbf16>
    %cst_278 = arith.constant dense<0.000000e+00> : vector<4x128xf32>
    %300 = tpu.matmul %299, %272, %cst_278 {dimension_numbers = #tpu.dot_dimension_numbers<[1], [0], [0], [1], [0, 0, 1, 1], [], []>} : vector<4x16xbf16>, vector<16x128xbf16>, vector<4x128xf32> -> vector<4x128xf32>
    %301 = arith.truncf %300 : vector<4x128xf32> to vector<4x128xbf16>
    %c3_279 = arith.constant 3 : index
    %c0_280 = arith.constant 0 : index
    %c0_281 = arith.constant 0 : index
    %302 = vector.load %arg9[%c3_279, %c0_280, %c0_281] : memref<16x128x256xbf16, #tpu.memory_space<vmem>>, vector<1x128x256xbf16>
    %303 = vector.shape_cast %302 : vector<1x128x256xbf16> to vector<128x256xbf16>
    %cst_282 = arith.constant dense<0.000000e+00> : vector<4x256xf32>
    %304 = tpu.matmul %301, %303, %cst_282 {dimension_numbers = #tpu.dot_dimension_numbers<[1], [0], [0], [1], [0, 0, 1, 1], [], []>} : vector<4x128xbf16>, vector<128x256xbf16>, vector<4x256xf32> -> vector<4x256xf32>
    %305 = arith.addf %297, %304 : vector<4x256xf32>
    %c4_283 = arith.constant 4 : index
    %c0_284 = arith.constant 0 : index
    %c0_285 = arith.constant 0 : index
    %306 = vector.load %arg8[%c4_283, %c0_284, %c0_285] : memref<16x4x16xbf16, #tpu.memory_space<vmem>>, vector<1x4x16xbf16>
    %307 = vector.shape_cast %306 : vector<1x4x16xbf16> to vector<4x16xbf16>
    %cst_286 = arith.constant dense<0.000000e+00> : vector<4x128xf32>
    %308 = tpu.matmul %307, %272, %cst_286 {dimension_numbers = #tpu.dot_dimension_numbers<[1], [0], [0], [1], [0, 0, 1, 1], [], []>} : vector<4x16xbf16>, vector<16x128xbf16>, vector<4x128xf32> -> vector<4x128xf32>
    %309 = arith.truncf %308 : vector<4x128xf32> to vector<4x128xbf16>
    %c4_287 = arith.constant 4 : index
    %c0_288 = arith.constant 0 : index
    %c0_289 = arith.constant 0 : index
    %310 = vector.load %arg9[%c4_287, %c0_288, %c0_289] : memref<16x128x256xbf16, #tpu.memory_space<vmem>>, vector<1x128x256xbf16>
    %311 = vector.shape_cast %310 : vector<1x128x256xbf16> to vector<128x256xbf16>
    %cst_290 = arith.constant dense<0.000000e+00> : vector<4x256xf32>
    %312 = tpu.matmul %309, %311, %cst_290 {dimension_numbers = #tpu.dot_dimension_numbers<[1], [0], [0], [1], [0, 0, 1, 1], [], []>} : vector<4x128xbf16>, vector<128x256xbf16>, vector<4x256xf32> -> vector<4x256xf32>
    %313 = arith.addf %305, %312 : vector<4x256xf32>
    %c5_291 = arith.constant 5 : index
    %c0_292 = arith.constant 0 : index
    %c0_293 = arith.constant 0 : index
    %314 = vector.load %arg8[%c5_291, %c0_292, %c0_293] : memref<16x4x16xbf16, #tpu.memory_space<vmem>>, vector<1x4x16xbf16>
    %315 = vector.shape_cast %314 : vector<1x4x16xbf16> to vector<4x16xbf16>
    %cst_294 = arith.constant dense<0.000000e+00> : vector<4x128xf32>
    %316 = tpu.matmul %315, %272, %cst_294 {dimension_numbers = #tpu.dot_dimension_numbers<[1], [0], [0], [1], [0, 0, 1, 1], [], []>} : vector<4x16xbf16>, vector<16x128xbf16>, vector<4x128xf32> -> vector<4x128xf32>
    %317 = arith.truncf %316 : vector<4x128xf32> to vector<4x128xbf16>
    %c5_295 = arith.constant 5 : index
    %c0_296 = arith.constant 0 : index
    %c0_297 = arith.constant 0 : index
    %318 = vector.load %arg9[%c5_295, %c0_296, %c0_297] : memref<16x128x256xbf16, #tpu.memory_space<vmem>>, vector<1x128x256xbf16>
    %319 = vector.shape_cast %318 : vector<1x128x256xbf16> to vector<128x256xbf16>
    %cst_298 = arith.constant dense<0.000000e+00> : vector<4x256xf32>
    %320 = tpu.matmul %317, %319, %cst_298 {dimension_numbers = #tpu.dot_dimension_numbers<[1], [0], [0], [1], [0, 0, 1, 1], [], []>} : vector<4x128xbf16>, vector<128x256xbf16>, vector<4x256xf32> -> vector<4x256xf32>
    %321 = arith.addf %313, %320 : vector<4x256xf32>
    %c6_299 = arith.constant 6 : index
    %c0_300 = arith.constant 0 : index
    %c0_301 = arith.constant 0 : index
    %322 = vector.load %arg8[%c6_299, %c0_300, %c0_301] : memref<16x4x16xbf16, #tpu.memory_space<vmem>>, vector<1x4x16xbf16>
    %323 = vector.shape_cast %322 : vector<1x4x16xbf16> to vector<4x16xbf16>
    %cst_302 = arith.constant dense<0.000000e+00> : vector<4x128xf32>
    %324 = tpu.matmul %323, %272, %cst_302 {dimension_numbers = #tpu.dot_dimension_numbers<[1], [0], [0], [1], [0, 0, 1, 1], [], []>} : vector<4x16xbf16>, vector<16x128xbf16>, vector<4x128xf32> -> vector<4x128xf32>
    %325 = arith.truncf %324 : vector<4x128xf32> to vector<4x128xbf16>
    %c6_303 = arith.constant 6 : index
    %c0_304 = arith.constant 0 : index
    %c0_305 = arith.constant 0 : index
    %326 = vector.load %arg9[%c6_303, %c0_304, %c0_305] : memref<16x128x256xbf16, #tpu.memory_space<vmem>>, vector<1x128x256xbf16>
    %327 = vector.shape_cast %326 : vector<1x128x256xbf16> to vector<128x256xbf16>
    %cst_306 = arith.constant dense<0.000000e+00> : vector<4x256xf32>
    %328 = tpu.matmul %325, %327, %cst_306 {dimension_numbers = #tpu.dot_dimension_numbers<[1], [0], [0], [1], [0, 0, 1, 1], [], []>} : vector<4x128xbf16>, vector<128x256xbf16>, vector<4x256xf32> -> vector<4x256xf32>
    %329 = arith.addf %321, %328 : vector<4x256xf32>
    %c7_307 = arith.constant 7 : index
    %c0_308 = arith.constant 0 : index
    %c0_309 = arith.constant 0 : index
    %330 = vector.load %arg8[%c7_307, %c0_308, %c0_309] : memref<16x4x16xbf16, #tpu.memory_space<vmem>>, vector<1x4x16xbf16>
    %331 = vector.shape_cast %330 : vector<1x4x16xbf16> to vector<4x16xbf16>
    %cst_310 = arith.constant dense<0.000000e+00> : vector<4x128xf32>
    %332 = tpu.matmul %331, %272, %cst_310 {dimension_numbers = #tpu.dot_dimension_numbers<[1], [0], [0], [1], [0, 0, 1, 1], [], []>} : vector<4x16xbf16>, vector<16x128xbf16>, vector<4x128xf32> -> vector<4x128xf32>
    %333 = arith.truncf %332 : vector<4x128xf32> to vector<4x128xbf16>
    %c7_311 = arith.constant 7 : index
    %c0_312 = arith.constant 0 : index
    %c0_313 = arith.constant 0 : index
    %334 = vector.load %arg9[%c7_311, %c0_312, %c0_313] : memref<16x128x256xbf16, #tpu.memory_space<vmem>>, vector<1x128x256xbf16>
    %335 = vector.shape_cast %334 : vector<1x128x256xbf16> to vector<128x256xbf16>
    %cst_314 = arith.constant dense<0.000000e+00> : vector<4x256xf32>
    %336 = tpu.matmul %333, %335, %cst_314 {dimension_numbers = #tpu.dot_dimension_numbers<[1], [0], [0], [1], [0, 0, 1, 1], [], []>} : vector<4x128xbf16>, vector<128x256xbf16>, vector<4x256xf32> -> vector<4x256xf32>
    %337 = arith.addf %329, %336 : vector<4x256xf32>
    %c8_315 = arith.constant 8 : index
    %c0_316 = arith.constant 0 : index
    %c0_317 = arith.constant 0 : index
    %338 = vector.load %arg8[%c8_315, %c0_316, %c0_317] : memref<16x4x16xbf16, #tpu.memory_space<vmem>>, vector<1x4x16xbf16>
    %339 = vector.shape_cast %338 : vector<1x4x16xbf16> to vector<4x16xbf16>
    %cst_318 = arith.constant dense<0.000000e+00> : vector<4x128xf32>
    %340 = tpu.matmul %339, %272, %cst_318 {dimension_numbers = #tpu.dot_dimension_numbers<[1], [0], [0], [1], [0, 0, 1, 1], [], []>} : vector<4x16xbf16>, vector<16x128xbf16>, vector<4x128xf32> -> vector<4x128xf32>
    %341 = arith.truncf %340 : vector<4x128xf32> to vector<4x128xbf16>
    %c8_319 = arith.constant 8 : index
    %c0_320 = arith.constant 0 : index
    %c0_321 = arith.constant 0 : index
    %342 = vector.load %arg9[%c8_319, %c0_320, %c0_321] : memref<16x128x256xbf16, #tpu.memory_space<vmem>>, vector<1x128x256xbf16>
    %343 = vector.shape_cast %342 : vector<1x128x256xbf16> to vector<128x256xbf16>
    %cst_322 = arith.constant dense<0.000000e+00> : vector<4x256xf32>
    %344 = tpu.matmul %341, %343, %cst_322 {dimension_numbers = #tpu.dot_dimension_numbers<[1], [0], [0], [1], [0, 0, 1, 1], [], []>} : vector<4x128xbf16>, vector<128x256xbf16>, vector<4x256xf32> -> vector<4x256xf32>
    %345 = arith.addf %337, %344 : vector<4x256xf32>
    %c9_323 = arith.constant 9 : index
    %c0_324 = arith.constant 0 : index
    %c0_325 = arith.constant 0 : index
    %346 = vector.load %arg8[%c9_323, %c0_324, %c0_325] : memref<16x4x16xbf16, #tpu.memory_space<vmem>>, vector<1x4x16xbf16>
    %347 = vector.shape_cast %346 : vector<1x4x16xbf16> to vector<4x16xbf16>
    %cst_326 = arith.constant dense<0.000000e+00> : vector<4x128xf32>
    %348 = tpu.matmul %347, %272, %cst_326 {dimension_numbers = #tpu.dot_dimension_numbers<[1], [0], [0], [1], [0, 0, 1, 1], [], []>} : vector<4x16xbf16>, vector<16x128xbf16>, vector<4x128xf32> -> vector<4x128xf32>
    %349 = arith.truncf %348 : vector<4x128xf32> to vector<4x128xbf16>
    %c9_327 = arith.constant 9 : index
    %c0_328 = arith.constant 0 : index
    %c0_329 = arith.constant 0 : index
    %350 = vector.load %arg9[%c9_327, %c0_328, %c0_329] : memref<16x128x256xbf16, #tpu.memory_space<vmem>>, vector<1x128x256xbf16>
    %351 = vector.shape_cast %350 : vector<1x128x256xbf16> to vector<128x256xbf16>
    %cst_330 = arith.constant dense<0.000000e+00> : vector<4x256xf32>
    %352 = tpu.matmul %349, %351, %cst_330 {dimension_numbers = #tpu.dot_dimension_numbers<[1], [0], [0], [1], [0, 0, 1, 1], [], []>} : vector<4x128xbf16>, vector<128x256xbf16>, vector<4x256xf32> -> vector<4x256xf32>
    %353 = arith.addf %345, %352 : vector<4x256xf32>
    %c10_331 = arith.constant 10 : index
    %c0_332 = arith.constant 0 : index
    %c0_333 = arith.constant 0 : index
    %354 = vector.load %arg8[%c10_331, %c0_332, %c0_333] : memref<16x4x16xbf16, #tpu.memory_space<vmem>>, vector<1x4x16xbf16>
    %355 = vector.shape_cast %354 : vector<1x4x16xbf16> to vector<4x16xbf16>
    %cst_334 = arith.constant dense<0.000000e+00> : vector<4x128xf32>
    %356 = tpu.matmul %355, %272, %cst_334 {dimension_numbers = #tpu.dot_dimension_numbers<[1], [0], [0], [1], [0, 0, 1, 1], [], []>} : vector<4x16xbf16>, vector<16x128xbf16>, vector<4x128xf32> -> vector<4x128xf32>
    %357 = arith.truncf %356 : vector<4x128xf32> to vector<4x128xbf16>
    %c10_335 = arith.constant 10 : index
    %c0_336 = arith.constant 0 : index
    %c0_337 = arith.constant 0 : index
    %358 = vector.load %arg9[%c10_335, %c0_336, %c0_337] : memref<16x128x256xbf16, #tpu.memory_space<vmem>>, vector<1x128x256xbf16>
    %359 = vector.shape_cast %358 : vector<1x128x256xbf16> to vector<128x256xbf16>
    %cst_338 = arith.constant dense<0.000000e+00> : vector<4x256xf32>
    %360 = tpu.matmul %357, %359, %cst_338 {dimension_numbers = #tpu.dot_dimension_numbers<[1], [0], [0], [1], [0, 0, 1, 1], [], []>} : vector<4x128xbf16>, vector<128x256xbf16>, vector<4x256xf32> -> vector<4x256xf32>
    %361 = arith.addf %353, %360 : vector<4x256xf32>
    %c11_339 = arith.constant 11 : index
    %c0_340 = arith.constant 0 : index
    %c0_341 = arith.constant 0 : index
    %362 = vector.load %arg8[%c11_339, %c0_340, %c0_341] : memref<16x4x16xbf16, #tpu.memory_space<vmem>>, vector<1x4x16xbf16>
    %363 = vector.shape_cast %362 : vector<1x4x16xbf16> to vector<4x16xbf16>
    %cst_342 = arith.constant dense<0.000000e+00> : vector<4x128xf32>
    %364 = tpu.matmul %363, %272, %cst_342 {dimension_numbers = #tpu.dot_dimension_numbers<[1], [0], [0], [1], [0, 0, 1, 1], [], []>} : vector<4x16xbf16>, vector<16x128xbf16>, vector<4x128xf32> -> vector<4x128xf32>
    %365 = arith.truncf %364 : vector<4x128xf32> to vector<4x128xbf16>
    %c11_343 = arith.constant 11 : index
    %c0_344 = arith.constant 0 : index
    %c0_345 = arith.constant 0 : index
    %366 = vector.load %arg9[%c11_343, %c0_344, %c0_345] : memref<16x128x256xbf16, #tpu.memory_space<vmem>>, vector<1x128x256xbf16>
    %367 = vector.shape_cast %366 : vector<1x128x256xbf16> to vector<128x256xbf16>
    %cst_346 = arith.constant dense<0.000000e+00> : vector<4x256xf32>
    %368 = tpu.matmul %365, %367, %cst_346 {dimension_numbers = #tpu.dot_dimension_numbers<[1], [0], [0], [1], [0, 0, 1, 1], [], []>} : vector<4x128xbf16>, vector<128x256xbf16>, vector<4x256xf32> -> vector<4x256xf32>
    %369 = arith.addf %361, %368 : vector<4x256xf32>
    %c12_347 = arith.constant 12 : index
    %c0_348 = arith.constant 0 : index
    %c0_349 = arith.constant 0 : index
    %370 = vector.load %arg8[%c12_347, %c0_348, %c0_349] : memref<16x4x16xbf16, #tpu.memory_space<vmem>>, vector<1x4x16xbf16>
    %371 = vector.shape_cast %370 : vector<1x4x16xbf16> to vector<4x16xbf16>
    %cst_350 = arith.constant dense<0.000000e+00> : vector<4x128xf32>
    %372 = tpu.matmul %371, %272, %cst_350 {dimension_numbers = #tpu.dot_dimension_numbers<[1], [0], [0], [1], [0, 0, 1, 1], [], []>} : vector<4x16xbf16>, vector<16x128xbf16>, vector<4x128xf32> -> vector<4x128xf32>
    %373 = arith.truncf %372 : vector<4x128xf32> to vector<4x128xbf16>
    %c12_351 = arith.constant 12 : index
    %c0_352 = arith.constant 0 : index
    %c0_353 = arith.constant 0 : index
    %374 = vector.load %arg9[%c12_351, %c0_352, %c0_353] : memref<16x128x256xbf16, #tpu.memory_space<vmem>>, vector<1x128x256xbf16>
    %375 = vector.shape_cast %374 : vector<1x128x256xbf16> to vector<128x256xbf16>
    %cst_354 = arith.constant dense<0.000000e+00> : vector<4x256xf32>
    %376 = tpu.matmul %373, %375, %cst_354 {dimension_numbers = #tpu.dot_dimension_numbers<[1], [0], [0], [1], [0, 0, 1, 1], [], []>} : vector<4x128xbf16>, vector<128x256xbf16>, vector<4x256xf32> -> vector<4x256xf32>
    %377 = arith.addf %369, %376 : vector<4x256xf32>
    %c13_355 = arith.constant 13 : index
    %c0_356 = arith.constant 0 : index
    %c0_357 = arith.constant 0 : index
    %378 = vector.load %arg8[%c13_355, %c0_356, %c0_357] : memref<16x4x16xbf16, #tpu.memory_space<vmem>>, vector<1x4x16xbf16>
    %379 = vector.shape_cast %378 : vector<1x4x16xbf16> to vector<4x16xbf16>
    %cst_358 = arith.constant dense<0.000000e+00> : vector<4x128xf32>
    %380 = tpu.matmul %379, %272, %cst_358 {dimension_numbers = #tpu.dot_dimension_numbers<[1], [0], [0], [1], [0, 0, 1, 1], [], []>} : vector<4x16xbf16>, vector<16x128xbf16>, vector<4x128xf32> -> vector<4x128xf32>
    %381 = arith.truncf %380 : vector<4x128xf32> to vector<4x128xbf16>
    %c13_359 = arith.constant 13 : index
    %c0_360 = arith.constant 0 : index
    %c0_361 = arith.constant 0 : index
    %382 = vector.load %arg9[%c13_359, %c0_360, %c0_361] : memref<16x128x256xbf16, #tpu.memory_space<vmem>>, vector<1x128x256xbf16>
    %383 = vector.shape_cast %382 : vector<1x128x256xbf16> to vector<128x256xbf16>
    %cst_362 = arith.constant dense<0.000000e+00> : vector<4x256xf32>
    %384 = tpu.matmul %381, %383, %cst_362 {dimension_numbers = #tpu.dot_dimension_numbers<[1], [0], [0], [1], [0, 0, 1, 1], [], []>} : vector<4x128xbf16>, vector<128x256xbf16>, vector<4x256xf32> -> vector<4x256xf32>
    %385 = arith.addf %377, %384 : vector<4x256xf32>
    %c14_363 = arith.constant 14 : index
    %c0_364 = arith.constant 0 : index
    %c0_365 = arith.constant 0 : index
    %386 = vector.load %arg8[%c14_363, %c0_364, %c0_365] : memref<16x4x16xbf16, #tpu.memory_space<vmem>>, vector<1x4x16xbf16>
    %387 = vector.shape_cast %386 : vector<1x4x16xbf16> to vector<4x16xbf16>
    %cst_366 = arith.constant dense<0.000000e+00> : vector<4x128xf32>
    %388 = tpu.matmul %387, %272, %cst_366 {dimension_numbers = #tpu.dot_dimension_numbers<[1], [0], [0], [1], [0, 0, 1, 1], [], []>} : vector<4x16xbf16>, vector<16x128xbf16>, vector<4x128xf32> -> vector<4x128xf32>
    %389 = arith.truncf %388 : vector<4x128xf32> to vector<4x128xbf16>
    %c14_367 = arith.constant 14 : index
    %c0_368 = arith.constant 0 : index
    %c0_369 = arith.constant 0 : index
    %390 = vector.load %arg9[%c14_367, %c0_368, %c0_369] : memref<16x128x256xbf16, #tpu.memory_space<vmem>>, vector<1x128x256xbf16>
    %391 = vector.shape_cast %390 : vector<1x128x256xbf16> to vector<128x256xbf16>
    %cst_370 = arith.constant dense<0.000000e+00> : vector<4x256xf32>
    %392 = tpu.matmul %389, %391, %cst_370 {dimension_numbers = #tpu.dot_dimension_numbers<[1], [0], [0], [1], [0, 0, 1, 1], [], []>} : vector<4x128xbf16>, vector<128x256xbf16>, vector<4x256xf32> -> vector<4x256xf32>
    %393 = arith.addf %385, %392 : vector<4x256xf32>
    %c15_371 = arith.constant 15 : index
    %c0_372 = arith.constant 0 : index
    %c0_373 = arith.constant 0 : index
    %394 = vector.load %arg8[%c15_371, %c0_372, %c0_373] : memref<16x4x16xbf16, #tpu.memory_space<vmem>>, vector<1x4x16xbf16>
    %395 = vector.shape_cast %394 : vector<1x4x16xbf16> to vector<4x16xbf16>
    %cst_374 = arith.constant dense<0.000000e+00> : vector<4x128xf32>
    %396 = tpu.matmul %395, %272, %cst_374 {dimension_numbers = #tpu.dot_dimension_numbers<[1], [0], [0], [1], [0, 0, 1, 1], [], []>} : vector<4x16xbf16>, vector<16x128xbf16>, vector<4x128xf32> -> vector<4x128xf32>
    %397 = arith.truncf %396 : vector<4x128xf32> to vector<4x128xbf16>
    %c15_375 = arith.constant 15 : index
    %c0_376 = arith.constant 0 : index
    %c0_377 = arith.constant 0 : index
    %398 = vector.load %arg9[%c15_375, %c0_376, %c0_377] : memref<16x128x256xbf16, #tpu.memory_space<vmem>>, vector<1x128x256xbf16>
    %399 = vector.shape_cast %398 : vector<1x128x256xbf16> to vector<128x256xbf16>
    %cst_378 = arith.constant dense<0.000000e+00> : vector<4x256xf32>
    %400 = tpu.matmul %397, %399, %cst_378 {dimension_numbers = #tpu.dot_dimension_numbers<[1], [0], [0], [1], [0, 0, 1, 1], [], []>} : vector<4x128xbf16>, vector<128x256xbf16>, vector<4x256xf32> -> vector<4x256xf32>
    %401 = arith.addf %393, %400 : vector<4x256xf32>
    %c0_379 = arith.constant 0 : index
    %c0_380 = arith.constant 0 : index
    %402 = vector.load %arg10[%c0_379, %c0_380] : memref<1x256xf32, #tpu.memory_space<vmem>>, vector<1x256xf32>
    %403 = vector.broadcast %402 : vector<1x256xf32> to vector<4x256xf32>
    %404 = arith.addf %401, %403 : vector<4x256xf32>
    %cst_381 = arith.constant 0.000000e+00 : f32
    %405 = vector.broadcast %cst_381 : f32 to vector<4x256xf32>
    %406 = arith.maximumf %404, %405 : vector<4x256xf32>
    %c0_382 = arith.constant 0 : index
    %c0_383 = arith.constant 0 : index
    %c0_384 = arith.constant 0 : index
    %407 = vector.load %arg11[%c0_382, %c0_383, %c0_384] : memref<1x4x256xf32, #tpu.memory_space<vmem>>, vector<1x4x256xf32>
    %408 = vector.shape_cast %407 : vector<1x4x256xf32> to vector<4x256xf32>
    %409 = vector.shape_cast %406 : vector<4x256xf32> to vector<1x4x256xf32>
    tpu.vector_store %arg11[%c0_382, %c0_383, %c0_384], %409 {strides = array<i32>} : memref<1x4x256xf32, #tpu.memory_space<vmem>>, vector<1x4x256xf32>,
    return
  }
  func.func @transform_0(%arg0: i32) -> (i32, i32, i32) {
    %c0_i32 = arith.constant 0 : i32
    %c0_i32_0 = arith.constant 0 : i32
    %c0_i32_1 = arith.constant 0 : i32
    return %arg0, %c0_i32, %c0_i32_0 : i32, i32, i32
  }
  func.func @transform_1(%arg0: i32) -> (i32, i32, i32) {
    %c0_i32 = arith.constant 0 : i32
    %c0_i32_0 = arith.constant 0 : i32
    %c0_i32_1 = arith.constant 0 : i32
    %c0_i32_2 = arith.constant 0 : i32
    return %c0_i32, %c0_i32_0, %c0_i32_1 : i32, i32, i32
  }
  func.func @transform_2(%arg0: i32) -> (i32, i32, i32) {
    %c0_i32 = arith.constant 0 : i32
    %c0_i32_0 = arith.constant 0 : i32
    %c0_i32_1 = arith.constant 0 : i32
    %c0_i32_2 = arith.constant 0 : i32
    return %c0_i32, %c0_i32_0, %c0_i32_1 : i32, i32, i32
  }
  func.func @transform_3(%arg0: i32) -> (i32, i32) {
    %c0_i32 = arith.constant 0 : i32
    %c0_i32_0 = arith.constant 0 : i32
    %c0_i32_1 = arith.constant 0 : i32
    return %c0_i32, %c0_i32_0 : i32, i32
  }
  func.func @transform_4(%arg0: i32) -> (i32, i32, i32) {
    %c0_i32 = arith.constant 0 : i32
    %c0_i32_0 = arith.constant 0 : i32
    %c0_i32_1 = arith.constant 0 : i32
    %c0_i32_2 = arith.constant 0 : i32
    return %c0_i32, %c0_i32_0, %c0_i32_1 : i32, i32, i32
  }
  func.func @transform_5(%arg0: i32) -> (i32, i32, i32) {
    %c0_i32 = arith.constant 0 : i32
    %c0_i32_0 = arith.constant 0 : i32
    %c0_i32_1 = arith.constant 0 : i32
    %c0_i32_2 = arith.constant 0 : i32
    return %c0_i32, %c0_i32_0, %c0_i32_1 : i32, i32, i32
  }
  func.func @transform_6(%arg0: i32) -> (i32, i32) {
    %c0_i32 = arith.constant 0 : i32
    %c0_i32_0 = arith.constant 0 : i32
    %c0_i32_1 = arith.constant 0 : i32
    return %c0_i32, %c0_i32_0 : i32, i32
  }
  func.func @transform_7(%arg0: i32) -> (i32, i32, i32) {
    %c0_i32 = arith.constant 0 : i32
    %c0_i32_0 = arith.constant 0 : i32
    %c0_i32_1 = arith.constant 0 : i32
    %c0_i32_2 = arith.constant 0 : i32
    return %c0_i32, %c0_i32_0, %c0_i32_1 : i32, i32, i32
  }
  func.func @transform_8(%arg0: i32) -> (i32, i32, i32) {
    %c0_i32 = arith.constant 0 : i32
    %c0_i32_0 = arith.constant 0 : i32
    %c0_i32_1 = arith.constant 0 : i32
    %c0_i32_2 = arith.constant 0 : i32
    return %c0_i32, %c0_i32_0, %c0_i32_1 : i32, i32, i32
  }
  func.func @transform_9(%arg0: i32) -> (i32, i32) {
    %c0_i32 = arith.constant 0 : i32
    %c0_i32_0 = arith.constant 0 : i32
    %c0_i32_1 = arith.constant 0 : i32
    return %c0_i32, %c0_i32_0 : i32, i32
  }
  func.func @transform_10(%arg0: i32) -> (i32, i32, i32) {
    %c0_i32 = arith.constant 0 : i32
    %c0_i32_0 = arith.constant 0 : i32
    %c0_i32_1 = arith.constant 0 : i32
    return %arg0, %c0_i32, %c0_i32_0 : i32, i32, i32
  }
}

</mosaic_0001>

<llo_original>
// kernel: encoder_forward.1
$region0: #{encoder_forward.1}
  #allocation0 [shape = 'u32[]', space=smem, size = 0x4, offset = 0x4, fixed_abs, tag = 'smem constant byte address 0x4 - core index']
  #allocation1 [shape = 'u32[144,128]{1,0:T(1,128)}', space=vmem, size = 0x12000, scoped, tag = 'internal scratch']
  %s0 = inlined_call_operand.vmem [shape: f32[2,256,4], index: 0, kind: input, shape index: {}]
  %s1 = inlined_call_operand.hbm [shape: bf16[16,64,256], index: 1, kind: input, shape index: {}]
  %s2 = inlined_call_operand.vmem [shape: bf16[16,4,128], index: 2, kind: input, shape index: {}]
  %s3 = inlined_call_operand.vmem [shape: f32[1,128], index: 3, kind: input, shape index: {}]
  %s4 = inlined_call_operand.vmem [shape: bf16[16,16,64], index: 4, kind: input, shape index: {}]
  %s5 = inlined_call_operand.hbm [shape: bf16[16,128,128], index: 5, kind: input, shape index: {}]
  %s6 = inlined_call_operand.vmem [shape: f32[1,128], index: 6, kind: input, shape index: {}]
  %s7 = inlined_call_operand.vmem [shape: bf16[16,4,16], index: 7, kind: input, shape index: {}]
  %s8 = inlined_call_operand.hbm [shape: bf16[16,128,256], index: 8, kind: input, shape index: {}]
  %s9 = inlined_call_operand.vmem [shape: f32[1,256], index: 9, kind: input, shape index: {}]
  %s10 = inlined_call_operand.vmem [shape: f32[2,4,256], index: 10, kind: output, shape index: {}]
  %s11 = sld [smem:[#allocation0]]
  $region85: #{encoder_forward.1} parent=0
    _
  %s13 = ssub.s32 1, %s11
  %s14 = scalar_select 0, %s13, %s11
  $region1: #{encoder_forward.1} parent=0
    #allocation2 [shape = 'u8[524288]{0}', space=vmem, size = 0x80000, scoped, tag = 'input window, operand 1, single buffered']
    #allocation3 [shape = 's32[2]{0}', space=sflag, size = 0x8, scoped, tag = 'scoped memory for encoder_forward.1']
    #allocation4 [shape = 'u8[524288]{0}', space=vmem, size = 0x80000, scoped, tag = 'input window, operand 5, single buffered']
    #allocation5 [shape = 's32[1]{0}', space=sflag, size = 0x4, scoped, tag = 'scoped memory for encoder_forward.1']
    #allocation6 [shape = 'u8[1048576]{0}', space=vmem, size = 0x100000, scoped, tag = 'input window, operand 8, single buffered']
    %15 = vsyncpa [#allocation3], 0
    %16 = vsyncpa [#allocation5], 0
    loop: start=0, step=1, limit=4
    $region2: #{encoder_forward.1} parent=1 // loop_pre_header
      _
    $region3: #{encoder_forward.1} parent=1 // loop_header
      %s18 = sphi 0, %s22
      %p19 = scmp.ge.s32.totalorder %s18, 4
      %s28 = sphi 0, %s30
      %s31 = sphi 0, %s28
      %s32 = sphi 0, %s31
      %s48 = sphi 0, %s32
      %s52 = sphi 0, %s52
      %s54 = sphi 0, %s52
      %s55 = sphi 0, %s54
      %s69 = sphi 0, %s55
      %s73 = sphi 0, %s73
      %s75 = sphi 0, %s73
      %s76 = sphi 0, %s75
      %s90 = sphi 0, %s76
      %s94 = sphi 0, %s94
      %s96 = sphi 0, %s94
      %s97 = sphi 0, %s96
      %s111 = sphi 0, %s97
      %s115 = sphi 0, %s115
      %s117 = sphi 0, %s115
      %s118 = sphi 0, %s117
      %s132 = sphi 0, %s118
      %s136 = sphi 0, %s136
      %s138 = sphi 0, %s136
      %s139 = sphi 0, %s138
      %s153 = sphi 0, %s139
      %s157 = sphi 0, %s157
      %s159 = sphi 0, %s157
      %s160 = sphi 0, %s159
      %s174 = sphi 0, %s160
      %s178 = sphi 0, %s178
      %s180 = sphi 0, %s178
      %s181 = sphi 0, %s180
      %s195 = sphi 0, %s181
      %s199 = sphi 0, %s199
      %s201 = sphi 0, %s199
      %s202 = sphi 0, %s201
      %s216 = sphi 0, %s202
      %s220 = sphi 0, %s220
      %s222 = sphi 0, %s220
      %s223 = sphi 0, %s222
      %s237 = sphi 0, %s223
      %s243 = sphi 0, %s245
      %s246 = sphi 0, %s243
      %s247 = sphi 0, %s246
      %s263 = sphi 0, %s247
    $region4: #{encoder_forward.1} parent=1 // loop_header_branch
      %21 = sbr.rel (%p19) target = $region8
    $region5: #{encoder_forward.1} parent=1 // loop_body
      %s23 = ssub.s32 %s18, 1
      %s24 = ssub.s32 %s18, 2
      %s25 = sadd.s32 %s18, 1
      %s26 = ssub.s32 %s18, %s25
      %p27 = scmp.eq.s32.totalorder %s26, 0
      %s29 = sadd.s32 %s28, 1
      %s30 = scalar_select %p27, %s28, %s29
      %p33 = pneg %p27
      %p34 = scmp.eq.s32.totalorder %s18, 1
      %p35 = por %p33, %p34
      %p36 = scmp.ne.s32.totalorder %s28, %s31
      %p37 = scmp.eq.s32.totalorder %s18, 0
      %p38 = por %p36, %p37
      %p39 = scmp.ne.s32.totalorder %s28, %s31
      %p40 = scmp.eq.s32.totalorder %s23, 1
      %p41 = por %p39, %p40
      %p42 = scmp.ne.s32.totalorder %s31, %s32
      %p43 = scmp.eq.s32.totalorder %s23, 0
      %p44 = por %p42, %p43
      %p45 = scmp.ne.s32.totalorder %s31, %s32
      %p46 = scmp.eq.s32.totalorder %s24, 1
      %p47 = por %p45, %p46
      %p49 = scmp.ne.s32.totalorder %s32, %s48
      %p50 = scmp.eq.s32.totalorder %s24, 0
      %p51 = por %p49, %p50
      %s53 = sadd.s32 %s52, 1
      %p56 = scmp.eq.s32.totalorder %s18, 1
      %p57 = scmp.ne.s32.totalorder %s52, %s54
      %p58 = scmp.eq.s32.totalorder %s18, 0
      %p59 = por %p57, %p58
      %p60 = scmp.ne.s32.totalorder %s52, %s54
      %p61 = scmp.eq.s32.totalorder %s23, 1
      %p62 = por %p60, %p61
      %p63 = scmp.ne.s32.totalorder %s54, %s55
      %p64 = scmp.eq.s32.totalorder %s23, 0
      %p65 = por %p63, %p64
      %p66 = scmp.ne.s32.totalorder %s54, %s55
      %p67 = scmp.eq.s32.totalorder %s24, 1
      %p68 = por %p66, %p67
      %p70 = scmp.ne.s32.totalorder %s55, %s69
      %p71 = scmp.eq.s32.totalorder %s24, 0
      %p72 = por %p70, %p71
      %s74 = sadd.s32 %s73, 1
      %p77 = scmp.eq.s32.totalorder %s18, 1
      %p78 = scmp.ne.s32.totalorder %s73, %s75
      %p79 = scmp.eq.s32.totalorder %s18, 0
      %p80 = por %p78, %p79
      %p81 = scmp.ne.s32.totalorder %s73, %s75
      %p82 = scmp.eq.s32.totalorder %s23, 1
      %p83 = por %p81, %p82
      %p84 = scmp.ne.s32.totalorder %s75, %s76
      %p85 = scmp.eq.s32.totalorder %s23, 0
      %p86 = por %p84, %p85
      %p87 = scmp.ne.s32.totalorder %s75, %s76
      %p88 = scmp.eq.s32.totalorder %s24, 1
      %p89 = por %p87, %p88
      %p91 = scmp.ne.s32.totalorder %s76, %s90
      %p92 = scmp.eq.s32.totalorder %s24, 0
      %p93 = por %p91, %p92
      %s95 = sadd.s32 %s94, 1
      %p98 = scmp.eq.s32.totalorder %s18, 1
      %p99 = scmp.ne.s32.totalorder %s94, %s96
      %p100 = scmp.eq.s32.totalorder %s18, 0
      %p101 = por %p99, %p100
      %p102 = scmp.ne.s32.totalorder %s94, %s96
      %p103 = scmp.eq.s32.totalorder %s23, 1
      %p104 = por %p102, %p103
      %p105 = scmp.ne.s32.totalorder %s96, %s97
      %p106 = scmp.eq.s32.totalorder %s23, 0
      %p107 = por %p105, %p106
      %p108 = scmp.ne.s32.totalorder %s96, %s97
      %p109 = scmp.eq.s32.totalorder %s24, 1
      %p110 = por %p108, %p109
      %p112 = scmp.ne.s32.totalorder %s97, %s111
      %p113 = scmp.eq.s32.totalorder %s24, 0
      %p114 = por %p112, %p113
      %s116 = sadd.s32 %s115, 1
      %p119 = scmp.eq.s32.totalorder %s18, 1
      %p120 = scmp.ne.s32.totalorder %s115, %s117
      %p121 = scmp.eq.s32.totalorder %s18, 0
      %p122 = por %p120, %p121
      %p123 = scmp.ne.s32.totalorder %s115, %s117
      %p124 = scmp.eq.s32.totalorder %s23, 1
      %p125 = por %p123, %p124
      %p126 = scmp.ne.s32.totalorder %s117, %s118
      %p127 = scmp.eq.s32.totalorder %s23, 0
      %p128 = por %p126, %p127
      %p129 = scmp.ne.s32.totalorder %s117, %s118
      %p130 = scmp.eq.s32.totalorder %s24, 1
      %p131 = por %p129, %p130
      %p133 = scmp.ne.s32.totalorder %s118, %s132
      %p134 = scmp.eq.s32.totalorder %s24, 0
      %p135 = por %p133, %p134
      %s137 = sadd.s32 %s136, 1
      %p140 = scmp.eq.s32.totalorder %s18, 1
      %p141 = scmp.ne.s32.totalorder %s136, %s138
      %p142 = scmp.eq.s32.totalorder %s18, 0
      %p143 = por %p141, %p142
      %p144 = scmp.ne.s32.totalorder %s136, %s138
      %p145 = scmp.eq.s32.totalorder %s23, 1
      %p146 = por %p144, %p145
      %p147 = scmp.ne.s32.totalorder %s138, %s139
      %p148 = scmp.eq.s32.totalorder %s23, 0
      %p149 = por %p147, %p148
      %p150 = scmp.ne.s32.totalorder %s138, %s139
      %p151 = scmp.eq.s32.totalorder %s24, 1
      %p152 = por %p150, %p151
      %p154 = scmp.ne.s32.totalorder %s139, %s153
      %p155 = scmp.eq.s32.totalorder %s24, 0
      %p156 = por %p154, %p155
      %s158 = sadd.s32 %s157, 1
      %p161 = scmp.eq.s32.totalorder %s18, 1
      %p162 = scmp.ne.s32.totalorder %s157, %s159
      %p163 = scmp.eq.s32.totalorder %s18, 0
      %p164 = por %p162, %p163
      %p165 = scmp.ne.s32.totalorder %s157, %s159
      %p166 = scmp.eq.s32.totalorder %s23, 1
      %p167 = por %p165, %p166
      %p168 = scmp.ne.s32.totalorder %s159, %s160
      %p169 = scmp.eq.s32.totalorder %s23, 0
      %p170 = por %p168, %p169
      %p171 = scmp.ne.s32.totalorder %s159, %s160
      %p172 = scmp.eq.s32.totalorder %s24, 1
      %p173 = por %p171, %p172
      %p175 = scmp.ne.s32.totalorder %s160, %s174
      %p176 = scmp.eq.s32.totalorder %s24, 0
      %p177 = por %p175, %p176
      %s179 = sadd.s32 %s178, 1
      %p182 = scmp.eq.s32.totalorder %s18, 1
      %p183 = scmp.ne.s32.totalorder %s178, %s180
      %p184 = scmp.eq.s32.totalorder %s18, 0
      %p185 = por %p183, %p184
      %p186 = scmp.ne.s32.totalorder %s178, %s180
      %p187 = scmp.eq.s32.totalorder %s23, 1
      %p188 = por %p186, %p187
      %p189 = scmp.ne.s32.totalorder %s180, %s181
      %p190 = scmp.eq.s32.totalorder %s23, 0
      %p191 = por %p189, %p190
      %p192 = scmp.ne.s32.totalorder %s180, %s181
      %p193 = scmp.eq.s32.totalorder %s24, 1
      %p194 = por %p192, %p193
      %p196 = scmp.ne.s32.totalorder %s181, %s195
      %p197 = scmp.eq.s32.totalorder %s24, 0
      %p198 = por %p196, %p197
      %s200 = sadd.s32 %s199, 1
      %p203 = scmp.eq.s32.totalorder %s18, 1
      %p204 = scmp.ne.s32.totalorder %s199, %s201
      %p205 = scmp.eq.s32.totalorder %s18, 0
      %p206 = por %p204, %p205
      %p207 = scmp.ne.s32.totalorder %s199, %s201
      %p208 = scmp.eq.s32.totalorder %s23, 1
      %p209 = por %p207, %p208
      %p210 = scmp.ne.s32.totalorder %s201, %s202
      %p211 = scmp.eq.s32.totalorder %s23, 0
      %p212 = por %p210, %p211
      %p213 = scmp.ne.s32.totalorder %s201, %s202
      %p214 = scmp.eq.s32.totalorder %s24, 1
      %p215 = por %p213, %p214
      %p217 = scmp.ne.s32.totalorder %s202, %s216
      %p218 = scmp.eq.s32.totalorder %s24, 0
      %p219 = por %p217, %p218
      %s221 = sadd.s32 %s220, 1
      %p224 = scmp.eq.s32.totalorder %s18, 1
      %p225 = scmp.ne.s32.totalorder %s220, %s222
      %p226 = scmp.eq.s32.totalorder %s18, 0
      %p227 = por %p225, %p226
      %p228 = scmp.ne.s32.totalorder %s220, %s222
      %p229 = scmp.eq.s32.totalorder %s23, 1
      %p230 = por %p228, %p229
      %p231 = scmp.ne.s32.totalorder %s222, %s223
      %p232 = scmp.eq.s32.totalorder %s23, 0
      %p233 = por %p231, %p232
      %p234 = scmp.ne.s32.totalorder %s222, %s223
      %p235 = scmp.eq.s32.totalorder %s24, 1
      %p236 = por %p234, %p235
      %p238 = scmp.ne.s32.totalorder %s223, %s237
      %p239 = scmp.eq.s32.totalorder %s24, 0
      %p240 = por %p238, %p239
      %s241 = ssub.s32 %s18, %s25
      %p242 = scmp.eq.s32.totalorder %s241, 0
      %s244 = sadd.s32 %s243, 1
      %s245 = scalar_select %p242, %s243, %s244
      %p248 = pneg %p242
      %p249 = scmp.eq.s32.totalorder %s18, 1
      %p250 = por %p248, %p249
      %p251 = scmp.ne.s32.totalorder %s243, %s246
      %p252 = scmp.eq.s32.totalorder %s18, 0
      %p253 = por %p251, %p252
      %p254 = scmp.ne.s32.totalorder %s243, %s246
      %p255 = scmp.eq.s32.totalorder %s23, 1
      %p256 = por %p254, %p255
      %p257 = scmp.ne.s32.totalorder %s246, %s247
      %p258 = scmp.eq.s32.totalorder %s23, 0
      %p259 = por %p257, %p258
      %p260 = scmp.ne.s32.totalorder %s246, %s247
      %p261 = scmp.eq.s32.totalorder %s24, 1
      %p262 = por %p260, %p261
      %p264 = scmp.ne.s32.totalorder %s247, %s263
      %p265 = scmp.eq.s32.totalorder %s24, 0
      %p266 = por %p264, %p265
      %p267 = scmp.le.s32.totalorder 1, %s18
      %p268 = scmp.lt.s32.totalorder %s18, 3
      %p269 = pnand %p267, %p268
      %p270 = pneg %p269
      // Predicated region
      $region9: #{encoder_forward.1} parent=5 // pred_check
        _
      $region10: #{encoder_forward.1} parent=5 // pred_check_branch
        %272 = sbr.rel (%p269) target = $region12
      $region11: #{encoder_forward.1} parent=5 // pred_region
        %s273 = ssub.s32 %s18, 1
        // Predicated region
        $region13: #{encoder_forward.1} parent=11 // pred_check
          %p274 = pneg %p65
        $region14: #{encoder_forward.1} parent=11 // pred_check_branch
          %276 = sbr.rel (%p274) target = $region16
        $region15: #{encoder_forward.1} parent=11 // pred_region
          %s278 = ssub.s32 16384, 16384
          %279 = vsyncadd [#allocation3], %s278
          %s280 = sshll.u32 [#allocation2], 4
          %s281 = int_to_ptr.vmem [resolvable:$true] %s280
          %286 = dma.hbm_to_vmem [thread:$0]  %s1, 16384, %s281, [#allocation3], 128, 128, 8
        $region16: #{encoder_forward.1} parent=11 // pred_fallthru
          _
        // Predicated region
        $region17: #{encoder_forward.1} parent=11 // pred_check
          %p287 = pneg %p86
        $region18: #{encoder_forward.1} parent=11 // pred_check_branch
          %289 = sbr.rel (%p287) target = $region20
        $region19: #{encoder_forward.1} parent=11 // pred_region
          _
        $region20: #{encoder_forward.1} parent=11 // pred_fallthru
          _
        // Predicated region
        $region21: #{encoder_forward.1} parent=11 // pred_check
          %p290 = pneg %p107
        $region22: #{encoder_forward.1} parent=11 // pred_check_branch
          %292 = sbr.rel (%p290) target = $region24
        $region23: #{encoder_forward.1} parent=11 // pred_region
          _
        $region24: #{encoder_forward.1} parent=11 // pred_fallthru
          _
        // Predicated region
        $region25: #{encoder_forward.1} parent=11 // pred_check
          %p293 = pneg %p128
        $region26: #{encoder_forward.1} parent=11 // pred_check_branch
          %295 = sbr.rel (%p293) target = $region28
        $region27: #{encoder_forward.1} parent=11 // pred_region
          _
        $region28: #{encoder_forward.1} parent=11 // pred_fallthru
          _
        // Predicated region
        $region29: #{encoder_forward.1} parent=11 // pred_check
          %p296 = pneg %p149
        $region30: #{encoder_forward.1} parent=11 // pred_check_branch
          %298 = sbr.rel (%p296) target = $region32
        $region31: #{encoder_forward.1} parent=11 // pred_region
          %s300 = ssub.s32 16384, 16384
          %301 = vsyncadd [#allocation5], %s300
          %s302 = sshll.u32 [#allocation4], 4
          %s303 = int_to_ptr.vmem [resolvable:$true] %s302
          %308 = dma.hbm_to_vmem [thread:$0]  %s5, 16384, %s303, [#allocation5], 64, 64, 4
        $region32: #{encoder_forward.1} parent=11 // pred_fallthru
          _
        // Predicated region
        $region33: #{encoder_forward.1} parent=11 // pred_check
          %p309 = pneg %p170
        $region34: #{encoder_forward.1} parent=11 // pred_check_branch
          %311 = sbr.rel (%p309) target = $region36
        $region35: #{encoder_forward.1} parent=11 // pred_region
          _
        $region36: #{encoder_forward.1} parent=11 // pred_fallthru
          _
        // Predicated region
        $region37: #{encoder_forward.1} parent=11 // pred_check
          %p312 = pneg %p191
        $region38: #{encoder_forward.1} parent=11 // pred_check_branch
          %314 = sbr.rel (%p312) target = $region40
        $region39: #{encoder_forward.1} parent=11 // pred_region
          _
        $region40: #{encoder_forward.1} parent=11 // pred_fallthru
          _
        // Predicated region
        $region41: #{encoder_forward.1} parent=11 // pred_check
          %p315 = pneg %p212
        $region42: #{encoder_forward.1} parent=11 // pred_check_branch
          %317 = sbr.rel (%p315) target = $region44
        $region43: #{encoder_forward.1} parent=11 // pred_region
          %s319 = ssub.s32 32768, 32768
          %320 = vsyncadd [#allocation5], %s319
          %s321 = sshll.u32 [#allocation6], 4
          %s322 = int_to_ptr.vmem [resolvable:$true] %s321
          %327 = dma.hbm_to_vmem [thread:$0]  %s8, 32768, %s322, [#allocation5], 128, 128, 8
        $region44: #{encoder_forward.1} parent=11 // pred_fallthru
          _
        // Predicated region
        $region45: #{encoder_forward.1} parent=11 // pred_check
          %p328 = pneg %p233
        $region46: #{encoder_forward.1} parent=11 // pred_check_branch
          %330 = sbr.rel (%p328) target = $region48
        $region47: #{encoder_forward.1} parent=11 // pred_region
          _
        $region48: #{encoder_forward.1} parent=11 // pred_fallthru
          _
      $region12: #{encoder_forward.1} parent=5 // pred_fallthru
        _
      %p331 = scmp.lt.s32.totalorder %s18, 2
      // Predicated region
      $region49: #{encoder_forward.1} parent=5 // pred_check
        %p332 = pneg %p331
      $region50: #{encoder_forward.1} parent=5 // pred_check_branch
        %334 = sbr.rel (%p332) target = $region52
      $region51: #{encoder_forward.1} parent=5 // pred_region
        // Predicated region
        $region53: #{encoder_forward.1} parent=51 // pred_check
          %p335 = pneg %p38
        $region54: #{encoder_forward.1} parent=51 // pred_check_branch
          %337 = sbr.rel (%p335) target = $region56
        $region55: #{encoder_forward.1} parent=51 // pred_region
          %p338 = scmp.lt.s32.totalorder %s18, 1
          %s339 = scalar_select %p338, %s18, 1
          %s340 = smul.addr %s339, 32
          %s341 = smul.addr %s340, 8
          %s342 = scalar_lea.vmem %s0, %s341
        $region56: #{encoder_forward.1} parent=51 // pred_fallthru
          _
      $region52: #{encoder_forward.1} parent=5 // pred_fallthru
        _
      %p343 = scmp.le.s32.totalorder 1, %s18
      %p344 = scmp.lt.s32.totalorder %s18, 3
      %p345 = pnand %p343, %p344
      %p346 = pneg %p345
      // Predicated region
      $region57: #{encoder_forward.1} parent=5 // pred_check
        _
      $region58: #{encoder_forward.1} parent=5 // pred_check_branch
        %348 = sbr.rel (%p345) target = $region60
      $region59: #{encoder_forward.1} parent=5 // pred_region
        %s349 = ssub.s32 %s18, 1
        // Predicated region
        $region61: #{encoder_forward.1} parent=59 // pred_check
          %p350 = pneg %p65
        $region62: #{encoder_forward.1} parent=59 // pred_check_branch
          %352 = sbr.rel (%p350) target = $region64
        $region63: #{encoder_forward.1} parent=59 // pred_region
          %353 = dma.done [#allocation3], 16384
        $region64: #{encoder_forward.1} parent=59 // pred_fallthru
          _
        // Predicated region
        $region65: #{encoder_forward.1} parent=59 // pred_check
          %p354 = pneg %p149
        $region66: #{encoder_forward.1} parent=59 // pred_check_branch
          %356 = sbr.rel (%p354) target = $region68
        $region67: #{encoder_forward.1} parent=59 // pred_region
          %357 = dma.done [#allocation5], 16384
        $region68: #{encoder_forward.1} parent=59 // pred_fallthru
          _
        // Predicated region
        $region69: #{encoder_forward.1} parent=59 // pred_check
          %p358 = pneg %p212
        $region70: #{encoder_forward.1} parent=59 // pred_check_branch
          %360 = sbr.rel (%p358) target = $region72
        $region71: #{encoder_forward.1} parent=59 // pred_region
          %361 = dma.done [#allocation5], 32768
        $region72: #{encoder_forward.1} parent=59 // pred_fallthru
          _
        %p362 = scmp.lt.s32.totalorder %s23, 1
        %s363 = scalar_select %p362, %s23, 1
        %s364 = smul.addr %s363, 32
        %s365 = smul.addr %s364, 8
        %s366 = scalar_lea.vmem %s0, %s365
        %p367 = pneg %p44
        %p368 = pneg %p41
        %p369 = pneg %p65
        %p370 = pneg %p62
        %p371 = pneg %p86
        %p372 = pneg %p83
        %p373 = pneg %p107
        %p374 = pneg %p104
        %p375 = pneg %p128
        %p376 = pneg %p125
        %p377 = pneg %p149
        %p378 = pneg %p146
        %p379 = pneg %p170
        %p380 = pneg %p167
        %p381 = pneg %p191
        %p382 = pneg %p188
        %p383 = pneg %p212
        %p384 = pneg %p209
        %p385 = pneg %p233
        %p386 = pneg %p230
        %p387 = pneg %p259
        %p388 = pneg %p256
        %p389 = scmp.lt.s32.totalorder %s23, 1
        %s390 = scalar_select %p389, %s23, 1
        %s391 = smul.addr %s390, 2
        %s392 = smul.addr %s391, 4
        %s393 = scalar_lea.vmem %s10, %s392
        %p394 = scmp.lt.s32.totalorder %s23, 1
        %s395 = scalar_select %p394, %s23, 1
        %s396 = smul.addr %s395, 32
        %s397 = smul.addr %s396, 8
        %s398 = scalar_lea.vmem %s0, %s397
        %p399 = scmp.lt.s32.totalorder %s23, 1
        %s400 = scalar_select %p399, %s23, 1
        %s401 = smul.addr %s400, 2
        %s402 = smul.addr %s401, 4
        %s403 = scalar_lea.vmem %s10, %s402
        %v405 = vld [vmem:[%s398] sm:$0xff]
        %v406 = vld [vmem:[%s398 + $0x8] sm:$0xff]
        %v407 = vld [vmem:[%s398 + $0x10] sm:$0xff]
        %v408 = vld [vmem:[%s398 + $0x18] sm:$0xff]
        %v409 = vld [vmem:[%s398 + $0x20] sm:$0xff]
        %v410 = vld [vmem:[%s398 + $0x28] sm:$0xff]
        %v411 = vld [vmem:[%s398 + $0x30] sm:$0xff]
        %v412 = vld [vmem:[%s398 + $0x38] sm:$0xff]
        %v413 = vld [vmem:[%s398 + $0x40] sm:$0xff]
        %v414 = vld [vmem:[%s398 + $0x48] sm:$0xff]
        %v415 = vld [vmem:[%s398 + $0x50] sm:$0xff]
        %v416 = vld [vmem:[%s398 + $0x58] sm:$0xff]
        %v417 = vld [vmem:[%s398 + $0x60] sm:$0xff]
        %v418 = vld [vmem:[%s398 + $0x68] sm:$0xff]
        %v419 = vld [vmem:[%s398 + $0x70] sm:$0xff]
        %v420 = vld [vmem:[%s398 + $0x78] sm:$0xff]
        %v421 = vld [vmem:[%s398 + $0x80] sm:$0xff]
        %v422 = vld [vmem:[%s398 + $0x88] sm:$0xff]
        %v423 = vld [vmem:[%s398 + $0x90] sm:$0xff]
        %v424 = vld [vmem:[%s398 + $0x98] sm:$0xff]
        %v425 = vld [vmem:[%s398 + $0xa0] sm:$0xff]
        %v426 = vld [vmem:[%s398 + $0xa8] sm:$0xff]
        %v427 = vld [vmem:[%s398 + $0xb0] sm:$0xff]
        %v428 = vld [vmem:[%s398 + $0xb8] sm:$0xff]
        %v429 = vld [vmem:[%s398 + $0xc0] sm:$0xff]
        %v430 = vld [vmem:[%s398 + $0xc8] sm:$0xff]
        %v431 = vld [vmem:[%s398 + $0xd0] sm:$0xff]
        %v432 = vld [vmem:[%s398 + $0xd8] sm:$0xff]
        %v433 = vld [vmem:[%s398 + $0xe0] sm:$0xff]
        %v434 = vld [vmem:[%s398 + $0xe8] sm:$0xff]
        %v435 = vld [vmem:[%s398 + $0xf0] sm:$0xff]
        %v436 = vld [vmem:[%s398 + $0xf8] sm:$0xff]
        %v437 = vpack.c.bf16 %v406, %v405
        %v438 = vpack.c.bf16 %v408, %v407
        %v439 = vpack.c.bf16 %v410, %v409
        %v440 = vpack.c.bf16 %v412, %v411
        %v441 = vpack.c.bf16 %v414, %v413
        %v442 = vpack.c.bf16 %v416, %v415
        %v443 = vpack.c.bf16 %v418, %v417
        %v444 = vpack.c.bf16 %v420, %v419
        %v445 = vpack.c.bf16 %v422, %v421
        %v446 = vpack.c.bf16 %v424, %v423
        %v447 = vpack.c.bf16 %v426, %v425
        %v448 = vpack.c.bf16 %v428, %v427
        %v449 = vpack.c.bf16 %v430, %v429
        %v450 = vpack.c.bf16 %v432, %v431
        %v451 = vpack.c.bf16 %v434, %v433
        %v452 = vpack.c.bf16 %v436, %v435
        %v453 = vld [vmem:[#allocation2] sm:$0xff]
        %v454 = vld [vmem:[#allocation2 + $0x8] sm:$0xff]
        %v455 = vld [vmem:[#allocation2 + $0x10] sm:$0xff]
        %v456 = vld [vmem:[#allocation2 + $0x18] sm:$0xff]
        %v457 = vld [vmem:[#allocation2 + $0x20] sm:$0xff]
        %v458 = vld [vmem:[#allocation2 + $0x28] sm:$0xff]
        %v459 = vld [vmem:[#allocation2 + $0x30] sm:$0xff]
        %v460 = vld [vmem:[#allocation2 + $0x38] sm:$0xff]
        %v469 = vunpack.c.l.b16 %v453
        %v470 = vunpack.c.h.b16 %v453
        %v471 = vunpack.c.l.b16 %v454
        %v472 = vunpack.c.h.b16 %v454
        %v473 = vunpack.c.l.b16 %v455
        %v474 = vunpack.c.h.b16 %v455
        %v475 = vunpack.c.l.b16 %v456
        %v476 = vunpack.c.h.b16 %v456
        %v477 = vunpack.c.l.b16 %v457
        %v478 = vunpack.c.h.b16 %v457
        %v479 = vunpack.c.l.b16 %v458
        %v480 = vunpack.c.h.b16 %v458
        %v481 = vunpack.c.l.b16 %v459
        %v482 = vunpack.c.h.b16 %v459
        %v483 = vunpack.c.l.b16 %v460
        %v484 = vunpack.c.h.b16 %v460
        %v485 = vpack.c.b16 %v471, %v469
        %v486 = vpack.c.b16 %v472, %v470
        %v487 = vpack.c.b16 %v475, %v473
        %v488 = vpack.c.b16 %v476, %v474
        %v489 = vpack.c.b16 %v479, %v477
        %v490 = vpack.c.b16 %v480, %v478
        %v491 = vpack.c.b16 %v483, %v481
        %v492 = vpack.c.b16 %v484, %v482
        %501 = vmatprep.subr.bf16.mxu0 0
        %502 = vmatpush1.bf16.msra.mxu0 %v437
        %503 = vmatprep.subr.bf16.mxu0 0
        %504 = vmatpush1.bf16.msra.mxu0 %v438
        %505 = vmatprep.subr.bf16.mxu0 0
        %506 = vmatpush1.bf16.msra.mxu0 %v439
        %507 = vmatprep.subr.bf16.mxu0 0
        %508 = vmatpush1.bf16.msra.mxu0 %v440
        %509 = vmatprep.subr.bf16.mxu0 0
        %510 = vmatpush1.bf16.msra.mxu0 %v441
        %511 = vmatprep.subr.bf16.mxu0 0
        %512 = vmatpush1.bf16.msra.mxu0 %v442
        %513 = vmatprep.subr.bf16.mxu0 0
        %514 = vmatpush1.bf16.msra.mxu0 %v443
        %515 = vmatprep.subr.bf16.mxu0 0
        %516 = vmatpush1.bf16.msra.mxu0 %v444
        %517 = vmatprep.subr.bf16.mxu0 0
        %518 = vmatpush1.bf16.msra.mxu0 %v445
        %519 = vmatprep.subr.bf16.mxu0 0
        %520 = vmatpush1.bf16.msra.mxu0 %v446
        %521 = vmatprep.subr.bf16.mxu0 0
        %522 = vmatpush1.bf16.msra.mxu0 %v447
        %523 = vmatprep.subr.bf16.mxu0 0
        %524 = vmatpush1.bf16.msra.mxu0 %v448
        %525 = vmatprep.subr.bf16.mxu0 0
        %526 = vmatpush1.bf16.msra.mxu0 %v449
        %527 = vmatprep.subr.bf16.mxu0 0
        %528 = vmatpush1.bf16.msra.mxu0 %v450
        %529 = vmatprep.subr.bf16.mxu0 0
        %530 = vmatpush1.bf16.msra.mxu0 %v451
        %531 = vmatprep.subr.bf16.mxu0 0
        %532 = vmatpush1.bf16.msra.mxu0 %v452
        %533 = vmatprep.mubr.bf16.mxu0 %v486
        %534 = vmatmul.mubr.bf16.gmra.mrb[0].mxu0 %v485
        %v535 = vpop.f32.mrb[0].mxu0
        %v536 = vadd.f32 0.0, %v535
        %v537 = vpop.f32.mrb[0].mxu0
        %v538 = vpop.f32.mrb[0].mxu0
        %v539 = vadd.f32 0.0, %v538
        %v540 = vpop.f32.mrb[0].mxu0
        %541 = vmatprep.mubr.bf16.mxu0 %v488
        %542 = vmatmul.mubr.bf16.gmra.mrb[0].mxu0 %v487
        %v543 = vpop.f32.mrb[0].mxu0
        %v544 = vadd.f32 0.0, %v543
        %v545 = vpop.f32.mrb[0].mxu0
        %v546 = vpop.f32.mrb[0].mxu0
        %v547 = vadd.f32 0.0, %v546
        %v548 = vpop.f32.mrb[0].mxu0
        %549 = vmatprep.mubr.bf16.mxu0 %v490
        %550 = vmatmul.mubr.bf16.gmra.mrb[0].mxu0 %v489
        %v551 = vpop.f32.mrb[0].mxu0
        %v552 = vadd.f32 0.0, %v551
        %v553 = vpop.f32.mrb[0].mxu0
        %v554 = vpop.f32.mrb[0].mxu0
        %v555 = vadd.f32 0.0, %v554
        %v556 = vpop.f32.mrb[0].mxu0
        %557 = vmatprep.mubr.bf16.mxu0 %v492
        %558 = vmatmul.mubr.bf16.gmra.mrb[0].mxu0 %v491
        %v559 = vpop.f32.mrb[0].mxu0
        %v560 = vadd.f32 0.0, %v559
        %v561 = vpop.f32.mrb[0].mxu0
        %v562 = vpop.f32.mrb[0].mxu0
        %v563 = vadd.f32 0.0, %v562
        %v564 = vpop.f32.mrb[0].mxu0
        %565 = vdwg.mxu0
        %v566 = vpack.c.bf16 %v539, %v536
        %v567 = vpack.c.bf16 %v547, %v544
        %v568 = vpack.c.bf16 %v555, %v552
        %v569 = vpack.c.bf16 %v563, %v560
        %v570 = vld [vmem:[%s2] sm:$0x3]
        %s571 = scalar_lea.vmem [#allocation2], 64
        %v572 = vld [vmem:[%s571] sm:$0xff]
        %v573 = vld [vmem:[%s571 + $0x8] sm:$0xff]
        %v574 = vld [vmem:[%s571 + $0x10] sm:$0xff]
        %v575 = vld [vmem:[%s571 + $0x18] sm:$0xff]
        %v576 = vld [vmem:[%s571 + $0x20] sm:$0xff]
        %v577 = vld [vmem:[%s571 + $0x28] sm:$0xff]
        %v578 = vld [vmem:[%s571 + $0x30] sm:$0xff]
        %v579 = vld [vmem:[%s571 + $0x38] sm:$0xff]
        %v588 = vunpack.c.l.b16 %v572
        %v589 = vunpack.c.h.b16 %v572
        %v590 = vunpack.c.l.b16 %v573
        %v591 = vunpack.c.h.b16 %v573
        %v592 = vunpack.c.l.b16 %v574
        %v593 = vunpack.c.h.b16 %v574
        %v594 = vunpack.c.l.b16 %v575
        %v595 = vunpack.c.h.b16 %v575
        %v596 = vunpack.c.l.b16 %v576
        %v597 = vunpack.c.h.b16 %v576
        %v598 = vunpack.c.l.b16 %v577
        %v599 = vunpack.c.h.b16 %v577
        %v600 = vunpack.c.l.b16 %v578
        %v601 = vunpack.c.h.b16 %v578
        %v602 = vunpack.c.l.b16 %v579
        %v603 = vunpack.c.h.b16 %v579
        %v604 = vpack.c.b16 %v590, %v588
        %v605 = vpack.c.b16 %v591, %v589
        %v606 = vpack.c.b16 %v594, %v592
        %v607 = vpack.c.b16 %v595, %v593
        %v608 = vpack.c.b16 %v598, %v596
        %v609 = vpack.c.b16 %v599, %v597
        %v610 = vpack.c.b16 %v602, %v600
        %v611 = vpack.c.b16 %v603, %v601
        %620 = vmatprep.subr.bf16.mxu0 0
        %621 = vmatpush1.bf16.msra.mxu0 %v437
        %622 = vmatprep.subr.bf16.mxu0 0
        %623 = vmatpush1.bf16.msra.mxu0 %v438
        %624 = vmatprep.subr.bf16.mxu0 0
        %625 = vmatpush1.bf16.msra.mxu0 %v439
        %626 = vmatprep.subr.bf16.mxu0 0
        %627 = vmatpush1.bf16.msra.mxu0 %v440
        %628 = vmatprep.subr.bf16.mxu0 0
        %629 = vmatpush1.bf16.msra.mxu0 %v441
        %630 = vmatprep.subr.bf16.mxu0 0
        %631 = vmatpush1.bf16.msra.mxu0 %v442
        %632 = vmatprep.subr.bf16.mxu0 0
        %633 = vmatpush1.bf16.msra.mxu0 %v443
        %634 = vmatprep.subr.bf16.mxu0 0
        %635 = vmatpush1.bf16.msra.mxu0 %v444
        %636 = vmatprep.subr.bf16.mxu0 0
        %637 = vmatpush1.bf16.msra.mxu0 %v445
        %638 = vmatprep.subr.bf16.mxu0 0
        %639 = vmatpush1.bf16.msra.mxu0 %v446
        %640 = vmatprep.subr.bf16.mxu0 0
        %641 = vmatpush1.bf16.msra.mxu0 %v447
        %642 = vmatprep.subr.bf16.mxu0 0
        %643 = vmatpush1.bf16.msra.mxu0 %v448
        %644 = vmatprep.subr.bf16.mxu0 0
        %645 = vmatpush1.bf16.msra.mxu0 %v449
        %646 = vmatprep.subr.bf16.mxu0 0
        %647 = vmatpush1.bf16.msra.mxu0 %v450
        %648 = vmatprep.subr.bf16.mxu0 0
        %649 = vmatpush1.bf16.msra.mxu0 %v451
        %650 = vmatprep.subr.bf16.mxu0 0
        %651 = vmatpush1.bf16.msra.mxu0 %v452
        %652 = vmatprep.mubr.bf16.mxu0 %v605
        %653 = vmatmul.mubr.bf16.gmra.mrb[0].mxu0 %v604
        %v654 = vpop.f32.mrb[0].mxu0
        %v655 = vadd.f32 0.0, %v654
        %v656 = vpop.f32.mrb[0].mxu0
        %v657 = vpop.f32.mrb[0].mxu0
        %v658 = vadd.f32 0.0, %v657
        %v659 = vpop.f32.mrb[0].mxu0
        %660 = vmatprep.mubr.bf16.mxu0 %v607
        %661 = vmatmul.mubr.bf16.gmra.mrb[0].mxu0 %v606
        %v662 = vpop.f32.mrb[0].mxu0
        %v663 = vadd.f32 0.0, %v662
        %v664 = vpop.f32.mrb[0].mxu0
        %v665 = vpop.f32.mrb[0].mxu0
        %v666 = vadd.f32 0.0, %v665
        %v667 = vpop.f32.mrb[0].mxu0
        %668 = vmatprep.mubr.bf16.mxu0 %v609
        %669 = vmatmul.mubr.bf16.gmra.mrb[0].mxu0 %v608
        %v670 = vpop.f32.mrb[0].mxu0
        %v671 = vadd.f32 0.0, %v670
        %v672 = vpop.f32.mrb[0].mxu0
        %v673 = vpop.f32.mrb[0].mxu0
        %v674 = vadd.f32 0.0, %v673
        %v675 = vpop.f32.mrb[0].mxu0
        %676 = vmatprep.mubr.bf16.mxu0 %v611
        %677 = vmatmul.mubr.bf16.gmra.mrb[0].mxu0 %v610
        %v678 = vpop.f32.mrb[0].mxu0
        %v679 = vadd.f32 0.0, %v678
        %v680 = vpop.f32.mrb[0].mxu0
        %v681 = vpop.f32.mrb[0].mxu0
        %v682 = vadd.f32 0.0, %v681
        %v683 = vpop.f32.mrb[0].mxu0
        %684 = vdwg.mxu0
        %v685 = vpack.c.bf16 %v658, %v655
        %v686 = vpack.c.bf16 %v666, %v663
        %v687 = vpack.c.bf16 %v674, %v671
        %v688 = vpack.c.bf16 %v682, %v679
        %s689 = scalar_lea.vmem %s2, 2
        %v690 = vld [vmem:[%s689] sm:$0x3]
        %vm691 = vcmask 31744
        %v693 = vsel %vm691, %v685, 0
        %v696 = vsel %vm691, %v686, 0
        %v699 = vsel %vm691, %v687, 0
        %v702 = vsel %vm691, %v688, 0
        %vm704 = vcmask 1041408
        %v706 = vsel %vm704, %v690, 0
        %708 = vmatprep.subr.bf16.mxu0 0
        %709 = vmatpush1.bf16.msra.mxu0 %v706
        %710 = vmatprep.subr.bf16.mxu0 0
        %711 = vmatpush1.bf16.msra.mxu0 0
        %712 = vmatprep.subr.bf16.mxu0 0
        %713 = vmatpush1.bf16.msra.mxu0 0
        %714 = vmatprep.subr.bf16.mxu0 0
        %715 = vmatpush1.bf16.msra.mxu0 0
        %716 = vmatprep.subr.bf16.mxu0 0
        %717 = vmatpush1.bf16.msra.mxu0 0
        %718 = vmatprep.subr.bf16.mxu0 0
        %719 = vmatpush1.bf16.msra.mxu0 0
        %720 = vmatprep.subr.bf16.mxu0 0
        %721 = vmatpush1.bf16.msra.mxu0 0
        %722 = vmatprep.subr.bf16.mxu0 0
        %723 = vmatpush1.bf16.msra.mxu0 0
        %724 = vmatprep.subr.bf16.mxu0 0
        %725 = vmatpush1.bf16.msra.mxu0 0
        %726 = vmatprep.subr.bf16.mxu0 0
        %727 = vmatpush1.bf16.msra.mxu0 0
        %728 = vmatprep.subr.bf16.mxu0 0
        %729 = vmatpush1.bf16.msra.mxu0 0
        %730 = vmatprep.subr.bf16.mxu0 0
        %731 = vmatpush1.bf16.msra.mxu0 0
        %732 = vmatprep.subr.bf16.mxu0 0
        %733 = vmatpush1.bf16.msra.mxu0 0
        %734 = vmatprep.subr.bf16.mxu0 0
        %735 = vmatpush1.bf16.msra.mxu0 0
        %736 = vmatprep.subr.bf16.mxu0 0
        %737 = vmatpush1.bf16.msra.mxu0 0
        %738 = vmatprep.subr.bf16.mxu0 0
        %739 = vmatpush1.bf16.msra.mxu0 0
        %740 = vmatprep.mubr.bf16.mxu0 0
        %741 = vmatmul.mubr.bf16.gmra.mrb[0].mxu0 %v693
        %v742 = vpop.f32.mrb[0].mxu0
        %v743 = vadd.f32 0.0, %v742
        %v744 = vpop.f32.mrb[0].mxu0
        %v745 = vpop.f32.mrb[0].mxu0
        %v746 = vadd.f32 0.0, %v745
        %v747 = vpop.f32.mrb[0].mxu0
        %748 = vmatprep.mubr.bf16.mxu0 0
        %749 = vmatmul.mubr.bf16.gmra.mrb[0].mxu0 %v696
        %v750 = vpop.f32.mrb[0].mxu0
        %v751 = vadd.f32 0.0, %v750
        %v752 = vpop.f32.mrb[0].mxu0
        %v753 = vpop.f32.mrb[0].mxu0
        %v754 = vadd.f32 0.0, %v753
        %v755 = vpop.f32.mrb[0].mxu0
        %756 = vmatprep.mubr.bf16.mxu0 0
        %757 = vmatmul.mubr.bf16.gmra.mrb[0].mxu0 %v699
        %v758 = vpop.f32.mrb[0].mxu0
        %v759 = vadd.f32 0.0, %v758
        %v760 = vpop.f32.mrb[0].mxu0
        %v761 = vpop.f32.mrb[0].mxu0
        %v762 = vadd.f32 0.0, %v761
        %v763 = vpop.f32.mrb[0].mxu0
        %764 = vmatprep.mubr.bf16.mxu0 0
        %765 = vmatmul.mubr.bf16.gmra.mrb[0].mxu0 %v702
        %v766 = vpop.f32.mrb[0].mxu0
        %v767 = vadd.f32 0.0, %v766
        %v768 = vpop.f32.mrb[0].mxu0
        %v769 = vpop.f32.mrb[0].mxu0
        %v770 = vadd.f32 0.0, %v769
        %v771 = vpop.f32.mrb[0].mxu0
        %772 = vdwg.mxu0
        %v774 = vsel %vm691, %v566, 0
        %v777 = vsel %vm691, %v567, 0
        %v780 = vsel %vm691, %v568, 0
        %v783 = vsel %vm691, %v569, 0
        %v786 = vsel %vm704, %v570, 0
        %788 = vmatprep.subr.bf16.mxu0 0
        %789 = vmatpush1.bf16.msra.mxu0 %v786
        %790 = vmatprep.subr.bf16.mxu0 0
        %791 = vmatpush1.bf16.msra.mxu0 0
        %792 = vmatprep.subr.bf16.mxu0 0
        %793 = vmatpush1.bf16.msra.mxu0 0
        %794 = vmatprep.subr.bf16.mxu0 0
        %795 = vmatpush1.bf16.msra.mxu0 0
        %796 = vmatprep.subr.bf16.mxu0 0
        %797 = vmatpush1.bf16.msra.mxu0 0
        %798 = vmatprep.subr.bf16.mxu0 0
        %799 = vmatpush1.bf16.msra.mxu0 0
        %800 = vmatprep.subr.bf16.mxu0 0
        %801 = vmatpush1.bf16.msra.mxu0 0
        %802 = vmatprep.subr.bf16.mxu0 0
        %803 = vmatpush1.bf16.msra.mxu0 0
        %804 = vmatprep.subr.bf16.mxu0 0
        %805 = vmatpush1.bf16.msra.mxu0 0
        %806 = vmatprep.subr.bf16.mxu0 0
        %807 = vmatpush1.bf16.msra.mxu0 0
        %808 = vmatprep.subr.bf16.mxu0 0
        %809 = vmatpush1.bf16.msra.mxu0 0
        %810 = vmatprep.subr.bf16.mxu0 0
        %811 = vmatpush1.bf16.msra.mxu0 0
        %812 = vmatprep.subr.bf16.mxu0 0
        %813 = vmatpush1.bf16.msra.mxu0 0
        %814 = vmatprep.subr.bf16.mxu0 0
        %815 = vmatpush1.bf16.msra.mxu0 0
        %816 = vmatprep.subr.bf16.mxu0 0
        %817 = vmatpush1.bf16.msra.mxu0 0
        %818 = vmatprep.subr.bf16.mxu0 0
        %819 = vmatpush1.bf16.msra.mxu0 0
        %820 = vmatprep.mubr.bf16.mxu0 0
        %821 = vmatmul.mubr.bf16.gmra.mrb[0].mxu0 %v774
        %v822 = vpop.f32.mrb[0].mxu0
        %v823 = vadd.f32 %v743, %v822
        %v824 = vpop.f32.mrb[0].mxu0
        %v825 = vpop.f32.mrb[0].mxu0
        %v826 = vadd.f32 %v746, %v825
        %v827 = vpop.f32.mrb[0].mxu0
        %828 = vmatprep.mubr.bf16.mxu0 0
        %829 = vmatmul.mubr.bf16.gmra.mrb[0].mxu0 %v777
        %v830 = vpop.f32.mrb[0].mxu0
        %v831 = vadd.f32 %v751, %v830
        %v832 = vpop.f32.mrb[0].mxu0
        %v833 = vpop.f32.mrb[0].mxu0
        %v834 = vadd.f32 %v754, %v833
        %v835 = vpop.f32.mrb[0].mxu0
        %836 = vmatprep.mubr.bf16.mxu0 0
        %837 = vmatmul.mubr.bf16.gmra.mrb[0].mxu0 %v780
        %v838 = vpop.f32.mrb[0].mxu0
        %v839 = vadd.f32 %v759, %v838
        %v840 = vpop.f32.mrb[0].mxu0
        %v841 = vpop.f32.mrb[0].mxu0
        %v842 = vadd.f32 %v762, %v841
        %v843 = vpop.f32.mrb[0].mxu0
        %844 = vmatprep.mubr.bf16.mxu0 0
        %845 = vmatmul.mubr.bf16.gmra.mrb[0].mxu0 %v783
        %v846 = vpop.f32.mrb[0].mxu0
        %v847 = vadd.f32 %v767, %v846
        %v848 = vpop.f32.mrb[0].mxu0
        %v849 = vpop.f32.mrb[0].mxu0
        %v850 = vadd.f32 %v770, %v849
        %v851 = vpop.f32.mrb[0].mxu0
        %852 = vdwg.mxu0
        %s853 = scalar_lea.vmem [#allocation2], 128
        %v854 = vld [vmem:[%s853] sm:$0xff]
        %v855 = vld [vmem:[%s853 + $0x8] sm:$0xff]
        %v856 = vld [vmem:[%s853 + $0x10] sm:$0xff]
        %v857 = vld [vmem:[%s853 + $0x18] sm:$0xff]
        %v858 = vld [vmem:[%s853 + $0x20] sm:$0xff]
        %v859 = vld [vmem:[%s853 + $0x28] sm:$0xff]
        %v860 = vld [vmem:[%s853 + $0x30] sm:$0xff]
        %v861 = vld [vmem:[%s853 + $0x38] sm:$0xff]
        %v870 = vunpack.c.l.b16 %v854
        %v871 = vunpack.c.h.b16 %v854
        %v872 = vunpack.c.l.b16 %v855
        %v873 = vunpack.c.h.b16 %v855
        %v874 = vunpack.c.l.b16 %v856
        %v875 = vunpack.c.h.b16 %v856
        %v876 = vunpack.c.l.b16 %v857
        %v877 = vunpack.c.h.b16 %v857
        %v878 = vunpack.c.l.b16 %v858
        %v879 = vunpack.c.h.b16 %v858
        %v880 = vunpack.c.l.b16 %v859
        %v881 = vunpack.c.h.b16 %v859
        %v882 = vunpack.c.l.b16 %v860
        %v883 = vunpack.c.h.b16 %v860
        %v884 = vunpack.c.l.b16 %v861
        %v885 = vunpack.c.h.b16 %v861
        %v886 = vpack.c.b16 %v872, %v870
        %v887 = vpack.c.b16 %v873, %v871
        %v888 = vpack.c.b16 %v876, %v874
        %v889 = vpack.c.b16 %v877, %v875
        %v890 = vpack.c.b16 %v880, %v878
        %v891 = vpack.c.b16 %v881, %v879
        %v892 = vpack.c.b16 %v884, %v882
        %v893 = vpack.c.b16 %v885, %v883
        %902 = vmatprep.subr.bf16.mxu0 0
        %903 = vmatpush1.bf16.msra.mxu0 %v437
        %904 = vmatprep.subr.bf16.mxu0 0
        %905 = vmatpush1.bf16.msra.mxu0 %v438
        %906 = vmatprep.subr.bf16.mxu0 0
        %907 = vmatpush1.bf16.msra.mxu0 %v439
        %908 = vmatprep.subr.bf16.mxu0 0
        %909 = vmatpush1.bf16.msra.mxu0 %v440
        %910 = vmatprep.subr.bf16.mxu0 0
        %911 = vmatpush1.bf16.msra.mxu0 %v441
        %912 = vmatprep.subr.bf16.mxu0 0
        %913 = vmatpush1.bf16.msra.mxu0 %v442
        %914 = vmatprep.subr.bf16.mxu0 0
        %915 = vmatpush1.bf16.msra.mxu0 %v443
        %916 = vmatprep.subr.bf16.mxu0 0
        %917 = vmatpush1.bf16.msra.mxu0 %v444
        %918 = vmatprep.subr.bf16.mxu0 0
        %919 = vmatpush1.bf16.msra.mxu0 %v445
        %920 = vmatprep.subr.bf16.mxu0 0
        %921 = vmatpush1.bf16.msra.mxu0 %v446
        %922 = vmatprep.subr.bf16.mxu0 0
        %923 = vmatpush1.bf16.msra.mxu0 %v447
        %924 = vmatprep.subr.bf16.mxu0 0
        %925 = vmatpush1.bf16.msra.mxu0 %v448
        %926 = vmatprep.subr.bf16.mxu0 0
        %927 = vmatpush1.bf16.msra.mxu0 %v449
        %928 = vmatprep.subr.bf16.mxu0 0
        %929 = vmatpush1.bf16.msra.mxu0 %v450
        %930 = vmatprep.subr.bf16.mxu0 0
        %931 = vmatpush1.bf16.msra.mxu0 %v451
        %932 = vmatprep.subr.bf16.mxu0 0
        %933 = vmatpush1.bf16.msra.mxu0 %v452
        %934 = vmatprep.mubr.bf16.mxu0 %v887
        %935 = vmatmul.mubr.bf16.gmra.mrb[0].mxu0 %v886
        %v936 = vpop.f32.mrb[0].mxu0
        %v937 = vadd.f32 0.0, %v936
        %v938 = vpop.f32.mrb[0].mxu0
        %v939 = vpop.f32.mrb[0].mxu0
        %v940 = vadd.f32 0.0, %v939
        %v941 = vpop.f32.mrb[0].mxu0
        %942 = vmatprep.mubr.bf16.mxu0 %v889
        %943 = vmatmul.mubr.bf16.gmra.mrb[0].mxu0 %v888
        %v944 = vpop.f32.mrb[0].mxu0
        %v945 = vadd.f32 0.0, %v944
        %v946 = vpop.f32.mrb[0].mxu0
        %v947 = vpop.f32.mrb[0].mxu0
        %v948 = vadd.f32 0.0, %v947
        %v949 = vpop.f32.mrb[0].mxu0
        %950 = vmatprep.mubr.bf16.mxu0 %v891
        %951 = vmatmul.mubr.bf16.gmra.mrb[0].mxu0 %v890
        %v952 = vpop.f32.mrb[0].mxu0
        %v953 = vadd.f32 0.0, %v952
        %v954 = vpop.f32.mrb[0].mxu0
        %v955 = vpop.f32.mrb[0].mxu0
        %v956 = vadd.f32 0.0, %v955
        %v957 = vpop.f32.mrb[0].mxu0
        %958 = vmatprep.mubr.bf16.mxu0 %v893
        %959 = vmatmul.mubr.bf16.gmra.mrb[0].mxu0 %v892
        %v960 = vpop.f32.mrb[0].mxu0
        %v961 = vadd.f32 0.0, %v960
        %v962 = vpop.f32.mrb[0].mxu0
        %v963 = vpop.f32.mrb[0].mxu0
        %v964 = vadd.f32 0.0, %v963
        %v965 = vpop.f32.mrb[0].mxu0
        %966 = vdwg.mxu0
        %v967 = vpack.c.bf16 %v940, %v937
        %v968 = vpack.c.bf16 %v948, %v945
        %v969 = vpack.c.bf16 %v956, %v953
        %v970 = vpack.c.bf16 %v964, %v961
        %s971 = scalar_lea.vmem %s2, 4
        %v972 = vld [vmem:[%s971] sm:$0x3]
        %v974 = vsel %vm691, %v967, 0
        %v977 = vsel %vm691, %v968, 0
        %v980 = vsel %vm691, %v969, 0
        %v983 = vsel %vm691, %v970, 0
        %v986 = vsel %vm704, %v972, 0
        %988 = vmatprep.subr.bf16.mxu0 0
        %989 = vmatpush1.bf16.msra.mxu0 %v986
        %990 = vmatprep.subr.bf16.mxu0 0
        %991 = vmatpush1.bf16.msra.mxu0 0
        %992 = vmatprep.subr.bf16.mxu0 0
        %993 = vmatpush1.bf16.msra.mxu0 0
        %994 = vmatprep.subr.bf16.mxu0 0
        %995 = vmatpush1.bf16.msra.mxu0 0
        %996 = vmatprep.subr.bf16.mxu0 0
        %997 = vmatpush1.bf16.msra.mxu0 0
        %998 = vmatprep.subr.bf16.mxu0 0
        %999 = vmatpush1.bf16.msra.mxu0 0
        %1000 = vmatprep.subr.bf16.mxu0 0
        %1001 = vmatpush1.bf16.msra.mxu0 0
        %1002 = vmatprep.subr.bf16.mxu0 0
        %1003 = vmatpush1.bf16.msra.mxu0 0
        %1004 = vmatprep.subr.bf16.mxu0 0
        %1005 = vmatpush1.bf16.msra.mxu0 0
        %1006 = vmatprep.subr.bf16.mxu0 0
        %1007 = vmatpush1.bf16.msra.mxu0 0
        %1008 = vmatprep.subr.bf16.mxu0 0
        %1009 = vmatpush1.bf16.msra.mxu0 0
        %1010 = vmatprep.subr.bf16.mxu0 0
        %1011 = vmatpush1.bf16.msra.mxu0 0
        %1012 = vmatprep.subr.bf16.mxu0 0
        %1013 = vmatpush1.bf16.msra.mxu0 0
        %1014 = vmatprep.subr.bf16.mxu0 0
        %1015 = vmatpush1.bf16.msra.mxu0 0
        %1016 = vmatprep.subr.bf16.mxu0 0
        %1017 = vmatpush1.bf16.msra.mxu0 0
        %1018 = vmatprep.subr.bf16.mxu0 0
        %1019 = vmatpush1.bf16.msra.mxu0 0
        %1020 = vmatprep.mubr.bf16.mxu0 0
        %1021 = vmatmul.mubr.bf16.gmra.mrb[0].mxu0 %v974
        %v1022 = vpop.f32.mrb[0].mxu0
        %v1023 = vadd.f32 0.0, %v1022
        %v1024 = vpop.f32.mrb[0].mxu0
        %v1025 = vpop.f32.mrb[0].mxu0
        %v1026 = vadd.f32 0.0, %v1025
        %v1027 = vpop.f32.mrb[0].mxu0
        %1028 = vmatprep.mubr.bf16.mxu0 0
        %1029 = vmatmul.mubr.bf16.gmra.mrb[0].mxu0 %v977
        %v1030 = vpop.f32.mrb[0].mxu0
        %v1031 = vadd.f32 0.0, %v1030
        %v1032 = vpop.f32.mrb[0].mxu0
        %v1033 = vpop.f32.mrb[0].mxu0
        %v1034 = vadd.f32 0.0, %v1033
        %v1035 = vpop.f32.mrb[0].mxu0
        %1036 = vmatprep.mubr.bf16.mxu0 0
        %1037 = vmatmul.mubr.bf16.gmra.mrb[0].mxu0 %v980
        %v1038 = vpop.f32.mrb[0].mxu0
        %v1039 = vadd.f32 0.0, %v1038
        %v1040 = vpop.f32.mrb[0].mxu0
        %v1041 = vpop.f32.mrb[0].mxu0
        %v1042 = vadd.f32 0.0, %v1041
        %v1043 = vpop.f32.mrb[0].mxu0
        %1044 = vmatprep.mubr.bf16.mxu0 0
        %1045 = vmatmul.mubr.bf16.gmra.mrb[0].mxu0 %v983
        %v1046 = vpop.f32.mrb[0].mxu0
        %v1047 = vadd.f32 0.0, %v1046
        %v1048 = vpop.f32.mrb[0].mxu0
        %v1049 = vpop.f32.mrb[0].mxu0
        %v1050 = vadd.f32 0.0, %v1049
        %v1051 = vpop.f32.mrb[0].mxu0
        %1052 = vdwg.mxu0
        %v1053 = vadd.f32 %v823, %v1023
        %v1054 = vadd.f32 %v826, %v1026
        %v1055 = vadd.f32 %v831, %v1031
        %v1056 = vadd.f32 %v834, %v1034
        %v1057 = vadd.f32 %v839, %v1039
        %v1058 = vadd.f32 %v842, %v1042
        %v1059 = vadd.f32 %v847, %v1047
        %v1060 = vadd.f32 %v850, %v1050
        %s1061 = scalar_lea.vmem [#allocation2], 192
        %v1062 = vld [vmem:[%s1061] sm:$0xff]
        %v1063 = vld [vmem:[%s1061 + $0x8] sm:$0xff]
        %v1064 = vld [vmem:[%s1061 + $0x10] sm:$0xff]
        %v1065 = vld [vmem:[%s1061 + $0x18] sm:$0xff]
        %v1066 = vld [vmem:[%s1061 + $0x20] sm:$0xff]
        %v1067 = vld [vmem:[%s1061 + $0x28] sm:$0xff]
        %v1068 = vld [vmem:[%s1061 + $0x30] sm:$0xff]
        %v1069 = vld [vmem:[%s1061 + $0x38] sm:$0xff]
        %v1078 = vunpack.c.l.b16 %v1062
        %v1079 = vunpack.c.h.b16 %v1062
        %v1080 = vunpack.c.l.b16 %v1063
        %v1081 = vunpack.c.h.b16 %v1063
        %v1082 = vunpack.c.l.b16 %v1064
        %v1083 = vunpack.c.h.b16 %v1064
        %v1084 = vunpack.c.l.b16 %v1065
        %v1085 = vunpack.c.h.b16 %v1065
        %v1086 = vunpack.c.l.b16 %v1066
        %v1087 = vunpack.c.h.b16 %v1066
        %v1088 = vunpack.c.l.b16 %v1067
        %v1089 = vunpack.c.h.b16 %v1067
        %v1090 = vunpack.c.l.b16 %v1068
        %v1091 = vunpack.c.h.b16 %v1068
        %v1092 = vunpack.c.l.b16 %v1069
        %v1093 = vunpack.c.h.b16 %v1069
        %v1094 = vpack.c.b16 %v1080, %v1078
        %v1095 = vpack.c.b16 %v1081, %v1079
        %v1096 = vpack.c.b16 %v1084, %v1082
        %v1097 = vpack.c.b16 %v1085, %v1083
        %v1098 = vpack.c.b16 %v1088, %v1086
        %v1099 = vpack.c.b16 %v1089, %v1087
        %v1100 = vpack.c.b16 %v1092, %v1090
        %v1101 = vpack.c.b16 %v1093, %v1091
        %1110 = vmatprep.subr.bf16.mxu0 0
        %1111 = vmatpush1.bf16.msra.mxu0 %v437
        %1112 = vmatprep.subr.bf16.mxu0 0
        %1113 = vmatpush1.bf16.msra.mxu0 %v438
        %1114 = vmatprep.subr.bf16.mxu0 0
        %1115 = vmatpush1.bf16.msra.mxu0 %v439
        %1116 = vmatprep.subr.bf16.mxu0 0
        %1117 = vmatpush1.bf16.msra.mxu0 %v440
        %1118 = vmatprep.subr.bf16.mxu0 0
        %1119 = vmatpush1.bf16.msra.mxu0 %v441
        %1120 = vmatprep.subr.bf16.mxu0 0
        %1121 = vmatpush1.bf16.msra.mxu0 %v442
        %1122 = vmatprep.subr.bf16.mxu0 0
        %1123 = vmatpush1.bf16.msra.mxu0 %v443
        %1124 = vmatprep.subr.bf16.mxu0 0
        %1125 = vmatpush1.bf16.msra.mxu0 %v444
        %1126 = vmatprep.subr.bf16.mxu0 0
        %1127 = vmatpush1.bf16.msra.mxu0 %v445
        %1128 = vmatprep.subr.bf16.mxu0 0
        %1129 = vmatpush1.bf16.msra.mxu0 %v446
        %1130 = vmatprep.subr.bf16.mxu0 0
        %1131 = vmatpush1.bf16.msra.mxu0 %v447
        %1132 = vmatprep.subr.bf16.mxu0 0
        %1133 = vmatpush1.bf16.msra.mxu0 %v448
        %1134 = vmatprep.subr.bf16.mxu0 0
        %1135 = vmatpush1.bf16.msra.mxu0 %v449
        %1136 = vmatprep.subr.bf16.mxu0 0
        %1137 = vmatpush1.bf16.msra.mxu0 %v450
        %1138 = vmatprep.subr.bf16.mxu0 0
        %1139 = vmatpush1.bf16.msra.mxu0 %v451
        %1140 = vmatprep.subr.bf16.mxu0 0
        %1141 = vmatpush1.bf16.msra.mxu0 %v452
        %1142 = vmatprep.mubr.bf16.mxu0 %v1095
        %1143 = vmatmul.mubr.bf16.gmra.mrb[0].mxu0 %v1094
        %v1144 = vpop.f32.mrb[0].mxu0
        %v1145 = vadd.f32 0.0, %v1144
        %v1146 = vpop.f32.mrb[0].mxu0
        %v1147 = vpop.f32.mrb[0].mxu0
        %v1148 = vadd.f32 0.0, %v1147
        %v1149 = vpop.f32.mrb[0].mxu0
        %1150 = vmatprep.mubr.bf16.mxu0 %v1097
        %1151 = vmatmul.mubr.bf16.gmra.mrb[0].mxu0 %v1096
        %v1152 = vpop.f32.mrb[0].mxu0
        %v1153 = vadd.f32 0.0, %v1152
        %v1154 = vpop.f32.mrb[0].mxu0
        %v1155 = vpop.f32.mrb[0].mxu0
        %v1156 = vadd.f32 0.0, %v1155
        %v1157 = vpop.f32.mrb[0].mxu0
        %1158 = vmatprep.mubr.bf16.mxu0 %v1099
        %1159 = vmatmul.mubr.bf16.gmra.mrb[0].mxu0 %v1098
        %v1160 = vpop.f32.mrb[0].mxu0
        %v1161 = vadd.f32 0.0, %v1160
        %v1162 = vpop.f32.mrb[0].mxu0
        %v1163 = vpop.f32.mrb[0].mxu0
        %v1164 = vadd.f32 0.0, %v1163
        %v1165 = vpop.f32.mrb[0].mxu0
        %1166 = vmatprep.mubr.bf16.mxu0 %v1101
        %1167 = vmatmul.mubr.bf16.gmra.mrb[0].mxu0 %v1100
        %v1168 = vpop.f32.mrb[0].mxu0
        %v1169 = vadd.f32 0.0, %v1168
        %v1170 = vpop.f32.mrb[0].mxu0
        %v1171 = vpop.f32.mrb[0].mxu0
        %v1172 = vadd.f32 0.0, %v1171
        %v1173 = vpop.f32.mrb[0].mxu0
        %1174 = vdwg.mxu0
        %v1175 = vpack.c.bf16 %v1148, %v1145
        %v1176 = vpack.c.bf16 %v1156, %v1153
        %v1177 = vpack.c.bf16 %v1164, %v1161
        %v1178 = vpack.c.bf16 %v1172, %v1169
        %s1179 = scalar_lea.vmem %s2, 6
        %v1180 = vld [vmem:[%s1179] sm:$0x3]
        %v1182 = vsel %vm691, %v1175, 0
        %v1185 = vsel %vm691, %v1176, 0
        %v1188 = vsel %vm691, %v1177, 0
        %v1191 = vsel %vm691, %v1178, 0
        %v1194 = vsel %vm704, %v1180, 0
        %1196 = vmatprep.subr.bf16.mxu0 0
        %1197 = vmatpush1.bf16.msra.mxu0 %v1194
        %1198 = vmatprep.subr.bf16.mxu0 0
        %1199 = vmatpush1.bf16.msra.mxu0 0
        %1200 = vmatprep.subr.bf16.mxu0 0
        %1201 = vmatpush1.bf16.msra.mxu0 0
        %1202 = vmatprep.subr.bf16.mxu0 0
        %1203 = vmatpush1.bf16.msra.mxu0 0
        %1204 = vmatprep.subr.bf16.mxu0 0
        %1205 = vmatpush1.bf16.msra.mxu0 0
        %1206 = vmatprep.subr.bf16.mxu0 0
        %1207 = vmatpush1.bf16.msra.mxu0 0
        %1208 = vmatprep.subr.bf16.mxu0 0
        %1209 = vmatpush1.bf16.msra.mxu0 0
        %1210 = vmatprep.subr.bf16.mxu0 0
        %1211 = vmatpush1.bf16.msra.mxu0 0
        %1212 = vmatprep.subr.bf16.mxu0 0
        %1213 = vmatpush1.bf16.msra.mxu0 0
        %1214 = vmatprep.subr.bf16.mxu0 0
        %1215 = vmatpush1.bf16.msra.mxu0 0
        %1216 = vmatprep.subr.bf16.mxu0 0
        %1217 = vmatpush1.bf16.msra.mxu0 0
        %1218 = vmatprep.subr.bf16.mxu0 0
        %1219 = vmatpush1.bf16.msra.mxu0 0
        %1220 = vmatprep.subr.bf16.mxu0 0
        %1221 = vmatpush1.bf16.msra.mxu0 0
        %1222 = vmatprep.subr.bf16.mxu0 0
        %1223 = vmatpush1.bf16.msra.mxu0 0
        %1224 = vmatprep.subr.bf16.mxu0 0
        %1225 = vmatpush1.bf16.msra.mxu0 0
        %1226 = vmatprep.subr.bf16.mxu0 0
        %1227 = vmatpush1.bf16.msra.mxu0 0
        %1228 = vmatprep.mubr.bf16.mxu0 0
        %1229 = vmatmul.mubr.bf16.gmra.mrb[0].mxu0 %v1182
        %v1230 = vpop.f32.mrb[0].mxu0
        %v1231 = vadd.f32 0.0, %v1230
        %v1232 = vpop.f32.mrb[0].mxu0
        %v1233 = vpop.f32.mrb[0].mxu0
        %v1234 = vadd.f32 0.0, %v1233
        %v1235 = vpop.f32.mrb[0].mxu0
        %1236 = vmatprep.mubr.bf16.mxu0 0
        %1237 = vmatmul.mubr.bf16.gmra.mrb[0].mxu0 %v1185
        %v1238 = vpop.f32.mrb[0].mxu0
        %v1239 = vadd.f32 0.0, %v1238
        %v1240 = vpop.f32.mrb[0].mxu0
        %v1241 = vpop.f32.mrb[0].mxu0
        %v1242 = vadd.f32 0.0, %v1241
        %v1243 = vpop.f32.mrb[0].mxu0
        %1244 = vmatprep.mubr.bf16.mxu0 0
        %1245 = vmatmul.mubr.bf16.gmra.mrb[0].mxu0 %v1188
        %v1246 = vpop.f32.mrb[0].mxu0
        %v1247 = vadd.f32 0.0, %v1246
        %v1248 = vpop.f32.mrb[0].mxu0
        %v1249 = vpop.f32.mrb[0].mxu0
        %v1250 = vadd.f32 0.0, %v1249
        %v1251 = vpop.f32.mrb[0].mxu0
        %1252 = vmatprep.mubr.bf16.mxu0 0
        %1253 = vmatmul.mubr.bf16.gmra.mrb[0].mxu0 %v1191
        %v1254 = vpop.f32.mrb[0].mxu0
        %v1255 = vadd.f32 0.0, %v1254
        %v1256 = vpop.f32.mrb[0].mxu0
        %v1257 = vpop.f32.mrb[0].mxu0
        %v1258 = vadd.f32 0.0, %v1257
        %v1259 = vpop.f32.mrb[0].mxu0
        %1260 = vdwg.mxu0
        %v1261 = vadd.f32 %v1053, %v1231
        %v1262 = vadd.f32 %v1054, %v1234
        %v1263 = vadd.f32 %v1055, %v1239
        %v1264 = vadd.f32 %v1056, %v1242
        %v1265 = vadd.f32 %v1057, %v1247
        %v1266 = vadd.f32 %v1058, %v1250
        %v1267 = vadd.f32 %v1059, %v1255
        %v1268 = vadd.f32 %v1060, %v1258
        %s1269 = scalar_lea.vmem [#allocation2], 256
        %v1270 = vld [vmem:[%s1269] sm:$0xff]
        %v1271 = vld [vmem:[%s1269 + $0x8] sm:$0xff]
        %v1272 = vld [vmem:[%s1269 + $0x10] sm:$0xff]
        %v1273 = vld [vmem:[%s1269 + $0x18] sm:$0xff]
        %v1274 = vld [vmem:[%s1269 + $0x20] sm:$0xff]
        %v1275 = vld [vmem:[%s1269 + $0x28] sm:$0xff]
        %v1276 = vld [vmem:[%s1269 + $0x30] sm:$0xff]
        %v1277 = vld [vmem:[%s1269 + $0x38] sm:$0xff]
        %v1286 = vunpack.c.l.b16 %v1270
        %v1287 = vunpack.c.h.b16 %v1270
        %v1288 = vunpack.c.l.b16 %v1271
        %v1289 = vunpack.c.h.b16 %v1271
        %v1290 = vunpack.c.l.b16 %v1272
        %v1291 = vunpack.c.h.b16 %v1272
        %v1292 = vunpack.c.l.b16 %v1273
        %v1293 = vunpack.c.h.b16 %v1273
        %v1294 = vunpack.c.l.b16 %v1274
        %v1295 = vunpack.c.h.b16 %v1274
        %v1296 = vunpack.c.l.b16 %v1275
        %v1297 = vunpack.c.h.b16 %v1275
        %v1298 = vunpack.c.l.b16 %v1276
        %v1299 = vunpack.c.h.b16 %v1276
        %v1300 = vunpack.c.l.b16 %v1277
        %v1301 = vunpack.c.h.b16 %v1277
        %v1302 = vpack.c.b16 %v1288, %v1286
        %v1303 = vpack.c.b16 %v1289, %v1287
        %v1304 = vpack.c.b16 %v1292, %v1290
        %v1305 = vpack.c.b16 %v1293, %v1291
        %v1306 = vpack.c.b16 %v1296, %v1294
        %v1307 = vpack.c.b16 %v1297, %v1295
        %v1308 = vpack.c.b16 %v1300, %v1298
        %v1309 = vpack.c.b16 %v1301, %v1299
        %1318 = vmatprep.subr.bf16.mxu0 0
        %1319 = vmatpush1.bf16.msra.mxu0 %v437
        %1320 = vmatprep.subr.bf16.mxu0 0
        %1321 = vmatpush1.bf16.msra.mxu0 %v438
        %1322 = vmatprep.subr.bf16.mxu0 0
        %1323 = vmatpush1.bf16.msra.mxu0 %v439
        %1324 = vmatprep.subr.bf16.mxu0 0
        %1325 = vmatpush1.bf16.msra.mxu0 %v440
        %1326 = vmatprep.subr.bf16.mxu0 0
        %1327 = vmatpush1.bf16.msra.mxu0 %v441
        %1328 = vmatprep.subr.bf16.mxu0 0
        %1329 = vmatpush1.bf16.msra.mxu0 %v442
        %1330 = vmatprep.subr.bf16.mxu0 0
        %1331 = vmatpush1.bf16.msra.mxu0 %v443
        %1332 = vmatprep.subr.bf16.mxu0 0
        %1333 = vmatpush1.bf16.msra.mxu0 %v444
        %1334 = vmatprep.subr.bf16.mxu0 0
        %1335 = vmatpush1.bf16.msra.mxu0 %v445
        %1336 = vmatprep.subr.bf16.mxu0 0
        %1337 = vmatpush1.bf16.msra.mxu0 %v446
        %1338 = vmatprep.subr.bf16.mxu0 0
        %1339 = vmatpush1.bf16.msra.mxu0 %v447
        %1340 = vmatprep.subr.bf16.mxu0 0
        %1341 = vmatpush1.bf16.msra.mxu0 %v448
        %1342 = vmatprep.subr.bf16.mxu0 0
        %1343 = vmatpush1.bf16.msra.mxu0 %v449
        %1344 = vmatprep.subr.bf16.mxu0 0
        %1345 = vmatpush1.bf16.msra.mxu0 %v450
        %1346 = vmatprep.subr.bf16.mxu0 0
        %1347 = vmatpush1.bf16.msra.mxu0 %v451
        %1348 = vmatprep.subr.bf16.mxu0 0
        %1349 = vmatpush1.bf16.msra.mxu0 %v452
        %1350 = vmatprep.mubr.bf16.mxu0 %v1303
        %1351 = vmatmul.mubr.bf16.gmra.mrb[0].mxu0 %v1302
        %v1352 = vpop.f32.mrb[0].mxu0
        %v1353 = vadd.f32 0.0, %v1352
        %v1354 = vpop.f32.mrb[0].mxu0
        %v1355 = vpop.f32.mrb[0].mxu0
        %v1356 = vadd.f32 0.0, %v1355
        %v1357 = vpop.f32.mrb[0].mxu0
        %1358 = vmatprep.mubr.bf16.mxu0 %v1305
        %1359 = vmatmul.mubr.bf16.gmra.mrb[0].mxu0 %v1304
        %v1360 = vpop.f32.mrb[0].mxu0
        %v1361 = vadd.f32 0.0, %v1360
        %v1362 = vpop.f32.mrb[0].mxu0
        %v1363 = vpop.f32.mrb[0].mxu0
        %v1364 = vadd.f32 0.0, %v1363
        %v1365 = vpop.f32.mrb[0].mxu0
        %1366 = vmatprep.mubr.bf16.mxu0 %v1307
        %1367 = vmatmul.mubr.bf16.gmra.mrb[0].mxu0 %v1306
        %v1368 = vpop.f32.mrb[0].mxu0
        %v1369 = vadd.f32 0.0, %v1368
        %v1370 = vpop.f32.mrb[0].mxu0
        %v1371 = vpop.f32.mrb[0].mxu0
        %v1372 = vadd.f32 0.0, %v1371
        %v1373 = vpop.f32.mrb[0].mxu0
        %1374 = vmatprep.mubr.bf16.mxu0 %v1309
        %1375 = vmatmul.mubr.bf16.gmra.mrb[0].mxu0 %v1308
        %v1376 = vpop.f32.mrb[0].mxu0
        %v1377 = vadd.f32 0.0, %v1376
        %v1378 = vpop.f32.mrb[0].mxu0
        %v1379 = vpop.f32.mrb[0].mxu0
        %v1380 = vadd.f32 0.0, %v1379
        %v1381 = vpop.f32.mrb[0].mxu0
        %1382 = vdwg.mxu0
        %v1383 = vpack.c.bf16 %v1356, %v1353
        %v1384 = vpack.c.bf16 %v1364, %v1361
        %v1385 = vpack.c.bf16 %v1372, %v1369
        %v1386 = vpack.c.bf16 %v1380, %v1377
        %s1387 = scalar_lea.vmem %s2, 8
        %v1388 = vld [vmem:[%s1387] sm:$0x3]
        %v1390 = vsel %vm691, %v1383, 0
        %v1393 = vsel %vm691, %v1384, 0
        %v1396 = vsel %vm691, %v1385, 0
        %v1399 = vsel %vm691, %v1386, 0
        %v1402 = vsel %vm704, %v1388, 0
        %1404 = vmatprep.subr.bf16.mxu0 0
        %1405 = vmatpush1.bf16.msra.mxu0 %v1402
        %1406 = vmatprep.subr.bf16.mxu0 0
        %1407 = vmatpush1.bf16.msra.mxu0 0
        %1408 = vmatprep.subr.bf16.mxu0 0
        %1409 = vmatpush1.bf16.msra.mxu0 0
        %1410 = vmatprep.subr.bf16.mxu0 0
        %1411 = vmatpush1.bf16.msra.mxu0 0
        %1412 = vmatprep.subr.bf16.mxu0 0
        %1413 = vmatpush1.bf16.msra.mxu0 0
        %1414 = vmatprep.subr.bf16.mxu0 0
        %1415 = vmatpush1.bf16.msra.mxu0 0
        %1416 = vmatprep.subr.bf16.mxu0 0
        %1417 = vmatpush1.bf16.msra.mxu0 0
        %1418 = vmatprep.subr.bf16.mxu0 0
        %1419 = vmatpush1.bf16.msra.mxu0 0
        %1420 = vmatprep.subr.bf16.mxu0 0
        %1421 = vmatpush1.bf16.msra.mxu0 0
        %1422 = vmatprep.subr.bf16.mxu0 0
        %1423 = vmatpush1.bf16.msra.mxu0 0
        %1424 = vmatprep.subr.bf16.mxu0 0
        %1425 = vmatpush1.bf16.msra.mxu0 0
        %1426 = vmatprep.subr.bf16.mxu0 0
        %1427 = vmatpush1.bf16.msra.mxu0 0
        %1428 = vmatprep.subr.bf16.mxu0 0
        %1429 = vmatpush1.bf16.msra.mxu0 0
        %1430 = vmatprep.subr.bf16.mxu0 0
        %1431 = vmatpush1.bf16.msra.mxu0 0
        %1432 = vmatprep.subr.bf16.mxu0 0
        %1433 = vmatpush1.bf16.msra.mxu0 0
        %1434 = vmatprep.subr.bf16.mxu0 0
        %1435 = vmatpush1.bf16.msra.mxu0 0
        %1436 = vmatprep.mubr.bf16.mxu0 0
        %1437 = vmatmul.mubr.bf16.gmra.mrb[0].mxu0 %v1390
        %v1438 = vpop.f32.mrb[0].mxu0
        %v1439 = vadd.f32 0.0, %v1438
        %v1440 = vpop.f32.mrb[0].mxu0
        %v1441 = vpop.f32.mrb[0].mxu0
        %v1442 = vadd.f32 0.0, %v1441
        %v1443 = vpop.f32.mrb[0].mxu0
        %1444 = vmatprep.mubr.bf16.mxu0 0
        %1445 = vmatmul.mubr.bf16.gmra.mrb[0].mxu0 %v1393
        %v1446 = vpop.f32.mrb[0].mxu0
        %v1447 = vadd.f32 0.0, %v1446
        %v1448 = vpop.f32.mrb[0].mxu0
        %v1449 = vpop.f32.mrb[0].mxu0
        %v1450 = vadd.f32 0.0, %v1449
        %v1451 = vpop.f32.mrb[0].mxu0
        %1452 = vmatprep.mubr.bf16.mxu0 0
        %1453 = vmatmul.mubr.bf16.gmra.mrb[0].mxu0 %v1396
        %v1454 = vpop.f32.mrb[0].mxu0
        %v1455 = vadd.f32 0.0, %v1454
        %v1456 = vpop.f32.mrb[0].mxu0
        %v1457 = vpop.f32.mrb[0].mxu0
        %v1458 = vadd.f32 0.0, %v1457
        %v1459 = vpop.f32.mrb[0].mxu0
        %1460 = vmatprep.mubr.bf16.mxu0 0
        %1461 = vmatmul.mubr.bf16.gmra.mrb[0].mxu0 %v1399
        %v1462 = vpop.f32.mrb[0].mxu0
        %v1463 = vadd.f32 0.0, %v1462
        %v1464 = vpop.f32.mrb[0].mxu0
        %v1465 = vpop.f32.mrb[0].mxu0
        %v1466 = vadd.f32 0.0, %v1465
        %v1467 = vpop.f32.mrb[0].mxu0
        %1468 = vdwg.mxu0
        %v1469 = vadd.f32 %v1261, %v1439
        %v1470 = vadd.f32 %v1262, %v1442
        %v1471 = vadd.f32 %v1263, %v1447
        %v1472 = vadd.f32 %v1264, %v1450
        %v1473 = vadd.f32 %v1265, %v1455
        %v1474 = vadd.f32 %v1266, %v1458
        %v1475 = vadd.f32 %v1267, %v1463
        %v1476 = vadd.f32 %v1268, %v1466
        %s1477 = scalar_lea.vmem [#allocation2], 320
        %v1478 = vld [vmem:[%s1477] sm:$0xff]
        %v1479 = vld [vmem:[%s1477 + $0x8] sm:$0xff]
        %v1480 = vld [vmem:[%s1477 + $0x10] sm:$0xff]
        %v1481 = vld [vmem:[%s1477 + $0x18] sm:$0xff]
        %v1482 = vld [vmem:[%s1477 + $0x20] sm:$0xff]
        %v1483 = vld [vmem:[%s1477 + $0x28] sm:$0xff]
        %v1484 = vld [vmem:[%s1477 + $0x30] sm:$0xff]
        %v1485 = vld [vmem:[%s1477 + $0x38] sm:$0xff]
        %v1494 = vunpack.c.l.b16 %v1478
        %v1495 = vunpack.c.h.b16 %v1478
        %v1496 = vunpack.c.l.b16 %v1479
        %v1497 = vunpack.c.h.b16 %v1479
        %v1498 = vunpack.c.l.b16 %v1480
        %v1499 = vunpack.c.h.b16 %v1480
        %v1500 = vunpack.c.l.b16 %v1481
        %v1501 = vunpack.c.h.b16 %v1481
        %v1502 = vunpack.c.l.b16 %v1482
        %v1503 = vunpack.c.h.b16 %v1482
        %v1504 = vunpack.c.l.b16 %v1483
        %v1505 = vunpack.c.h.b16 %v1483
        %v1506 = vunpack.c.l.b16 %v1484
        %v1507 = vunpack.c.h.b16 %v1484
        %v1508 = vunpack.c.l.b16 %v1485
        %v1509 = vunpack.c.h.b16 %v1485
        %v1510 = vpack.c.b16 %v1496, %v1494
        %v1511 = vpack.c.b16 %v1497, %v1495
        %v1512 = vpack.c.b16 %v1500, %v1498
        %v1513 = vpack.c.b16 %v1501, %v1499
        %v1514 = vpack.c.b16 %v1504, %v1502
        %v1515 = vpack.c.b16 %v1505, %v1503
        %v1516 = vpack.c.b16 %v1508, %v1506
        %v1517 = vpack.c.b16 %v1509, %v1507
        %1526 = vmatprep.subr.bf16.mxu0 0
        %1527 = vmatpush1.bf16.msra.mxu0 %v437
        %1528 = vmatprep.subr.bf16.mxu0 0
        %1529 = vmatpush1.bf16.msra.mxu0 %v438
        %1530 = vmatprep.subr.bf16.mxu0 0
        %1531 = vmatpush1.bf16.msra.mxu0 %v439
        %1532 = vmatprep.subr.bf16.mxu0 0
        %1533 = vmatpush1.bf16.msra.mxu0 %v440
        %1534 = vmatprep.subr.bf16.mxu0 0
        %1535 = vmatpush1.bf16.msra.mxu0 %v441
        %1536 = vmatprep.subr.bf16.mxu0 0
        %1537 = vmatpush1.bf16.msra.mxu0 %v442
        %1538 = vmatprep.subr.bf16.mxu0 0
        %1539 = vmatpush1.bf16.msra.mxu0 %v443
        %1540 = vmatprep.subr.bf16.mxu0 0
        %1541 = vmatpush1.bf16.msra.mxu0 %v444
        %1542 = vmatprep.subr.bf16.mxu0 0
        %1543 = vmatpush1.bf16.msra.mxu0 %v445
        %1544 = vmatprep.subr.bf16.mxu0 0
        %1545 = vmatpush1.bf16.msra.mxu0 %v446
        %1546 = vmatprep.subr.bf16.mxu0 0
        %1547 = vmatpush1.bf16.msra.mxu0 %v447
        %1548 = vmatprep.subr.bf16.mxu0 0
        %1549 = vmatpush1.bf16.msra.mxu0 %v448
        %1550 = vmatprep.subr.bf16.mxu0 0
        %1551 = vmatpush1.bf16.msra.mxu0 %v449
        %1552 = vmatprep.subr.bf16.mxu0 0
        %1553 = vmatpush1.bf16.msra.mxu0 %v450
        %1554 = vmatprep.subr.bf16.mxu0 0
        %1555 = vmatpush1.bf16.msra.mxu0 %v451
        %1556 = vmatprep.subr.bf16.mxu0 0
        %1557 = vmatpush1.bf16.msra.mxu0 %v452
        %1558 = vmatprep.mubr.bf16.mxu0 %v1511
        %1559 = vmatmul.mubr.bf16.gmra.mrb[0].mxu0 %v1510
        %v1560 = vpop.f32.mrb[0].mxu0
        %v1561 = vadd.f32 0.0, %v1560
        %v1562 = vpop.f32.mrb[0].mxu0
        %v1563 = vpop.f32.mrb[0].mxu0
        %v1564 = vadd.f32 0.0, %v1563
        %v1565 = vpop.f32.mrb[0].mxu0
        %1566 = vmatprep.mubr.bf16.mxu0 %v1513
        %1567 = vmatmul.mubr.bf16.gmra.mrb[0].mxu0 %v1512
        %v1568 = vpop.f32.mrb[0].mxu0
        %v1569 = vadd.f32 0.0, %v1568
        %v1570 = vpop.f32.mrb[0].mxu0
        %v1571 = vpop.f32.mrb[0].mxu0
        %v1572 = vadd.f32 0.0, %v1571
        %v1573 = vpop.f32.mrb[0].mxu0
        %1574 = vmatprep.mubr.bf16.mxu0 %v1515
        %1575 = vmatmul.mubr.bf16.gmra.mrb[0].mxu0 %v1514
        %v1576 = vpop.f32.mrb[0].mxu0
        %v1577 = vadd.f32 0.0, %v1576
        %v1578 = vpop.f32.mrb[0].mxu0
        %v1579 = vpop.f32.mrb[0].mxu0
        %v1580 = vadd.f32 0.0, %v1579
        %v1581 = vpop.f32.mrb[0].mxu0
        %1582 = vmatprep.mubr.bf16.mxu0 %v1517
        %1583 = vmatmul.mubr.bf16.gmra.mrb[0].mxu0 %v1516
        %v1584 = vpop.f32.mrb[0].mxu0
        %v1585 = vadd.f32 0.0, %v1584
        %v1586 = vpop.f32.mrb[0].mxu0
        %v1587 = vpop.f32.mrb[0].mxu0
        %v1588 = vadd.f32 0.0, %v1587
        %v1589 = vpop.f32.mrb[0].mxu0
        %1590 = vdwg.mxu0
        %v1591 = vpack.c.bf16 %v1564, %v1561
        %v1592 = vpack.c.bf16 %v1572, %v1569
        %v1593 = vpack.c.bf16 %v1580, %v1577
        %v1594 = vpack.c.bf16 %v1588, %v1585
        %s1595 = scalar_lea.vmem %s2, 10
        %v1596 = vld [vmem:[%s1595] sm:$0x3]
        %v1598 = vsel %vm691, %v1591, 0
        %v1601 = vsel %vm691, %v1592, 0
        %v1604 = vsel %vm691, %v1593, 0
        %v1607 = vsel %vm691, %v1594, 0
        %v1610 = vsel %vm704, %v1596, 0
        %1612 = vmatprep.subr.bf16.mxu0 0
        %1613 = vmatpush1.bf16.msra.mxu0 %v1610
        %1614 = vmatprep.subr.bf16.mxu0 0
        %1615 = vmatpush1.bf16.msra.mxu0 0
        %1616 = vmatprep.subr.bf16.mxu0 0
        %1617 = vmatpush1.bf16.msra.mxu0 0
        %1618 = vmatprep.subr.bf16.mxu0 0
        %1619 = vmatpush1.bf16.msra.mxu0 0
        %1620 = vmatprep.subr.bf16.mxu0 0
        %1621 = vmatpush1.bf16.msra.mxu0 0
        %1622 = vmatprep.subr.bf16.mxu0 0
        %1623 = vmatpush1.bf16.msra.mxu0 0
        %1624 = vmatprep.subr.bf16.mxu0 0
        %1625 = vmatpush1.bf16.msra.mxu0 0
        %1626 = vmatprep.subr.bf16.mxu0 0
        %1627 = vmatpush1.bf16.msra.mxu0 0
        %1628 = vmatprep.subr.bf16.mxu0 0
        %1629 = vmatpush1.bf16.msra.mxu0 0
        %1630 = vmatprep.subr.bf16.mxu0 0
        %1631 = vmatpush1.bf16.msra.mxu0 0
        %1632 = vmatprep.subr.bf16.mxu0 0
        %1633 = vmatpush1.bf16.msra.mxu0 0
        %1634 = vmatprep.subr.bf16.mxu0 0
        %1635 = vmatpush1.bf16.msra.mxu0 0
        %1636 = vmatprep.subr.bf16.mxu0 0
        %1637 = vmatpush1.bf16.msra.mxu0 0
        %1638 = vmatprep.subr.bf16.mxu0 0
        %1639 = vmatpush1.bf16.msra.mxu0 0
        %1640 = vmatprep.subr.bf16.mxu0 0
        %1641 = vmatpush1.bf16.msra.mxu0 0
        %1642 = vmatprep.subr.bf16.mxu0 0
        %1643 = vmatpush1.bf16.msra.mxu0 0
        %1644 = vmatprep.mubr.bf16.mxu0 0
        %1645 = vmatmul.mubr.bf16.gmra.mrb[0].mxu0 %v1598
        %v1646 = vpop.f32.mrb[0].mxu0
        %v1647 = vadd.f32 0.0, %v1646
        %v1648 = vpop.f32.mrb[0].mxu0
        %v1649 = vpop.f32.mrb[0].mxu0
        %v1650 = vadd.f32 0.0, %v1649
        %v1651 = vpop.f32.mrb[0].mxu0
        %1652 = vmatprep.mubr.bf16.mxu0 0
        %1653 = vmatmul.mubr.bf16.gmra.mrb[0].mxu0 %v1601
        %v1654 = vpop.f32.mrb[0].mxu0
        %v1655 = vadd.f32 0.0, %v1654
        %v1656 = vpop.f32.mrb[0].mxu0
        %v1657 = vpop.f32.mrb[0].mxu0
        %v1658 = vadd.f32 0.0, %v1657
        %v1659 = vpop.f32.mrb[0].mxu0
        %1660 = vmatprep.mubr.bf16.mxu0 0
        %1661 = vmatmul.mubr.bf16.gmra.mrb[0].mxu0 %v1604
        %v1662 = vpop.f32.mrb[0].mxu0
        %v1663 = vadd.f32 0.0, %v1662
        %v1664 = vpop.f32.mrb[0].mxu0
        %v1665 = vpop.f32.mrb[0].mxu0
        %v1666 = vadd.f32 0.0, %v1665
        %v1667 = vpop.f32.mrb[0].mxu0
        %1668 = vmatprep.mubr.bf16.mxu0 0
        %1669 = vmatmul.mubr.bf16.gmra.mrb[0].mxu0 %v1607
        %v1670 = vpop.f32.mrb[0].mxu0
        %v1671 = vadd.f32 0.0, %v1670
        %v1672 = vpop.f32.mrb[0].mxu0
        %v1673 = vpop.f32.mrb[0].mxu0
        %v1674 = vadd.f32 0.0, %v1673
        %v1675 = vpop.f32.mrb[0].mxu0
        %1676 = vdwg.mxu0
        %v1677 = vadd.f32 %v1469, %v1647
        %v1678 = vadd.f32 %v1470, %v1650
        %v1679 = vadd.f32 %v1471, %v1655
        %v1680 = vadd.f32 %v1472, %v1658
        %v1681 = vadd.f32 %v1473, %v1663
        %v1682 = vadd.f32 %v1474, %v1666
        %v1683 = vadd.f32 %v1475, %v1671
        %v1684 = vadd.f32 %v1476, %v1674
        %s1685 = scalar_lea.vmem [#allocation2], 384
        %v1686 = vld [vmem:[%s1685] sm:$0xff]
        %v1687 = vld [vmem:[%s1685 + $0x8] sm:$0xff]
        %v1688 = vld [vmem:[%s1685 + $0x10] sm:$0xff]
        %v1689 = vld [vmem:[%s1685 + $0x18] sm:$0xff]
        %v1690 = vld [vmem:[%s1685 + $0x20] sm:$0xff]
        %v1691 = vld [vmem:[%s1685 + $0x28] sm:$0xff]
        %v1692 = vld [vmem:[%s1685 + $0x30] sm:$0xff]
        %v1693 = vld [vmem:[%s1685 + $0x38] sm:$0xff]
        %v1702 = vunpack.c.l.b16 %v1686
        %v1703 = vunpack.c.h.b16 %v1686
        %v1704 = vunpack.c.l.b16 %v1687
        %v1705 = vunpack.c.h.b16 %v1687
        %v1706 = vunpack.c.l.b16 %v1688
        %v1707 = vunpack.c.h.b16 %v1688
        %v1708 = vunpack.c.l.b16 %v1689
        %v1709 = vunpack.c.h.b16 %v1689
        %v1710 = vunpack.c.l.b16 %v1690
        %v1711 = vunpack.c.h.b16 %v1690
        %v1712 = vunpack.c.l.b16 %v1691
        %v1713 = vunpack.c.h.b16 %v1691
        %v1714 = vunpack.c.l.b16 %v1692
        %v1715 = vunpack.c.h.b16 %v1692
        %v1716 = vunpack.c.l.b16 %v1693
        %v1717 = vunpack.c.h.b16 %v1693
        %v1718 = vpack.c.b16 %v1704, %v1702
        %v1719 = vpack.c.b16 %v1705, %v1703
        %v1720 = vpack.c.b16 %v1708, %v1706
        %v1721 = vpack.c.b16 %v1709, %v1707
        %v1722 = vpack.c.b16 %v1712, %v1710
        %v1723 = vpack.c.b16 %v1713, %v1711
        %v1724 = vpack.c.b16 %v1716, %v1714
        %v1725 = vpack.c.b16 %v1717, %v1715
        %1734 = vmatprep.subr.bf16.mxu0 0
        %1735 = vmatpush1.bf16.msra.mxu0 %v437
        %1736 = vmatprep.subr.bf16.mxu0 0
        %1737 = vmatpush1.bf16.msra.mxu0 %v438
        %1738 = vmatprep.subr.bf16.mxu0 0
        %1739 = vmatpush1.bf16.msra.mxu0 %v439
        %1740 = vmatprep.subr.bf16.mxu0 0
        %1741 = vmatpush1.bf16.msra.mxu0 %v440
        %1742 = vmatprep.subr.bf16.mxu0 0
        %1743 = vmatpush1.bf16.msra.mxu0 %v441
        %1744 = vmatprep.subr.bf16.mxu0 0
        %1745 = vmatpush1.bf16.msra.mxu0 %v442
        %1746 = vmatprep.subr.bf16.mxu0 0
        %1747 = vmatpush1.bf16.msra.mxu0 %v443
        %1748 = vmatprep.subr.bf16.mxu0 0
        %1749 = vmatpush1.bf16.msra.mxu0 %v444
        %1750 = vmatprep.subr.bf16.mxu0 0
        %1751 = vmatpush1.bf16.msra.mxu0 %v445
        %1752 = vmatprep.subr.bf16.mxu0 0
        %1753 = vmatpush1.bf16.msra.mxu0 %v446
        %1754 = vmatprep.subr.bf16.mxu0 0
        %1755 = vmatpush1.bf16.msra.mxu0 %v447
        %1756 = vmatprep.subr.bf16.mxu0 0
        %1757 = vmatpush1.bf16.msra.mxu0 %v448
        %1758 = vmatprep.subr.bf16.mxu0 0
        %1759 = vmatpush1.bf16.msra.mxu0 %v449
        %1760 = vmatprep.subr.bf16.mxu0 0
        %1761 = vmatpush1.bf16.msra.mxu0 %v450
        %1762 = vmatprep.subr.bf16.mxu0 0
        %1763 = vmatpush1.bf16.msra.mxu0 %v451
        %1764 = vmatprep.subr.bf16.mxu0 0
        %1765 = vmatpush1.bf16.msra.mxu0 %v452
        %1766 = vmatprep.mubr.bf16.mxu0 %v1719
        %1767 = vmatmul.mubr.bf16.gmra.mrb[0].mxu0 %v1718
        %v1768 = vpop.f32.mrb[0].mxu0
        %v1769 = vadd.f32 0.0, %v1768
        %v1770 = vpop.f32.mrb[0].mxu0
        %v1771 = vpop.f32.mrb[0].mxu0
        %v1772 = vadd.f32 0.0, %v1771
        %v1773 = vpop.f32.mrb[0].mxu0
        %1774 = vmatprep.mubr.bf16.mxu0 %v1721
        %1775 = vmatmul.mubr.bf16.gmra.mrb[0].mxu0 %v1720
        %v1776 = vpop.f32.mrb[0].mxu0
        %v1777 = vadd.f32 0.0, %v1776
        %v1778 = vpop.f32.mrb[0].mxu0
        %v1779 = vpop.f32.mrb[0].mxu0
        %v1780 = vadd.f32 0.0, %v1779
        %v1781 = vpop.f32.mrb[0].mxu0
        %1782 = vmatprep.mubr.bf16.mxu0 %v1723
        %1783 = vmatmul.mubr.bf16.gmra.mrb[0].mxu0 %v1722
        %v1784 = vpop.f32.mrb[0].mxu0
        %v1785 = vadd.f32 0.0, %v1784
        %v1786 = vpop.f32.mrb[0].mxu0
        %v1787 = vpop.f32.mrb[0].mxu0
        %v1788 = vadd.f32 0.0, %v1787
        %v1789 = vpop.f32.mrb[0].mxu0
        %1790 = vmatprep.mubr.bf16.mxu0 %v1725
        %1791 = vmatmul.mubr.bf16.gmra.mrb[0].mxu0 %v1724
        %v1792 = vpop.f32.mrb[0].mxu0
        %v1793 = vadd.f32 0.0, %v1792
        %v1794 = vpop.f32.mrb[0].mxu0
        %v1795 = vpop.f32.mrb[0].mxu0
        %v1796 = vadd.f32 0.0, %v1795
        %v1797 = vpop.f32.mrb[0].mxu0
        %1798 = vdwg.mxu0
        %v1799 = vpack.c.bf16 %v1772, %v1769
        %v1800 = vpack.c.bf16 %v1780, %v1777
        %v1801 = vpack.c.bf16 %v1788, %v1785
        %v1802 = vpack.c.bf16 %v1796, %v1793
        %s1803 = scalar_lea.vmem %s2, 12
        %v1804 = vld [vmem:[%s1803] sm:$0x3]
        %v1806 = vsel %vm691, %v1799, 0
        %v1809 = vsel %vm691, %v1800, 0
        %v1812 = vsel %vm691, %v1801, 0
        %v1815 = vsel %vm691, %v1802, 0
        %v1818 = vsel %vm704, %v1804, 0
        %1820 = vmatprep.subr.bf16.mxu0 0
        %1821 = vmatpush1.bf16.msra.mxu0 %v1818
        %1822 = vmatprep.subr.bf16.mxu0 0
        %1823 = vmatpush1.bf16.msra.mxu0 0
        %1824 = vmatprep.subr.bf16.mxu0 0
        %1825 = vmatpush1.bf16.msra.mxu0 0
        %1826 = vmatprep.subr.bf16.mxu0 0
        %1827 = vmatpush1.bf16.msra.mxu0 0
        %1828 = vmatprep.subr.bf16.mxu0 0
        %1829 = vmatpush1.bf16.msra.mxu0 0
        %1830 = vmatprep.subr.bf16.mxu0 0
        %1831 = vmatpush1.bf16.msra.mxu0 0
        %1832 = vmatprep.subr.bf16.mxu0 0
        %1833 = vmatpush1.bf16.msra.mxu0 0
        %1834 = vmatprep.subr.bf16.mxu0 0
        %1835 = vmatpush1.bf16.msra.mxu0 0
        %1836 = vmatprep.subr.bf16.mxu0 0
        %1837 = vmatpush1.bf16.msra.mxu0 0
        %1838 = vmatprep.subr.bf16.mxu0 0
        %1839 = vmatpush1.bf16.msra.mxu0 0
        %1840 = vmatprep.subr.bf16.mxu0 0
        %1841 = vmatpush1.bf16.msra.mxu0 0
        %1842 = vmatprep.subr.bf16.mxu0 0
        %1843 = vmatpush1.bf16.msra.mxu0 0
        %1844 = vmatprep.subr.bf16.mxu0 0
        %1845 = vmatpush1.bf16.msra.mxu0 0
        %1846 = vmatprep.subr.bf16.mxu0 0
        %1847 = vmatpush1.bf16.msra.mxu0 0
        %1848 = vmatprep.subr.bf16.mxu0 0
        %1849 = vmatpush1.bf16.msra.mxu0 0
        %1850 = vmatprep.subr.bf16.mxu0 0
        %1851 = vmatpush1.bf16.msra.mxu0 0
        %1852 = vmatprep.mubr.bf16.mxu0 0
        %1853 = vmatmul.mubr.bf16.gmra.mrb[0].mxu0 %v1806
        %v1854 = vpop.f32.mrb[0].mxu0
        %v1855 = vadd.f32 0.0, %v1854
        %v1856 = vpop.f32.mrb[0].mxu0
        %v1857 = vpop.f32.mrb[0].mxu0
        %v1858 = vadd.f32 0.0, %v1857
        %v1859 = vpop.f32.mrb[0].mxu0
        %1860 = vmatprep.mubr.bf16.mxu0 0
        %1861 = vmatmul.mubr.bf16.gmra.mrb[0].mxu0 %v1809
        %v1862 = vpop.f32.mrb[0].mxu0
        %v1863 = vadd.f32 0.0, %v1862
        %v1864 = vpop.f32.mrb[0].mxu0
        %v1865 = vpop.f32.mrb[0].mxu0
        %v1866 = vadd.f32 0.0, %v1865
        %v1867 = vpop.f32.mrb[0].mxu0
        %1868 = vmatprep.mubr.bf16.mxu0 0
        %1869 = vmatmul.mubr.bf16.gmra.mrb[0].mxu0 %v1812
        %v1870 = vpop.f32.mrb[0].mxu0
        %v1871 = vadd.f32 0.0, %v1870
        %v1872 = vpop.f32.mrb[0].mxu0
        %v1873 = vpop.f32.mrb[0].mxu0
        %v1874 = vadd.f32 0.0, %v1873
        %v1875 = vpop.f32.mrb[0].mxu0
        %1876 = vmatprep.mubr.bf16.mxu0 0
        %1877 = vmatmul.mubr.bf16.gmra.mrb[0].mxu0 %v1815
        %v1878 = vpop.f32.mrb[0].mxu0
        %v1879 = vadd.f32 0.0, %v1878
        %v1880 = vpop.f32.mrb[0].mxu0
        %v1881 = vpop.f32.mrb[0].mxu0
        %v1882 = vadd.f32 0.0, %v1881
        %v1883 = vpop.f32.mrb[0].mxu0
        %1884 = vdwg.mxu0
        %v1885 = vadd.f32 %v1677, %v1855
        %v1886 = vadd.f32 %v1678, %v1858
        %v1887 = vadd.f32 %v1679, %v1863
        %v1888 = vadd.f32 %v1680, %v1866
        %v1889 = vadd.f32 %v1681, %v1871
        %v1890 = vadd.f32 %v1682, %v1874
        %v1891 = vadd.f32 %v1683, %v1879
        %v1892 = vadd.f32 %v1684, %v1882
        %s1893 = scalar_lea.vmem [#allocation2], 448
        %v1894 = vld [vmem:[%s1893] sm:$0xff]
        %v1895 = vld [vmem:[%s1893 + $0x8] sm:$0xff]
        %v1896 = vld [vmem:[%s1893 + $0x10] sm:$0xff]
        %v1897 = vld [vmem:[%s1893 + $0x18] sm:$0xff]
        %v1898 = vld [vmem:[%s1893 + $0x20] sm:$0xff]
        %v1899 = vld [vmem:[%s1893 + $0x28] sm:$0xff]
        %v1900 = vld [vmem:[%s1893 + $0x30] sm:$0xff]
        %v1901 = vld [vmem:[%s1893 + $0x38] sm:$0xff]
        %v1910 = vunpack.c.l.b16 %v1894
        %v1911 = vunpack.c.h.b16 %v1894
        %v1912 = vunpack.c.l.b16 %v1895
        %v1913 = vunpack.c.h.b16 %v1895
        %v1914 = vunpack.c.l.b16 %v1896
        %v1915 = vunpack.c.h.b16 %v1896
        %v1916 = vunpack.c.l.b16 %v1897
        %v1917 = vunpack.c.h.b16 %v1897
        %v1918 = vunpack.c.l.b16 %v1898
        %v1919 = vunpack.c.h.b16 %v1898
        %v1920 = vunpack.c.l.b16 %v1899
        %v1921 = vunpack.c.h.b16 %v1899
        %v1922 = vunpack.c.l.b16 %v1900
        %v1923 = vunpack.c.h.b16 %v1900
        %v1924 = vunpack.c.l.b16 %v1901
        %v1925 = vunpack.c.h.b16 %v1901
        %v1926 = vpack.c.b16 %v1912, %v1910
        %v1927 = vpack.c.b16 %v1913, %v1911
        %v1928 = vpack.c.b16 %v1916, %v1914
        %v1929 = vpack.c.b16 %v1917, %v1915
        %v1930 = vpack.c.b16 %v1920, %v1918
        %v1931 = vpack.c.b16 %v1921, %v1919
        %v1932 = vpack.c.b16 %v1924, %v1922
        %v1933 = vpack.c.b16 %v1925, %v1923
        %1942 = vmatprep.subr.bf16.mxu0 0
        %1943 = vmatpush1.bf16.msra.mxu0 %v437
        %1944 = vmatprep.subr.bf16.mxu0 0
        %1945 = vmatpush1.bf16.msra.mxu0 %v438
        %1946 = vmatprep.subr.bf16.mxu0 0
        %1947 = vmatpush1.bf16.msra.mxu0 %v439
        %1948 = vmatprep.subr.bf16.mxu0 0
        %1949 = vmatpush1.bf16.msra.mxu0 %v440
        %1950 = vmatprep.subr.bf16.mxu0 0
        %1951 = vmatpush1.bf16.msra.mxu0 %v441
        %1952 = vmatprep.subr.bf16.mxu0 0
        %1953 = vmatpush1.bf16.msra.mxu0 %v442
        %1954 = vmatprep.subr.bf16.mxu0 0
        %1955 = vmatpush1.bf16.msra.mxu0 %v443
        %1956 = vmatprep.subr.bf16.mxu0 0
        %1957 = vmatpush1.bf16.msra.mxu0 %v444
        %1958 = vmatprep.subr.bf16.mxu0 0
        %1959 = vmatpush1.bf16.msra.mxu0 %v445
        %1960 = vmatprep.subr.bf16.mxu0 0
        %1961 = vmatpush1.bf16.msra.mxu0 %v446
        %1962 = vmatprep.subr.bf16.mxu0 0
        %1963 = vmatpush1.bf16.msra.mxu0 %v447
        %1964 = vmatprep.subr.bf16.mxu0 0
        %1965 = vmatpush1.bf16.msra.mxu0 %v448
        %1966 = vmatprep.subr.bf16.mxu0 0
        %1967 = vmatpush1.bf16.msra.mxu0 %v449
        %1968 = vmatprep.subr.bf16.mxu0 0
        %1969 = vmatpush1.bf16.msra.mxu0 %v450
        %1970 = vmatprep.subr.bf16.mxu0 0
        %1971 = vmatpush1.bf16.msra.mxu0 %v451
        %1972 = vmatprep.subr.bf16.mxu0 0
        %1973 = vmatpush1.bf16.msra.mxu0 %v452
        %1974 = vmatprep.mubr.bf16.mxu0 %v1927
        %1975 = vmatmul.mubr.bf16.gmra.mrb[0].mxu0 %v1926
        %v1976 = vpop.f32.mrb[0].mxu0
        %v1977 = vadd.f32 0.0, %v1976
        %v1978 = vpop.f32.mrb[0].mxu0
        %v1979 = vpop.f32.mrb[0].mxu0
        %v1980 = vadd.f32 0.0, %v1979
        %v1981 = vpop.f32.mrb[0].mxu0
        %1982 = vmatprep.mubr.bf16.mxu0 %v1929
        %1983 = vmatmul.mubr.bf16.gmra.mrb[0].mxu0 %v1928
        %v1984 = vpop.f32.mrb[0].mxu0
        %v1985 = vadd.f32 0.0, %v1984
        %v1986 = vpop.f32.mrb[0].mxu0
        %v1987 = vpop.f32.mrb[0].mxu0
        %v1988 = vadd.f32 0.0, %v1987
        %v1989 = vpop.f32.mrb[0].mxu0
        %1990 = vmatprep.mubr.bf16.mxu0 %v1931
        %1991 = vmatmul.mubr.bf16.gmra.mrb[0].mxu0 %v1930
        %v1992 = vpop.f32.mrb[0].mxu0
        %v1993 = vadd.f32 0.0, %v1992
        %v1994 = vpop.f32.mrb[0].mxu0
        %v1995 = vpop.f32.mrb[0].mxu0
        %v1996 = vadd.f32 0.0, %v1995
        %v1997 = vpop.f32.mrb[0].mxu0
        %1998 = vmatprep.mubr.bf16.mxu0 %v1933
        %1999 = vmatmul.mubr.bf16.gmra.mrb[0].mxu0 %v1932
        %v2000 = vpop.f32.mrb[0].mxu0
        %v2001 = vadd.f32 0.0, %v2000
        %v2002 = vpop.f32.mrb[0].mxu0
        %v2003 = vpop.f32.mrb[0].mxu0
        %v2004 = vadd.f32 0.0, %v2003
        %v2005 = vpop.f32.mrb[0].mxu0
        %2006 = vdwg.mxu0
        %v2007 = vpack.c.bf16 %v1980, %v1977
        %v2008 = vpack.c.bf16 %v1988, %v1985
        %v2009 = vpack.c.bf16 %v1996, %v1993
        %v2010 = vpack.c.bf16 %v2004, %v2001
        %s2011 = scalar_lea.vmem %s2, 14
        %v2012 = vld [vmem:[%s2011] sm:$0x3]
        %v2014 = vsel %vm691, %v2007, 0
        %v2017 = vsel %vm691, %v2008, 0
        %v2020 = vsel %vm691, %v2009, 0
        %v2023 = vsel %vm691, %v2010, 0
        %v2026 = vsel %vm704, %v2012, 0
        %2028 = vmatprep.subr.bf16.mxu0 0
        %2029 = vmatpush1.bf16.msra.mxu0 %v2026
        %2030 = vmatprep.subr.bf16.mxu0 0
        %2031 = vmatpush1.bf16.msra.mxu0 0
        %2032 = vmatprep.subr.bf16.mxu0 0
        %2033 = vmatpush1.bf16.msra.mxu0 0
        %2034 = vmatprep.subr.bf16.mxu0 0
        %2035 = vmatpush1.bf16.msra.mxu0 0
        %2036 = vmatprep.subr.bf16.mxu0 0
        %2037 = vmatpush1.bf16.msra.mxu0 0
        %2038 = vmatprep.subr.bf16.mxu0 0
        %2039 = vmatpush1.bf16.msra.mxu0 0
        %2040 = vmatprep.subr.bf16.mxu0 0
        %2041 = vmatpush1.bf16.msra.mxu0 0
        %2042 = vmatprep.subr.bf16.mxu0 0
        %2043 = vmatpush1.bf16.msra.mxu0 0
        %2044 = vmatprep.subr.bf16.mxu0 0
        %2045 = vmatpush1.bf16.msra.mxu0 0
        %2046 = vmatprep.subr.bf16.mxu0 0
        %2047 = vmatpush1.bf16.msra.mxu0 0
        %2048 = vmatprep.subr.bf16.mxu0 0
        %2049 = vmatpush1.bf16.msra.mxu0 0
        %2050 = vmatprep.subr.bf16.mxu0 0
        %2051 = vmatpush1.bf16.msra.mxu0 0
        %2052 = vmatprep.subr.bf16.mxu0 0
        %2053 = vmatpush1.bf16.msra.mxu0 0
        %2054 = vmatprep.subr.bf16.mxu0 0
        %2055 = vmatpush1.bf16.msra.mxu0 0
        %2056 = vmatprep.subr.bf16.mxu0 0
        %2057 = vmatpush1.bf16.msra.mxu0 0
        %2058 = vmatprep.subr.bf16.mxu0 0
        %2059 = vmatpush1.bf16.msra.mxu0 0
        %2060 = vmatprep.mubr.bf16.mxu0 0
        %2061 = vmatmul.mubr.bf16.gmra.mrb[0].mxu0 %v2014
        %v2062 = vpop.f32.mrb[0].mxu0
        %v2063 = vadd.f32 0.0, %v2062
        %v2064 = vpop.f32.mrb[0].mxu0
        %v2065 = vpop.f32.mrb[0].mxu0
        %v2066 = vadd.f32 0.0, %v2065
        %v2067 = vpop.f32.mrb[0].mxu0
        %2068 = vmatprep.mubr.bf16.mxu0 0
        %2069 = vmatmul.mubr.bf16.gmra.mrb[0].mxu0 %v2017
        %v2070 = vpop.f32.mrb[0].mxu0
        %v2071 = vadd.f32 0.0, %v2070
        %v2072 = vpop.f32.mrb[0].mxu0
        %v2073 = vpop.f32.mrb[0].mxu0
        %v2074 = vadd.f32 0.0, %v2073
        %v2075 = vpop.f32.mrb[0].mxu0
        %2076 = vmatprep.mubr.bf16.mxu0 0
        %2077 = vmatmul.mubr.bf16.gmra.mrb[0].mxu0 %v2020
        %v2078 = vpop.f32.mrb[0].mxu0
        %v2079 = vadd.f32 0.0, %v2078
        %v2080 = vpop.f32.mrb[0].mxu0
        %v2081 = vpop.f32.mrb[0].mxu0
        %v2082 = vadd.f32 0.0, %v2081
        %v2083 = vpop.f32.mrb[0].mxu0
        %2084 = vmatprep.mubr.bf16.mxu0 0
        %2085 = vmatmul.mubr.bf16.gmra.mrb[0].mxu0 %v2023
        %v2086 = vpop.f32.mrb[0].mxu0
        %v2087 = vadd.f32 0.0, %v2086
        %v2088 = vpop.f32.mrb[0].mxu0
        %v2089 = vpop.f32.mrb[0].mxu0
        %v2090 = vadd.f32 0.0, %v2089
        %v2091 = vpop.f32.mrb[0].mxu0
        %2092 = vdwg.mxu0
        %v2093 = vadd.f32 %v1885, %v2063
        %v2094 = vadd.f32 %v1886, %v2066
        %v2095 = vadd.f32 %v1887, %v2071
        %v2096 = vadd.f32 %v1888, %v2074
        %v2097 = vadd.f32 %v1889, %v2079
        %v2098 = vadd.f32 %v1890, %v2082
        %v2099 = vadd.f32 %v1891, %v2087
        %v2100 = vadd.f32 %v1892, %v2090
        %s2101 = scalar_lea.vmem [#allocation2], 512
        %v2102 = vld [vmem:[%s2101] sm:$0xff]
        %v2103 = vld [vmem:[%s2101 + $0x8] sm:$0xff]
        %v2104 = vld [vmem:[%s2101 + $0x10] sm:$0xff]
        %v2105 = vld [vmem:[%s2101 + $0x18] sm:$0xff]
        %v2106 = vld [vmem:[%s2101 + $0x20] sm:$0xff]
        %v2107 = vld [vmem:[%s2101 + $0x28] sm:$0xff]
        %v2108 = vld [vmem:[%s2101 + $0x30] sm:$0xff]
        %v2109 = vld [vmem:[%s2101 + $0x38] sm:$0xff]
        %v2118 = vunpack.c.l.b16 %v2102
        %v2119 = vunpack.c.h.b16 %v2102
        %v2120 = vunpack.c.l.b16 %v2103
        %v2121 = vunpack.c.h.b16 %v2103
        %v2122 = vunpack.c.l.b16 %v2104
        %v2123 = vunpack.c.h.b16 %v2104
        %v2124 = vunpack.c.l.b16 %v2105
        %v2125 = vunpack.c.h.b16 %v2105
        %v2126 = vunpack.c.l.b16 %v2106
        %v2127 = vunpack.c.h.b16 %v2106
        %v2128 = vunpack.c.l.b16 %v2107
        %v2129 = vunpack.c.h.b16 %v2107
        %v2130 = vunpack.c.l.b16 %v2108
        %v2131 = vunpack.c.h.b16 %v2108
        %v2132 = vunpack.c.l.b16 %v2109
        %v2133 = vunpack.c.h.b16 %v2109
        %v2134 = vpack.c.b16 %v2120, %v2118
        %v2135 = vpack.c.b16 %v2121, %v2119
        %v2136 = vpack.c.b16 %v2124, %v2122
        %v2137 = vpack.c.b16 %v2125, %v2123
        %v2138 = vpack.c.b16 %v2128, %v2126
        %v2139 = vpack.c.b16 %v2129, %v2127
        %v2140 = vpack.c.b16 %v2132, %v2130
        %v2141 = vpack.c.b16 %v2133, %v2131
        %2150 = vmatprep.subr.bf16.mxu0 0
        %2151 = vmatpush1.bf16.msra.mxu0 %v437
        %2152 = vmatprep.subr.bf16.mxu0 0
        %2153 = vmatpush1.bf16.msra.mxu0 %v438
        %2154 = vmatprep.subr.bf16.mxu0 0
        %2155 = vmatpush1.bf16.msra.mxu0 %v439
        %2156 = vmatprep.subr.bf16.mxu0 0
        %2157 = vmatpush1.bf16.msra.mxu0 %v440
        %2158 = vmatprep.subr.bf16.mxu0 0
        %2159 = vmatpush1.bf16.msra.mxu0 %v441
        %2160 = vmatprep.subr.bf16.mxu0 0
        %2161 = vmatpush1.bf16.msra.mxu0 %v442
        %2162 = vmatprep.subr.bf16.mxu0 0
        %2163 = vmatpush1.bf16.msra.mxu0 %v443
        %2164 = vmatprep.subr.bf16.mxu0 0
        %2165 = vmatpush1.bf16.msra.mxu0 %v444
        %2166 = vmatprep.subr.bf16.mxu0 0
        %2167 = vmatpush1.bf16.msra.mxu0 %v445
        %2168 = vmatprep.subr.bf16.mxu0 0
        %2169 = vmatpush1.bf16.msra.mxu0 %v446
        %2170 = vmatprep.subr.bf16.mxu0 0
        %2171 = vmatpush1.bf16.msra.mxu0 %v447
        %2172 = vmatprep.subr.bf16.mxu0 0
        %2173 = vmatpush1.bf16.msra.mxu0 %v448
        %2174 = vmatprep.subr.bf16.mxu0 0
        %2175 = vmatpush1.bf16.msra.mxu0 %v449
        %2176 = vmatprep.subr.bf16.mxu0 0
        %2177 = vmatpush1.bf16.msra.mxu0 %v450
        %2178 = vmatprep.subr.bf16.mxu0 0
        %2179 = vmatpush1.bf16.msra.mxu0 %v451
        %2180 = vmatprep.subr.bf16.mxu0 0
        %2181 = vmatpush1.bf16.msra.mxu0 %v452
        %2182 = vmatprep.mubr.bf16.mxu0 %v2135
        %2183 = vmatmul.mubr.bf16.gmra.mrb[0].mxu0 %v2134
        %v2184 = vpop.f32.mrb[0].mxu0
        %v2185 = vadd.f32 0.0, %v2184
        %v2186 = vpop.f32.mrb[0].mxu0
        %v2187 = vpop.f32.mrb[0].mxu0
        %v2188 = vadd.f32 0.0, %v2187
        %v2189 = vpop.f32.mrb[0].mxu0
        %2190 = vmatprep.mubr.bf16.mxu0 %v2137
        %2191 = vmatmul.mubr.bf16.gmra.mrb[0].mxu0 %v2136
        %v2192 = vpop.f32.mrb[0].mxu0
        %v2193 = vadd.f32 0.0, %v2192
        %v2194 = vpop.f32.mrb[0].mxu0
        %v2195 = vpop.f32.mrb[0].mxu0
        %v2196 = vadd.f32 0.0, %v2195
        %v2197 = vpop.f32.mrb[0].mxu0
        %2198 = vmatprep.mubr.bf16.mxu0 %v2139
        %2199 = vmatmul.mubr.bf16.gmra.mrb[0].mxu0 %v2138
        %v2200 = vpop.f32.mrb[0].mxu0
        %v2201 = vadd.f32 0.0, %v2200
        %v2202 = vpop.f32.mrb[0].mxu0
        %v2203 = vpop.f32.mrb[0].mxu0
        %v2204 = vadd.f32 0.0, %v2203
        %v2205 = vpop.f32.mrb[0].mxu0
        %2206 = vmatprep.mubr.bf16.mxu0 %v2141
        %2207 = vmatmul.mubr.bf16.gmra.mrb[0].mxu0 %v2140
        %v2208 = vpop.f32.mrb[0].mxu0
        %v2209 = vadd.f32 0.0, %v2208
        %v2210 = vpop.f32.mrb[0].mxu0
        %v2211 = vpop.f32.mrb[0].mxu0
        %v2212 = vadd.f32 0.0, %v2211
        %v2213 = vpop.f32.mrb[0].mxu0
        %2214 = vdwg.mxu0
        %v2215 = vpack.c.bf16 %v2188, %v2185
        %v2216 = vpack.c.bf16 %v2196, %v2193
        %v2217 = vpack.c.bf16 %v2204, %v2201
        %v2218 = vpack.c.bf16 %v2212, %v2209
        %s2219 = scalar_lea.vmem %s2, 16
        %v2220 = vld [vmem:[%s2219] sm:$0x3]
        %v2222 = vsel %vm691, %v2215, 0
        %v2225 = vsel %vm691, %v2216, 0
        %v2228 = vsel %vm691, %v2217, 0
        %v2231 = vsel %vm691, %v2218, 0
        %v2234 = vsel %vm704, %v2220, 0
        %2236 = vmatprep.subr.bf16.mxu0 0
        %2237 = vmatpush1.bf16.msra.mxu0 %v2234
        %2238 = vmatprep.subr.bf16.mxu0 0
        %2239 = vmatpush1.bf16.msra.mxu0 0
        %2240 = vmatprep.subr.bf16.mxu0 0
        %2241 = vmatpush1.bf16.msra.mxu0 0
        %2242 = vmatprep.subr.bf16.mxu0 0
        %2243 = vmatpush1.bf16.msra.mxu0 0
        %2244 = vmatprep.subr.bf16.mxu0 0
        %2245 = vmatpush1.bf16.msra.mxu0 0
        %2246 = vmatprep.subr.bf16.mxu0 0
        %2247 = vmatpush1.bf16.msra.mxu0 0
        %2248 = vmatprep.subr.bf16.mxu0 0
        %2249 = vmatpush1.bf16.msra.mxu0 0
        %2250 = vmatprep.subr.bf16.mxu0 0
        %2251 = vmatpush1.bf16.msra.mxu0 0
        %2252 = vmatprep.subr.bf16.mxu0 0
        %2253 = vmatpush1.bf16.msra.mxu0 0
        %2254 = vmatprep.subr.bf16.mxu0 0
        %2255 = vmatpush1.bf16.msra.mxu0 0
        %2256 = vmatprep.subr.bf16.mxu0 0
        %2257 = vmatpush1.bf16.msra.mxu0 0
        %2258 = vmatprep.subr.bf16.mxu0 0
        %2259 = vmatpush1.bf16.msra.mxu0 0
        %2260 = vmatprep.subr.bf16.mxu0 0
        %2261 = vmatpush1.bf16.msra.mxu0 0
        %2262 = vmatprep.subr.bf16.mxu0 0
        %2263 = vmatpush1.bf16.msra.mxu0 0
        %2264 = vmatprep.subr.bf16.mxu0 0
        %2265 = vmatpush1.bf16.msra.mxu0 0
        %2266 = vmatprep.subr.bf16.mxu0 0
        %2267 = vmatpush1.bf16.msra.mxu0 0
        %2268 = vmatprep.mubr.bf16.mxu0 0
        %2269 = vmatmul.mubr.bf16.gmra.mrb[0].mxu0 %v2222
        %v2270 = vpop.f32.mrb[0].mxu0
        %v2271 = vadd.f32 0.0, %v2270
        %v2272 = vpop.f32.mrb[0].mxu0
        %v2273 = vpop.f32.mrb[0].mxu0
        %v2274 = vadd.f32 0.0, %v2273
        %v2275 = vpop.f32.mrb[0].mxu0
        %2276 = vmatprep.mubr.bf16.mxu0 0
        %2277 = vmatmul.mubr.bf16.gmra.mrb[0].mxu0 %v2225
        %v2278 = vpop.f32.mrb[0].mxu0
        %v2279 = vadd.f32 0.0, %v2278
        %v2280 = vpop.f32.mrb[0].mxu0
        %v2281 = vpop.f32.mrb[0].mxu0
        %v2282 = vadd.f32 0.0, %v2281
        %v2283 = vpop.f32.mrb[0].mxu0
        %2284 = vmatprep.mubr.bf16.mxu0 0
        %2285 = vmatmul.mubr.bf16.gmra.mrb[0].mxu0 %v2228
        %v2286 = vpop.f32.mrb[0].mxu0
        %v2287 = vadd.f32 0.0, %v2286
        %v2288 = vpop.f32.mrb[0].mxu0
        %v2289 = vpop.f32.mrb[0].mxu0
        %v2290 = vadd.f32 0.0, %v2289
        %v2291 = vpop.f32.mrb[0].mxu0
        %2292 = vmatprep.mubr.bf16.mxu0 0
        %2293 = vmatmul.mubr.bf16.gmra.mrb[0].mxu0 %v2231
        %v2294 = vpop.f32.mrb[0].mxu0
        %v2295 = vadd.f32 0.0, %v2294
        %v2296 = vpop.f32.mrb[0].mxu0
        %v2297 = vpop.f32.mrb[0].mxu0
        %v2298 = vadd.f32 0.0, %v2297
        %v2299 = vpop.f32.mrb[0].mxu0
        %2300 = vdwg.mxu0
        %v2301 = vadd.f32 %v2093, %v2271
        %v2302 = vadd.f32 %v2094, %v2274
        %v2303 = vadd.f32 %v2095, %v2279
        %v2304 = vadd.f32 %v2096, %v2282
        %v2305 = vadd.f32 %v2097, %v2287
        %v2306 = vadd.f32 %v2098, %v2290
        %v2307 = vadd.f32 %v2099, %v2295
        %v2308 = vadd.f32 %v2100, %v2298
        %s2309 = scalar_lea.vmem [#allocation2], 576
        %v2310 = vld [vmem:[%s2309] sm:$0xff]
        %v2311 = vld [vmem:[%s2309 + $0x8] sm:$0xff]
        %v2312 = vld [vmem:[%s2309 + $0x10] sm:$0xff]
        %v2313 = vld [vmem:[%s2309 + $0x18] sm:$0xff]
        %v2314 = vld [vmem:[%s2309 + $0x20] sm:$0xff]
        %v2315 = vld [vmem:[%s2309 + $0x28] sm:$0xff]
        %v2316 = vld [vmem:[%s2309 + $0x30] sm:$0xff]
        %v2317 = vld [vmem:[%s2309 + $0x38] sm:$0xff]
        %v2326 = vunpack.c.l.b16 %v2310
        %v2327 = vunpack.c.h.b16 %v2310
        %v2328 = vunpack.c.l.b16 %v2311
        %v2329 = vunpack.c.h.b16 %v2311
        %v2330 = vunpack.c.l.b16 %v2312
        %v2331 = vunpack.c.h.b16 %v2312
        %v2332 = vunpack.c.l.b16 %v2313
        %v2333 = vunpack.c.h.b16 %v2313
        %v2334 = vunpack.c.l.b16 %v2314
        %v2335 = vunpack.c.h.b16 %v2314
        %v2336 = vunpack.c.l.b16 %v2315
        %v2337 = vunpack.c.h.b16 %v2315
        %v2338 = vunpack.c.l.b16 %v2316
        %v2339 = vunpack.c.h.b16 %v2316
        %v2340 = vunpack.c.l.b16 %v2317
        %v2341 = vunpack.c.h.b16 %v2317
        %v2342 = vpack.c.b16 %v2328, %v2326
        %v2343 = vpack.c.b16 %v2329, %v2327
        %v2344 = vpack.c.b16 %v2332, %v2330
        %v2345 = vpack.c.b16 %v2333, %v2331
        %v2346 = vpack.c.b16 %v2336, %v2334
        %v2347 = vpack.c.b16 %v2337, %v2335
        %v2348 = vpack.c.b16 %v2340, %v2338
        %v2349 = vpack.c.b16 %v2341, %v2339
        %2358 = vmatprep.subr.bf16.mxu0 0
        %2359 = vmatpush1.bf16.msra.mxu0 %v437
        %2360 = vmatprep.subr.bf16.mxu0 0
        %2361 = vmatpush1.bf16.msra.mxu0 %v438
        %2362 = vmatprep.subr.bf16.mxu0 0
        %2363 = vmatpush1.bf16.msra.mxu0 %v439
        %2364 = vmatprep.subr.bf16.mxu0 0
        %2365 = vmatpush1.bf16.msra.mxu0 %v440
        %2366 = vmatprep.subr.bf16.mxu0 0
        %2367 = vmatpush1.bf16.msra.mxu0 %v441
        %2368 = vmatprep.subr.bf16.mxu0 0
        %2369 = vmatpush1.bf16.msra.mxu0 %v442
        %2370 = vmatprep.subr.bf16.mxu0 0
        %2371 = vmatpush1.bf16.msra.mxu0 %v443
        %2372 = vmatprep.subr.bf16.mxu0 0
        %2373 = vmatpush1.bf16.msra.mxu0 %v444
        %2374 = vmatprep.subr.bf16.mxu0 0
        %2375 = vmatpush1.bf16.msra.mxu0 %v445
        %2376 = vmatprep.subr.bf16.mxu0 0
        %2377 = vmatpush1.bf16.msra.mxu0 %v446
        %2378 = vmatprep.subr.bf16.mxu0 0
        %2379 = vmatpush1.bf16.msra.mxu0 %v447
        %2380 = vmatprep.subr.bf16.mxu0 0
        %2381 = vmatpush1.bf16.msra.mxu0 %v448
        %2382 = vmatprep.subr.bf16.mxu0 0
        %2383 = vmatpush1.bf16.msra.mxu0 %v449
        %2384 = vmatprep.subr.bf16.mxu0 0
        %2385 = vmatpush1.bf16.msra.mxu0 %v450
        %2386 = vmatprep.subr.bf16.mxu0 0
        %2387 = vmatpush1.bf16.msra.mxu0 %v451
        %2388 = vmatprep.subr.bf16.mxu0 0
        %2389 = vmatpush1.bf16.msra.mxu0 %v452
        %2390 = vmatprep.mubr.bf16.mxu0 %v2343
        %2391 = vmatmul.mubr.bf16.gmra.mrb[0].mxu0 %v2342
        %v2392 = vpop.f32.mrb[0].mxu0
        %v2393 = vadd.f32 0.0, %v2392
        %v2394 = vpop.f32.mrb[0].mxu0
        %v2395 = vpop.f32.mrb[0].mxu0
        %v2396 = vadd.f32 0.0, %v2395
        %v2397 = vpop.f32.mrb[0].mxu0
        %2398 = vmatprep.mubr.bf16.mxu0 %v2345
        %2399 = vmatmul.mubr.bf16.gmra.mrb[0].mxu0 %v2344
        %v2400 = vpop.f32.mrb[0].mxu0
        %v2401 = vadd.f32 0.0, %v2400
        %v2402 = vpop.f32.mrb[0].mxu0
        %v2403 = vpop.f32.mrb[0].mxu0
        %v2404 = vadd.f32 0.0, %v2403
        %v2405 = vpop.f32.mrb[0].mxu0
        %2406 = vmatprep.mubr.bf16.mxu0 %v2347
        %2407 = vmatmul.mubr.bf16.gmra.mrb[0].mxu0 %v2346
        %v2408 = vpop.f32.mrb[0].mxu0
        %v2409 = vadd.f32 0.0, %v2408
        %v2410 = vpop.f32.mrb[0].mxu0
        %v2411 = vpop.f32.mrb[0].mxu0
        %v2412 = vadd.f32 0.0, %v2411
        %v2413 = vpop.f32.mrb[0].mxu0
        %2414 = vmatprep.mubr.bf16.mxu0 %v2349
        %2415 = vmatmul.mubr.bf16.gmra.mrb[0].mxu0 %v2348
        %v2416 = vpop.f32.mrb[0].mxu0
        %v2417 = vadd.f32 0.0, %v2416
        %v2418 = vpop.f32.mrb[0].mxu0
        %v2419 = vpop.f32.mrb[0].mxu0
        %v2420 = vadd.f32 0.0, %v2419
        %v2421 = vpop.f32.mrb[0].mxu0
        %2422 = vdwg.mxu0
        %v2423 = vpack.c.bf16 %v2396, %v2393
        %v2424 = vpack.c.bf16 %v2404, %v2401
        %v2425 = vpack.c.bf16 %v2412, %v2409
        %v2426 = vpack.c.bf16 %v2420, %v2417
        %s2427 = scalar_lea.vmem %s2, 18
        %v2428 = vld [vmem:[%s2427] sm:$0x3]
        %v2430 = vsel %vm691, %v2423, 0
        %v2433 = vsel %vm691, %v2424, 0
        %v2436 = vsel %vm691, %v2425, 0
        %v2439 = vsel %vm691, %v2426, 0
        %v2442 = vsel %vm704, %v2428, 0
        %2444 = vmatprep.subr.bf16.mxu0 0
        %2445 = vmatpush1.bf16.msra.mxu0 %v2442
        %2446 = vmatprep.subr.bf16.mxu0 0
        %2447 = vmatpush1.bf16.msra.mxu0 0
        %2448 = vmatprep.subr.bf16.mxu0 0
        %2449 = vmatpush1.bf16.msra.mxu0 0
        %2450 = vmatprep.subr.bf16.mxu0 0
        %2451 = vmatpush1.bf16.msra.mxu0 0
        %2452 = vmatprep.subr.bf16.mxu0 0
        %2453 = vmatpush1.bf16.msra.mxu0 0
        %2454 = vmatprep.subr.bf16.mxu0 0
        %2455 = vmatpush1.bf16.msra.mxu0 0
        %2456 = vmatprep.subr.bf16.mxu0 0
        %2457 = vmatpush1.bf16.msra.mxu0 0
        %2458 = vmatprep.subr.bf16.mxu0 0
        %2459 = vmatpush1.bf16.msra.mxu0 0
        %2460 = vmatprep.subr.bf16.mxu0 0
        %2461 = vmatpush1.bf16.msra.mxu0 0
        %2462 = vmatprep.subr.bf16.mxu0 0
        %2463 = vmatpush1.bf16.msra.mxu0 0
        %2464 = vmatprep.subr.bf16.mxu0 0
        %2465 = vmatpush1.bf16.msra.mxu0 0
        %2466 = vmatprep.subr.bf16.mxu0 0
        %2467 = vmatpush1.bf16.msra.mxu0 0
        %2468 = vmatprep.subr.bf16.mxu0 0
        %2469 = vmatpush1.bf16.msra.mxu0 0
        %2470 = vmatprep.subr.bf16.mxu0 0
        %2471 = vmatpush1.bf16.msra.mxu0 0
        %2472 = vmatprep.subr.bf16.mxu0 0
        %2473 = vmatpush1.bf16.msra.mxu0 0
        %2474 = vmatprep.subr.bf16.mxu0 0
        %2475 = vmatpush1.bf16.msra.mxu0 0
        %2476 = vmatprep.mubr.bf16.mxu0 0
        %2477 = vmatmul.mubr.bf16.gmra.mrb[0].mxu0 %v2430
        %v2478 = vpop.f32.mrb[0].mxu0
        %v2479 = vadd.f32 0.0, %v2478
        %v2480 = vpop.f32.mrb[0].mxu0
        %v2481 = vpop.f32.mrb[0].mxu0
        %v2482 = vadd.f32 0.0, %v2481
        %v2483 = vpop.f32.mrb[0].mxu0
        %2484 = vmatprep.mubr.bf16.mxu0 0
        %2485 = vmatmul.mubr.bf16.gmra.mrb[0].mxu0 %v2433
        %v2486 = vpop.f32.mrb[0].mxu0
        %v2487 = vadd.f32 0.0, %v2486
        %v2488 = vpop.f32.mrb[0].mxu0
        %v2489 = vpop.f32.mrb[0].mxu0
        %v2490 = vadd.f32 0.0, %v2489
        %v2491 = vpop.f32.mrb[0].mxu0
        %2492 = vmatprep.mubr.bf16.mxu0 0
        %2493 = vmatmul.mubr.bf16.gmra.mrb[0].mxu0 %v2436
        %v2494 = vpop.f32.mrb[0].mxu0
        %v2495 = vadd.f32 0.0, %v2494
        %v2496 = vpop.f32.mrb[0].mxu0
        %v2497 = vpop.f32.mrb[0].mxu0
        %v2498 = vadd.f32 0.0, %v2497
        %v2499 = vpop.f32.mrb[0].mxu0
        %2500 = vmatprep.mubr.bf16.mxu0 0
        %2501 = vmatmul.mubr.bf16.gmra.mrb[0].mxu0 %v2439
        %v2502 = vpop.f32.mrb[0].mxu0
        %v2503 = vadd.f32 0.0, %v2502
        %v2504 = vpop.f32.mrb[0].mxu0
        %v2505 = vpop.f32.mrb[0].mxu0
        %v2506 = vadd.f32 0.0, %v2505
        %v2507 = vpop.f32.mrb[0].mxu0
        %2508 = vdwg.mxu0
        %v2509 = vadd.f32 %v2301, %v2479
        %v2510 = vadd.f32 %v2302, %v2482
        %v2511 = vadd.f32 %v2303, %v2487
        %v2512 = vadd.f32 %v2304, %v2490
        %v2513 = vadd.f32 %v2305, %v2495
        %v2514 = vadd.f32 %v2306, %v2498
        %v2515 = vadd.f32 %v2307, %v2503
        %v2516 = vadd.f32 %v2308, %v2506
        %s2517 = scalar_lea.vmem [#allocation2], 640
        %v2518 = vld [vmem:[%s2517] sm:$0xff]
        %v2519 = vld [vmem:[%s2517 + $0x8] sm:$0xff]
        %v2520 = vld [vmem:[%s2517 + $0x10] sm:$0xff]
        %v2521 = vld [vmem:[%s2517 + $0x18] sm:$0xff]
        %v2522 = vld [vmem:[%s2517 + $0x20] sm:$0xff]
        %v2523 = vld [vmem:[%s2517 + $0x28] sm:$0xff]
        %v2524 = vld [vmem:[%s2517 + $0x30] sm:$0xff]
        %v2525 = vld [vmem:[%s2517 + $0x38] sm:$0xff]
        %v2534 = vunpack.c.l.b16 %v2518
        %v2535 = vunpack.c.h.b16 %v2518
        %v2536 = vunpack.c.l.b16 %v2519
        %v2537 = vunpack.c.h.b16 %v2519
        %v2538 = vunpack.c.l.b16 %v2520
        %v2539 = vunpack.c.h.b16 %v2520
        %v2540 = vunpack.c.l.b16 %v2521
        %v2541 = vunpack.c.h.b16 %v2521
        %v2542 = vunpack.c.l.b16 %v2522
        %v2543 = vunpack.c.h.b16 %v2522
        %v2544 = vunpack.c.l.b16 %v2523
        %v2545 = vunpack.c.h.b16 %v2523
        %v2546 = vunpack.c.l.b16 %v2524
        %v2547 = vunpack.c.h.b16 %v2524
        %v2548 = vunpack.c.l.b16 %v2525
        %v2549 = vunpack.c.h.b16 %v2525
        %v2550 = vpack.c.b16 %v2536, %v2534
        %v2551 = vpack.c.b16 %v2537, %v2535
        %v2552 = vpack.c.b16 %v2540, %v2538
        %v2553 = vpack.c.b16 %v2541, %v2539
        %v2554 = vpack.c.b16 %v2544, %v2542
        %v2555 = vpack.c.b16 %v2545, %v2543
        %v2556 = vpack.c.b16 %v2548, %v2546
        %v2557 = vpack.c.b16 %v2549, %v2547
        %2566 = vmatprep.subr.bf16.mxu0 0
        %2567 = vmatpush1.bf16.msra.mxu0 %v437
        %2568 = vmatprep.subr.bf16.mxu0 0
        %2569 = vmatpush1.bf16.msra.mxu0 %v438
        %2570 = vmatprep.subr.bf16.mxu0 0
        %2571 = vmatpush1.bf16.msra.mxu0 %v439
        %2572 = vmatprep.subr.bf16.mxu0 0
        %2573 = vmatpush1.bf16.msra.mxu0 %v440
        %2574 = vmatprep.subr.bf16.mxu0 0
        %2575 = vmatpush1.bf16.msra.mxu0 %v441
        %2576 = vmatprep.subr.bf16.mxu0 0
        %2577 = vmatpush1.bf16.msra.mxu0 %v442
        %2578 = vmatprep.subr.bf16.mxu0 0
        %2579 = vmatpush1.bf16.msra.mxu0 %v443
        %2580 = vmatprep.subr.bf16.mxu0 0
        %2581 = vmatpush1.bf16.msra.mxu0 %v444
        %2582 = vmatprep.subr.bf16.mxu0 0
        %2583 = vmatpush1.bf16.msra.mxu0 %v445
        %2584 = vmatprep.subr.bf16.mxu0 0
        %2585 = vmatpush1.bf16.msra.mxu0 %v446
        %2586 = vmatprep.subr.bf16.mxu0 0
        %2587 = vmatpush1.bf16.msra.mxu0 %v447
        %2588 = vmatprep.subr.bf16.mxu0 0
        %2589 = vmatpush1.bf16.msra.mxu0 %v448
        %2590 = vmatprep.subr.bf16.mxu0 0
        %2591 = vmatpush1.bf16.msra.mxu0 %v449
        %2592 = vmatprep.subr.bf16.mxu0 0
        %2593 = vmatpush1.bf16.msra.mxu0 %v450
        %2594 = vmatprep.subr.bf16.mxu0 0
        %2595 = vmatpush1.bf16.msra.mxu0 %v451
        %2596 = vmatprep.subr.bf16.mxu0 0
        %2597 = vmatpush1.bf16.msra.mxu0 %v452
        %2598 = vmatprep.mubr.bf16.mxu0 %v2551
        %2599 = vmatmul.mubr.bf16.gmra.mrb[0].mxu0 %v2550
        %v2600 = vpop.f32.mrb[0].mxu0
        %v2601 = vadd.f32 0.0, %v2600
        %v2602 = vpop.f32.mrb[0].mxu0
        %v2603 = vpop.f32.mrb[0].mxu0
        %v2604 = vadd.f32 0.0, %v2603
        %v2605 = vpop.f32.mrb[0].mxu0
        %2606 = vmatprep.mubr.bf16.mxu0 %v2553
        %2607 = vmatmul.mubr.bf16.gmra.mrb[0].mxu0 %v2552
        %v2608 = vpop.f32.mrb[0].mxu0
        %v2609 = vadd.f32 0.0, %v2608
        %v2610 = vpop.f32.mrb[0].mxu0
        %v2611 = vpop.f32.mrb[0].mxu0
        %v2612 = vadd.f32 0.0, %v2611
        %v2613 = vpop.f32.mrb[0].mxu0
        %2614 = vmatprep.mubr.bf16.mxu0 %v2555
        %2615 = vmatmul.mubr.bf16.gmra.mrb[0].mxu0 %v2554
        %v2616 = vpop.f32.mrb[0].mxu0
        %v2617 = vadd.f32 0.0, %v2616
        %v2618 = vpop.f32.mrb[0].mxu0
        %v2619 = vpop.f32.mrb[0].mxu0
        %v2620 = vadd.f32 0.0, %v2619
        %v2621 = vpop.f32.mrb[0].mxu0
        %2622 = vmatprep.mubr.bf16.mxu0 %v2557
        %2623 = vmatmul.mubr.bf16.gmra.mrb[0].mxu0 %v2556
        %v2624 = vpop.f32.mrb[0].mxu0
        %v2625 = vadd.f32 0.0, %v2624
        %v2626 = vpop.f32.mrb[0].mxu0
        %v2627 = vpop.f32.mrb[0].mxu0
        %v2628 = vadd.f32 0.0, %v2627
        %v2629 = vpop.f32.mrb[0].mxu0
        %2630 = vdwg.mxu0
        %v2631 = vpack.c.bf16 %v2604, %v2601
        %v2632 = vpack.c.bf16 %v2612, %v2609
        %v2633 = vpack.c.bf16 %v2620, %v2617
        %v2634 = vpack.c.bf16 %v2628, %v2625
        %s2635 = scalar_lea.vmem %s2, 20
        %v2636 = vld [vmem:[%s2635] sm:$0x3]
        %v2638 = vsel %vm691, %v2631, 0
        %v2641 = vsel %vm691, %v2632, 0
        %v2644 = vsel %vm691, %v2633, 0
        %v2647 = vsel %vm691, %v2634, 0
        %v2650 = vsel %vm704, %v2636, 0
        %2652 = vmatprep.subr.bf16.mxu0 0
        %2653 = vmatpush1.bf16.msra.mxu0 %v2650
        %2654 = vmatprep.subr.bf16.mxu0 0
        %2655 = vmatpush1.bf16.msra.mxu0 0
        %2656 = vmatprep.subr.bf16.mxu0 0
        %2657 = vmatpush1.bf16.msra.mxu0 0
        %2658 = vmatprep.subr.bf16.mxu0 0
        %2659 = vmatpush1.bf16.msra.mxu0 0
        %2660 = vmatprep.subr.bf16.mxu0 0
        %2661 = vmatpush1.bf16.msra.mxu0 0
        %2662 = vmatprep.subr.bf16.mxu0 0
        %2663 = vmatpush1.bf16.msra.mxu0 0
        %2664 = vmatprep.subr.bf16.mxu0 0
        %2665 = vmatpush1.bf16.msra.mxu0 0
        %2666 = vmatprep.subr.bf16.mxu0 0
        %2667 = vmatpush1.bf16.msra.mxu0 0
        %2668 = vmatprep.subr.bf16.mxu0 0
        %2669 = vmatpush1.bf16.msra.mxu0 0
        %2670 = vmatprep.subr.bf16.mxu0 0
        %2671 = vmatpush1.bf16.msra.mxu0 0
        %2672 = vmatprep.subr.bf16.mxu0 0
        %2673 = vmatpush1.bf16.msra.mxu0 0
        %2674 = vmatprep.subr.bf16.mxu0 0
        %2675 = vmatpush1.bf16.msra.mxu0 0
        %2676 = vmatprep.subr.bf16.mxu0 0
        %2677 = vmatpush1.bf16.msra.mxu0 0
        %2678 = vmatprep.subr.bf16.mxu0 0
        %2679 = vmatpush1.bf16.msra.mxu0 0
        %2680 = vmatprep.subr.bf16.mxu0 0
        %2681 = vmatpush1.bf16.msra.mxu0 0
        %2682 = vmatprep.subr.bf16.mxu0 0
        %2683 = vmatpush1.bf16.msra.mxu0 0
        %2684 = vmatprep.mubr.bf16.mxu0 0
        %2685 = vmatmul.mubr.bf16.gmra.mrb[0].mxu0 %v2638
        %v2686 = vpop.f32.mrb[0].mxu0
        %v2687 = vadd.f32 0.0, %v2686
        %v2688 = vpop.f32.mrb[0].mxu0
        %v2689 = vpop.f32.mrb[0].mxu0
        %v2690 = vadd.f32 0.0, %v2689
        %v2691 = vpop.f32.mrb[0].mxu0
        %2692 = vmatprep.mubr.bf16.mxu0 0
        %2693 = vmatmul.mubr.bf16.gmra.mrb[0].mxu0 %v2641
        %v2694 = vpop.f32.mrb[0].mxu0
        %v2695 = vadd.f32 0.0, %v2694
        %v2696 = vpop.f32.mrb[0].mxu0
        %v2697 = vpop.f32.mrb[0].mxu0
        %v2698 = vadd.f32 0.0, %v2697
        %v2699 = vpop.f32.mrb[0].mxu0
        %2700 = vmatprep.mubr.bf16.mxu0 0
        %2701 = vmatmul.mubr.bf16.gmra.mrb[0].mxu0 %v2644
        %v2702 = vpop.f32.mrb[0].mxu0
        %v2703 = vadd.f32 0.0, %v2702
        %v2704 = vpop.f32.mrb[0].mxu0
        %v2705 = vpop.f32.mrb[0].mxu0
        %v2706 = vadd.f32 0.0, %v2705
        %v2707 = vpop.f32.mrb[0].mxu0
        %2708 = vmatprep.mubr.bf16.mxu0 0
        %2709 = vmatmul.mubr.bf16.gmra.mrb[0].mxu0 %v2647
        %v2710 = vpop.f32.mrb[0].mxu0
        %v2711 = vadd.f32 0.0, %v2710
        %v2712 = vpop.f32.mrb[0].mxu0
        %v2713 = vpop.f32.mrb[0].mxu0
        %v2714 = vadd.f32 0.0, %v2713
        %v2715 = vpop.f32.mrb[0].mxu0
        %2716 = vdwg.mxu0
        %v2717 = vadd.f32 %v2509, %v2687
        %v2718 = vadd.f32 %v2510, %v2690
        %v2719 = vadd.f32 %v2511, %v2695
        %v2720 = vadd.f32 %v2512, %v2698
        %v2721 = vadd.f32 %v2513, %v2703
        %v2722 = vadd.f32 %v2514, %v2706
        %v2723 = vadd.f32 %v2515, %v2711
        %v2724 = vadd.f32 %v2516, %v2714
        %s2725 = scalar_lea.vmem [#allocation2], 704
        %v2726 = vld [vmem:[%s2725] sm:$0xff]
        %v2727 = vld [vmem:[%s2725 + $0x8] sm:$0xff]
        %v2728 = vld [vmem:[%s2725 + $0x10] sm:$0xff]
        %v2729 = vld [vmem:[%s2725 + $0x18] sm:$0xff]
        %v2730 = vld [vmem:[%s2725 + $0x20] sm:$0xff]
        %v2731 = vld [vmem:[%s2725 + $0x28] sm:$0xff]
        %v2732 = vld [vmem:[%s2725 + $0x30] sm:$0xff]
        %v2733 = vld [vmem:[%s2725 + $0x38] sm:$0xff]
        %v2742 = vunpack.c.l.b16 %v2726
        %v2743 = vunpack.c.h.b16 %v2726
        %v2744 = vunpack.c.l.b16 %v2727
        %v2745 = vunpack.c.h.b16 %v2727
        %v2746 = vunpack.c.l.b16 %v2728
        %v2747 = vunpack.c.h.b16 %v2728
        %v2748 = vunpack.c.l.b16 %v2729
        %v2749 = vunpack.c.h.b16 %v2729
        %v2750 = vunpack.c.l.b16 %v2730
        %v2751 = vunpack.c.h.b16 %v2730
        %v2752 = vunpack.c.l.b16 %v2731
        %v2753 = vunpack.c.h.b16 %v2731
        %v2754 = vunpack.c.l.b16 %v2732
        %v2755 = vunpack.c.h.b16 %v2732
        %v2756 = vunpack.c.l.b16 %v2733
        %v2757 = vunpack.c.h.b16 %v2733
        %v2758 = vpack.c.b16 %v2744, %v2742
        %v2759 = vpack.c.b16 %v2745, %v2743
        %v2760 = vpack.c.b16 %v2748, %v2746
        %v2761 = vpack.c.b16 %v2749, %v2747
        %v2762 = vpack.c.b16 %v2752, %v2750
        %v2763 = vpack.c.b16 %v2753, %v2751
        %v2764 = vpack.c.b16 %v2756, %v2754
        %v2765 = vpack.c.b16 %v2757, %v2755
        %2774 = vmatprep.subr.bf16.mxu0 0
        %2775 = vmatpush1.bf16.msra.mxu0 %v437
        %2776 = vmatprep.subr.bf16.mxu0 0
        %2777 = vmatpush1.bf16.msra.mxu0 %v438
        %2778 = vmatprep.subr.bf16.mxu0 0
        %2779 = vmatpush1.bf16.msra.mxu0 %v439
        %2780 = vmatprep.subr.bf16.mxu0 0
        %2781 = vmatpush1.bf16.msra.mxu0 %v440
        %2782 = vmatprep.subr.bf16.mxu0 0
        %2783 = vmatpush1.bf16.msra.mxu0 %v441
        %2784 = vmatprep.subr.bf16.mxu0 0
        %2785 = vmatpush1.bf16.msra.mxu0 %v442
        %2786 = vmatprep.subr.bf16.mxu0 0
        %2787 = vmatpush1.bf16.msra.mxu0 %v443
        %2788 = vmatprep.subr.bf16.mxu0 0
        %2789 = vmatpush1.bf16.msra.mxu0 %v444
        %2790 = vmatprep.subr.bf16.mxu0 0
        %2791 = vmatpush1.bf16.msra.mxu0 %v445
        %2792 = vmatprep.subr.bf16.mxu0 0
        %2793 = vmatpush1.bf16.msra.mxu0 %v446
        %2794 = vmatprep.subr.bf16.mxu0 0
        %2795 = vmatpush1.bf16.msra.mxu0 %v447
        %2796 = vmatprep.subr.bf16.mxu0 0
        %2797 = vmatpush1.bf16.msra.mxu0 %v448
        %2798 = vmatprep.subr.bf16.mxu0 0
        %2799 = vmatpush1.bf16.msra.mxu0 %v449
        %2800 = vmatprep.subr.bf16.mxu0 0
        %2801 = vmatpush1.bf16.msra.mxu0 %v450
        %2802 = vmatprep.subr.bf16.mxu0 0
        %2803 = vmatpush1.bf16.msra.mxu0 %v451
        %2804 = vmatprep.subr.bf16.mxu0 0
        %2805 = vmatpush1.bf16.msra.mxu0 %v452
        %2806 = vmatprep.mubr.bf16.mxu0 %v2759
        %2807 = vmatmul.mubr.bf16.gmra.mrb[0].mxu0 %v2758
        %v2808 = vpop.f32.mrb[0].mxu0
        %v2809 = vadd.f32 0.0, %v2808
        %v2810 = vpop.f32.mrb[0].mxu0
        %v2811 = vpop.f32.mrb[0].mxu0
        %v2812 = vadd.f32 0.0, %v2811
        %v2813 = vpop.f32.mrb[0].mxu0
        %2814 = vmatprep.mubr.bf16.mxu0 %v2761
        %2815 = vmatmul.mubr.bf16.gmra.mrb[0].mxu0 %v2760
        %v2816 = vpop.f32.mrb[0].mxu0
        %v2817 = vadd.f32 0.0, %v2816
        %v2818 = vpop.f32.mrb[0].mxu0
        %v2819 = vpop.f32.mrb[0].mxu0
        %v2820 = vadd.f32 0.0, %v2819
        %v2821 = vpop.f32.mrb[0].mxu0
        %2822 = vmatprep.mubr.bf16.mxu0 %v2763
        %2823 = vmatmul.mubr.bf16.gmra.mrb[0].mxu0 %v2762
        %v2824 = vpop.f32.mrb[0].mxu0
        %v2825 = vadd.f32 0.0, %v2824
        %v2826 = vpop.f32.mrb[0].mxu0
        %v2827 = vpop.f32.mrb[0].mxu0
        %v2828 = vadd.f32 0.0, %v2827
        %v2829 = vpop.f32.mrb[0].mxu0
        %2830 = vmatprep.mubr.bf16.mxu0 %v2765
        %2831 = vmatmul.mubr.bf16.gmra.mrb[0].mxu0 %v2764
        %v2832 = vpop.f32.mrb[0].mxu0
        %v2833 = vadd.f32 0.0, %v2832
        %v2834 = vpop.f32.mrb[0].mxu0
        %v2835 = vpop.f32.mrb[0].mxu0
        %v2836 = vadd.f32 0.0, %v2835
        %v2837 = vpop.f32.mrb[0].mxu0
        %2838 = vdwg.mxu0
        %v2839 = vpack.c.bf16 %v2812, %v2809
        %v2840 = vpack.c.bf16 %v2820, %v2817
        %v2841 = vpack.c.bf16 %v2828, %v2825
        %v2842 = vpack.c.bf16 %v2836, %v2833
        %s2843 = scalar_lea.vmem %s2, 22
        %v2844 = vld [vmem:[%s2843] sm:$0x3]
        %v2846 = vsel %vm691, %v2839, 0
        %v2849 = vsel %vm691, %v2840, 0
        %v2852 = vsel %vm691, %v2841, 0
        %v2855 = vsel %vm691, %v2842, 0
        %v2858 = vsel %vm704, %v2844, 0
        %2860 = vmatprep.subr.bf16.mxu0 0
        %2861 = vmatpush1.bf16.msra.mxu0 %v2858
        %2862 = vmatprep.subr.bf16.mxu0 0
        %2863 = vmatpush1.bf16.msra.mxu0 0
        %2864 = vmatprep.subr.bf16.mxu0 0
        %2865 = vmatpush1.bf16.msra.mxu0 0
        %2866 = vmatprep.subr.bf16.mxu0 0
        %2867 = vmatpush1.bf16.msra.mxu0 0
        %2868 = vmatprep.subr.bf16.mxu0 0
        %2869 = vmatpush1.bf16.msra.mxu0 0
        %2870 = vmatprep.subr.bf16.mxu0 0
        %2871 = vmatpush1.bf16.msra.mxu0 0
        %2872 = vmatprep.subr.bf16.mxu0 0
        %2873 = vmatpush1.bf16.msra.mxu0 0
        %2874 = vmatprep.subr.bf16.mxu0 0
        %2875 = vmatpush1.bf16.msra.mxu0 0
        %2876 = vmatprep.subr.bf16.mxu0 0
        %2877 = vmatpush1.bf16.msra.mxu0 0
        %2878 = vmatprep.subr.bf16.mxu0 0
        %2879 = vmatpush1.bf16.msra.mxu0 0
        %2880 = vmatprep.subr.bf16.mxu0 0
        %2881 = vmatpush1.bf16.msra.mxu0 0
        %2882 = vmatprep.subr.bf16.mxu0 0
        %2883 = vmatpush1.bf16.msra.mxu0 0
        %2884 = vmatprep.subr.bf16.mxu0 0
        %2885 = vmatpush1.bf16.msra.mxu0 0
        %2886 = vmatprep.subr.bf16.mxu0 0
        %2887 = vmatpush1.bf16.msra.mxu0 0
        %2888 = vmatprep.subr.bf16.mxu0 0
        %2889 = vmatpush1.bf16.msra.mxu0 0
        %2890 = vmatprep.subr.bf16.mxu0 0
        %2891 = vmatpush1.bf16.msra.mxu0 0
        %2892 = vmatprep.mubr.bf16.mxu0 0
        %2893 = vmatmul.mubr.bf16.gmra.mrb[0].mxu0 %v2846
        %v2894 = vpop.f32.mrb[0].mxu0
        %v2895 = vadd.f32 0.0, %v2894
        %v2896 = vpop.f32.mrb[0].mxu0
        %v2897 = vpop.f32.mrb[0].mxu0
        %v2898 = vadd.f32 0.0, %v2897
        %v2899 = vpop.f32.mrb[0].mxu0
        %2900 = vmatprep.mubr.bf16.mxu0 0
        %2901 = vmatmul.mubr.bf16.gmra.mrb[0].mxu0 %v2849
        %v2902 = vpop.f32.mrb[0].mxu0
        %v2903 = vadd.f32 0.0, %v2902
        %v2904 = vpop.f32.mrb[0].mxu0
        %v2905 = vpop.f32.mrb[0].mxu0
        %v2906 = vadd.f32 0.0, %v2905
        %v2907 = vpop.f32.mrb[0].mxu0
        %2908 = vmatprep.mubr.bf16.mxu0 0
        %2909 = vmatmul.mubr.bf16.gmra.mrb[0].mxu0 %v2852
        %v2910 = vpop.f32.mrb[0].mxu0
        %v2911 = vadd.f32 0.0, %v2910
        %v2912 = vpop.f32.mrb[0].mxu0
        %v2913 = vpop.f32.mrb[0].mxu0
        %v2914 = vadd.f32 0.0, %v2913
        %v2915 = vpop.f32.mrb[0].mxu0
        %2916 = vmatprep.mubr.bf16.mxu0 0
        %2917 = vmatmul.mubr.bf16.gmra.mrb[0].mxu0 %v2855
        %v2918 = vpop.f32.mrb[0].mxu0
        %v2919 = vadd.f32 0.0, %v2918
        %v2920 = vpop.f32.mrb[0].mxu0
        %v2921 = vpop.f32.mrb[0].mxu0
        %v2922 = vadd.f32 0.0, %v2921
        %v2923 = vpop.f32.mrb[0].mxu0
        %2924 = vdwg.mxu0
        %v2925 = vadd.f32 %v2717, %v2895
        %v2926 = vadd.f32 %v2718, %v2898
        %v2927 = vadd.f32 %v2719, %v2903
        %v2928 = vadd.f32 %v2720, %v2906
        %v2929 = vadd.f32 %v2721, %v2911
        %v2930 = vadd.f32 %v2722, %v2914
        %v2931 = vadd.f32 %v2723, %v2919
        %v2932 = vadd.f32 %v2724, %v2922
        %s2933 = scalar_lea.vmem [#allocation2], 768
        %v2934 = vld [vmem:[%s2933] sm:$0xff]
        %v2935 = vld [vmem:[%s2933 + $0x8] sm:$0xff]
        %v2936 = vld [vmem:[%s2933 + $0x10] sm:$0xff]
        %v2937 = vld [vmem:[%s2933 + $0x18] sm:$0xff]
        %v2938 = vld [vmem:[%s2933 + $0x20] sm:$0xff]
        %v2939 = vld [vmem:[%s2933 + $0x28] sm:$0xff]
        %v2940 = vld [vmem:[%s2933 + $0x30] sm:$0xff]
        %v2941 = vld [vmem:[%s2933 + $0x38] sm:$0xff]
        %v2950 = vunpack.c.l.b16 %v2934
        %v2951 = vunpack.c.h.b16 %v2934
        %v2952 = vunpack.c.l.b16 %v2935
        %v2953 = vunpack.c.h.b16 %v2935
        %v2954 = vunpack.c.l.b16 %v2936
        %v2955 = vunpack.c.h.b16 %v2936
        %v2956 = vunpack.c.l.b16 %v2937
        %v2957 = vunpack.c.h.b16 %v2937
        %v2958 = vunpack.c.l.b16 %v2938
        %v2959 = vunpack.c.h.b16 %v2938
        %v2960 = vunpack.c.l.b16 %v2939
        %v2961 = vunpack.c.h.b16 %v2939
        %v2962 = vunpack.c.l.b16 %v2940
        %v2963 = vunpack.c.h.b16 %v2940
        %v2964 = vunpack.c.l.b16 %v2941
        %v2965 = vunpack.c.h.b16 %v2941
        %v2966 = vpack.c.b16 %v2952, %v2950
        %v2967 = vpack.c.b16 %v2953, %v2951
        %v2968 = vpack.c.b16 %v2956, %v2954
        %v2969 = vpack.c.b16 %v2957, %v2955
        %v2970 = vpack.c.b16 %v2960, %v2958
        %v2971 = vpack.c.b16 %v2961, %v2959
        %v2972 = vpack.c.b16 %v2964, %v2962
        %v2973 = vpack.c.b16 %v2965, %v2963
        %2982 = vmatprep.subr.bf16.mxu0 0
        %2983 = vmatpush1.bf16.msra.mxu0 %v437
        %2984 = vmatprep.subr.bf16.mxu0 0
        %2985 = vmatpush1.bf16.msra.mxu0 %v438
        %2986 = vmatprep.subr.bf16.mxu0 0
        %2987 = vmatpush1.bf16.msra.mxu0 %v439
        %2988 = vmatprep.subr.bf16.mxu0 0
        %2989 = vmatpush1.bf16.msra.mxu0 %v440
        %2990 = vmatprep.subr.bf16.mxu0 0
        %2991 = vmatpush1.bf16.msra.mxu0 %v441
        %2992 = vmatprep.subr.bf16.mxu0 0
        %2993 = vmatpush1.bf16.msra.mxu0 %v442
        %2994 = vmatprep.subr.bf16.mxu0 0
        %2995 = vmatpush1.bf16.msra.mxu0 %v443
        %2996 = vmatprep.subr.bf16.mxu0 0
        %2997 = vmatpush1.bf16.msra.mxu0 %v444
        %2998 = vmatprep.subr.bf16.mxu0 0
        %2999 = vmatpush1.bf16.msra.mxu0 %v445
        %3000 = vmatprep.subr.bf16.mxu0 0
        %3001 = vmatpush1.bf16.msra.mxu0 %v446
        %3002 = vmatprep.subr.bf16.mxu0 0
        %3003 = vmatpush1.bf16.msra.mxu0 %v447
        %3004 = vmatprep.subr.bf16.mxu0 0
        %3005 = vmatpush1.bf16.msra.mxu0 %v448
        %3006 = vmatprep.subr.bf16.mxu0 0
        %3007 = vmatpush1.bf16.msra.mxu0 %v449
        %3008 = vmatprep.subr.bf16.mxu0 0
        %3009 = vmatpush1.bf16.msra.mxu0 %v450
        %3010 = vmatprep.subr.bf16.mxu0 0
        %3011 = vmatpush1.bf16.msra.mxu0 %v451
        %3012 = vmatprep.subr.bf16.mxu0 0
        %3013 = vmatpush1.bf16.msra.mxu0 %v452
        %3014 = vmatprep.mubr.bf16.mxu0 %v2967
        %3015 = vmatmul.mubr.bf16.gmra.mrb[0].mxu0 %v2966
        %v3016 = vpop.f32.mrb[0].mxu0
        %v3017 = vadd.f32 0.0, %v3016
        %v3018 = vpop.f32.mrb[0].mxu0
        %v3019 = vpop.f32.mrb[0].mxu0
        %v3020 = vadd.f32 0.0, %v3019
        %v3021 = vpop.f32.mrb[0].mxu0
        %3022 = vmatprep.mubr.bf16.mxu0 %v2969
        %3023 = vmatmul.mubr.bf16.gmra.mrb[0].mxu0 %v2968
        %v3024 = vpop.f32.mrb[0].mxu0
        %v3025 = vadd.f32 0.0, %v3024
        %v3026 = vpop.f32.mrb[0].mxu0
        %v3027 = vpop.f32.mrb[0].mxu0
        %v3028 = vadd.f32 0.0, %v3027
        %v3029 = vpop.f32.mrb[0].mxu0
        %3030 = vmatprep.mubr.bf16.mxu0 %v2971
        %3031 = vmatmul.mubr.bf16.gmra.mrb[0].mxu0 %v2970
        %v3032 = vpop.f32.mrb[0].mxu0
        %v3033 = vadd.f32 0.0, %v3032
        %v3034 = vpop.f32.mrb[0].mxu0
        %v3035 = vpop.f32.mrb[0].mxu0
        %v3036 = vadd.f32 0.0, %v3035
        %v3037 = vpop.f32.mrb[0].mxu0
        %3038 = vmatprep.mubr.bf16.mxu0 %v2973
        %3039 = vmatmul.mubr.bf16.gmra.mrb[0].mxu0 %v2972
        %v3040 = vpop.f32.mrb[0].mxu0
        %v3041 = vadd.f32 0.0, %v3040
        %v3042 = vpop.f32.mrb[0].mxu0
        %v3043 = vpop.f32.mrb[0].mxu0
        %v3044 = vadd.f32 0.0, %v3043
        %v3045 = vpop.f32.mrb[0].mxu0
        %3046 = vdwg.mxu0
        %v3047 = vpack.c.bf16 %v3020, %v3017
        %v3048 = vpack.c.bf16 %v3028, %v3025
        %v3049 = vpack.c.bf16 %v3036, %v3033
        %v3050 = vpack.c.bf16 %v3044, %v3041
        %s3051 = scalar_lea.vmem %s2, 24
        %v3052 = vld [vmem:[%s3051] sm:$0x3]
        %v3054 = vsel %vm691, %v3047, 0
        %v3057 = vsel %vm691, %v3048, 0
        %v3060 = vsel %vm691, %v3049, 0
        %v3063 = vsel %vm691, %v3050, 0
        %v3066 = vsel %vm704, %v3052, 0
        %3068 = vmatprep.subr.bf16.mxu0 0
        %3069 = vmatpush1.bf16.msra.mxu0 %v3066
        %3070 = vmatprep.subr.bf16.mxu0 0
        %3071 = vmatpush1.bf16.msra.mxu0 0
        %3072 = vmatprep.subr.bf16.mxu0 0
        %3073 = vmatpush1.bf16.msra.mxu0 0
        %3074 = vmatprep.subr.bf16.mxu0 0
        %3075 = vmatpush1.bf16.msra.mxu0 0
        %3076 = vmatprep.subr.bf16.mxu0 0
        %3077 = vmatpush1.bf16.msra.mxu0 0
        %3078 = vmatprep.subr.bf16.mxu0 0
        %3079 = vmatpush1.bf16.msra.mxu0 0
        %3080 = vmatprep.subr.bf16.mxu0 0
        %3081 = vmatpush1.bf16.msra.mxu0 0
        %3082 = vmatprep.subr.bf16.mxu0 0
        %3083 = vmatpush1.bf16.msra.mxu0 0
        %3084 = vmatprep.subr.bf16.mxu0 0
        %3085 = vmatpush1.bf16.msra.mxu0 0
        %3086 = vmatprep.subr.bf16.mxu0 0
        %3087 = vmatpush1.bf16.msra.mxu0 0
        %3088 = vmatprep.subr.bf16.mxu0 0
        %3089 = vmatpush1.bf16.msra.mxu0 0
        %3090 = vmatprep.subr.bf16.mxu0 0
        %3091 = vmatpush1.bf16.msra.mxu0 0
        %3092 = vmatprep.subr.bf16.mxu0 0
        %3093 = vmatpush1.bf16.msra.mxu0 0
        %3094 = vmatprep.subr.bf16.mxu0 0
        %3095 = vmatpush1.bf16.msra.mxu0 0
        %3096 = vmatprep.subr.bf16.mxu0 0
        %3097 = vmatpush1.bf16.msra.mxu0 0
        %3098 = vmatprep.subr.bf16.mxu0 0
        %3099 = vmatpush1.bf16.msra.mxu0 0
        %3100 = vmatprep.mubr.bf16.mxu0 0
        %3101 = vmatmul.mubr.bf16.gmra.mrb[0].mxu0 %v3054
        %v3102 = vpop.f32.mrb[0].mxu0
        %v3103 = vadd.f32 0.0, %v3102
        %v3104 = vpop.f32.mrb[0].mxu0
        %v3105 = vpop.f32.mrb[0].mxu0
        %v3106 = vadd.f32 0.0, %v3105
        %v3107 = vpop.f32.mrb[0].mxu0
        %3108 = vmatprep.mubr.bf16.mxu0 0
        %3109 = vmatmul.mubr.bf16.gmra.mrb[0].mxu0 %v3057
        %v3110 = vpop.f32.mrb[0].mxu0
        %v3111 = vadd.f32 0.0, %v3110
        %v3112 = vpop.f32.mrb[0].mxu0
        %v3113 = vpop.f32.mrb[0].mxu0
        %v3114 = vadd.f32 0.0, %v3113
        %v3115 = vpop.f32.mrb[0].mxu0
        %3116 = vmatprep.mubr.bf16.mxu0 0
        %3117 = vmatmul.mubr.bf16.gmra.mrb[0].mxu0 %v3060
        %v3118 = vpop.f32.mrb[0].mxu0
        %v3119 = vadd.f32 0.0, %v3118
        %v3120 = vpop.f32.mrb[0].mxu0
        %v3121 = vpop.f32.mrb[0].mxu0
        %v3122 = vadd.f32 0.0, %v3121
        %v3123 = vpop.f32.mrb[0].mxu0
        %3124 = vmatprep.mubr.bf16.mxu0 0
        %3125 = vmatmul.mubr.bf16.gmra.mrb[0].mxu0 %v3063
        %v3126 = vpop.f32.mrb[0].mxu0
        %v3127 = vadd.f32 0.0, %v3126
        %v3128 = vpop.f32.mrb[0].mxu0
        %v3129 = vpop.f32.mrb[0].mxu0
        %v3130 = vadd.f32 0.0, %v3129
        %v3131 = vpop.f32.mrb[0].mxu0
        %3132 = vdwg.mxu0
        %v3133 = vadd.f32 %v2925, %v3103
        %v3134 = vadd.f32 %v2926, %v3106
        %v3135 = vadd.f32 %v2927, %v3111
        %v3136 = vadd.f32 %v2928, %v3114
        %v3137 = vadd.f32 %v2929, %v3119
        %v3138 = vadd.f32 %v2930, %v3122
        %v3139 = vadd.f32 %v2931, %v3127
        %v3140 = vadd.f32 %v2932, %v3130
        %s3141 = scalar_lea.vmem [#allocation2], 832
        %v3142 = vld [vmem:[%s3141] sm:$0xff]
        %v3143 = vld [vmem:[%s3141 + $0x8] sm:$0xff]
        %v3144 = vld [vmem:[%s3141 + $0x10] sm:$0xff]
        %v3145 = vld [vmem:[%s3141 + $0x18] sm:$0xff]
        %v3146 = vld [vmem:[%s3141 + $0x20] sm:$0xff]
        %v3147 = vld [vmem:[%s3141 + $0x28] sm:$0xff]
        %v3148 = vld [vmem:[%s3141 + $0x30] sm:$0xff]
        %v3149 = vld [vmem:[%s3141 + $0x38] sm:$0xff]
        %v3158 = vunpack.c.l.b16 %v3142
        %v3159 = vunpack.c.h.b16 %v3142
        %v3160 = vunpack.c.l.b16 %v3143
        %v3161 = vunpack.c.h.b16 %v3143
        %v3162 = vunpack.c.l.b16 %v3144
        %v3163 = vunpack.c.h.b16 %v3144
        %v3164 = vunpack.c.l.b16 %v3145
        %v3165 = vunpack.c.h.b16 %v3145
        %v3166 = vunpack.c.l.b16 %v3146
        %v3167 = vunpack.c.h.b16 %v3146
        %v3168 = vunpack.c.l.b16 %v3147
        %v3169 = vunpack.c.h.b16 %v3147
        %v3170 = vunpack.c.l.b16 %v3148
        %v3171 = vunpack.c.h.b16 %v3148
        %v3172 = vunpack.c.l.b16 %v3149
        %v3173 = vunpack.c.h.b16 %v3149
        %v3174 = vpack.c.b16 %v3160, %v3158
        %v3175 = vpack.c.b16 %v3161, %v3159
        %v3176 = vpack.c.b16 %v3164, %v3162
        %v3177 = vpack.c.b16 %v3165, %v3163
        %v3178 = vpack.c.b16 %v3168, %v3166
        %v3179 = vpack.c.b16 %v3169, %v3167
        %v3180 = vpack.c.b16 %v3172, %v3170
        %v3181 = vpack.c.b16 %v3173, %v3171
        %3190 = vmatprep.subr.bf16.mxu0 0
        %3191 = vmatpush1.bf16.msra.mxu0 %v437
        %3192 = vmatprep.subr.bf16.mxu0 0
        %3193 = vmatpush1.bf16.msra.mxu0 %v438
        %3194 = vmatprep.subr.bf16.mxu0 0
        %3195 = vmatpush1.bf16.msra.mxu0 %v439
        %3196 = vmatprep.subr.bf16.mxu0 0
        %3197 = vmatpush1.bf16.msra.mxu0 %v440
        %3198 = vmatprep.subr.bf16.mxu0 0
        %3199 = vmatpush1.bf16.msra.mxu0 %v441
        %3200 = vmatprep.subr.bf16.mxu0 0
        %3201 = vmatpush1.bf16.msra.mxu0 %v442
        %3202 = vmatprep.subr.bf16.mxu0 0
        %3203 = vmatpush1.bf16.msra.mxu0 %v443
        %3204 = vmatprep.subr.bf16.mxu0 0
        %3205 = vmatpush1.bf16.msra.mxu0 %v444
        %3206 = vmatprep.subr.bf16.mxu0 0
        %3207 = vmatpush1.bf16.msra.mxu0 %v445
        %3208 = vmatprep.subr.bf16.mxu0 0
        %3209 = vmatpush1.bf16.msra.mxu0 %v446
        %3210 = vmatprep.subr.bf16.mxu0 0
        %3211 = vmatpush1.bf16.msra.mxu0 %v447
        %3212 = vmatprep.subr.bf16.mxu0 0
        %3213 = vmatpush1.bf16.msra.mxu0 %v448
        %3214 = vmatprep.subr.bf16.mxu0 0
        %3215 = vmatpush1.bf16.msra.mxu0 %v449
        %3216 = vmatprep.subr.bf16.mxu0 0
        %3217 = vmatpush1.bf16.msra.mxu0 %v450
        %3218 = vmatprep.subr.bf16.mxu0 0
        %3219 = vmatpush1.bf16.msra.mxu0 %v451
        %3220 = vmatprep.subr.bf16.mxu0 0
        %3221 = vmatpush1.bf16.msra.mxu0 %v452
        %3222 = vmatprep.mubr.bf16.mxu0 %v3175
        %3223 = vmatmul.mubr.bf16.gmra.mrb[0].mxu0 %v3174
        %v3224 = vpop.f32.mrb[0].mxu0
        %v3225 = vadd.f32 0.0, %v3224
        %v3226 = vpop.f32.mrb[0].mxu0
        %v3227 = vpop.f32.mrb[0].mxu0
        %v3228 = vadd.f32 0.0, %v3227
        %v3229 = vpop.f32.mrb[0].mxu0
        %3230 = vmatprep.mubr.bf16.mxu0 %v3177
        %3231 = vmatmul.mubr.bf16.gmra.mrb[0].mxu0 %v3176
        %v3232 = vpop.f32.mrb[0].mxu0
        %v3233 = vadd.f32 0.0, %v3232
        %v3234 = vpop.f32.mrb[0].mxu0
        %v3235 = vpop.f32.mrb[0].mxu0
        %v3236 = vadd.f32 0.0, %v3235
        %v3237 = vpop.f32.mrb[0].mxu0
        %3238 = vmatprep.mubr.bf16.mxu0 %v3179
        %3239 = vmatmul.mubr.bf16.gmra.mrb[0].mxu0 %v3178
        %v3240 = vpop.f32.mrb[0].mxu0
        %v3241 = vadd.f32 0.0, %v3240
        %v3242 = vpop.f32.mrb[0].mxu0
        %v3243 = vpop.f32.mrb[0].mxu0
        %v3244 = vadd.f32 0.0, %v3243
        %v3245 = vpop.f32.mrb[0].mxu0
        %3246 = vmatprep.mubr.bf16.mxu0 %v3181
        %3247 = vmatmul.mubr.bf16.gmra.mrb[0].mxu0 %v3180
        %v3248 = vpop.f32.mrb[0].mxu0
        %v3249 = vadd.f32 0.0, %v3248
        %v3250 = vpop.f32.mrb[0].mxu0
        %v3251 = vpop.f32.mrb[0].mxu0
        %v3252 = vadd.f32 0.0, %v3251
        %v3253 = vpop.f32.mrb[0].mxu0
        %3254 = vdwg.mxu0
        %v3255 = vpack.c.bf16 %v3228, %v3225
        %v3256 = vpack.c.bf16 %v3236, %v3233
        %v3257 = vpack.c.bf16 %v3244, %v3241
        %v3258 = vpack.c.bf16 %v3252, %v3249
        %s3259 = scalar_lea.vmem %s2, 26
        %v3260 = vld [vmem:[%s3259] sm:$0x3]
        %v3262 = vsel %vm691, %v3255, 0
        %v3265 = vsel %vm691, %v3256, 0
        %v3268 = vsel %vm691, %v3257, 0
        %v3271 = vsel %vm691, %v3258, 0
        %v3274 = vsel %vm704, %v3260, 0
        %3276 = vmatprep.subr.bf16.mxu0 0
        %3277 = vmatpush1.bf16.msra.mxu0 %v3274
        %3278 = vmatprep.subr.bf16.mxu0 0
        %3279 = vmatpush1.bf16.msra.mxu0 0
        %3280 = vmatprep.subr.bf16.mxu0 0
        %3281 = vmatpush1.bf16.msra.mxu0 0
        %3282 = vmatprep.subr.bf16.mxu0 0
        %3283 = vmatpush1.bf16.msra.mxu0 0
        %3284 = vmatprep.subr.bf16.mxu0 0
        %3285 = vmatpush1.bf16.msra.mxu0 0
        %3286 = vmatprep.subr.bf16.mxu0 0
        %3287 = vmatpush1.bf16.msra.mxu0 0
        %3288 = vmatprep.subr.bf16.mxu0 0
        %3289 = vmatpush1.bf16.msra.mxu0 0
        %3290 = vmatprep.subr.bf16.mxu0 0
        %3291 = vmatpush1.bf16.msra.mxu0 0
        %3292 = vmatprep.subr.bf16.mxu0 0
        %3293 = vmatpush1.bf16.msra.mxu0 0
        %3294 = vmatprep.subr.bf16.mxu0 0
        %3295 = vmatpush1.bf16.msra.mxu0 0
        %3296 = vmatprep.subr.bf16.mxu0 0
        %3297 = vmatpush1.bf16.msra.mxu0 0
        %3298 = vmatprep.subr.bf16.mxu0 0
        %3299 = vmatpush1.bf16.msra.mxu0 0
        %3300 = vmatprep.subr.bf16.mxu0 0
        %3301 = vmatpush1.bf16.msra.mxu0 0
        %3302 = vmatprep.subr.bf16.mxu0 0
        %3303 = vmatpush1.bf16.msra.mxu0 0
        %3304 = vmatprep.subr.bf16.mxu0 0
        %3305 = vmatpush1.bf16.msra.mxu0 0
        %3306 = vmatprep.subr.bf16.mxu0 0
        %3307 = vmatpush1.bf16.msra.mxu0 0
        %3308 = vmatprep.mubr.bf16.mxu0 0
        %3309 = vmatmul.mubr.bf16.gmra.mrb[0].mxu0 %v3262
        %v3310 = vpop.f32.mrb[0].mxu0
        %v3311 = vadd.f32 0.0, %v3310
        %v3312 = vpop.f32.mrb[0].mxu0
        %v3313 = vpop.f32.mrb[0].mxu0
        %v3314 = vadd.f32 0.0, %v3313
        %v3315 = vpop.f32.mrb[0].mxu0
        %3316 = vmatprep.mubr.bf16.mxu0 0
        %3317 = vmatmul.mubr.bf16.gmra.mrb[0].mxu0 %v3265
        %v3318 = vpop.f32.mrb[0].mxu0
        %v3319 = vadd.f32 0.0, %v3318
        %v3320 = vpop.f32.mrb[0].mxu0
        %v3321 = vpop.f32.mrb[0].mxu0
        %v3322 = vadd.f32 0.0, %v3321
        %v3323 = vpop.f32.mrb[0].mxu0
        %3324 = vmatprep.mubr.bf16.mxu0 0
        %3325 = vmatmul.mubr.bf16.gmra.mrb[0].mxu0 %v3268
        %v3326 = vpop.f32.mrb[0].mxu0
        %v3327 = vadd.f32 0.0, %v3326
        %v3328 = vpop.f32.mrb[0].mxu0
        %v3329 = vpop.f32.mrb[0].mxu0
        %v3330 = vadd.f32 0.0, %v3329
        %v3331 = vpop.f32.mrb[0].mxu0
        %3332 = vmatprep.mubr.bf16.mxu0 0
        %3333 = vmatmul.mubr.bf16.gmra.mrb[0].mxu0 %v3271
        %v3334 = vpop.f32.mrb[0].mxu0
        %v3335 = vadd.f32 0.0, %v3334
        %v3336 = vpop.f32.mrb[0].mxu0
        %v3337 = vpop.f32.mrb[0].mxu0
        %v3338 = vadd.f32 0.0, %v3337
        %v3339 = vpop.f32.mrb[0].mxu0
        %3340 = vdwg.mxu0
        %v3341 = vadd.f32 %v3133, %v3311
        %v3342 = vadd.f32 %v3134, %v3314
        %v3343 = vadd.f32 %v3135, %v3319
        %v3344 = vadd.f32 %v3136, %v3322
        %v3345 = vadd.f32 %v3137, %v3327
        %v3346 = vadd.f32 %v3138, %v3330
        %v3347 = vadd.f32 %v3139, %v3335
        %v3348 = vadd.f32 %v3140, %v3338
        %s3349 = scalar_lea.vmem [#allocation2], 896
        %v3350 = vld [vmem:[%s3349] sm:$0xff]
        %v3351 = vld [vmem:[%s3349 + $0x8] sm:$0xff]
        %v3352 = vld [vmem:[%s3349 + $0x10] sm:$0xff]
        %v3353 = vld [vmem:[%s3349 + $0x18] sm:$0xff]
        %v3354 = vld [vmem:[%s3349 + $0x20] sm:$0xff]
        %v3355 = vld [vmem:[%s3349 + $0x28] sm:$0xff]
        %v3356 = vld [vmem:[%s3349 + $0x30] sm:$0xff]
        %v3357 = vld [vmem:[%s3349 + $0x38] sm:$0xff]
        %v3366 = vunpack.c.l.b16 %v3350
        %v3367 = vunpack.c.h.b16 %v3350
        %v3368 = vunpack.c.l.b16 %v3351
        %v3369 = vunpack.c.h.b16 %v3351
        %v3370 = vunpack.c.l.b16 %v3352
        %v3371 = vunpack.c.h.b16 %v3352
        %v3372 = vunpack.c.l.b16 %v3353
        %v3373 = vunpack.c.h.b16 %v3353
        %v3374 = vunpack.c.l.b16 %v3354
        %v3375 = vunpack.c.h.b16 %v3354
        %v3376 = vunpack.c.l.b16 %v3355
        %v3377 = vunpack.c.h.b16 %v3355
        %v3378 = vunpack.c.l.b16 %v3356
        %v3379 = vunpack.c.h.b16 %v3356
        %v3380 = vunpack.c.l.b16 %v3357
        %v3381 = vunpack.c.h.b16 %v3357
        %v3382 = vpack.c.b16 %v3368, %v3366
        %v3383 = vpack.c.b16 %v3369, %v3367
        %v3384 = vpack.c.b16 %v3372, %v3370
        %v3385 = vpack.c.b16 %v3373, %v3371
        %v3386 = vpack.c.b16 %v3376, %v3374
        %v3387 = vpack.c.b16 %v3377, %v3375
        %v3388 = vpack.c.b16 %v3380, %v3378
        %v3389 = vpack.c.b16 %v3381, %v3379
        %3398 = vmatprep.subr.bf16.mxu0 0
        %3399 = vmatpush1.bf16.msra.mxu0 %v437
        %3400 = vmatprep.subr.bf16.mxu0 0
        %3401 = vmatpush1.bf16.msra.mxu0 %v438
        %3402 = vmatprep.subr.bf16.mxu0 0
        %3403 = vmatpush1.bf16.msra.mxu0 %v439
        %3404 = vmatprep.subr.bf16.mxu0 0
        %3405 = vmatpush1.bf16.msra.mxu0 %v440
        %3406 = vmatprep.subr.bf16.mxu0 0
        %3407 = vmatpush1.bf16.msra.mxu0 %v441
        %3408 = vmatprep.subr.bf16.mxu0 0
        %3409 = vmatpush1.bf16.msra.mxu0 %v442
        %3410 = vmatprep.subr.bf16.mxu0 0
        %3411 = vmatpush1.bf16.msra.mxu0 %v443
        %3412 = vmatprep.subr.bf16.mxu0 0
        %3413 = vmatpush1.bf16.msra.mxu0 %v444
        %3414 = vmatprep.subr.bf16.mxu0 0
        %3415 = vmatpush1.bf16.msra.mxu0 %v445
        %3416 = vmatprep.subr.bf16.mxu0 0
        %3417 = vmatpush1.bf16.msra.mxu0 %v446
        %3418 = vmatprep.subr.bf16.mxu0 0
        %3419 = vmatpush1.bf16.msra.mxu0 %v447
        %3420 = vmatprep.subr.bf16.mxu0 0
        %3421 = vmatpush1.bf16.msra.mxu0 %v448
        %3422 = vmatprep.subr.bf16.mxu0 0
        %3423 = vmatpush1.bf16.msra.mxu0 %v449
        %3424 = vmatprep.subr.bf16.mxu0 0
        %3425 = vmatpush1.bf16.msra.mxu0 %v450
        %3426 = vmatprep.subr.bf16.mxu0 0
        %3427 = vmatpush1.bf16.msra.mxu0 %v451
        %3428 = vmatprep.subr.bf16.mxu0 0
        %3429 = vmatpush1.bf16.msra.mxu0 %v452
        %3430 = vmatprep.mubr.bf16.mxu0 %v3383
        %3431 = vmatmul.mubr.bf16.gmra.mrb[0].mxu0 %v3382
        %v3432 = vpop.f32.mrb[0].mxu0
        %v3433 = vadd.f32 0.0, %v3432
        %v3434 = vpop.f32.mrb[0].mxu0
        %v3435 = vpop.f32.mrb[0].mxu0
        %v3436 = vadd.f32 0.0, %v3435
        %v3437 = vpop.f32.mrb[0].mxu0
        %3438 = vmatprep.mubr.bf16.mxu0 %v3385
        %3439 = vmatmul.mubr.bf16.gmra.mrb[0].mxu0 %v3384
        %v3440 = vpop.f32.mrb[0].mxu0
        %v3441 = vadd.f32 0.0, %v3440
        %v3442 = vpop.f32.mrb[0].mxu0
        %v3443 = vpop.f32.mrb[0].mxu0
        %v3444 = vadd.f32 0.0, %v3443
        %v3445 = vpop.f32.mrb[0].mxu0
        %3446 = vmatprep.mubr.bf16.mxu0 %v3387
        %3447 = vmatmul.mubr.bf16.gmra.mrb[0].mxu0 %v3386
        %v3448 = vpop.f32.mrb[0].mxu0
        %v3449 = vadd.f32 0.0, %v3448
        %v3450 = vpop.f32.mrb[0].mxu0
        %v3451 = vpop.f32.mrb[0].mxu0
        %v3452 = vadd.f32 0.0, %v3451
        %v3453 = vpop.f32.mrb[0].mxu0
        %3454 = vmatprep.mubr.bf16.mxu0 %v3389
        %3455 = vmatmul.mubr.bf16.gmra.mrb[0].mxu0 %v3388
        %v3456 = vpop.f32.mrb[0].mxu0
        %v3457 = vadd.f32 0.0, %v3456
        %v3458 = vpop.f32.mrb[0].mxu0
        %v3459 = vpop.f32.mrb[0].mxu0
        %v3460 = vadd.f32 0.0, %v3459
        %v3461 = vpop.f32.mrb[0].mxu0
        %3462 = vdwg.mxu0
        %v3463 = vpack.c.bf16 %v3436, %v3433
        %v3464 = vpack.c.bf16 %v3444, %v3441
        %v3465 = vpack.c.bf16 %v3452, %v3449
        %v3466 = vpack.c.bf16 %v3460, %v3457
        %s3467 = scalar_lea.vmem %s2, 28
        %v3468 = vld [vmem:[%s3467] sm:$0x3]
        %v3470 = vsel %vm691, %v3463, 0
        %v3473 = vsel %vm691, %v3464, 0
        %v3476 = vsel %vm691, %v3465, 0
        %v3479 = vsel %vm691, %v3466, 0
        %v3482 = vsel %vm704, %v3468, 0
        %3484 = vmatprep.subr.bf16.mxu0 0
        %3485 = vmatpush1.bf16.msra.mxu0 %v3482
        %3486 = vmatprep.subr.bf16.mxu0 0
        %3487 = vmatpush1.bf16.msra.mxu0 0
        %3488 = vmatprep.subr.bf16.mxu0 0
        %3489 = vmatpush1.bf16.msra.mxu0 0
        %3490 = vmatprep.subr.bf16.mxu0 0
        %3491 = vmatpush1.bf16.msra.mxu0 0
        %3492 = vmatprep.subr.bf16.mxu0 0
        %3493 = vmatpush1.bf16.msra.mxu0 0
        %3494 = vmatprep.subr.bf16.mxu0 0
        %3495 = vmatpush1.bf16.msra.mxu0 0
        %3496 = vmatprep.subr.bf16.mxu0 0
        %3497 = vmatpush1.bf16.msra.mxu0 0
        %3498 = vmatprep.subr.bf16.mxu0 0
        %3499 = vmatpush1.bf16.msra.mxu0 0
        %3500 = vmatprep.subr.bf16.mxu0 0
        %3501 = vmatpush1.bf16.msra.mxu0 0
        %3502 = vmatprep.subr.bf16.mxu0 0
        %3503 = vmatpush1.bf16.msra.mxu0 0
        %3504 = vmatprep.subr.bf16.mxu0 0
        %3505 = vmatpush1.bf16.msra.mxu0 0
        %3506 = vmatprep.subr.bf16.mxu0 0
        %3507 = vmatpush1.bf16.msra.mxu0 0
        %3508 = vmatprep.subr.bf16.mxu0 0
        %3509 = vmatpush1.bf16.msra.mxu0 0
        %3510 = vmatprep.subr.bf16.mxu0 0
        %3511 = vmatpush1.bf16.msra.mxu0 0
        %3512 = vmatprep.subr.bf16.mxu0 0
        %3513 = vmatpush1.bf16.msra.mxu0 0
        %3514 = vmatprep.subr.bf16.mxu0 0
        %3515 = vmatpush1.bf16.msra.mxu0 0
        %3516 = vmatprep.mubr.bf16.mxu0 0
        %3517 = vmatmul.mubr.bf16.gmra.mrb[0].mxu0 %v3470
        %v3518 = vpop.f32.mrb[0].mxu0
        %v3519 = vadd.f32 0.0, %v3518
        %v3520 = vpop.f32.mrb[0].mxu0
        %v3521 = vpop.f32.mrb[0].mxu0
        %v3522 = vadd.f32 0.0, %v3521
        %v3523 = vpop.f32.mrb[0].mxu0
        %3524 = vmatprep.mubr.bf16.mxu0 0
        %3525 = vmatmul.mubr.bf16.gmra.mrb[0].mxu0 %v3473
        %v3526 = vpop.f32.mrb[0].mxu0
        %v3527 = vadd.f32 0.0, %v3526
        %v3528 = vpop.f32.mrb[0].mxu0
        %v3529 = vpop.f32.mrb[0].mxu0
        %v3530 = vadd.f32 0.0, %v3529
        %v3531 = vpop.f32.mrb[0].mxu0
        %3532 = vmatprep.mubr.bf16.mxu0 0
        %3533 = vmatmul.mubr.bf16.gmra.mrb[0].mxu0 %v3476
        %v3534 = vpop.f32.mrb[0].mxu0
        %v3535 = vadd.f32 0.0, %v3534
        %v3536 = vpop.f32.mrb[0].mxu0
        %v3537 = vpop.f32.mrb[0].mxu0
        %v3538 = vadd.f32 0.0, %v3537
        %v3539 = vpop.f32.mrb[0].mxu0
        %3540 = vmatprep.mubr.bf16.mxu0 0
        %3541 = vmatmul.mubr.bf16.gmra.mrb[0].mxu0 %v3479
        %v3542 = vpop.f32.mrb[0].mxu0
        %v3543 = vadd.f32 0.0, %v3542
        %v3544 = vpop.f32.mrb[0].mxu0
        %v3545 = vpop.f32.mrb[0].mxu0
        %v3546 = vadd.f32 0.0, %v3545
        %v3547 = vpop.f32.mrb[0].mxu0
        %3548 = vdwg.mxu0
        %v3549 = vadd.f32 %v3341, %v3519
        %v3550 = vadd.f32 %v3342, %v3522
        %v3551 = vadd.f32 %v3343, %v3527
        %v3552 = vadd.f32 %v3344, %v3530
        %v3553 = vadd.f32 %v3345, %v3535
        %v3554 = vadd.f32 %v3346, %v3538
        %v3555 = vadd.f32 %v3347, %v3543
        %v3556 = vadd.f32 %v3348, %v3546
        %s3557 = scalar_lea.vmem [#allocation2], 960
        %v3558 = vld [vmem:[%s3557] sm:$0xff]
        %v3559 = vld [vmem:[%s3557 + $0x8] sm:$0xff]
        %v3560 = vld [vmem:[%s3557 + $0x10] sm:$0xff]
        %v3561 = vld [vmem:[%s3557 + $0x18] sm:$0xff]
        %v3562 = vld [vmem:[%s3557 + $0x20] sm:$0xff]
        %v3563 = vld [vmem:[%s3557 + $0x28] sm:$0xff]
        %v3564 = vld [vmem:[%s3557 + $0x30] sm:$0xff]
        %v3565 = vld [vmem:[%s3557 + $0x38] sm:$0xff]
        %v3574 = vunpack.c.l.b16 %v3558
        %v3575 = vunpack.c.h.b16 %v3558
        %v3576 = vunpack.c.l.b16 %v3559
        %v3577 = vunpack.c.h.b16 %v3559
        %v3578 = vunpack.c.l.b16 %v3560
        %v3579 = vunpack.c.h.b16 %v3560
        %v3580 = vunpack.c.l.b16 %v3561
        %v3581 = vunpack.c.h.b16 %v3561
        %v3582 = vunpack.c.l.b16 %v3562
        %v3583 = vunpack.c.h.b16 %v3562
        %v3584 = vunpack.c.l.b16 %v3563
        %v3585 = vunpack.c.h.b16 %v3563
        %v3586 = vunpack.c.l.b16 %v3564
        %v3587 = vunpack.c.h.b16 %v3564
        %v3588 = vunpack.c.l.b16 %v3565
        %v3589 = vunpack.c.h.b16 %v3565
        %v3590 = vpack.c.b16 %v3576, %v3574
        %v3591 = vpack.c.b16 %v3577, %v3575
        %v3592 = vpack.c.b16 %v3580, %v3578
        %v3593 = vpack.c.b16 %v3581, %v3579
        %v3594 = vpack.c.b16 %v3584, %v3582
        %v3595 = vpack.c.b16 %v3585, %v3583
        %v3596 = vpack.c.b16 %v3588, %v3586
        %v3597 = vpack.c.b16 %v3589, %v3587
        %3606 = vmatprep.subr.bf16.mxu0 0
        %3607 = vmatpush1.bf16.msra.mxu0 %v437
        %3608 = vmatprep.subr.bf16.mxu0 0
        %3609 = vmatpush1.bf16.msra.mxu0 %v438
        %3610 = vmatprep.subr.bf16.mxu0 0
        %3611 = vmatpush1.bf16.msra.mxu0 %v439
        %3612 = vmatprep.subr.bf16.mxu0 0
        %3613 = vmatpush1.bf16.msra.mxu0 %v440
        %3614 = vmatprep.subr.bf16.mxu0 0
        %3615 = vmatpush1.bf16.msra.mxu0 %v441
        %3616 = vmatprep.subr.bf16.mxu0 0
        %3617 = vmatpush1.bf16.msra.mxu0 %v442
        %3618 = vmatprep.subr.bf16.mxu0 0
        %3619 = vmatpush1.bf16.msra.mxu0 %v443
        %3620 = vmatprep.subr.bf16.mxu0 0
        %3621 = vmatpush1.bf16.msra.mxu0 %v444
        %3622 = vmatprep.subr.bf16.mxu0 0
        %3623 = vmatpush1.bf16.msra.mxu0 %v445
        %3624 = vmatprep.subr.bf16.mxu0 0
        %3625 = vmatpush1.bf16.msra.mxu0 %v446
        %3626 = vmatprep.subr.bf16.mxu0 0
        %3627 = vmatpush1.bf16.msra.mxu0 %v447
        %3628 = vmatprep.subr.bf16.mxu0 0
        %3629 = vmatpush1.bf16.msra.mxu0 %v448
        %3630 = vmatprep.subr.bf16.mxu0 0
        %3631 = vmatpush1.bf16.msra.mxu0 %v449
        %3632 = vmatprep.subr.bf16.mxu0 0
        %3633 = vmatpush1.bf16.msra.mxu0 %v450
        %3634 = vmatprep.subr.bf16.mxu0 0
        %3635 = vmatpush1.bf16.msra.mxu0 %v451
        %3636 = vmatprep.subr.bf16.mxu0 0
        %3637 = vmatpush1.bf16.msra.mxu0 %v452
        %3638 = vmatprep.mubr.bf16.mxu0 %v3591
        %3639 = vmatmul.mubr.bf16.gmra.mrb[0].mxu0 %v3590
        %v3640 = vpop.f32.mrb[0].mxu0
        %v3641 = vadd.f32 0.0, %v3640
        %v3642 = vpop.f32.mrb[0].mxu0
        %v3643 = vpop.f32.mrb[0].mxu0
        %v3644 = vadd.f32 0.0, %v3643
        %v3645 = vpop.f32.mrb[0].mxu0
        %3646 = vmatprep.mubr.bf16.mxu0 %v3593
        %3647 = vmatmul.mubr.bf16.gmra.mrb[0].mxu0 %v3592
        %v3648 = vpop.f32.mrb[0].mxu0
        %v3649 = vadd.f32 0.0, %v3648
        %v3650 = vpop.f32.mrb[0].mxu0
        %v3651 = vpop.f32.mrb[0].mxu0
        %v3652 = vadd.f32 0.0, %v3651
        %v3653 = vpop.f32.mrb[0].mxu0
        %3654 = vmatprep.mubr.bf16.mxu0 %v3595
        %3655 = vmatmul.mubr.bf16.gmra.mrb[0].mxu0 %v3594
        %v3656 = vpop.f32.mrb[0].mxu0
        %v3657 = vadd.f32 0.0, %v3656
        %v3658 = vpop.f32.mrb[0].mxu0
        %v3659 = vpop.f32.mrb[0].mxu0
        %v3660 = vadd.f32 0.0, %v3659
        %v3661 = vpop.f32.mrb[0].mxu0
        %3662 = vmatprep.mubr.bf16.mxu0 %v3597
        %3663 = vmatmul.mubr.bf16.gmra.mrb[0].mxu0 %v3596
        %v3664 = vpop.f32.mrb[0].mxu0
        %v3665 = vadd.f32 0.0, %v3664
        %v3666 = vpop.f32.mrb[0].mxu0
        %v3667 = vpop.f32.mrb[0].mxu0
        %v3668 = vadd.f32 0.0, %v3667
        %v3669 = vpop.f32.mrb[0].mxu0
        %3670 = vdwg.mxu0
        %v3671 = vpack.c.bf16 %v3644, %v3641
        %v3672 = vpack.c.bf16 %v3652, %v3649
        %v3673 = vpack.c.bf16 %v3660, %v3657
        %v3674 = vpack.c.bf16 %v3668, %v3665
        %s3675 = scalar_lea.vmem %s2, 30
        %v3676 = vld [vmem:[%s3675] sm:$0x3]
        %v3678 = vsel %vm691, %v3671, 0
        %v3681 = vsel %vm691, %v3672, 0
        %v3684 = vsel %vm691, %v3673, 0
        %v3687 = vsel %vm691, %v3674, 0
        %v3690 = vsel %vm704, %v3676, 0
        %3692 = vmatprep.subr.bf16.mxu0 0
        %3693 = vmatpush1.bf16.msra.mxu0 %v3690
        %3694 = vmatprep.subr.bf16.mxu0 0
        %3695 = vmatpush1.bf16.msra.mxu0 0
        %3696 = vmatprep.subr.bf16.mxu0 0
        %3697 = vmatpush1.bf16.msra.mxu0 0
        %3698 = vmatprep.subr.bf16.mxu0 0
        %3699 = vmatpush1.bf16.msra.mxu0 0
        %3700 = vmatprep.subr.bf16.mxu0 0
        %3701 = vmatpush1.bf16.msra.mxu0 0
        %3702 = vmatprep.subr.bf16.mxu0 0
        %3703 = vmatpush1.bf16.msra.mxu0 0
        %3704 = vmatprep.subr.bf16.mxu0 0
        %3705 = vmatpush1.bf16.msra.mxu0 0
        %3706 = vmatprep.subr.bf16.mxu0 0
        %3707 = vmatpush1.bf16.msra.mxu0 0
        %3708 = vmatprep.subr.bf16.mxu0 0
        %3709 = vmatpush1.bf16.msra.mxu0 0
        %3710 = vmatprep.subr.bf16.mxu0 0
        %3711 = vmatpush1.bf16.msra.mxu0 0
        %3712 = vmatprep.subr.bf16.mxu0 0
        %3713 = vmatpush1.bf16.msra.mxu0 0
        %3714 = vmatprep.subr.bf16.mxu0 0
        %3715 = vmatpush1.bf16.msra.mxu0 0
        %3716 = vmatprep.subr.bf16.mxu0 0
        %3717 = vmatpush1.bf16.msra.mxu0 0
        %3718 = vmatprep.subr.bf16.mxu0 0
        %3719 = vmatpush1.bf16.msra.mxu0 0
        %3720 = vmatprep.subr.bf16.mxu0 0
        %3721 = vmatpush1.bf16.msra.mxu0 0
        %3722 = vmatprep.subr.bf16.mxu0 0
        %3723 = vmatpush1.bf16.msra.mxu0 0
        %3724 = vmatprep.mubr.bf16.mxu0 0
        %3725 = vmatmul.mubr.bf16.gmra.mrb[0].mxu0 %v3678
        %v3726 = vpop.f32.mrb[0].mxu0
        %v3727 = vadd.f32 0.0, %v3726
        %v3728 = vpop.f32.mrb[0].mxu0
        %v3729 = vpop.f32.mrb[0].mxu0
        %v3730 = vadd.f32 0.0, %v3729
        %v3731 = vpop.f32.mrb[0].mxu0
        %3732 = vmatprep.mubr.bf16.mxu0 0
        %3733 = vmatmul.mubr.bf16.gmra.mrb[0].mxu0 %v3681
        %v3734 = vpop.f32.mrb[0].mxu0
        %v3735 = vadd.f32 0.0, %v3734
        %v3736 = vpop.f32.mrb[0].mxu0
        %v3737 = vpop.f32.mrb[0].mxu0
        %v3738 = vadd.f32 0.0, %v3737
        %v3739 = vpop.f32.mrb[0].mxu0
        %3740 = vmatprep.mubr.bf16.mxu0 0
        %3741 = vmatmul.mubr.bf16.gmra.mrb[0].mxu0 %v3684
        %v3742 = vpop.f32.mrb[0].mxu0
        %v3743 = vadd.f32 0.0, %v3742
        %v3744 = vpop.f32.mrb[0].mxu0
        %v3745 = vpop.f32.mrb[0].mxu0
        %v3746 = vadd.f32 0.0, %v3745
        %v3747 = vpop.f32.mrb[0].mxu0
        %3748 = vmatprep.mubr.bf16.mxu0 0
        %3749 = vmatmul.mubr.bf16.gmra.mrb[0].mxu0 %v3687
        %v3750 = vpop.f32.mrb[0].mxu0
        %v3751 = vadd.f32 0.0, %v3750
        %v3752 = vpop.f32.mrb[0].mxu0
        %v3753 = vpop.f32.mrb[0].mxu0
        %v3754 = vadd.f32 0.0, %v3753
        %v3755 = vpop.f32.mrb[0].mxu0
        %3756 = vdwg.mxu0
        %v3757 = vadd.f32 %v3549, %v3727
        %v3758 = vadd.f32 %v3550, %v3730
        %v3759 = vadd.f32 %v3551, %v3735
        %v3760 = vadd.f32 %v3552, %v3738
        %v3761 = vadd.f32 %v3553, %v3743
        %v3762 = vadd.f32 %v3554, %v3746
        %v3763 = vadd.f32 %v3555, %v3751
        %v3764 = vadd.f32 %v3556, %v3754
        %v3765 = vld [vmem:[%s3] sm:$0x1]
        %v3767 = vlaneseq
        %v3768 = vshrl.u32 %v3767, 7
        %v3769 = vsub.s32 0, %v3768
        %v3770 = vrot.slane %v3765, %v3769
        %v3772 = vadd.f32 %v3757, %v3770
        %v3773 = vadd.f32 %v3758, %v3770
        %v3774 = vadd.f32 %v3759, %v3770
        %v3775 = vadd.f32 %v3760, %v3770
        %v3776 = vadd.f32 %v3761, %v3770
        %v3777 = vadd.f32 %v3762, %v3770
        %v3778 = vadd.f32 %v3763, %v3770
        %v3779 = vadd.f32 %v3764, %v3770
        %v3780 = vmax.f32 %v3772, 0.0
        %v3781 = vmax.f32 %v3773, 0.0
        %v3782 = vmax.f32 %v3774, 0.0
        %v3783 = vmax.f32 %v3775, 0.0
        %v3784 = vmax.f32 %v3776, 0.0
        %v3785 = vmax.f32 %v3777, 0.0
        %v3786 = vmax.f32 %v3778, 0.0
        %v3787 = vmax.f32 %v3779, 0.0
        %v3788 = vpack.c.bf16 %v3781, %v3780
        %v3789 = vpack.c.bf16 %v3783, %v3782
        %v3790 = vpack.c.bf16 %v3785, %v3784
        %v3791 = vpack.c.bf16 %v3787, %v3786
        %v3792 = vld [vmem:[%s4] sm:$0xf]
        %v3793 = vld [vmem:[%s4 + $0x4] sm:$0xf]
        %v3796 = vunpack.c.l.b16 %v3792
        %v3797 = vunpack.c.l.b16 %v3793
        %v3798 = vpack.c.b16 %v3797, %v3796
        %vm3799 = vcmask 523264
        %v3801 = vsel %vm3799, %v3798, 0
        %3803 = vmatprep.subr.bf16.mxu0 0
        %3804 = vmatpush1.bf16.msra.mxu0 %v3788
        %3805 = vmatprep.subr.bf16.mxu0 0
        %3806 = vmatpush1.bf16.msra.mxu0 %v3789
        %3807 = vmatprep.subr.bf16.mxu0 0
        %3808 = vmatpush1.bf16.msra.mxu0 %v3790
        %3809 = vmatprep.subr.bf16.mxu0 0
        %3810 = vmatpush1.bf16.msra.mxu0 %v3791
        %3811 = vmatprep.subr.bf16.mxu0 0
        %3812 = vmatpush1.bf16.msra.mxu0 0
        %3813 = vmatprep.subr.bf16.mxu0 0
        %3814 = vmatpush1.bf16.msra.mxu0 0
        %3815 = vmatprep.subr.bf16.mxu0 0
        %3816 = vmatpush1.bf16.msra.mxu0 0
        %3817 = vmatprep.subr.bf16.mxu0 0
        %3818 = vmatpush1.bf16.msra.mxu0 0
        %3819 = vmatprep.subr.bf16.mxu0 0
        %3820 = vmatpush1.bf16.msra.mxu0 0
        %3821 = vmatprep.subr.bf16.mxu0 0
        %3822 = vmatpush1.bf16.msra.mxu0 0
        %3823 = vmatprep.subr.bf16.mxu0 0
        %3824 = vmatpush1.bf16.msra.mxu0 0
        %3825 = vmatprep.subr.bf16.mxu0 0
        %3826 = vmatpush1.bf16.msra.mxu0 0
        %3827 = vmatprep.subr.bf16.mxu0 0
        %3828 = vmatpush1.bf16.msra.mxu0 0
        %3829 = vmatprep.subr.bf16.mxu0 0
        %3830 = vmatpush1.bf16.msra.mxu0 0
        %3831 = vmatprep.subr.bf16.mxu0 0
        %3832 = vmatpush1.bf16.msra.mxu0 0
        %3833 = vmatprep.subr.bf16.mxu0 0
        %3834 = vmatpush1.bf16.msra.mxu0 0
        %3835 = vmatprep.mubr.bf16.mxu0 0
        %3836 = vmatmul.mubr.bf16.gmra.mrb[0].mxu0 %v3801
        %v3837 = vpop.f32.mrb[0].mxu0
        %v3838 = vadd.f32 0.0, %v3837
        %v3839 = vpop.f32.mrb[0].mxu0
        %v3840 = vpop.f32.mrb[0].mxu0
        %v3841 = vadd.f32 0.0, %v3840
        %v3842 = vpop.f32.mrb[0].mxu0
        %3843 = vdwg.mxu0
        %v3844 = vpack.c.bf16 %v3841, %v3838
        %v3845 = vld [vmem:[#allocation4] sm:$0xf]
        %v3846 = vld [vmem:[#allocation4 + $0x4] sm:$0xf]
        %v3847 = vld [vmem:[#allocation4 + $0x8] sm:$0xf]
        %v3848 = vld [vmem:[#allocation4 + $0xc] sm:$0xf]
        %v3849 = vld [vmem:[#allocation4 + $0x10] sm:$0xf]
        %v3850 = vld [vmem:[#allocation4 + $0x14] sm:$0xf]
        %v3851 = vld [vmem:[#allocation4 + $0x18] sm:$0xf]
        %v3852 = vld [vmem:[#allocation4 + $0x1c] sm:$0xf]
        %v3853 = vld [vmem:[#allocation4 + $0x20] sm:$0xf]
        %v3854 = vld [vmem:[#allocation4 + $0x24] sm:$0xf]
        %v3855 = vld [vmem:[#allocation4 + $0x28] sm:$0xf]
        %v3856 = vld [vmem:[#allocation4 + $0x2c] sm:$0xf]
        %v3857 = vld [vmem:[#allocation4 + $0x30] sm:$0xf]
        %v3858 = vld [vmem:[#allocation4 + $0x34] sm:$0xf]
        %v3859 = vld [vmem:[#allocation4 + $0x38] sm:$0xf]
        %v3860 = vld [vmem:[#allocation4 + $0x3c] sm:$0xf]
        %s3861 = scalar_lea.vmem %s4, 8
        %v3862 = vld [vmem:[%s3861] sm:$0xf]
        %v3863 = vld [vmem:[%s3861 + $0x4] sm:$0xf]
        %v3866 = vunpack.c.l.b16 %v3862
        %v3867 = vunpack.c.l.b16 %v3863
        %v3868 = vpack.c.b16 %v3867, %v3866
        %v3870 = vsel %vm3799, %v3868, 0
        %3872 = vmatprep.subr.bf16.mxu0 0
        %3873 = vmatpush1.bf16.msra.mxu0 %v3788
        %3874 = vmatprep.subr.bf16.mxu0 0
        %3875 = vmatpush1.bf16.msra.mxu0 %v3789
        %3876 = vmatprep.subr.bf16.mxu0 0
        %3877 = vmatpush1.bf16.msra.mxu0 %v3790
        %3878 = vmatprep.subr.bf16.mxu0 0
        %3879 = vmatpush1.bf16.msra.mxu0 %v3791
        %3880 = vmatprep.subr.bf16.mxu0 0
        %3881 = vmatpush1.bf16.msra.mxu0 0
        %3882 = vmatprep.subr.bf16.mxu0 0
        %3883 = vmatpush1.bf16.msra.mxu0 0
        %3884 = vmatprep.subr.bf16.mxu0 0
        %3885 = vmatpush1.bf16.msra.mxu0 0
        %3886 = vmatprep.subr.bf16.mxu0 0
        %3887 = vmatpush1.bf16.msra.mxu0 0
        %3888 = vmatprep.subr.bf16.mxu0 0
        %3889 = vmatpush1.bf16.msra.mxu0 0
        %3890 = vmatprep.subr.bf16.mxu0 0
        %3891 = vmatpush1.bf16.msra.mxu0 0
        %3892 = vmatprep.subr.bf16.mxu0 0
        %3893 = vmatpush1.bf16.msra.mxu0 0
        %3894 = vmatprep.subr.bf16.mxu0 0
        %3895 = vmatpush1.bf16.msra.mxu0 0
        %3896 = vmatprep.subr.bf16.mxu0 0
        %3897 = vmatpush1.bf16.msra.mxu0 0
        %3898 = vmatprep.subr.bf16.mxu0 0
        %3899 = vmatpush1.bf16.msra.mxu0 0
        %3900 = vmatprep.subr.bf16.mxu0 0
        %3901 = vmatpush1.bf16.msra.mxu0 0
        %3902 = vmatprep.subr.bf16.mxu0 0
        %3903 = vmatpush1.bf16.msra.mxu0 0
        %3904 = vmatprep.mubr.bf16.mxu0 0
        %3905 = vmatmul.mubr.bf16.gmra.mrb[0].mxu0 %v3870
        %v3906 = vpop.f32.mrb[0].mxu0
        %v3907 = vadd.f32 0.0, %v3906
        %v3908 = vpop.f32.mrb[0].mxu0
        %v3909 = vpop.f32.mrb[0].mxu0
        %v3910 = vadd.f32 0.0, %v3909
        %v3911 = vpop.f32.mrb[0].mxu0
        %3912 = vdwg.mxu0
        %v3913 = vpack.c.bf16 %v3910, %v3907
        %s3914 = scalar_lea.vmem [#allocation4], 64
        %v3915 = vld [vmem:[%s3914] sm:$0xf]
        %v3916 = vld [vmem:[%s3914 + $0x4] sm:$0xf]
        %v3917 = vld [vmem:[%s3914 + $0x8] sm:$0xf]
        %v3918 = vld [vmem:[%s3914 + $0xc] sm:$0xf]
        %v3919 = vld [vmem:[%s3914 + $0x10] sm:$0xf]
        %v3920 = vld [vmem:[%s3914 + $0x14] sm:$0xf]
        %v3921 = vld [vmem:[%s3914 + $0x18] sm:$0xf]
        %v3922 = vld [vmem:[%s3914 + $0x1c] sm:$0xf]
        %v3923 = vld [vmem:[%s3914 + $0x20] sm:$0xf]
        %v3924 = vld [vmem:[%s3914 + $0x24] sm:$0xf]
        %v3925 = vld [vmem:[%s3914 + $0x28] sm:$0xf]
        %v3926 = vld [vmem:[%s3914 + $0x2c] sm:$0xf]
        %v3927 = vld [vmem:[%s3914 + $0x30] sm:$0xf]
        %v3928 = vld [vmem:[%s3914 + $0x34] sm:$0xf]
        %v3929 = vld [vmem:[%s3914 + $0x38] sm:$0xf]
        %v3930 = vld [vmem:[%s3914 + $0x3c] sm:$0xf]
        %v3947 = vunpack.c.l.b16 %v3915
        %v3948 = vunpack.c.l.b16 %v3916
        %v3949 = vunpack.c.l.b16 %v3917
        %v3950 = vunpack.c.l.b16 %v3918
        %v3951 = vunpack.c.l.b16 %v3919
        %v3952 = vunpack.c.l.b16 %v3920
        %v3953 = vunpack.c.l.b16 %v3921
        %v3954 = vunpack.c.l.b16 %v3922
        %v3955 = vunpack.c.l.b16 %v3923
        %v3956 = vunpack.c.l.b16 %v3924
        %v3957 = vunpack.c.l.b16 %v3925
        %v3958 = vunpack.c.l.b16 %v3926
        %v3959 = vunpack.c.l.b16 %v3927
        %v3960 = vunpack.c.l.b16 %v3928
        %v3961 = vunpack.c.l.b16 %v3929
        %v3962 = vunpack.c.l.b16 %v3930
        %v3963 = vpack.c.b16 %v3948, %v3947
        %v3964 = vpack.c.b16 %v3950, %v3949
        %v3965 = vpack.c.b16 %v3952, %v3951
        %v3966 = vpack.c.b16 %v3954, %v3953
        %v3967 = vpack.c.b16 %v3956, %v3955
        %v3968 = vpack.c.b16 %v3958, %v3957
        %v3969 = vpack.c.b16 %v3960, %v3959
        %v3970 = vpack.c.b16 %v3962, %v3961
        %3979 = vmatprep.subr.bf16.mxu0 0
        %3980 = vmatpush1.bf16.msra.mxu0 %v3963
        %3981 = vmatprep.subr.bf16.mxu0 0
        %3982 = vmatpush1.bf16.msra.mxu0 %v3964
        %3983 = vmatprep.subr.bf16.mxu0 0
        %3984 = vmatpush1.bf16.msra.mxu0 %v3965
        %3985 = vmatprep.subr.bf16.mxu0 0
        %3986 = vmatpush1.bf16.msra.mxu0 %v3966
        %3987 = vmatprep.subr.bf16.mxu0 0
        %3988 = vmatpush1.bf16.msra.mxu0 %v3967
        %3989 = vmatprep.subr.bf16.mxu0 0
        %3990 = vmatpush1.bf16.msra.mxu0 %v3968
        %3991 = vmatprep.subr.bf16.mxu0 0
        %3992 = vmatpush1.bf16.msra.mxu0 %v3969
        %3993 = vmatprep.subr.bf16.mxu0 0
        %3994 = vmatpush1.bf16.msra.mxu0 %v3970
        %3995 = vmatprep.subr.bf16.mxu0 0
        %3996 = vmatpush1.bf16.msra.mxu0 0
        %3997 = vmatprep.subr.bf16.mxu0 0
        %3998 = vmatpush1.bf16.msra.mxu0 0
        %3999 = vmatprep.subr.bf16.mxu0 0
        %4000 = vmatpush1.bf16.msra.mxu0 0
        %4001 = vmatprep.subr.bf16.mxu0 0
        %4002 = vmatpush1.bf16.msra.mxu0 0
        %4003 = vmatprep.subr.bf16.mxu0 0
        %4004 = vmatpush1.bf16.msra.mxu0 0
        %4005 = vmatprep.subr.bf16.mxu0 0
        %4006 = vmatpush1.bf16.msra.mxu0 0
        %4007 = vmatprep.subr.bf16.mxu0 0
        %4008 = vmatpush1.bf16.msra.mxu0 0
        %4009 = vmatprep.subr.bf16.mxu0 0
        %4010 = vmatpush1.bf16.msra.mxu0 0
        %4011 = vmatprep.mubr.bf16.mxu0 0
        %4012 = vmatmul.mubr.bf16.gmra.mrb[0].mxu0 %v3913
        %v4013 = vpop.f32.mrb[0].mxu0
        %v4014 = vadd.f32 0.0, %v4013
        %v4015 = vpop.f32.mrb[0].mxu0
        %v4016 = vpop.f32.mrb[0].mxu0
        %v4017 = vadd.f32 0.0, %v4016
        %v4018 = vpop.f32.mrb[0].mxu0
        %4019 = vdwg.mxu0
        %v4036 = vunpack.c.l.b16 %v3845
        %v4037 = vunpack.c.l.b16 %v3846
        %v4038 = vunpack.c.l.b16 %v3847
        %v4039 = vunpack.c.l.b16 %v3848
        %v4040 = vunpack.c.l.b16 %v3849
        %v4041 = vunpack.c.l.b16 %v3850
        %v4042 = vunpack.c.l.b16 %v3851
        %v4043 = vunpack.c.l.b16 %v3852
        %v4044 = vunpack.c.l.b16 %v3853
        %v4045 = vunpack.c.l.b16 %v3854
        %v4046 = vunpack.c.l.b16 %v3855
        %v4047 = vunpack.c.l.b16 %v3856
        %v4048 = vunpack.c.l.b16 %v3857
        %v4049 = vunpack.c.l.b16 %v3858
        %v4050 = vunpack.c.l.b16 %v3859
        %v4051 = vunpack.c.l.b16 %v3860
        %v4052 = vpack.c.b16 %v4037, %v4036
        %v4053 = vpack.c.b16 %v4039, %v4038
        %v4054 = vpack.c.b16 %v4041, %v4040
        %v4055 = vpack.c.b16 %v4043, %v4042
        %v4056 = vpack.c.b16 %v4045, %v4044
        %v4057 = vpack.c.b16 %v4047, %v4046
        %v4058 = vpack.c.b16 %v4049, %v4048
        %v4059 = vpack.c.b16 %v4051, %v4050
        %4068 = vmatprep.subr.bf16.mxu0 0
        %4069 = vmatpush1.bf16.msra.mxu0 %v4052
        %4070 = vmatprep.subr.bf16.mxu0 0
        %4071 = vmatpush1.bf16.msra.mxu0 %v4053
        %4072 = vmatprep.subr.bf16.mxu0 0
        %4073 = vmatpush1.bf16.msra.mxu0 %v4054
        %4074 = vmatprep.subr.bf16.mxu0 0
        %4075 = vmatpush1.bf16.msra.mxu0 %v4055
        %4076 = vmatprep.subr.bf16.mxu0 0
        %4077 = vmatpush1.bf16.msra.mxu0 %v4056
        %4078 = vmatprep.subr.bf16.mxu0 0
        %4079 = vmatpush1.bf16.msra.mxu0 %v4057
        %4080 = vmatprep.subr.bf16.mxu0 0
        %4081 = vmatpush1.bf16.msra.mxu0 %v4058
        %4082 = vmatprep.subr.bf16.mxu0 0
        %4083 = vmatpush1.bf16.msra.mxu0 %v4059
        %4084 = vmatprep.subr.bf16.mxu0 0
        %4085 = vmatpush1.bf16.msra.mxu0 0
        %4086 = vmatprep.subr.bf16.mxu0 0
        %4087 = vmatpush1.bf16.msra.mxu0 0
        %4088 = vmatprep.subr.bf16.mxu0 0
        %4089 = vmatpush1.bf16.msra.mxu0 0
        %4090 = vmatprep.subr.bf16.mxu0 0
        %4091 = vmatpush1.bf16.msra.mxu0 0
        %4092 = vmatprep.subr.bf16.mxu0 0
        %4093 = vmatpush1.bf16.msra.mxu0 0
        %4094 = vmatprep.subr.bf16.mxu0 0
        %4095 = vmatpush1.bf16.msra.mxu0 0
        %4096 = vmatprep.subr.bf16.mxu0 0
        %4097 = vmatpush1.bf16.msra.mxu0 0
        %4098 = vmatprep.subr.bf16.mxu0 0
        %4099 = vmatpush1.bf16.msra.mxu0 0
        %4100 = vmatprep.mubr.bf16.mxu0 0
        %4101 = vmatmul.mubr.bf16.gmra.mrb[0].mxu0 %v3844
        %v4102 = vpop.f32.mrb[0].mxu0
        %v4103 = vadd.f32 %v4014, %v4102
        %v4104 = vpop.f32.mrb[0].mxu0
        %v4105 = vpop.f32.mrb[0].mxu0
        %v4106 = vadd.f32 %v4017, %v4105
        %v4107 = vpop.f32.mrb[0].mxu0
        %4108 = vdwg.mxu0
        %s4109 = scalar_lea.vmem %s4, 16
        %v4110 = vld [vmem:[%s4109] sm:$0xf]
        %v4111 = vld [vmem:[%s4109 + $0x4] sm:$0xf]
        %v4114 = vunpack.c.l.b16 %v4110
        %v4115 = vunpack.c.l.b16 %v4111
        %v4116 = vpack.c.b16 %v4115, %v4114
        %v4118 = vsel %vm3799, %v4116, 0
        %4120 = vmatprep.subr.bf16.mxu0 0
        %4121 = vmatpush1.bf16.msra.mxu0 %v3788
        %4122 = vmatprep.subr.bf16.mxu0 0
        %4123 = vmatpush1.bf16.msra.mxu0 %v3789
        %4124 = vmatprep.subr.bf16.mxu0 0
        %4125 = vmatpush1.bf16.msra.mxu0 %v3790
        %4126 = vmatprep.subr.bf16.mxu0 0
        %4127 = vmatpush1.bf16.msra.mxu0 %v3791
        %4128 = vmatprep.subr.bf16.mxu0 0
        %4129 = vmatpush1.bf16.msra.mxu0 0
        %4130 = vmatprep.subr.bf16.mxu0 0
        %4131 = vmatpush1.bf16.msra.mxu0 0
        %4132 = vmatprep.subr.bf16.mxu0 0
        %4133 = vmatpush1.bf16.msra.mxu0 0
        %4134 = vmatprep.subr.bf16.mxu0 0
        %4135 = vmatpush1.bf16.msra.mxu0 0
        %4136 = vmatprep.subr.bf16.mxu0 0
        %4137 = vmatpush1.bf16.msra.mxu0 0
        %4138 = vmatprep.subr.bf16.mxu0 0
        %4139 = vmatpush1.bf16.msra.mxu0 0
        %4140 = vmatprep.subr.bf16.mxu0 0
        %4141 = vmatpush1.bf16.msra.mxu0 0
        %4142 = vmatprep.subr.bf16.mxu0 0
        %4143 = vmatpush1.bf16.msra.mxu0 0
        %4144 = vmatprep.subr.bf16.mxu0 0
        %4145 = vmatpush1.bf16.msra.mxu0 0
        %4146 = vmatprep.subr.bf16.mxu0 0
        %4147 = vmatpush1.bf16.msra.mxu0 0
        %4148 = vmatprep.subr.bf16.mxu0 0
        %4149 = vmatpush1.bf16.msra.mxu0 0
        %4150 = vmatprep.subr.bf16.mxu0 0
        %4151 = vmatpush1.bf16.msra.mxu0 0
        %4152 = vmatprep.mubr.bf16.mxu0 0
        %4153 = vmatmul.mubr.bf16.gmra.mrb[0].mxu0 %v4118
        %v4154 = vpop.f32.mrb[0].mxu0
        %v4155 = vadd.f32 0.0, %v4154
        %v4156 = vpop.f32.mrb[0].mxu0
        %v4157 = vpop.f32.mrb[0].mxu0
        %v4158 = vadd.f32 0.0, %v4157
        %v4159 = vpop.f32.mrb[0].mxu0
        %4160 = vdwg.mxu0
        %v4161 = vpack.c.bf16 %v4158, %v4155
        %s4162 = scalar_lea.vmem [#allocation4], 128
        %v4163 = vld [vmem:[%s4162] sm:$0xf]
        %v4164 = vld [vmem:[%s4162 + $0x4] sm:$0xf]
        %v4165 = vld [vmem:[%s4162 + $0x8] sm:$0xf]
        %v4166 = vld [vmem:[%s4162 + $0xc] sm:$0xf]
        %v4167 = vld [vmem:[%s4162 + $0x10] sm:$0xf]
        %v4168 = vld [vmem:[%s4162 + $0x14] sm:$0xf]
        %v4169 = vld [vmem:[%s4162 + $0x18] sm:$0xf]
        %v4170 = vld [vmem:[%s4162 + $0x1c] sm:$0xf]
        %v4171 = vld [vmem:[%s4162 + $0x20] sm:$0xf]
        %v4172 = vld [vmem:[%s4162 + $0x24] sm:$0xf]
        %v4173 = vld [vmem:[%s4162 + $0x28] sm:$0xf]
        %v4174 = vld [vmem:[%s4162 + $0x2c] sm:$0xf]
        %v4175 = vld [vmem:[%s4162 + $0x30] sm:$0xf]
        %v4176 = vld [vmem:[%s4162 + $0x34] sm:$0xf]
        %v4177 = vld [vmem:[%s4162 + $0x38] sm:$0xf]
        %v4178 = vld [vmem:[%s4162 + $0x3c] sm:$0xf]
        %v4195 = vunpack.c.l.b16 %v4163
        %v4196 = vunpack.c.l.b16 %v4164
        %v4197 = vunpack.c.l.b16 %v4165
        %v4198 = vunpack.c.l.b16 %v4166
        %v4199 = vunpack.c.l.b16 %v4167
        %v4200 = vunpack.c.l.b16 %v4168
        %v4201 = vunpack.c.l.b16 %v4169
        %v4202 = vunpack.c.l.b16 %v4170
        %v4203 = vunpack.c.l.b16 %v4171
        %v4204 = vunpack.c.l.b16 %v4172
        %v4205 = vunpack.c.l.b16 %v4173
        %v4206 = vunpack.c.l.b16 %v4174
        %v4207 = vunpack.c.l.b16 %v4175
        %v4208 = vunpack.c.l.b16 %v4176
        %v4209 = vunpack.c.l.b16 %v4177
        %v4210 = vunpack.c.l.b16 %v4178
        %v4211 = vpack.c.b16 %v4196, %v4195
        %v4212 = vpack.c.b16 %v4198, %v4197
        %v4213 = vpack.c.b16 %v4200, %v4199
        %v4214 = vpack.c.b16 %v4202, %v4201
        %v4215 = vpack.c.b16 %v4204, %v4203
        %v4216 = vpack.c.b16 %v4206, %v4205
        %v4217 = vpack.c.b16 %v4208, %v4207
        %v4218 = vpack.c.b16 %v4210, %v4209
        %4227 = vmatprep.subr.bf16.mxu0 0
        %4228 = vmatpush1.bf16.msra.mxu0 %v4211
        %4229 = vmatprep.subr.bf16.mxu0 0
        %4230 = vmatpush1.bf16.msra.mxu0 %v4212
        %4231 = vmatprep.subr.bf16.mxu0 0
        %4232 = vmatpush1.bf16.msra.mxu0 %v4213
        %4233 = vmatprep.subr.bf16.mxu0 0
        %4234 = vmatpush1.bf16.msra.mxu0 %v4214
        %4235 = vmatprep.subr.bf16.mxu0 0
        %4236 = vmatpush1.bf16.msra.mxu0 %v4215
        %4237 = vmatprep.subr.bf16.mxu0 0
        %4238 = vmatpush1.bf16.msra.mxu0 %v4216
        %4239 = vmatprep.subr.bf16.mxu0 0
        %4240 = vmatpush1.bf16.msra.mxu0 %v4217
        %4241 = vmatprep.subr.bf16.mxu0 0
        %4242 = vmatpush1.bf16.msra.mxu0 %v4218
        %4243 = vmatprep.subr.bf16.mxu0 0
        %4244 = vmatpush1.bf16.msra.mxu0 0
        %4245 = vmatprep.subr.bf16.mxu0 0
        %4246 = vmatpush1.bf16.msra.mxu0 0
        %4247 = vmatprep.subr.bf16.mxu0 0
        %4248 = vmatpush1.bf16.msra.mxu0 0
        %4249 = vmatprep.subr.bf16.mxu0 0
        %4250 = vmatpush1.bf16.msra.mxu0 0
        %4251 = vmatprep.subr.bf16.mxu0 0
        %4252 = vmatpush1.bf16.msra.mxu0 0
        %4253 = vmatprep.subr.bf16.mxu0 0
        %4254 = vmatpush1.bf16.msra.mxu0 0
        %4255 = vmatprep.subr.bf16.mxu0 0
        %4256 = vmatpush1.bf16.msra.mxu0 0
        %4257 = vmatprep.subr.bf16.mxu0 0
        %4258 = vmatpush1.bf16.msra.mxu0 0
        %4259 = vmatprep.mubr.bf16.mxu0 0
        %4260 = vmatmul.mubr.bf16.gmra.mrb[0].mxu0 %v4161
        %v4261 = vpop.f32.mrb[0].mxu0
        %v4262 = vadd.f32 0.0, %v4261
        %v4263 = vpop.f32.mrb[0].mxu0
        %v4264 = vpop.f32.mrb[0].mxu0
        %v4265 = vadd.f32 0.0, %v4264
        %v4266 = vpop.f32.mrb[0].mxu0
        %4267 = vdwg.mxu0
        %v4268 = vadd.f32 %v4103, %v4262
        %v4269 = vadd.f32 %v4106, %v4265
        %s4270 = scalar_lea.vmem %s4, 24
        %v4271 = vld [vmem:[%s4270] sm:$0xf]
        %v4272 = vld [vmem:[%s4270 + $0x4] sm:$0xf]
        %v4275 = vunpack.c.l.b16 %v4271
        %v4276 = vunpack.c.l.b16 %v4272
        %v4277 = vpack.c.b16 %v4276, %v4275
        %v4279 = vsel %vm3799, %v4277, 0
        %4281 = vmatprep.subr.bf16.mxu0 0
        %4282 = vmatpush1.bf16.msra.mxu0 %v3788
        %4283 = vmatprep.subr.bf16.mxu0 0
        %4284 = vmatpush1.bf16.msra.mxu0 %v3789
        %4285 = vmatprep.subr.bf16.mxu0 0
        %4286 = vmatpush1.bf16.msra.mxu0 %v3790
        %4287 = vmatprep.subr.bf16.mxu0 0
        %4288 = vmatpush1.bf16.msra.mxu0 %v3791
        %4289 = vmatprep.subr.bf16.mxu0 0
        %4290 = vmatpush1.bf16.msra.mxu0 0
        %4291 = vmatprep.subr.bf16.mxu0 0
        %4292 = vmatpush1.bf16.msra.mxu0 0
        %4293 = vmatprep.subr.bf16.mxu0 0
        %4294 = vmatpush1.bf16.msra.mxu0 0
        %4295 = vmatprep.subr.bf16.mxu0 0
        %4296 = vmatpush1.bf16.msra.mxu0 0
        %4297 = vmatprep.subr.bf16.mxu0 0
        %4298 = vmatpush1.bf16.msra.mxu0 0
        %4299 = vmatprep.subr.bf16.mxu0 0
        %4300 = vmatpush1.bf16.msra.mxu0 0
        %4301 = vmatprep.subr.bf16.mxu0 0
        %4302 = vmatpush1.bf16.msra.mxu0 0
        %4303 = vmatprep.subr.bf16.mxu0 0
        %4304 = vmatpush1.bf16.msra.mxu0 0
        %4305 = vmatprep.subr.bf16.mxu0 0
        %4306 = vmatpush1.bf16.msra.mxu0 0
        %4307 = vmatprep.subr.bf16.mxu0 0
        %4308 = vmatpush1.bf16.msra.mxu0 0
        %4309 = vmatprep.subr.bf16.mxu0 0
        %4310 = vmatpush1.bf16.msra.mxu0 0
        %4311 = vmatprep.subr.bf16.mxu0 0
        %4312 = vmatpush1.bf16.msra.mxu0 0
        %4313 = vmatprep.mubr.bf16.mxu0 0
        %4314 = vmatmul.mubr.bf16.gmra.mrb[0].mxu0 %v4279
        %v4315 = vpop.f32.mrb[0].mxu0
        %v4316 = vadd.f32 0.0, %v4315
        %v4317 = vpop.f32.mrb[0].mxu0
        %v4318 = vpop.f32.mrb[0].mxu0
        %v4319 = vadd.f32 0.0, %v4318
        %v4320 = vpop.f32.mrb[0].mxu0
        %4321 = vdwg.mxu0
        %v4322 = vpack.c.bf16 %v4319, %v4316
        %s4323 = scalar_lea.vmem [#allocation4], 192
        %v4324 = vld [vmem:[%s4323] sm:$0xf]
        %v4325 = vld [vmem:[%s4323 + $0x4] sm:$0xf]
        %v4326 = vld [vmem:[%s4323 + $0x8] sm:$0xf]
        %v4327 = vld [vmem:[%s4323 + $0xc] sm:$0xf]
        %v4328 = vld [vmem:[%s4323 + $0x10] sm:$0xf]
        %v4329 = vld [vmem:[%s4323 + $0x14] sm:$0xf]
        %v4330 = vld [vmem:[%s4323 + $0x18] sm:$0xf]
        %v4331 = vld [vmem:[%s4323 + $0x1c] sm:$0xf]
        %v4332 = vld [vmem:[%s4323 + $0x20] sm:$0xf]
        %v4333 = vld [vmem:[%s4323 + $0x24] sm:$0xf]
        %v4334 = vld [vmem:[%s4323 + $0x28] sm:$0xf]
        %v4335 = vld [vmem:[%s4323 + $0x2c] sm:$0xf]
        %v4336 = vld [vmem:[%s4323 + $0x30] sm:$0xf]
        %v4337 = vld [vmem:[%s4323 + $0x34] sm:$0xf]
        %v4338 = vld [vmem:[%s4323 + $0x38] sm:$0xf]
        %v4339 = vld [vmem:[%s4323 + $0x3c] sm:$0xf]
        %v4356 = vunpack.c.l.b16 %v4324
        %v4357 = vunpack.c.l.b16 %v4325
        %v4358 = vunpack.c.l.b16 %v4326
        %v4359 = vunpack.c.l.b16 %v4327
        %v4360 = vunpack.c.l.b16 %v4328
        %v4361 = vunpack.c.l.b16 %v4329
        %v4362 = vunpack.c.l.b16 %v4330
        %v4363 = vunpack.c.l.b16 %v4331
        %v4364 = vunpack.c.l.b16 %v4332
        %v4365 = vunpack.c.l.b16 %v4333
        %v4366 = vunpack.c.l.b16 %v4334
        %v4367 = vunpack.c.l.b16 %v4335
        %v4368 = vunpack.c.l.b16 %v4336
        %v4369 = vunpack.c.l.b16 %v4337
        %v4370 = vunpack.c.l.b16 %v4338
        %v4371 = vunpack.c.l.b16 %v4339
        %v4372 = vpack.c.b16 %v4357, %v4356
        %v4373 = vpack.c.b16 %v4359, %v4358
        %v4374 = vpack.c.b16 %v4361, %v4360
        %v4375 = vpack.c.b16 %v4363, %v4362
        %v4376 = vpack.c.b16 %v4365, %v4364
        %v4377 = vpack.c.b16 %v4367, %v4366
        %v4378 = vpack.c.b16 %v4369, %v4368
        %v4379 = vpack.c.b16 %v4371, %v4370
        %4388 = vmatprep.subr.bf16.mxu0 0
        %4389 = vmatpush1.bf16.msra.mxu0 %v4372
        %4390 = vmatprep.subr.bf16.mxu0 0
        %4391 = vmatpush1.bf16.msra.mxu0 %v4373
        %4392 = vmatprep.subr.bf16.mxu0 0
        %4393 = vmatpush1.bf16.msra.mxu0 %v4374
        %4394 = vmatprep.subr.bf16.mxu0 0
        %4395 = vmatpush1.bf16.msra.mxu0 %v4375
        %4396 = vmatprep.subr.bf16.mxu0 0
        %4397 = vmatpush1.bf16.msra.mxu0 %v4376
        %4398 = vmatprep.subr.bf16.mxu0 0
        %4399 = vmatpush1.bf16.msra.mxu0 %v4377
        %4400 = vmatprep.subr.bf16.mxu0 0
        %4401 = vmatpush1.bf16.msra.mxu0 %v4378
        %4402 = vmatprep.subr.bf16.mxu0 0
        %4403 = vmatpush1.bf16.msra.mxu0 %v4379
        %4404 = vmatprep.subr.bf16.mxu0 0
        %4405 = vmatpush1.bf16.msra.mxu0 0
        %4406 = vmatprep.subr.bf16.mxu0 0
        %4407 = vmatpush1.bf16.msra.mxu0 0
        %4408 = vmatprep.subr.bf16.mxu0 0
        %4409 = vmatpush1.bf16.msra.mxu0 0
        %4410 = vmatprep.subr.bf16.mxu0 0
        %4411 = vmatpush1.bf16.msra.mxu0 0
        %4412 = vmatprep.subr.bf16.mxu0 0
        %4413 = vmatpush1.bf16.msra.mxu0 0
        %4414 = vmatprep.subr.bf16.mxu0 0
        %4415 = vmatpush1.bf16.msra.mxu0 0
        %4416 = vmatprep.subr.bf16.mxu0 0
        %4417 = vmatpush1.bf16.msra.mxu0 0
        %4418 = vmatprep.subr.bf16.mxu0 0
        %4419 = vmatpush1.bf16.msra.mxu0 0
        %4420 = vmatprep.mubr.bf16.mxu0 0
        %4421 = vmatmul.mubr.bf16.gmra.mrb[0].mxu0 %v4322
        %v4422 = vpop.f32.mrb[0].mxu0
        %v4423 = vadd.f32 0.0, %v4422
        %v4424 = vpop.f32.mrb[0].mxu0
        %v4425 = vpop.f32.mrb[0].mxu0
        %v4426 = vadd.f32 0.0, %v4425
        %v4427 = vpop.f32.mrb[0].mxu0
        %4428 = vdwg.mxu0
        %v4429 = vadd.f32 %v4268, %v4423
        %v4430 = vadd.f32 %v4269, %v4426
        %s4431 = scalar_lea.vmem %s4, 32
        %v4432 = vld [vmem:[%s4431] sm:$0xf]
        %v4433 = vld [vmem:[%s4431 + $0x4] sm:$0xf]
        %v4436 = vunpack.c.l.b16 %v4432
        %v4437 = vunpack.c.l.b16 %v4433
        %v4438 = vpack.c.b16 %v4437, %v4436
        %v4440 = vsel %vm3799, %v4438, 0
        %4442 = vmatprep.subr.bf16.mxu0 0
        %4443 = vmatpush1.bf16.msra.mxu0 %v3788
        %4444 = vmatprep.subr.bf16.mxu0 0
        %4445 = vmatpush1.bf16.msra.mxu0 %v3789
        %4446 = vmatprep.subr.bf16.mxu0 0
        %4447 = vmatpush1.bf16.msra.mxu0 %v3790
        %4448 = vmatprep.subr.bf16.mxu0 0
        %4449 = vmatpush1.bf16.msra.mxu0 %v3791
        %4450 = vmatprep.subr.bf16.mxu0 0
        %4451 = vmatpush1.bf16.msra.mxu0 0
        %4452 = vmatprep.subr.bf16.mxu0 0
        %4453 = vmatpush1.bf16.msra.mxu0 0
        %4454 = vmatprep.subr.bf16.mxu0 0
        %4455 = vmatpush1.bf16.msra.mxu0 0
        %4456 = vmatprep.subr.bf16.mxu0 0
        %4457 = vmatpush1.bf16.msra.mxu0 0
        %4458 = vmatprep.subr.bf16.mxu0 0
        %4459 = vmatpush1.bf16.msra.mxu0 0
        %4460 = vmatprep.subr.bf16.mxu0 0
        %4461 = vmatpush1.bf16.msra.mxu0 0
        %4462 = vmatprep.subr.bf16.mxu0 0
        %4463 = vmatpush1.bf16.msra.mxu0 0
        %4464 = vmatprep.subr.bf16.mxu0 0
        %4465 = vmatpush1.bf16.msra.mxu0 0
        %4466 = vmatprep.subr.bf16.mxu0 0
        %4467 = vmatpush1.bf16.msra.mxu0 0
        %4468 = vmatprep.subr.bf16.mxu0 0
        %4469 = vmatpush1.bf16.msra.mxu0 0
        %4470 = vmatprep.subr.bf16.mxu0 0
        %4471 = vmatpush1.bf16.msra.mxu0 0
        %4472 = vmatprep.subr.bf16.mxu0 0
        %4473 = vmatpush1.bf16.msra.mxu0 0
        %4474 = vmatprep.mubr.bf16.mxu0 0
        %4475 = vmatmul.mubr.bf16.gmra.mrb[0].mxu0 %v4440
        %v4476 = vpop.f32.mrb[0].mxu0
        %v4477 = vadd.f32 0.0, %v4476
        %v4478 = vpop.f32.mrb[0].mxu0
        %v4479 = vpop.f32.mrb[0].mxu0
        %v4480 = vadd.f32 0.0, %v4479
        %v4481 = vpop.f32.mrb[0].mxu0
        %4482 = vdwg.mxu0
        %v4483 = vpack.c.bf16 %v4480, %v4477
        %s4484 = scalar_lea.vmem [#allocation4], 256
        %v4485 = vld [vmem:[%s4484] sm:$0xf]
        %v4486 = vld [vmem:[%s4484 + $0x4] sm:$0xf]
        %v4487 = vld [vmem:[%s4484 + $0x8] sm:$0xf]
        %v4488 = vld [vmem:[%s4484 + $0xc] sm:$0xf]
        %v4489 = vld [vmem:[%s4484 + $0x10] sm:$0xf]
        %v4490 = vld [vmem:[%s4484 + $0x14] sm:$0xf]
        %v4491 = vld [vmem:[%s4484 + $0x18] sm:$0xf]
        %v4492 = vld [vmem:[%s4484 + $0x1c] sm:$0xf]
        %v4493 = vld [vmem:[%s4484 + $0x20] sm:$0xf]
        %v4494 = vld [vmem:[%s4484 + $0x24] sm:$0xf]
        %v4495 = vld [vmem:[%s4484 + $0x28] sm:$0xf]
        %v4496 = vld [vmem:[%s4484 + $0x2c] sm:$0xf]
        %v4497 = vld [vmem:[%s4484 + $0x30] sm:$0xf]
        %v4498 = vld [vmem:[%s4484 + $0x34] sm:$0xf]
        %v4499 = vld [vmem:[%s4484 + $0x38] sm:$0xf]
        %v4500 = vld [vmem:[%s4484 + $0x3c] sm:$0xf]
        %v4517 = vunpack.c.l.b16 %v4485
        %v4518 = vunpack.c.l.b16 %v4486
        %v4519 = vunpack.c.l.b16 %v4487
        %v4520 = vunpack.c.l.b16 %v4488
        %v4521 = vunpack.c.l.b16 %v4489
        %v4522 = vunpack.c.l.b16 %v4490
        %v4523 = vunpack.c.l.b16 %v4491
        %v4524 = vunpack.c.l.b16 %v4492
        %v4525 = vunpack.c.l.b16 %v4493
        %v4526 = vunpack.c.l.b16 %v4494
        %v4527 = vunpack.c.l.b16 %v4495
        %v4528 = vunpack.c.l.b16 %v4496
        %v4529 = vunpack.c.l.b16 %v4497
        %v4530 = vunpack.c.l.b16 %v4498
        %v4531 = vunpack.c.l.b16 %v4499
        %v4532 = vunpack.c.l.b16 %v4500
        %v4533 = vpack.c.b16 %v4518, %v4517
        %v4534 = vpack.c.b16 %v4520, %v4519
        %v4535 = vpack.c.b16 %v4522, %v4521
        %v4536 = vpack.c.b16 %v4524, %v4523
        %v4537 = vpack.c.b16 %v4526, %v4525
        %v4538 = vpack.c.b16 %v4528, %v4527
        %v4539 = vpack.c.b16 %v4530, %v4529
        %v4540 = vpack.c.b16 %v4532, %v4531
        %4549 = vmatprep.subr.bf16.mxu0 0
        %4550 = vmatpush1.bf16.msra.mxu0 %v4533
        %4551 = vmatprep.subr.bf16.mxu0 0
        %4552 = vmatpush1.bf16.msra.mxu0 %v4534
        %4553 = vmatprep.subr.bf16.mxu0 0
        %4554 = vmatpush1.bf16.msra.mxu0 %v4535
        %4555 = vmatprep.subr.bf16.mxu0 0
        %4556 = vmatpush1.bf16.msra.mxu0 %v4536
        %4557 = vmatprep.subr.bf16.mxu0 0
        %4558 = vmatpush1.bf16.msra.mxu0 %v4537
        %4559 = vmatprep.subr.bf16.mxu0 0
        %4560 = vmatpush1.bf16.msra.mxu0 %v4538
        %4561 = vmatprep.subr.bf16.mxu0 0
        %4562 = vmatpush1.bf16.msra.mxu0 %v4539
        %4563 = vmatprep.subr.bf16.mxu0 0
        %4564 = vmatpush1.bf16.msra.mxu0 %v4540
        %4565 = vmatprep.subr.bf16.mxu0 0
        %4566 = vmatpush1.bf16.msra.mxu0 0
        %4567 = vmatprep.subr.bf16.mxu0 0
        %4568 = vmatpush1.bf16.msra.mxu0 0
        %4569 = vmatprep.subr.bf16.mxu0 0
        %4570 = vmatpush1.bf16.msra.mxu0 0
        %4571 = vmatprep.subr.bf16.mxu0 0
        %4572 = vmatpush1.bf16.msra.mxu0 0
        %4573 = vmatprep.subr.bf16.mxu0 0
        %4574 = vmatpush1.bf16.msra.mxu0 0
        %4575 = vmatprep.subr.bf16.mxu0 0
        %4576 = vmatpush1.bf16.msra.mxu0 0
        %4577 = vmatprep.subr.bf16.mxu0 0
        %4578 = vmatpush1.bf16.msra.mxu0 0
        %4579 = vmatprep.subr.bf16.mxu0 0
        %4580 = vmatpush1.bf16.msra.mxu0 0
        %4581 = vmatprep.mubr.bf16.mxu0 0
        %4582 = vmatmul.mubr.bf16.gmra.mrb[0].mxu0 %v4483
        %v4583 = vpop.f32.mrb[0].mxu0
        %v4584 = vadd.f32 0.0, %v4583
        %v4585 = vpop.f32.mrb[0].mxu0
        %v4586 = vpop.f32.mrb[0].mxu0
        %v4587 = vadd.f32 0.0, %v4586
        %v4588 = vpop.f32.mrb[0].mxu0
        %4589 = vdwg.mxu0
        %v4590 = vadd.f32 %v4429, %v4584
        %v4591 = vadd.f32 %v4430, %v4587
        %s4592 = scalar_lea.vmem %s4, 40
        %v4593 = vld [vmem:[%s4592] sm:$0xf]
        %v4594 = vld [vmem:[%s4592 + $0x4] sm:$0xf]
        %v4597 = vunpack.c.l.b16 %v4593
        %v4598 = vunpack.c.l.b16 %v4594
        %v4599 = vpack.c.b16 %v4598, %v4597
        %v4601 = vsel %vm3799, %v4599, 0
        %4603 = vmatprep.subr.bf16.mxu0 0
        %4604 = vmatpush1.bf16.msra.mxu0 %v3788
        %4605 = vmatprep.subr.bf16.mxu0 0
        %4606 = vmatpush1.bf16.msra.mxu0 %v3789
        %4607 = vmatprep.subr.bf16.mxu0 0
        %4608 = vmatpush1.bf16.msra.mxu0 %v3790
        %4609 = vmatprep.subr.bf16.mxu0 0
        %4610 = vmatpush1.bf16.msra.mxu0 %v3791
        %4611 = vmatprep.subr.bf16.mxu0 0
        %4612 = vmatpush1.bf16.msra.mxu0 0
        %4613 = vmatprep.subr.bf16.mxu0 0
        %4614 = vmatpush1.bf16.msra.mxu0 0
        %4615 = vmatprep.subr.bf16.mxu0 0
        %4616 = vmatpush1.bf16.msra.mxu0 0
        %4617 = vmatprep.subr.bf16.mxu0 0
        %4618 = vmatpush1.bf16.msra.mxu0 0
        %4619 = vmatprep.subr.bf16.mxu0 0
        %4620 = vmatpush1.bf16.msra.mxu0 0
        %4621 = vmatprep.subr.bf16.mxu0 0
        %4622 = vmatpush1.bf16.msra.mxu0 0
        %4623 = vmatprep.subr.bf16.mxu0 0
        %4624 = vmatpush1.bf16.msra.mxu0 0
        %4625 = vmatprep.subr.bf16.mxu0 0
        %4626 = vmatpush1.bf16.msra.mxu0 0
        %4627 = vmatprep.subr.bf16.mxu0 0
        %4628 = vmatpush1.bf16.msra.mxu0 0
        %4629 = vmatprep.subr.bf16.mxu0 0
        %4630 = vmatpush1.bf16.msra.mxu0 0
        %4631 = vmatprep.subr.bf16.mxu0 0
        %4632 = vmatpush1.bf16.msra.mxu0 0
        %4633 = vmatprep.subr.bf16.mxu0 0
        %4634 = vmatpush1.bf16.msra.mxu0 0
        %4635 = vmatprep.mubr.bf16.mxu0 0
        %4636 = vmatmul.mubr.bf16.gmra.mrb[0].mxu0 %v4601
        %v4637 = vpop.f32.mrb[0].mxu0
        %v4638 = vadd.f32 0.0, %v4637
        %v4639 = vpop.f32.mrb[0].mxu0
        %v4640 = vpop.f32.mrb[0].mxu0
        %v4641 = vadd.f32 0.0, %v4640
        %v4642 = vpop.f32.mrb[0].mxu0
        %4643 = vdwg.mxu0
        %v4644 = vpack.c.bf16 %v4641, %v4638
        %s4645 = scalar_lea.vmem [#allocation4], 320
        %v4646 = vld [vmem:[%s4645] sm:$0xf]
        %v4647 = vld [vmem:[%s4645 + $0x4] sm:$0xf]
        %v4648 = vld [vmem:[%s4645 + $0x8] sm:$0xf]
        %v4649 = vld [vmem:[%s4645 + $0xc] sm:$0xf]
        %v4650 = vld [vmem:[%s4645 + $0x10] sm:$0xf]
        %v4651 = vld [vmem:[%s4645 + $0x14] sm:$0xf]
        %v4652 = vld [vmem:[%s4645 + $0x18] sm:$0xf]
        %v4653 = vld [vmem:[%s4645 + $0x1c] sm:$0xf]
        %v4654 = vld [vmem:[%s4645 + $0x20] sm:$0xf]
        %v4655 = vld [vmem:[%s4645 + $0x24] sm:$0xf]
        %v4656 = vld [vmem:[%s4645 + $0x28] sm:$0xf]
        %v4657 = vld [vmem:[%s4645 + $0x2c] sm:$0xf]
        %v4658 = vld [vmem:[%s4645 + $0x30] sm:$0xf]
        %v4659 = vld [vmem:[%s4645 + $0x34] sm:$0xf]
        %v4660 = vld [vmem:[%s4645 + $0x38] sm:$0xf]
        %v4661 = vld [vmem:[%s4645 + $0x3c] sm:$0xf]
        %v4678 = vunpack.c.l.b16 %v4646
        %v4679 = vunpack.c.l.b16 %v4647
        %v4680 = vunpack.c.l.b16 %v4648
        %v4681 = vunpack.c.l.b16 %v4649
        %v4682 = vunpack.c.l.b16 %v4650
        %v4683 = vunpack.c.l.b16 %v4651
        %v4684 = vunpack.c.l.b16 %v4652
        %v4685 = vunpack.c.l.b16 %v4653
        %v4686 = vunpack.c.l.b16 %v4654
        %v4687 = vunpack.c.l.b16 %v4655
        %v4688 = vunpack.c.l.b16 %v4656
        %v4689 = vunpack.c.l.b16 %v4657
        %v4690 = vunpack.c.l.b16 %v4658
        %v4691 = vunpack.c.l.b16 %v4659
        %v4692 = vunpack.c.l.b16 %v4660
        %v4693 = vunpack.c.l.b16 %v4661
        %v4694 = vpack.c.b16 %v4679, %v4678
        %v4695 = vpack.c.b16 %v4681, %v4680
        %v4696 = vpack.c.b16 %v4683, %v4682
        %v4697 = vpack.c.b16 %v4685, %v4684
        %v4698 = vpack.c.b16 %v4687, %v4686
        %v4699 = vpack.c.b16 %v4689, %v4688
        %v4700 = vpack.c.b16 %v4691, %v4690
        %v4701 = vpack.c.b16 %v4693, %v4692
        %4710 = vmatprep.subr.bf16.mxu0 0
        %4711 = vmatpush1.bf16.msra.mxu0 %v4694
        %4712 = vmatprep.subr.bf16.mxu0 0
        %4713 = vmatpush1.bf16.msra.mxu0 %v4695
        %4714 = vmatprep.subr.bf16.mxu0 0
        %4715 = vmatpush1.bf16.msra.mxu0 %v4696
        %4716 = vmatprep.subr.bf16.mxu0 0
        %4717 = vmatpush1.bf16.msra.mxu0 %v4697
        %4718 = vmatprep.subr.bf16.mxu0 0
        %4719 = vmatpush1.bf16.msra.mxu0 %v4698
        %4720 = vmatprep.subr.bf16.mxu0 0
        %4721 = vmatpush1.bf16.msra.mxu0 %v4699
        %4722 = vmatprep.subr.bf16.mxu0 0
        %4723 = vmatpush1.bf16.msra.mxu0 %v4700
        %4724 = vmatprep.subr.bf16.mxu0 0
        %4725 = vmatpush1.bf16.msra.mxu0 %v4701
        %4726 = vmatprep.subr.bf16.mxu0 0
        %4727 = vmatpush1.bf16.msra.mxu0 0
        %4728 = vmatprep.subr.bf16.mxu0 0
        %4729 = vmatpush1.bf16.msra.mxu0 0
        %4730 = vmatprep.subr.bf16.mxu0 0
        %4731 = vmatpush1.bf16.msra.mxu0 0
        %4732 = vmatprep.subr.bf16.mxu0 0
        %4733 = vmatpush1.bf16.msra.mxu0 0
        %4734 = vmatprep.subr.bf16.mxu0 0
        %4735 = vmatpush1.bf16.msra.mxu0 0
        %4736 = vmatprep.subr.bf16.mxu0 0
        %4737 = vmatpush1.bf16.msra.mxu0 0
        %4738 = vmatprep.subr.bf16.mxu0 0
        %4739 = vmatpush1.bf16.msra.mxu0 0
        %4740 = vmatprep.subr.bf16.mxu0 0
        %4741 = vmatpush1.bf16.msra.mxu0 0
        %4742 = vmatprep.mubr.bf16.mxu0 0
        %4743 = vmatmul.mubr.bf16.gmra.mrb[0].mxu0 %v4644
        %v4744 = vpop.f32.mrb[0].mxu0
        %v4745 = vadd.f32 0.0, %v4744
        %v4746 = vpop.f32.mrb[0].mxu0
        %v4747 = vpop.f32.mrb[0].mxu0
        %v4748 = vadd.f32 0.0, %v4747
        %v4749 = vpop.f32.mrb[0].mxu0
        %4750 = vdwg.mxu0
        %v4751 = vadd.f32 %v4590, %v4745
        %v4752 = vadd.f32 %v4591, %v4748
        %s4753 = scalar_lea.vmem %s4, 48
        %v4754 = vld [vmem:[%s4753] sm:$0xf]
        %v4755 = vld [vmem:[%s4753 + $0x4] sm:$0xf]
        %v4758 = vunpack.c.l.b16 %v4754
        %v4759 = vunpack.c.l.b16 %v4755
        %v4760 = vpack.c.b16 %v4759, %v4758
        %v4762 = vsel %vm3799, %v4760, 0
        %4764 = vmatprep.subr.bf16.mxu0 0
        %4765 = vmatpush1.bf16.msra.mxu0 %v3788
        %4766 = vmatprep.subr.bf16.mxu0 0
        %4767 = vmatpush1.bf16.msra.mxu0 %v3789
        %4768 = vmatprep.subr.bf16.mxu0 0
        %4769 = vmatpush1.bf16.msra.mxu0 %v3790
        %4770 = vmatprep.subr.bf16.mxu0 0
        %4771 = vmatpush1.bf16.msra.mxu0 %v3791
        %4772 = vmatprep.subr.bf16.mxu0 0
        %4773 = vmatpush1.bf16.msra.mxu0 0
        %4774 = vmatprep.subr.bf16.mxu0 0
        %4775 = vmatpush1.bf16.msra.mxu0 0
        %4776 = vmatprep.subr.bf16.mxu0 0
        %4777 = vmatpush1.bf16.msra.mxu0 0
        %4778 = vmatprep.subr.bf16.mxu0 0
        %4779 = vmatpush1.bf16.msra.mxu0 0
        %4780 = vmatprep.subr.bf16.mxu0 0
        %4781 = vmatpush1.bf16.msra.mxu0 0
        %4782 = vmatprep.subr.bf16.mxu0 0
        %4783 = vmatpush1.bf16.msra.mxu0 0
        %4784 = vmatprep.subr.bf16.mxu0 0
        %4785 = vmatpush1.bf16.msra.mxu0 0
        %4786 = vmatprep.subr.bf16.mxu0 0
        %4787 = vmatpush1.bf16.msra.mxu0 0
        %4788 = vmatprep.subr.bf16.mxu0 0
        %4789 = vmatpush1.bf16.msra.mxu0 0
        %4790 = vmatprep.subr.bf16.mxu0 0
        %4791 = vmatpush1.bf16.msra.mxu0 0
        %4792 = vmatprep.subr.bf16.mxu0 0
        %4793 = vmatpush1.bf16.msra.mxu0 0
        %4794 = vmatprep.subr.bf16.mxu0 0
        %4795 = vmatpush1.bf16.msra.mxu0 0
        %4796 = vmatprep.mubr.bf16.mxu0 0
        %4797 = vmatmul.mubr.bf16.gmra.mrb[0].mxu0 %v4762
        %v4798 = vpop.f32.mrb[0].mxu0
        %v4799 = vadd.f32 0.0, %v4798
        %v4800 = vpop.f32.mrb[0].mxu0
        %v4801 = vpop.f32.mrb[0].mxu0
        %v4802 = vadd.f32 0.0, %v4801
        %v4803 = vpop.f32.mrb[0].mxu0
        %4804 = vdwg.mxu0
        %v4805 = vpack.c.bf16 %v4802, %v4799
        %s4806 = scalar_lea.vmem [#allocation4], 384
        %v4807 = vld [vmem:[%s4806] sm:$0xf]
        %v4808 = vld [vmem:[%s4806 + $0x4] sm:$0xf]
        %v4809 = vld [vmem:[%s4806 + $0x8] sm:$0xf]
        %v4810 = vld [vmem:[%s4806 + $0xc] sm:$0xf]
        %v4811 = vld [vmem:[%s4806 + $0x10] sm:$0xf]
        %v4812 = vld [vmem:[%s4806 + $0x14] sm:$0xf]
        %v4813 = vld [vmem:[%s4806 + $0x18] sm:$0xf]
        %v4814 = vld [vmem:[%s4806 + $0x1c] sm:$0xf]
        %v4815 = vld [vmem:[%s4806 + $0x20] sm:$0xf]
        %v4816 = vld [vmem:[%s4806 + $0x24] sm:$0xf]
        %v4817 = vld [vmem:[%s4806 + $0x28] sm:$0xf]
        %v4818 = vld [vmem:[%s4806 + $0x2c] sm:$0xf]
        %v4819 = vld [vmem:[%s4806 + $0x30] sm:$0xf]
        %v4820 = vld [vmem:[%s4806 + $0x34] sm:$0xf]
        %v4821 = vld [vmem:[%s4806 + $0x38] sm:$0xf]
        %v4822 = vld [vmem:[%s4806 + $0x3c] sm:$0xf]
        %v4839 = vunpack.c.l.b16 %v4807
        %v4840 = vunpack.c.l.b16 %v4808
        %v4841 = vunpack.c.l.b16 %v4809
        %v4842 = vunpack.c.l.b16 %v4810
        %v4843 = vunpack.c.l.b16 %v4811
        %v4844 = vunpack.c.l.b16 %v4812
        %v4845 = vunpack.c.l.b16 %v4813
        %v4846 = vunpack.c.l.b16 %v4814
        %v4847 = vunpack.c.l.b16 %v4815
        %v4848 = vunpack.c.l.b16 %v4816
        %v4849 = vunpack.c.l.b16 %v4817
        %v4850 = vunpack.c.l.b16 %v4818
        %v4851 = vunpack.c.l.b16 %v4819
        %v4852 = vunpack.c.l.b16 %v4820
        %v4853 = vunpack.c.l.b16 %v4821
        %v4854 = vunpack.c.l.b16 %v4822
        %v4855 = vpack.c.b16 %v4840, %v4839
        %v4856 = vpack.c.b16 %v4842, %v4841
        %v4857 = vpack.c.b16 %v4844, %v4843
        %v4858 = vpack.c.b16 %v4846, %v4845
        %v4859 = vpack.c.b16 %v4848, %v4847
        %v4860 = vpack.c.b16 %v4850, %v4849
        %v4861 = vpack.c.b16 %v4852, %v4851
        %v4862 = vpack.c.b16 %v4854, %v4853
        %4871 = vmatprep.subr.bf16.mxu0 0
        %4872 = vmatpush1.bf16.msra.mxu0 %v4855
        %4873 = vmatprep.subr.bf16.mxu0 0
        %4874 = vmatpush1.bf16.msra.mxu0 %v4856
        %4875 = vmatprep.subr.bf16.mxu0 0
        %4876 = vmatpush1.bf16.msra.mxu0 %v4857
        %4877 = vmatprep.subr.bf16.mxu0 0
        %4878 = vmatpush1.bf16.msra.mxu0 %v4858
        %4879 = vmatprep.subr.bf16.mxu0 0
        %4880 = vmatpush1.bf16.msra.mxu0 %v4859
        %4881 = vmatprep.subr.bf16.mxu0 0
        %4882 = vmatpush1.bf16.msra.mxu0 %v4860
        %4883 = vmatprep.subr.bf16.mxu0 0
        %4884 = vmatpush1.bf16.msra.mxu0 %v4861
        %4885 = vmatprep.subr.bf16.mxu0 0
        %4886 = vmatpush1.bf16.msra.mxu0 %v4862
        %4887 = vmatprep.subr.bf16.mxu0 0
        %4888 = vmatpush1.bf16.msra.mxu0 0
        %4889 = vmatprep.subr.bf16.mxu0 0
        %4890 = vmatpush1.bf16.msra.mxu0 0
        %4891 = vmatprep.subr.bf16.mxu0 0
        %4892 = vmatpush1.bf16.msra.mxu0 0
        %4893 = vmatprep.subr.bf16.mxu0 0
        %4894 = vmatpush1.bf16.msra.mxu0 0
        %4895 = vmatprep.subr.bf16.mxu0 0
        %4896 = vmatpush1.bf16.msra.mxu0 0
        %4897 = vmatprep.subr.bf16.mxu0 0
        %4898 = vmatpush1.bf16.msra.mxu0 0
        %4899 = vmatprep.subr.bf16.mxu0 0
        %4900 = vmatpush1.bf16.msra.mxu0 0
        %4901 = vmatprep.subr.bf16.mxu0 0
        %4902 = vmatpush1.bf16.msra.mxu0 0
        %4903 = vmatprep.mubr.bf16.mxu0 0
        %4904 = vmatmul.mubr.bf16.gmra.mrb[0].mxu0 %v4805
        %v4905 = vpop.f32.mrb[0].mxu0
        %v4906 = vadd.f32 0.0, %v4905
        %v4907 = vpop.f32.mrb[0].mxu0
        %v4908 = vpop.f32.mrb[0].mxu0
        %v4909 = vadd.f32 0.0, %v4908
        %v4910 = vpop.f32.mrb[0].mxu0
        %4911 = vdwg.mxu0
        %v4912 = vadd.f32 %v4751, %v4906
        %v4913 = vadd.f32 %v4752, %v4909
        %s4914 = scalar_lea.vmem %s4, 56
        %v4915 = vld [vmem:[%s4914] sm:$0xf]
        %v4916 = vld [vmem:[%s4914 + $0x4] sm:$0xf]
        %v4919 = vunpack.c.l.b16 %v4915
        %v4920 = vunpack.c.l.b16 %v4916
        %v4921 = vpack.c.b16 %v4920, %v4919
        %v4923 = vsel %vm3799, %v4921, 0
        %4925 = vmatprep.subr.bf16.mxu0 0
        %4926 = vmatpush1.bf16.msra.mxu0 %v3788
        %4927 = vmatprep.subr.bf16.mxu0 0
        %4928 = vmatpush1.bf16.msra.mxu0 %v3789
        %4929 = vmatprep.subr.bf16.mxu0 0
        %4930 = vmatpush1.bf16.msra.mxu0 %v3790
        %4931 = vmatprep.subr.bf16.mxu0 0
        %4932 = vmatpush1.bf16.msra.mxu0 %v3791
        %4933 = vmatprep.subr.bf16.mxu0 0
        %4934 = vmatpush1.bf16.msra.mxu0 0
        %4935 = vmatprep.subr.bf16.mxu0 0
        %4936 = vmatpush1.bf16.msra.mxu0 0
        %4937 = vmatprep.subr.bf16.mxu0 0
        %4938 = vmatpush1.bf16.msra.mxu0 0
        %4939 = vmatprep.subr.bf16.mxu0 0
        %4940 = vmatpush1.bf16.msra.mxu0 0
        %4941 = vmatprep.subr.bf16.mxu0 0
        %4942 = vmatpush1.bf16.msra.mxu0 0
        %4943 = vmatprep.subr.bf16.mxu0 0
        %4944 = vmatpush1.bf16.msra.mxu0 0
        %4945 = vmatprep.subr.bf16.mxu0 0
        %4946 = vmatpush1.bf16.msra.mxu0 0
        %4947 = vmatprep.subr.bf16.mxu0 0
        %4948 = vmatpush1.bf16.msra.mxu0 0
        %4949 = vmatprep.subr.bf16.mxu0 0
        %4950 = vmatpush1.bf16.msra.mxu0 0
        %4951 = vmatprep.subr.bf16.mxu0 0
        %4952 = vmatpush1.bf16.msra.mxu0 0
        %4953 = vmatprep.subr.bf16.mxu0 0
        %4954 = vmatpush1.bf16.msra.mxu0 0
        %4955 = vmatprep.subr.bf16.mxu0 0
        %4956 = vmatpush1.bf16.msra.mxu0 0
        %4957 = vmatprep.mubr.bf16.mxu0 0
        %4958 = vmatmul.mubr.bf16.gmra.mrb[0].mxu0 %v4923
        %v4959 = vpop.f32.mrb[0].mxu0
        %v4960 = vadd.f32 0.0, %v4959
        %v4961 = vpop.f32.mrb[0].mxu0
        %v4962 = vpop.f32.mrb[0].mxu0
        %v4963 = vadd.f32 0.0, %v4962
        %v4964 = vpop.f32.mrb[0].mxu0
        %4965 = vdwg.mxu0
        %v4966 = vpack.c.bf16 %v4963, %v4960
        %s4967 = scalar_lea.vmem [#allocation4], 448
        %v4968 = vld [vmem:[%s4967] sm:$0xf]
        %v4969 = vld [vmem:[%s4967 + $0x4] sm:$0xf]
        %v4970 = vld [vmem:[%s4967 + $0x8] sm:$0xf]
        %v4971 = vld [vmem:[%s4967 + $0xc] sm:$0xf]
        %v4972 = vld [vmem:[%s4967 + $0x10] sm:$0xf]
        %v4973 = vld [vmem:[%s4967 + $0x14] sm:$0xf]
        %v4974 = vld [vmem:[%s4967 + $0x18] sm:$0xf]
        %v4975 = vld [vmem:[%s4967 + $0x1c] sm:$0xf]
        %v4976 = vld [vmem:[%s4967 + $0x20] sm:$0xf]
        %v4977 = vld [vmem:[%s4967 + $0x24] sm:$0xf]
        %v4978 = vld [vmem:[%s4967 + $0x28] sm:$0xf]
        %v4979 = vld [vmem:[%s4967 + $0x2c] sm:$0xf]
        %v4980 = vld [vmem:[%s4967 + $0x30] sm:$0xf]
        %v4981 = vld [vmem:[%s4967 + $0x34] sm:$0xf]
        %v4982 = vld [vmem:[%s4967 + $0x38] sm:$0xf]
        %v4983 = vld [vmem:[%s4967 + $0x3c] sm:$0xf]
        %v5000 = vunpack.c.l.b16 %v4968
        %v5001 = vunpack.c.l.b16 %v4969
        %v5002 = vunpack.c.l.b16 %v4970
        %v5003 = vunpack.c.l.b16 %v4971
        %v5004 = vunpack.c.l.b16 %v4972
        %v5005 = vunpack.c.l.b16 %v4973
        %v5006 = vunpack.c.l.b16 %v4974
        %v5007 = vunpack.c.l.b16 %v4975
        %v5008 = vunpack.c.l.b16 %v4976
        %v5009 = vunpack.c.l.b16 %v4977
        %v5010 = vunpack.c.l.b16 %v4978
        %v5011 = vunpack.c.l.b16 %v4979
        %v5012 = vunpack.c.l.b16 %v4980
        %v5013 = vunpack.c.l.b16 %v4981
        %v5014 = vunpack.c.l.b16 %v4982
        %v5015 = vunpack.c.l.b16 %v4983
        %v5016 = vpack.c.b16 %v5001, %v5000
        %v5017 = vpack.c.b16 %v5003, %v5002
        %v5018 = vpack.c.b16 %v5005, %v5004
        %v5019 = vpack.c.b16 %v5007, %v5006
        %v5020 = vpack.c.b16 %v5009, %v5008
        %v5021 = vpack.c.b16 %v5011, %v5010
        %v5022 = vpack.c.b16 %v5013, %v5012
        %v5023 = vpack.c.b16 %v5015, %v5014
        %5032 = vmatprep.subr.bf16.mxu0 0
        %5033 = vmatpush1.bf16.msra.mxu0 %v5016
        %5034 = vmatprep.subr.bf16.mxu0 0
        %5035 = vmatpush1.bf16.msra.mxu0 %v5017
        %5036 = vmatprep.subr.bf16.mxu0 0
        %5037 = vmatpush1.bf16.msra.mxu0 %v5018
        %5038 = vmatprep.subr.bf16.mxu0 0
        %5039 = vmatpush1.bf16.msra.mxu0 %v5019
        %5040 = vmatprep.subr.bf16.mxu0 0
        %5041 = vmatpush1.bf16.msra.mxu0 %v5020
        %5042 = vmatprep.subr.bf16.mxu0 0
        %5043 = vmatpush1.bf16.msra.mxu0 %v5021
        %5044 = vmatprep.subr.bf16.mxu0 0
        %5045 = vmatpush1.bf16.msra.mxu0 %v5022
        %5046 = vmatprep.subr.bf16.mxu0 0
        %5047 = vmatpush1.bf16.msra.mxu0 %v5023
        %5048 = vmatprep.subr.bf16.mxu0 0
        %5049 = vmatpush1.bf16.msra.mxu0 0
        %5050 = vmatprep.subr.bf16.mxu0 0
        %5051 = vmatpush1.bf16.msra.mxu0 0
        %5052 = vmatprep.subr.bf16.mxu0 0
        %5053 = vmatpush1.bf16.msra.mxu0 0
        %5054 = vmatprep.subr.bf16.mxu0 0
        %5055 = vmatpush1.bf16.msra.mxu0 0
        %5056 = vmatprep.subr.bf16.mxu0 0
        %5057 = vmatpush1.bf16.msra.mxu0 0
        %5058 = vmatprep.subr.bf16.mxu0 0
        %5059 = vmatpush1.bf16.msra.mxu0 0
        %5060 = vmatprep.subr.bf16.mxu0 0
        %5061 = vmatpush1.bf16.msra.mxu0 0
        %5062 = vmatprep.subr.bf16.mxu0 0
        %5063 = vmatpush1.bf16.msra.mxu0 0
        %5064 = vmatprep.mubr.bf16.mxu0 0
        %5065 = vmatmul.mubr.bf16.gmra.mrb[0].mxu0 %v4966
        %v5066 = vpop.f32.mrb[0].mxu0
        %v5067 = vadd.f32 0.0, %v5066
        %v5068 = vpop.f32.mrb[0].mxu0
        %v5069 = vpop.f32.mrb[0].mxu0
        %v5070 = vadd.f32 0.0, %v5069
        %v5071 = vpop.f32.mrb[0].mxu0
        %5072 = vdwg.mxu0
        %v5073 = vadd.f32 %v4912, %v5067
        %v5074 = vadd.f32 %v4913, %v5070
        %s5075 = scalar_lea.vmem %s4, 64
        %v5076 = vld [vmem:[%s5075] sm:$0xf]
        %v5077 = vld [vmem:[%s5075 + $0x4] sm:$0xf]
        %v5080 = vunpack.c.l.b16 %v5076
        %v5081 = vunpack.c.l.b16 %v5077
        %v5082 = vpack.c.b16 %v5081, %v5080
        %v5084 = vsel %vm3799, %v5082, 0
        %5086 = vmatprep.subr.bf16.mxu0 0
        %5087 = vmatpush1.bf16.msra.mxu0 %v3788
        %5088 = vmatprep.subr.bf16.mxu0 0
        %5089 = vmatpush1.bf16.msra.mxu0 %v3789
        %5090 = vmatprep.subr.bf16.mxu0 0
        %5091 = vmatpush1.bf16.msra.mxu0 %v3790
        %5092 = vmatprep.subr.bf16.mxu0 0
        %5093 = vmatpush1.bf16.msra.mxu0 %v3791
        %5094 = vmatprep.subr.bf16.mxu0 0
        %5095 = vmatpush1.bf16.msra.mxu0 0
        %5096 = vmatprep.subr.bf16.mxu0 0
        %5097 = vmatpush1.bf16.msra.mxu0 0
        %5098 = vmatprep.subr.bf16.mxu0 0
        %5099 = vmatpush1.bf16.msra.mxu0 0
        %5100 = vmatprep.subr.bf16.mxu0 0
        %5101 = vmatpush1.bf16.msra.mxu0 0
        %5102 = vmatprep.subr.bf16.mxu0 0
        %5103 = vmatpush1.bf16.msra.mxu0 0
        %5104 = vmatprep.subr.bf16.mxu0 0
        %5105 = vmatpush1.bf16.msra.mxu0 0
        %5106 = vmatprep.subr.bf16.mxu0 0
        %5107 = vmatpush1.bf16.msra.mxu0 0
        %5108 = vmatprep.subr.bf16.mxu0 0
        %5109 = vmatpush1.bf16.msra.mxu0 0
        %5110 = vmatprep.subr.bf16.mxu0 0
        %5111 = vmatpush1.bf16.msra.mxu0 0
        %5112 = vmatprep.subr.bf16.mxu0 0
        %5113 = vmatpush1.bf16.msra.mxu0 0
        %5114 = vmatprep.subr.bf16.mxu0 0
        %5115 = vmatpush1.bf16.msra.mxu0 0
        %5116 = vmatprep.subr.bf16.mxu0 0
        %5117 = vmatpush1.bf16.msra.mxu0 0
        %5118 = vmatprep.mubr.bf16.mxu0 0
        %5119 = vmatmul.mubr.bf16.gmra.mrb[0].mxu0 %v5084
        %v5120 = vpop.f32.mrb[0].mxu0
        %v5121 = vadd.f32 0.0, %v5120
        %v5122 = vpop.f32.mrb[0].mxu0
        %v5123 = vpop.f32.mrb[0].mxu0
        %v5124 = vadd.f32 0.0, %v5123
        %v5125 = vpop.f32.mrb[0].mxu0
        %5126 = vdwg.mxu0
        %v5127 = vpack.c.bf16 %v5124, %v5121
        %s5128 = scalar_lea.vmem [#allocation4], 512
        %v5129 = vld [vmem:[%s5128] sm:$0xf]
        %v5130 = vld [vmem:[%s5128 + $0x4] sm:$0xf]
        %v5131 = vld [vmem:[%s5128 + $0x8] sm:$0xf]
        %v5132 = vld [vmem:[%s5128 + $0xc] sm:$0xf]
        %v5133 = vld [vmem:[%s5128 + $0x10] sm:$0xf]
        %v5134 = vld [vmem:[%s5128 + $0x14] sm:$0xf]
        %v5135 = vld [vmem:[%s5128 + $0x18] sm:$0xf]
        %v5136 = vld [vmem:[%s5128 + $0x1c] sm:$0xf]
        %v5137 = vld [vmem:[%s5128 + $0x20] sm:$0xf]
        %v5138 = vld [vmem:[%s5128 + $0x24] sm:$0xf]
        %v5139 = vld [vmem:[%s5128 + $0x28] sm:$0xf]
        %v5140 = vld [vmem:[%s5128 + $0x2c] sm:$0xf]
        %v5141 = vld [vmem:[%s5128 + $0x30] sm:$0xf]
        %v5142 = vld [vmem:[%s5128 + $0x34] sm:$0xf]
        %v5143 = vld [vmem:[%s5128 + $0x38] sm:$0xf]
        %v5144 = vld [vmem:[%s5128 + $0x3c] sm:$0xf]
        %v5161 = vunpack.c.l.b16 %v5129
        %v5162 = vunpack.c.l.b16 %v5130
        %v5163 = vunpack.c.l.b16 %v5131
        %v5164 = vunpack.c.l.b16 %v5132
        %v5165 = vunpack.c.l.b16 %v5133
        %v5166 = vunpack.c.l.b16 %v5134
        %v5167 = vunpack.c.l.b16 %v5135
        %v5168 = vunpack.c.l.b16 %v5136
        %v5169 = vunpack.c.l.b16 %v5137
        %v5170 = vunpack.c.l.b16 %v5138
        %v5171 = vunpack.c.l.b16 %v5139
        %v5172 = vunpack.c.l.b16 %v5140
        %v5173 = vunpack.c.l.b16 %v5141
        %v5174 = vunpack.c.l.b16 %v5142
        %v5175 = vunpack.c.l.b16 %v5143
        %v5176 = vunpack.c.l.b16 %v5144
        %v5177 = vpack.c.b16 %v5162, %v5161
        %v5178 = vpack.c.b16 %v5164, %v5163
        %v5179 = vpack.c.b16 %v5166, %v5165
        %v5180 = vpack.c.b16 %v5168, %v5167
        %v5181 = vpack.c.b16 %v5170, %v5169
        %v5182 = vpack.c.b16 %v5172, %v5171
        %v5183 = vpack.c.b16 %v5174, %v5173
        %v5184 = vpack.c.b16 %v5176, %v5175
        %5193 = vmatprep.subr.bf16.mxu0 0
        %5194 = vmatpush1.bf16.msra.mxu0 %v5177
        %5195 = vmatprep.subr.bf16.mxu0 0
        %5196 = vmatpush1.bf16.msra.mxu0 %v5178
        %5197 = vmatprep.subr.bf16.mxu0 0
        %5198 = vmatpush1.bf16.msra.mxu0 %v5179
        %5199 = vmatprep.subr.bf16.mxu0 0
        %5200 = vmatpush1.bf16.msra.mxu0 %v5180
        %5201 = vmatprep.subr.bf16.mxu0 0
        %5202 = vmatpush1.bf16.msra.mxu0 %v5181
        %5203 = vmatprep.subr.bf16.mxu0 0
        %5204 = vmatpush1.bf16.msra.mxu0 %v5182
        %5205 = vmatprep.subr.bf16.mxu0 0
        %5206 = vmatpush1.bf16.msra.mxu0 %v5183
        %5207 = vmatprep.subr.bf16.mxu0 0
        %5208 = vmatpush1.bf16.msra.mxu0 %v5184
        %5209 = vmatprep.subr.bf16.mxu0 0
        %5210 = vmatpush1.bf16.msra.mxu0 0
        %5211 = vmatprep.subr.bf16.mxu0 0
        %5212 = vmatpush1.bf16.msra.mxu0 0
        %5213 = vmatprep.subr.bf16.mxu0 0
        %5214 = vmatpush1.bf16.msra.mxu0 0
        %5215 = vmatprep.subr.bf16.mxu0 0
        %5216 = vmatpush1.bf16.msra.mxu0 0
        %5217 = vmatprep.subr.bf16.mxu0 0
        %5218 = vmatpush1.bf16.msra.mxu0 0
        %5219 = vmatprep.subr.bf16.mxu0 0
        %5220 = vmatpush1.bf16.msra.mxu0 0
        %5221 = vmatprep.subr.bf16.mxu0 0
        %5222 = vmatpush1.bf16.msra.mxu0 0
        %5223 = vmatprep.subr.bf16.mxu0 0
        %5224 = vmatpush1.bf16.msra.mxu0 0
        %5225 = vmatprep.mubr.bf16.mxu0 0
        %5226 = vmatmul.mubr.bf16.gmra.mrb[0].mxu0 %v5127
        %v5227 = vpop.f32.mrb[0].mxu0
        %v5228 = vadd.f32 0.0, %v5227
        %v5229 = vpop.f32.mrb[0].mxu0
        %v5230 = vpop.f32.mrb[0].mxu0
        %v5231 = vadd.f32 0.0, %v5230
        %v5232 = vpop.f32.mrb[0].mxu0
        %5233 = vdwg.mxu0
        %v5234 = vadd.f32 %v5073, %v5228
        %v5235 = vadd.f32 %v5074, %v5231
        %s5236 = scalar_lea.vmem %s4, 72
        %v5237 = vld [vmem:[%s5236] sm:$0xf]
        %v5238 = vld [vmem:[%s5236 + $0x4] sm:$0xf]
        %v5241 = vunpack.c.l.b16 %v5237
        %v5242 = vunpack.c.l.b16 %v5238
        %v5243 = vpack.c.b16 %v5242, %v5241
        %v5245 = vsel %vm3799, %v5243, 0
        %5247 = vmatprep.subr.bf16.mxu0 0
        %5248 = vmatpush1.bf16.msra.mxu0 %v3788
        %5249 = vmatprep.subr.bf16.mxu0 0
        %5250 = vmatpush1.bf16.msra.mxu0 %v3789
        %5251 = vmatprep.subr.bf16.mxu0 0
        %5252 = vmatpush1.bf16.msra.mxu0 %v3790
        %5253 = vmatprep.subr.bf16.mxu0 0
        %5254 = vmatpush1.bf16.msra.mxu0 %v3791
        %5255 = vmatprep.subr.bf16.mxu0 0
        %5256 = vmatpush1.bf16.msra.mxu0 0
        %5257 = vmatprep.subr.bf16.mxu0 0
        %5258 = vmatpush1.bf16.msra.mxu0 0
        %5259 = vmatprep.subr.bf16.mxu0 0
        %5260 = vmatpush1.bf16.msra.mxu0 0
        %5261 = vmatprep.subr.bf16.mxu0 0
        %5262 = vmatpush1.bf16.msra.mxu0 0
        %5263 = vmatprep.subr.bf16.mxu0 0
        %5264 = vmatpush1.bf16.msra.mxu0 0
        %5265 = vmatprep.subr.bf16.mxu0 0
        %5266 = vmatpush1.bf16.msra.mxu0 0
        %5267 = vmatprep.subr.bf16.mxu0 0
        %5268 = vmatpush1.bf16.msra.mxu0 0
        %5269 = vmatprep.subr.bf16.mxu0 0
        %5270 = vmatpush1.bf16.msra.mxu0 0
        %5271 = vmatprep.subr.bf16.mxu0 0
        %5272 = vmatpush1.bf16.msra.mxu0 0
        %5273 = vmatprep.subr.bf16.mxu0 0
        %5274 = vmatpush1.bf16.msra.mxu0 0
        %5275 = vmatprep.subr.bf16.mxu0 0
        %5276 = vmatpush1.bf16.msra.mxu0 0
        %5277 = vmatprep.subr.bf16.mxu0 0
        %5278 = vmatpush1.bf16.msra.mxu0 0
        %5279 = vmatprep.mubr.bf16.mxu0 0
        %5280 = vmatmul.mubr.bf16.gmra.mrb[0].mxu0 %v5245
        %v5281 = vpop.f32.mrb[0].mxu0
        %v5282 = vadd.f32 0.0, %v5281
        %v5283 = vpop.f32.mrb[0].mxu0
        %v5284 = vpop.f32.mrb[0].mxu0
        %v5285 = vadd.f32 0.0, %v5284
        %v5286 = vpop.f32.mrb[0].mxu0
        %5287 = vdwg.mxu0
        %v5288 = vpack.c.bf16 %v5285, %v5282
        %s5289 = scalar_lea.vmem [#allocation4], 576
        %v5290 = vld [vmem:[%s5289] sm:$0xf]
        %v5291 = vld [vmem:[%s5289 + $0x4] sm:$0xf]
        %v5292 = vld [vmem:[%s5289 + $0x8] sm:$0xf]
        %v5293 = vld [vmem:[%s5289 + $0xc] sm:$0xf]
        %v5294 = vld [vmem:[%s5289 + $0x10] sm:$0xf]
        %v5295 = vld [vmem:[%s5289 + $0x14] sm:$0xf]
        %v5296 = vld [vmem:[%s5289 + $0x18] sm:$0xf]
        %v5297 = vld [vmem:[%s5289 + $0x1c] sm:$0xf]
        %v5298 = vld [vmem:[%s5289 + $0x20] sm:$0xf]
        %v5299 = vld [vmem:[%s5289 + $0x24] sm:$0xf]
        %v5300 = vld [vmem:[%s5289 + $0x28] sm:$0xf]
        %v5301 = vld [vmem:[%s5289 + $0x2c] sm:$0xf]
        %v5302 = vld [vmem:[%s5289 + $0x30] sm:$0xf]
        %v5303 = vld [vmem:[%s5289 + $0x34] sm:$0xf]
        %v5304 = vld [vmem:[%s5289 + $0x38] sm:$0xf]
        %v5305 = vld [vmem:[%s5289 + $0x3c] sm:$0xf]
        %v5322 = vunpack.c.l.b16 %v5290
        %v5323 = vunpack.c.l.b16 %v5291
        %v5324 = vunpack.c.l.b16 %v5292
        %v5325 = vunpack.c.l.b16 %v5293
        %v5326 = vunpack.c.l.b16 %v5294
        %v5327 = vunpack.c.l.b16 %v5295
        %v5328 = vunpack.c.l.b16 %v5296
        %v5329 = vunpack.c.l.b16 %v5297
        %v5330 = vunpack.c.l.b16 %v5298
        %v5331 = vunpack.c.l.b16 %v5299
        %v5332 = vunpack.c.l.b16 %v5300
        %v5333 = vunpack.c.l.b16 %v5301
        %v5334 = vunpack.c.l.b16 %v5302
        %v5335 = vunpack.c.l.b16 %v5303
        %v5336 = vunpack.c.l.b16 %v5304
        %v5337 = vunpack.c.l.b16 %v5305
        %v5338 = vpack.c.b16 %v5323, %v5322
        %v5339 = vpack.c.b16 %v5325, %v5324
        %v5340 = vpack.c.b16 %v5327, %v5326
        %v5341 = vpack.c.b16 %v5329, %v5328
        %v5342 = vpack.c.b16 %v5331, %v5330
        %v5343 = vpack.c.b16 %v5333, %v5332
        %v5344 = vpack.c.b16 %v5335, %v5334
        %v5345 = vpack.c.b16 %v5337, %v5336
        %5354 = vmatprep.subr.bf16.mxu0 0
        %5355 = vmatpush1.bf16.msra.mxu0 %v5338
        %5356 = vmatprep.subr.bf16.mxu0 0
        %5357 = vmatpush1.bf16.msra.mxu0 %v5339
        %5358 = vmatprep.subr.bf16.mxu0 0
        %5359 = vmatpush1.bf16.msra.mxu0 %v5340
        %5360 = vmatprep.subr.bf16.mxu0 0
        %5361 = vmatpush1.bf16.msra.mxu0 %v5341
        %5362 = vmatprep.subr.bf16.mxu0 0
        %5363 = vmatpush1.bf16.msra.mxu0 %v5342
        %5364 = vmatprep.subr.bf16.mxu0 0
        %5365 = vmatpush1.bf16.msra.mxu0 %v5343
        %5366 = vmatprep.subr.bf16.mxu0 0
        %5367 = vmatpush1.bf16.msra.mxu0 %v5344
        %5368 = vmatprep.subr.bf16.mxu0 0
        %5369 = vmatpush1.bf16.msra.mxu0 %v5345
        %5370 = vmatprep.subr.bf16.mxu0 0
        %5371 = vmatpush1.bf16.msra.mxu0 0
        %5372 = vmatprep.subr.bf16.mxu0 0
        %5373 = vmatpush1.bf16.msra.mxu0 0
        %5374 = vmatprep.subr.bf16.mxu0 0
        %5375 = vmatpush1.bf16.msra.mxu0 0
        %5376 = vmatprep.subr.bf16.mxu0 0
        %5377 = vmatpush1.bf16.msra.mxu0 0
        %5378 = vmatprep.subr.bf16.mxu0 0
        %5379 = vmatpush1.bf16.msra.mxu0 0
        %5380 = vmatprep.subr.bf16.mxu0 0
        %5381 = vmatpush1.bf16.msra.mxu0 0
        %5382 = vmatprep.subr.bf16.mxu0 0
        %5383 = vmatpush1.bf16.msra.mxu0 0
        %5384 = vmatprep.subr.bf16.mxu0 0
        %5385 = vmatpush1.bf16.msra.mxu0 0
        %5386 = vmatprep.mubr.bf16.mxu0 0
        %5387 = vmatmul.mubr.bf16.gmra.mrb[0].mxu0 %v5288
        %v5388 = vpop.f32.mrb[0].mxu0
        %v5389 = vadd.f32 0.0, %v5388
        %v5390 = vpop.f32.mrb[0].mxu0
        %v5391 = vpop.f32.mrb[0].mxu0
        %v5392 = vadd.f32 0.0, %v5391
        %v5393 = vpop.f32.mrb[0].mxu0
        %5394 = vdwg.mxu0
        %v5395 = vadd.f32 %v5234, %v5389
        %v5396 = vadd.f32 %v5235, %v5392
        %s5397 = scalar_lea.vmem %s4, 80
        %v5398 = vld [vmem:[%s5397] sm:$0xf]
        %v5399 = vld [vmem:[%s5397 + $0x4] sm:$0xf]
        %v5402 = vunpack.c.l.b16 %v5398
        %v5403 = vunpack.c.l.b16 %v5399
        %v5404 = vpack.c.b16 %v5403, %v5402
        %v5406 = vsel %vm3799, %v5404, 0
        %5408 = vmatprep.subr.bf16.mxu0 0
        %5409 = vmatpush1.bf16.msra.mxu0 %v3788
        %5410 = vmatprep.subr.bf16.mxu0 0
        %5411 = vmatpush1.bf16.msra.mxu0 %v3789
        %5412 = vmatprep.subr.bf16.mxu0 0
        %5413 = vmatpush1.bf16.msra.mxu0 %v3790
        %5414 = vmatprep.subr.bf16.mxu0 0
        %5415 = vmatpush1.bf16.msra.mxu0 %v3791
        %5416 = vmatprep.subr.bf16.mxu0 0
        %5417 = vmatpush1.bf16.msra.mxu0 0
        %5418 = vmatprep.subr.bf16.mxu0 0
        %5419 = vmatpush1.bf16.msra.mxu0 0
        %5420 = vmatprep.subr.bf16.mxu0 0
        %5421 = vmatpush1.bf16.msra.mxu0 0
        %5422 = vmatprep.subr.bf16.mxu0 0
        %5423 = vmatpush1.bf16.msra.mxu0 0
        %5424 = vmatprep.subr.bf16.mxu0 0
        %5425 = vmatpush1.bf16.msra.mxu0 0
        %5426 = vmatprep.subr.bf16.mxu0 0
        %5427 = vmatpush1.bf16.msra.mxu0 0
        %5428 = vmatprep.subr.bf16.mxu0 0
        %5429 = vmatpush1.bf16.msra.mxu0 0
        %5430 = vmatprep.subr.bf16.mxu0 0
        %5431 = vmatpush1.bf16.msra.mxu0 0
        %5432 = vmatprep.subr.bf16.mxu0 0
        %5433 = vmatpush1.bf16.msra.mxu0 0
        %5434 = vmatprep.subr.bf16.mxu0 0
        %5435 = vmatpush1.bf16.msra.mxu0 0
        %5436 = vmatprep.subr.bf16.mxu0 0
        %5437 = vmatpush1.bf16.msra.mxu0 0
        %5438 = vmatprep.subr.bf16.mxu0 0
        %5439 = vmatpush1.bf16.msra.mxu0 0
        %5440 = vmatprep.mubr.bf16.mxu0 0
        %5441 = vmatmul.mubr.bf16.gmra.mrb[0].mxu0 %v5406
        %v5442 = vpop.f32.mrb[0].mxu0
        %v5443 = vadd.f32 0.0, %v5442
        %v5444 = vpop.f32.mrb[0].mxu0
        %v5445 = vpop.f32.mrb[0].mxu0
        %v5446 = vadd.f32 0.0, %v5445
        %v5447 = vpop.f32.mrb[0].mxu0
        %5448 = vdwg.mxu0
        %v5449 = vpack.c.bf16 %v5446, %v5443
        %s5450 = scalar_lea.vmem [#allocation4], 640
        %v5451 = vld [vmem:[%s5450] sm:$0xf]
        %v5452 = vld [vmem:[%s5450 + $0x4] sm:$0xf]
        %v5453 = vld [vmem:[%s5450 + $0x8] sm:$0xf]
        %v5454 = vld [vmem:[%s5450 + $0xc] sm:$0xf]
        %v5455 = vld [vmem:[%s5450 + $0x10] sm:$0xf]
        %v5456 = vld [vmem:[%s5450 + $0x14] sm:$0xf]
        %v5457 = vld [vmem:[%s5450 + $0x18] sm:$0xf]
        %v5458 = vld [vmem:[%s5450 + $0x1c] sm:$0xf]
        %v5459 = vld [vmem:[%s5450 + $0x20] sm:$0xf]
        %v5460 = vld [vmem:[%s5450 + $0x24] sm:$0xf]
        %v5461 = vld [vmem:[%s5450 + $0x28] sm:$0xf]
        %v5462 = vld [vmem:[%s5450 + $0x2c] sm:$0xf]
        %v5463 = vld [vmem:[%s5450 + $0x30] sm:$0xf]
        %v5464 = vld [vmem:[%s5450 + $0x34] sm:$0xf]
        %v5465 = vld [vmem:[%s5450 + $0x38] sm:$0xf]
        %v5466 = vld [vmem:[%s5450 + $0x3c] sm:$0xf]
        %v5483 = vunpack.c.l.b16 %v5451
        %v5484 = vunpack.c.l.b16 %v5452
        %v5485 = vunpack.c.l.b16 %v5453
        %v5486 = vunpack.c.l.b16 %v5454
        %v5487 = vunpack.c.l.b16 %v5455
        %v5488 = vunpack.c.l.b16 %v5456
        %v5489 = vunpack.c.l.b16 %v5457
        %v5490 = vunpack.c.l.b16 %v5458
        %v5491 = vunpack.c.l.b16 %v5459
        %v5492 = vunpack.c.l.b16 %v5460
        %v5493 = vunpack.c.l.b16 %v5461
        %v5494 = vunpack.c.l.b16 %v5462
        %v5495 = vunpack.c.l.b16 %v5463
        %v5496 = vunpack.c.l.b16 %v5464
        %v5497 = vunpack.c.l.b16 %v5465
        %v5498 = vunpack.c.l.b16 %v5466
        %v5499 = vpack.c.b16 %v5484, %v5483
        %v5500 = vpack.c.b16 %v5486, %v5485
        %v5501 = vpack.c.b16 %v5488, %v5487
        %v5502 = vpack.c.b16 %v5490, %v5489
        %v5503 = vpack.c.b16 %v5492, %v5491
        %v5504 = vpack.c.b16 %v5494, %v5493
        %v5505 = vpack.c.b16 %v5496, %v5495
        %v5506 = vpack.c.b16 %v5498, %v5497
        %5515 = vmatprep.subr.bf16.mxu0 0
        %5516 = vmatpush1.bf16.msra.mxu0 %v5499
        %5517 = vmatprep.subr.bf16.mxu0 0
        %5518 = vmatpush1.bf16.msra.mxu0 %v5500
        %5519 = vmatprep.subr.bf16.mxu0 0
        %5520 = vmatpush1.bf16.msra.mxu0 %v5501
        %5521 = vmatprep.subr.bf16.mxu0 0
        %5522 = vmatpush1.bf16.msra.mxu0 %v5502
        %5523 = vmatprep.subr.bf16.mxu0 0
        %5524 = vmatpush1.bf16.msra.mxu0 %v5503
        %5525 = vmatprep.subr.bf16.mxu0 0
        %5526 = vmatpush1.bf16.msra.mxu0 %v5504
        %5527 = vmatprep.subr.bf16.mxu0 0
        %5528 = vmatpush1.bf16.msra.mxu0 %v5505
        %5529 = vmatprep.subr.bf16.mxu0 0
        %5530 = vmatpush1.bf16.msra.mxu0 %v5506
        %5531 = vmatprep.subr.bf16.mxu0 0
        %5532 = vmatpush1.bf16.msra.mxu0 0
        %5533 = vmatprep.subr.bf16.mxu0 0
        %5534 = vmatpush1.bf16.msra.mxu0 0
        %5535 = vmatprep.subr.bf16.mxu0 0
        %5536 = vmatpush1.bf16.msra.mxu0 0
        %5537 = vmatprep.subr.bf16.mxu0 0
        %5538 = vmatpush1.bf16.msra.mxu0 0
        %5539 = vmatprep.subr.bf16.mxu0 0
        %5540 = vmatpush1.bf16.msra.mxu0 0
        %5541 = vmatprep.subr.bf16.mxu0 0
        %5542 = vmatpush1.bf16.msra.mxu0 0
        %5543 = vmatprep.subr.bf16.mxu0 0
        %5544 = vmatpush1.bf16.msra.mxu0 0
        %5545 = vmatprep.subr.bf16.mxu0 0
        %5546 = vmatpush1.bf16.msra.mxu0 0
        %5547 = vmatprep.mubr.bf16.mxu0 0
        %5548 = vmatmul.mubr.bf16.gmra.mrb[0].mxu0 %v5449
        %v5549 = vpop.f32.mrb[0].mxu0
        %v5550 = vadd.f32 0.0, %v5549
        %v5551 = vpop.f32.mrb[0].mxu0
        %v5552 = vpop.f32.mrb[0].mxu0
        %v5553 = vadd.f32 0.0, %v5552
        %v5554 = vpop.f32.mrb[0].mxu0
        %5555 = vdwg.mxu0
        %v5556 = vadd.f32 %v5395, %v5550
        %v5557 = vadd.f32 %v5396, %v5553
        %s5558 = scalar_lea.vmem %s4, 88
        %v5559 = vld [vmem:[%s5558] sm:$0xf]
        %v5560 = vld [vmem:[%s5558 + $0x4] sm:$0xf]
        %v5563 = vunpack.c.l.b16 %v5559
        %v5564 = vunpack.c.l.b16 %v5560
        %v5565 = vpack.c.b16 %v5564, %v5563
        %v5567 = vsel %vm3799, %v5565, 0
        %5569 = vmatprep.subr.bf16.mxu0 0
        %5570 = vmatpush1.bf16.msra.mxu0 %v3788
        %5571 = vmatprep.subr.bf16.mxu0 0
        %5572 = vmatpush1.bf16.msra.mxu0 %v3789
        %5573 = vmatprep.subr.bf16.mxu0 0
        %5574 = vmatpush1.bf16.msra.mxu0 %v3790
        %5575 = vmatprep.subr.bf16.mxu0 0
        %5576 = vmatpush1.bf16.msra.mxu0 %v3791
        %5577 = vmatprep.subr.bf16.mxu0 0
        %5578 = vmatpush1.bf16.msra.mxu0 0
        %5579 = vmatprep.subr.bf16.mxu0 0
        %5580 = vmatpush1.bf16.msra.mxu0 0
        %5581 = vmatprep.subr.bf16.mxu0 0
        %5582 = vmatpush1.bf16.msra.mxu0 0
        %5583 = vmatprep.subr.bf16.mxu0 0
        %5584 = vmatpush1.bf16.msra.mxu0 0
        %5585 = vmatprep.subr.bf16.mxu0 0
        %5586 = vmatpush1.bf16.msra.mxu0 0
        %5587 = vmatprep.subr.bf16.mxu0 0
        %5588 = vmatpush1.bf16.msra.mxu0 0
        %5589 = vmatprep.subr.bf16.mxu0 0
        %5590 = vmatpush1.bf16.msra.mxu0 0
        %5591 = vmatprep.subr.bf16.mxu0 0
        %5592 = vmatpush1.bf16.msra.mxu0 0
        %5593 = vmatprep.subr.bf16.mxu0 0
        %5594 = vmatpush1.bf16.msra.mxu0 0
        %5595 = vmatprep.subr.bf16.mxu0 0
        %5596 = vmatpush1.bf16.msra.mxu0 0
        %5597 = vmatprep.subr.bf16.mxu0 0
        %5598 = vmatpush1.bf16.msra.mxu0 0
        %5599 = vmatprep.subr.bf16.mxu0 0
        %5600 = vmatpush1.bf16.msra.mxu0 0
        %5601 = vmatprep.mubr.bf16.mxu0 0
        %5602 = vmatmul.mubr.bf16.gmra.mrb[0].mxu0 %v5567
        %v5603 = vpop.f32.mrb[0].mxu0
        %v5604 = vadd.f32 0.0, %v5603
        %v5605 = vpop.f32.mrb[0].mxu0
        %v5606 = vpop.f32.mrb[0].mxu0
        %v5607 = vadd.f32 0.0, %v5606
        %v5608 = vpop.f32.mrb[0].mxu0
        %5609 = vdwg.mxu0
        %v5610 = vpack.c.bf16 %v5607, %v5604
        %s5611 = scalar_lea.vmem [#allocation4], 704
        %v5612 = vld [vmem:[%s5611] sm:$0xf]
        %v5613 = vld [vmem:[%s5611 + $0x4] sm:$0xf]
        %v5614 = vld [vmem:[%s5611 + $0x8] sm:$0xf]
        %v5615 = vld [vmem:[%s5611 + $0xc] sm:$0xf]
        %v5616 = vld [vmem:[%s5611 + $0x10] sm:$0xf]
        %v5617 = vld [vmem:[%s5611 + $0x14] sm:$0xf]
        %v5618 = vld [vmem:[%s5611 + $0x18] sm:$0xf]
        %v5619 = vld [vmem:[%s5611 + $0x1c] sm:$0xf]
        %v5620 = vld [vmem:[%s5611 + $0x20] sm:$0xf]
        %v5621 = vld [vmem:[%s5611 + $0x24] sm:$0xf]
        %v5622 = vld [vmem:[%s5611 + $0x28] sm:$0xf]
        %v5623 = vld [vmem:[%s5611 + $0x2c] sm:$0xf]
        %v5624 = vld [vmem:[%s5611 + $0x30] sm:$0xf]
        %v5625 = vld [vmem:[%s5611 + $0x34] sm:$0xf]
        %v5626 = vld [vmem:[%s5611 + $0x38] sm:$0xf]
        %v5627 = vld [vmem:[%s5611 + $0x3c] sm:$0xf]
        %v5644 = vunpack.c.l.b16 %v5612
        %v5645 = vunpack.c.l.b16 %v5613
        %v5646 = vunpack.c.l.b16 %v5614
        %v5647 = vunpack.c.l.b16 %v5615
        %v5648 = vunpack.c.l.b16 %v5616
        %v5649 = vunpack.c.l.b16 %v5617
        %v5650 = vunpack.c.l.b16 %v5618
        %v5651 = vunpack.c.l.b16 %v5619
        %v5652 = vunpack.c.l.b16 %v5620
        %v5653 = vunpack.c.l.b16 %v5621
        %v5654 = vunpack.c.l.b16 %v5622
        %v5655 = vunpack.c.l.b16 %v5623
        %v5656 = vunpack.c.l.b16 %v5624
        %v5657 = vunpack.c.l.b16 %v5625
        %v5658 = vunpack.c.l.b16 %v5626
        %v5659 = vunpack.c.l.b16 %v5627
        %v5660 = vpack.c.b16 %v5645, %v5644
        %v5661 = vpack.c.b16 %v5647, %v5646
        %v5662 = vpack.c.b16 %v5649, %v5648
        %v5663 = vpack.c.b16 %v5651, %v5650
        %v5664 = vpack.c.b16 %v5653, %v5652
        %v5665 = vpack.c.b16 %v5655, %v5654
        %v5666 = vpack.c.b16 %v5657, %v5656
        %v5667 = vpack.c.b16 %v5659, %v5658
        %5676 = vmatprep.subr.bf16.mxu0 0
        %5677 = vmatpush1.bf16.msra.mxu0 %v5660
        %5678 = vmatprep.subr.bf16.mxu0 0
        %5679 = vmatpush1.bf16.msra.mxu0 %v5661
        %5680 = vmatprep.subr.bf16.mxu0 0
        %5681 = vmatpush1.bf16.msra.mxu0 %v5662
        %5682 = vmatprep.subr.bf16.mxu0 0
        %5683 = vmatpush1.bf16.msra.mxu0 %v5663
        %5684 = vmatprep.subr.bf16.mxu0 0
        %5685 = vmatpush1.bf16.msra.mxu0 %v5664
        %5686 = vmatprep.subr.bf16.mxu0 0
        %5687 = vmatpush1.bf16.msra.mxu0 %v5665
        %5688 = vmatprep.subr.bf16.mxu0 0
        %5689 = vmatpush1.bf16.msra.mxu0 %v5666
        %5690 = vmatprep.subr.bf16.mxu0 0
        %5691 = vmatpush1.bf16.msra.mxu0 %v5667
        %5692 = vmatprep.subr.bf16.mxu0 0
        %5693 = vmatpush1.bf16.msra.mxu0 0
        %5694 = vmatprep.subr.bf16.mxu0 0
        %5695 = vmatpush1.bf16.msra.mxu0 0
        %5696 = vmatprep.subr.bf16.mxu0 0
        %5697 = vmatpush1.bf16.msra.mxu0 0
        %5698 = vmatprep.subr.bf16.mxu0 0
        %5699 = vmatpush1.bf16.msra.mxu0 0
        %5700 = vmatprep.subr.bf16.mxu0 0
        %5701 = vmatpush1.bf16.msra.mxu0 0
        %5702 = vmatprep.subr.bf16.mxu0 0
        %5703 = vmatpush1.bf16.msra.mxu0 0
        %5704 = vmatprep.subr.bf16.mxu0 0
        %5705 = vmatpush1.bf16.msra.mxu0 0
        %5706 = vmatprep.subr.bf16.mxu0 0
        %5707 = vmatpush1.bf16.msra.mxu0 0
        %5708 = vmatprep.mubr.bf16.mxu0 0
        %5709 = vmatmul.mubr.bf16.gmra.mrb[0].mxu0 %v5610
        %v5710 = vpop.f32.mrb[0].mxu0
        %v5711 = vadd.f32 0.0, %v5710
        %v5712 = vpop.f32.mrb[0].mxu0
        %v5713 = vpop.f32.mrb[0].mxu0
        %v5714 = vadd.f32 0.0, %v5713
        %v5715 = vpop.f32.mrb[0].mxu0
        %5716 = vdwg.mxu0
        %v5717 = vadd.f32 %v5556, %v5711
        %v5718 = vadd.f32 %v5557, %v5714
        %s5719 = scalar_lea.vmem %s4, 96
        %v5720 = vld [vmem:[%s5719] sm:$0xf]
        %v5721 = vld [vmem:[%s5719 + $0x4] sm:$0xf]
        %v5724 = vunpack.c.l.b16 %v5720
        %v5725 = vunpack.c.l.b16 %v5721
        %v5726 = vpack.c.b16 %v5725, %v5724
        %v5728 = vsel %vm3799, %v5726, 0
        %5730 = vmatprep.subr.bf16.mxu0 0
        %5731 = vmatpush1.bf16.msra.mxu0 %v3788
        %5732 = vmatprep.subr.bf16.mxu0 0
        %5733 = vmatpush1.bf16.msra.mxu0 %v3789
        %5734 = vmatprep.subr.bf16.mxu0 0
        %5735 = vmatpush1.bf16.msra.mxu0 %v3790
        %5736 = vmatprep.subr.bf16.mxu0 0
        %5737 = vmatpush1.bf16.msra.mxu0 %v3791
        %5738 = vmatprep.subr.bf16.mxu0 0
        %5739 = vmatpush1.bf16.msra.mxu0 0
        %5740 = vmatprep.subr.bf16.mxu0 0
        %5741 = vmatpush1.bf16.msra.mxu0 0
        %5742 = vmatprep.subr.bf16.mxu0 0
        %5743 = vmatpush1.bf16.msra.mxu0 0
        %5744 = vmatprep.subr.bf16.mxu0 0
        %5745 = vmatpush1.bf16.msra.mxu0 0
        %5746 = vmatprep.subr.bf16.mxu0 0
        %5747 = vmatpush1.bf16.msra.mxu0 0
        %5748 = vmatprep.subr.bf16.mxu0 0
        %5749 = vmatpush1.bf16.msra.mxu0 0
        %5750 = vmatprep.subr.bf16.mxu0 0
        %5751 = vmatpush1.bf16.msra.mxu0 0
        %5752 = vmatprep.subr.bf16.mxu0 0
        %5753 = vmatpush1.bf16.msra.mxu0 0
        %5754 = vmatprep.subr.bf16.mxu0 0
        %5755 = vmatpush1.bf16.msra.mxu0 0
        %5756 = vmatprep.subr.bf16.mxu0 0
        %5757 = vmatpush1.bf16.msra.mxu0 0
        %5758 = vmatprep.subr.bf16.mxu0 0
        %5759 = vmatpush1.bf16.msra.mxu0 0
        %5760 = vmatprep.subr.bf16.mxu0 0
        %5761 = vmatpush1.bf16.msra.mxu0 0
        %5762 = vmatprep.mubr.bf16.mxu0 0
        %5763 = vmatmul.mubr.bf16.gmra.mrb[0].mxu0 %v5728
        %v5764 = vpop.f32.mrb[0].mxu0
        %v5765 = vadd.f32 0.0, %v5764
        %v5766 = vpop.f32.mrb[0].mxu0
        %v5767 = vpop.f32.mrb[0].mxu0
        %v5768 = vadd.f32 0.0, %v5767
        %v5769 = vpop.f32.mrb[0].mxu0
        %5770 = vdwg.mxu0
        %v5771 = vpack.c.bf16 %v5768, %v5765
        %s5772 = scalar_lea.vmem [#allocation4], 768
        %v5773 = vld [vmem:[%s5772] sm:$0xf]
        %v5774 = vld [vmem:[%s5772 + $0x4] sm:$0xf]
        %v5775 = vld [vmem:[%s5772 + $0x8] sm:$0xf]
        %v5776 = vld [vmem:[%s5772 + $0xc] sm:$0xf]
        %v5777 = vld [vmem:[%s5772 + $0x10] sm:$0xf]
        %v5778 = vld [vmem:[%s5772 + $0x14] sm:$0xf]
        %v5779 = vld [vmem:[%s5772 + $0x18] sm:$0xf]
        %v5780 = vld [vmem:[%s5772 + $0x1c] sm:$0xf]
        %v5781 = vld [vmem:[%s5772 + $0x20] sm:$0xf]
        %v5782 = vld [vmem:[%s5772 + $0x24] sm:$0xf]
        %v5783 = vld [vmem:[%s5772 + $0x28] sm:$0xf]
        %v5784 = vld [vmem:[%s5772 + $0x2c] sm:$0xf]
        %v5785 = vld [vmem:[%s5772 + $0x30] sm:$0xf]
        %v5786 = vld [vmem:[%s5772 + $0x34] sm:$0xf]
        %v5787 = vld [vmem:[%s5772 + $0x38] sm:$0xf]
        %v5788 = vld [vmem:[%s5772 + $0x3c] sm:$0xf]
        %v5805 = vunpack.c.l.b16 %v5773
        %v5806 = vunpack.c.l.b16 %v5774
        %v5807 = vunpack.c.l.b16 %v5775
        %v5808 = vunpack.c.l.b16 %v5776
        %v5809 = vunpack.c.l.b16 %v5777
        %v5810 = vunpack.c.l.b16 %v5778
        %v5811 = vunpack.c.l.b16 %v5779
        %v5812 = vunpack.c.l.b16 %v5780
        %v5813 = vunpack.c.l.b16 %v5781
        %v5814 = vunpack.c.l.b16 %v5782
        %v5815 = vunpack.c.l.b16 %v5783
        %v5816 = vunpack.c.l.b16 %v5784
        %v5817 = vunpack.c.l.b16 %v5785
        %v5818 = vunpack.c.l.b16 %v5786
        %v5819 = vunpack.c.l.b16 %v5787
        %v5820 = vunpack.c.l.b16 %v5788
        %v5821 = vpack.c.b16 %v5806, %v5805
        %v5822 = vpack.c.b16 %v5808, %v5807
        %v5823 = vpack.c.b16 %v5810, %v5809
        %v5824 = vpack.c.b16 %v5812, %v5811
        %v5825 = vpack.c.b16 %v5814, %v5813
        %v5826 = vpack.c.b16 %v5816, %v5815
        %v5827 = vpack.c.b16 %v5818, %v5817
        %v5828 = vpack.c.b16 %v5820, %v5819
        %5837 = vmatprep.subr.bf16.mxu0 0
        %5838 = vmatpush1.bf16.msra.mxu0 %v5821
        %5839 = vmatprep.subr.bf16.mxu0 0
        %5840 = vmatpush1.bf16.msra.mxu0 %v5822
        %5841 = vmatprep.subr.bf16.mxu0 0
        %5842 = vmatpush1.bf16.msra.mxu0 %v5823
        %5843 = vmatprep.subr.bf16.mxu0 0
        %5844 = vmatpush1.bf16.msra.mxu0 %v5824
        %5845 = vmatprep.subr.bf16.mxu0 0
        %5846 = vmatpush1.bf16.msra.mxu0 %v5825
        %5847 = vmatprep.subr.bf16.mxu0 0
        %5848 = vmatpush1.bf16.msra.mxu0 %v5826
        %5849 = vmatprep.subr.bf16.mxu0 0
        %5850 = vmatpush1.bf16.msra.mxu0 %v5827
        %5851 = vmatprep.subr.bf16.mxu0 0
        %5852 = vmatpush1.bf16.msra.mxu0 %v5828
        %5853 = vmatprep.subr.bf16.mxu0 0
        %5854 = vmatpush1.bf16.msra.mxu0 0
        %5855 = vmatprep.subr.bf16.mxu0 0
        %5856 = vmatpush1.bf16.msra.mxu0 0
        %5857 = vmatprep.subr.bf16.mxu0 0
        %5858 = vmatpush1.bf16.msra.mxu0 0
        %5859 = vmatprep.subr.bf16.mxu0 0
        %5860 = vmatpush1.bf16.msra.mxu0 0
        %5861 = vmatprep.subr.bf16.mxu0 0
        %5862 = vmatpush1.bf16.msra.mxu0 0
        %5863 = vmatprep.subr.bf16.mxu0 0
        %5864 = vmatpush1.bf16.msra.mxu0 0
        %5865 = vmatprep.subr.bf16.mxu0 0
        %5866 = vmatpush1.bf16.msra.mxu0 0
        %5867 = vmatprep.subr.bf16.mxu0 0
        %5868 = vmatpush1.bf16.msra.mxu0 0
        %5869 = vmatprep.mubr.bf16.mxu0 0
        %5870 = vmatmul.mubr.bf16.gmra.mrb[0].mxu0 %v5771
        %v5871 = vpop.f32.mrb[0].mxu0
        %v5872 = vadd.f32 0.0, %v5871
        %v5873 = vpop.f32.mrb[0].mxu0
        %v5874 = vpop.f32.mrb[0].mxu0
        %v5875 = vadd.f32 0.0, %v5874
        %v5876 = vpop.f32.mrb[0].mxu0
        %5877 = vdwg.mxu0
        %v5878 = vadd.f32 %v5717, %v5872
        %v5879 = vadd.f32 %v5718, %v5875
        %s5880 = scalar_lea.vmem %s4, 104
        %v5881 = vld [vmem:[%s5880] sm:$0xf]
        %v5882 = vld [vmem:[%s5880 + $0x4] sm:$0xf]
        %v5885 = vunpack.c.l.b16 %v5881
        %v5886 = vunpack.c.l.b16 %v5882
        %v5887 = vpack.c.b16 %v5886, %v5885
        %v5889 = vsel %vm3799, %v5887, 0
        %5891 = vmatprep.subr.bf16.mxu0 0
        %5892 = vmatpush1.bf16.msra.mxu0 %v3788
        %5893 = vmatprep.subr.bf16.mxu0 0
        %5894 = vmatpush1.bf16.msra.mxu0 %v3789
        %5895 = vmatprep.subr.bf16.mxu0 0
        %5896 = vmatpush1.bf16.msra.mxu0 %v3790
        %5897 = vmatprep.subr.bf16.mxu0 0
        %5898 = vmatpush1.bf16.msra.mxu0 %v3791
        %5899 = vmatprep.subr.bf16.mxu0 0
        %5900 = vmatpush1.bf16.msra.mxu0 0
        %5901 = vmatprep.subr.bf16.mxu0 0
        %5902 = vmatpush1.bf16.msra.mxu0 0
        %5903 = vmatprep.subr.bf16.mxu0 0
        %5904 = vmatpush1.bf16.msra.mxu0 0
        %5905 = vmatprep.subr.bf16.mxu0 0
        %5906 = vmatpush1.bf16.msra.mxu0 0
        %5907 = vmatprep.subr.bf16.mxu0 0
        %5908 = vmatpush1.bf16.msra.mxu0 0
        %5909 = vmatprep.subr.bf16.mxu0 0
        %5910 = vmatpush1.bf16.msra.mxu0 0
        %5911 = vmatprep.subr.bf16.mxu0 0
        %5912 = vmatpush1.bf16.msra.mxu0 0
        %5913 = vmatprep.subr.bf16.mxu0 0
        %5914 = vmatpush1.bf16.msra.mxu0 0
        %5915 = vmatprep.subr.bf16.mxu0 0
        %5916 = vmatpush1.bf16.msra.mxu0 0
        %5917 = vmatprep.subr.bf16.mxu0 0
        %5918 = vmatpush1.bf16.msra.mxu0 0
        %5919 = vmatprep.subr.bf16.mxu0 0
        %5920 = vmatpush1.bf16.msra.mxu0 0
        %5921 = vmatprep.subr.bf16.mxu0 0
        %5922 = vmatpush1.bf16.msra.mxu0 0
        %5923 = vmatprep.mubr.bf16.mxu0 0
        %5924 = vmatmul.mubr.bf16.gmra.mrb[0].mxu0 %v5889
        %v5925 = vpop.f32.mrb[0].mxu0
        %v5926 = vadd.f32 0.0, %v5925
        %v5927 = vpop.f32.mrb[0].mxu0
        %v5928 = vpop.f32.mrb[0].mxu0
        %v5929 = vadd.f32 0.0, %v5928
        %v5930 = vpop.f32.mrb[0].mxu0
        %5931 = vdwg.mxu0
        %v5932 = vpack.c.bf16 %v5929, %v5926
        %s5933 = scalar_lea.vmem [#allocation4], 832
        %v5934 = vld [vmem:[%s5933] sm:$0xf]
        %v5935 = vld [vmem:[%s5933 + $0x4] sm:$0xf]
        %v5936 = vld [vmem:[%s5933 + $0x8] sm:$0xf]
        %v5937 = vld [vmem:[%s5933 + $0xc] sm:$0xf]
        %v5938 = vld [vmem:[%s5933 + $0x10] sm:$0xf]
        %v5939 = vld [vmem:[%s5933 + $0x14] sm:$0xf]
        %v5940 = vld [vmem:[%s5933 + $0x18] sm:$0xf]
        %v5941 = vld [vmem:[%s5933 + $0x1c] sm:$0xf]
        %v5942 = vld [vmem:[%s5933 + $0x20] sm:$0xf]
        %v5943 = vld [vmem:[%s5933 + $0x24] sm:$0xf]
        %v5944 = vld [vmem:[%s5933 + $0x28] sm:$0xf]
        %v5945 = vld [vmem:[%s5933 + $0x2c] sm:$0xf]
        %v5946 = vld [vmem:[%s5933 + $0x30] sm:$0xf]
        %v5947 = vld [vmem:[%s5933 + $0x34] sm:$0xf]
        %v5948 = vld [vmem:[%s5933 + $0x38] sm:$0xf]
        %v5949 = vld [vmem:[%s5933 + $0x3c] sm:$0xf]
        %v5966 = vunpack.c.l.b16 %v5934
        %v5967 = vunpack.c.l.b16 %v5935
        %v5968 = vunpack.c.l.b16 %v5936
        %v5969 = vunpack.c.l.b16 %v5937
        %v5970 = vunpack.c.l.b16 %v5938
        %v5971 = vunpack.c.l.b16 %v5939
        %v5972 = vunpack.c.l.b16 %v5940
        %v5973 = vunpack.c.l.b16 %v5941
        %v5974 = vunpack.c.l.b16 %v5942
        %v5975 = vunpack.c.l.b16 %v5943
        %v5976 = vunpack.c.l.b16 %v5944
        %v5977 = vunpack.c.l.b16 %v5945
        %v5978 = vunpack.c.l.b16 %v5946
        %v5979 = vunpack.c.l.b16 %v5947
        %v5980 = vunpack.c.l.b16 %v5948
        %v5981 = vunpack.c.l.b16 %v5949
        %v5982 = vpack.c.b16 %v5967, %v5966
        %v5983 = vpack.c.b16 %v5969, %v5968
        %v5984 = vpack.c.b16 %v5971, %v5970
        %v5985 = vpack.c.b16 %v5973, %v5972
        %v5986 = vpack.c.b16 %v5975, %v5974
        %v5987 = vpack.c.b16 %v5977, %v5976
        %v5988 = vpack.c.b16 %v5979, %v5978
        %v5989 = vpack.c.b16 %v5981, %v5980
        %5998 = vmatprep.subr.bf16.mxu0 0
        %5999 = vmatpush1.bf16.msra.mxu0 %v5982
        %6000 = vmatprep.subr.bf16.mxu0 0
        %6001 = vmatpush1.bf16.msra.mxu0 %v5983
        %6002 = vmatprep.subr.bf16.mxu0 0
        %6003 = vmatpush1.bf16.msra.mxu0 %v5984
        %6004 = vmatprep.subr.bf16.mxu0 0
        %6005 = vmatpush1.bf16.msra.mxu0 %v5985
        %6006 = vmatprep.subr.bf16.mxu0 0
        %6007 = vmatpush1.bf16.msra.mxu0 %v5986
        %6008 = vmatprep.subr.bf16.mxu0 0
        %6009 = vmatpush1.bf16.msra.mxu0 %v5987
        %6010 = vmatprep.subr.bf16.mxu0 0
        %6011 = vmatpush1.bf16.msra.mxu0 %v5988
        %6012 = vmatprep.subr.bf16.mxu0 0
        %6013 = vmatpush1.bf16.msra.mxu0 %v5989
        %6014 = vmatprep.subr.bf16.mxu0 0
        %6015 = vmatpush1.bf16.msra.mxu0 0
        %6016 = vmatprep.subr.bf16.mxu0 0
        %6017 = vmatpush1.bf16.msra.mxu0 0
        %6018 = vmatprep.subr.bf16.mxu0 0
        %6019 = vmatpush1.bf16.msra.mxu0 0
        %6020 = vmatprep.subr.bf16.mxu0 0
        %6021 = vmatpush1.bf16.msra.mxu0 0
        %6022 = vmatprep.subr.bf16.mxu0 0
        %6023 = vmatpush1.bf16.msra.mxu0 0
        %6024 = vmatprep.subr.bf16.mxu0 0
        %6025 = vmatpush1.bf16.msra.mxu0 0
        %6026 = vmatprep.subr.bf16.mxu0 0
        %6027 = vmatpush1.bf16.msra.mxu0 0
        %6028 = vmatprep.subr.bf16.mxu0 0
        %6029 = vmatpush1.bf16.msra.mxu0 0
        %6030 = vmatprep.mubr.bf16.mxu0 0
        %6031 = vmatmul.mubr.bf16.gmra.mrb[0].mxu0 %v5932
        %v6032 = vpop.f32.mrb[0].mxu0
        %v6033 = vadd.f32 0.0, %v6032
        %v6034 = vpop.f32.mrb[0].mxu0
        %v6035 = vpop.f32.mrb[0].mxu0
        %v6036 = vadd.f32 0.0, %v6035
        %v6037 = vpop.f32.mrb[0].mxu0
        %6038 = vdwg.mxu0
        %v6039 = vadd.f32 %v5878, %v6033
        %v6040 = vadd.f32 %v5879, %v6036
        %s6041 = scalar_lea.vmem %s4, 112
        %v6042 = vld [vmem:[%s6041] sm:$0xf]
        %v6043 = vld [vmem:[%s6041 + $0x4] sm:$0xf]
        %v6046 = vunpack.c.l.b16 %v6042
        %v6047 = vunpack.c.l.b16 %v6043
        %v6048 = vpack.c.b16 %v6047, %v6046
        %v6050 = vsel %vm3799, %v6048, 0
        %6052 = vmatprep.subr.bf16.mxu0 0
        %6053 = vmatpush1.bf16.msra.mxu0 %v3788
        %6054 = vmatprep.subr.bf16.mxu0 0
        %6055 = vmatpush1.bf16.msra.mxu0 %v3789
        %6056 = vmatprep.subr.bf16.mxu0 0
        %6057 = vmatpush1.bf16.msra.mxu0 %v3790
        %6058 = vmatprep.subr.bf16.mxu0 0
        %6059 = vmatpush1.bf16.msra.mxu0 %v3791
        %6060 = vmatprep.subr.bf16.mxu0 0
        %6061 = vmatpush1.bf16.msra.mxu0 0
        %6062 = vmatprep.subr.bf16.mxu0 0
        %6063 = vmatpush1.bf16.msra.mxu0 0
        %6064 = vmatprep.subr.bf16.mxu0 0
        %6065 = vmatpush1.bf16.msra.mxu0 0
        %6066 = vmatprep.subr.bf16.mxu0 0
        %6067 = vmatpush1.bf16.msra.mxu0 0
        %6068 = vmatprep.subr.bf16.mxu0 0
        %6069 = vmatpush1.bf16.msra.mxu0 0
        %6070 = vmatprep.subr.bf16.mxu0 0
        %6071 = vmatpush1.bf16.msra.mxu0 0
        %6072 = vmatprep.subr.bf16.mxu0 0
        %6073 = vmatpush1.bf16.msra.mxu0 0
        %6074 = vmatprep.subr.bf16.mxu0 0
        %6075 = vmatpush1.bf16.msra.mxu0 0
        %6076 = vmatprep.subr.bf16.mxu0 0
        %6077 = vmatpush1.bf16.msra.mxu0 0
        %6078 = vmatprep.subr.bf16.mxu0 0
        %6079 = vmatpush1.bf16.msra.mxu0 0
        %6080 = vmatprep.subr.bf16.mxu0 0
        %6081 = vmatpush1.bf16.msra.mxu0 0
        %6082 = vmatprep.subr.bf16.mxu0 0
        %6083 = vmatpush1.bf16.msra.mxu0 0
        %6084 = vmatprep.mubr.bf16.mxu0 0
        %6085 = vmatmul.mubr.bf16.gmra.mrb[0].mxu0 %v6050
        %v6086 = vpop.f32.mrb[0].mxu0
        %v6087 = vadd.f32 0.0, %v6086
        %v6088 = vpop.f32.mrb[0].mxu0
        %v6089 = vpop.f32.mrb[0].mxu0
        %v6090 = vadd.f32 0.0, %v6089
        %v6091 = vpop.f32.mrb[0].mxu0
        %6092 = vdwg.mxu0
        %v6093 = vpack.c.bf16 %v6090, %v6087
        %s6094 = scalar_lea.vmem [#allocation4], 896
        %v6095 = vld [vmem:[%s6094] sm:$0xf]
        %v6096 = vld [vmem:[%s6094 + $0x4] sm:$0xf]
        %v6097 = vld [vmem:[%s6094 + $0x8] sm:$0xf]
        %v6098 = vld [vmem:[%s6094 + $0xc] sm:$0xf]
        %v6099 = vld [vmem:[%s6094 + $0x10] sm:$0xf]
        %v6100 = vld [vmem:[%s6094 + $0x14] sm:$0xf]
        %v6101 = vld [vmem:[%s6094 + $0x18] sm:$0xf]
        %v6102 = vld [vmem:[%s6094 + $0x1c] sm:$0xf]
        %v6103 = vld [vmem:[%s6094 + $0x20] sm:$0xf]
        %v6104 = vld [vmem:[%s6094 + $0x24] sm:$0xf]
        %v6105 = vld [vmem:[%s6094 + $0x28] sm:$0xf]
        %v6106 = vld [vmem:[%s6094 + $0x2c] sm:$0xf]
        %v6107 = vld [vmem:[%s6094 + $0x30] sm:$0xf]
        %v6108 = vld [vmem:[%s6094 + $0x34] sm:$0xf]
        %v6109 = vld [vmem:[%s6094 + $0x38] sm:$0xf]
        %v6110 = vld [vmem:[%s6094 + $0x3c] sm:$0xf]
        %v6127 = vunpack.c.l.b16 %v6095
        %v6128 = vunpack.c.l.b16 %v6096
        %v6129 = vunpack.c.l.b16 %v6097
        %v6130 = vunpack.c.l.b16 %v6098
        %v6131 = vunpack.c.l.b16 %v6099
        %v6132 = vunpack.c.l.b16 %v6100
        %v6133 = vunpack.c.l.b16 %v6101
        %v6134 = vunpack.c.l.b16 %v6102
        %v6135 = vunpack.c.l.b16 %v6103
        %v6136 = vunpack.c.l.b16 %v6104
        %v6137 = vunpack.c.l.b16 %v6105
        %v6138 = vunpack.c.l.b16 %v6106
        %v6139 = vunpack.c.l.b16 %v6107
        %v6140 = vunpack.c.l.b16 %v6108
        %v6141 = vunpack.c.l.b16 %v6109
        %v6142 = vunpack.c.l.b16 %v6110
        %v6143 = vpack.c.b16 %v6128, %v6127
        %v6144 = vpack.c.b16 %v6130, %v6129
        %v6145 = vpack.c.b16 %v6132, %v6131
        %v6146 = vpack.c.b16 %v6134, %v6133
        %v6147 = vpack.c.b16 %v6136, %v6135
        %v6148 = vpack.c.b16 %v6138, %v6137
        %v6149 = vpack.c.b16 %v6140, %v6139
        %v6150 = vpack.c.b16 %v6142, %v6141
        %6159 = vmatprep.subr.bf16.mxu0 0
        %6160 = vmatpush1.bf16.msra.mxu0 %v6143
        %6161 = vmatprep.subr.bf16.mxu0 0
        %6162 = vmatpush1.bf16.msra.mxu0 %v6144
        %6163 = vmatprep.subr.bf16.mxu0 0
        %6164 = vmatpush1.bf16.msra.mxu0 %v6145
        %6165 = vmatprep.subr.bf16.mxu0 0
        %6166 = vmatpush1.bf16.msra.mxu0 %v6146
        %6167 = vmatprep.subr.bf16.mxu0 0
        %6168 = vmatpush1.bf16.msra.mxu0 %v6147
        %6169 = vmatprep.subr.bf16.mxu0 0
        %6170 = vmatpush1.bf16.msra.mxu0 %v6148
        %6171 = vmatprep.subr.bf16.mxu0 0
        %6172 = vmatpush1.bf16.msra.mxu0 %v6149
        %6173 = vmatprep.subr.bf16.mxu0 0
        %6174 = vmatpush1.bf16.msra.mxu0 %v6150
        %6175 = vmatprep.subr.bf16.mxu0 0
        %6176 = vmatpush1.bf16.msra.mxu0 0
        %6177 = vmatprep.subr.bf16.mxu0 0
        %6178 = vmatpush1.bf16.msra.mxu0 0
        %6179 = vmatprep.subr.bf16.mxu0 0
        %6180 = vmatpush1.bf16.msra.mxu0 0
        %6181 = vmatprep.subr.bf16.mxu0 0
        %6182 = vmatpush1.bf16.msra.mxu0 0
        %6183 = vmatprep.subr.bf16.mxu0 0
        %6184 = vmatpush1.bf16.msra.mxu0 0
        %6185 = vmatprep.subr.bf16.mxu0 0
        %6186 = vmatpush1.bf16.msra.mxu0 0
        %6187 = vmatprep.subr.bf16.mxu0 0
        %6188 = vmatpush1.bf16.msra.mxu0 0
        %6189 = vmatprep.subr.bf16.mxu0 0
        %6190 = vmatpush1.bf16.msra.mxu0 0
        %6191 = vmatprep.mubr.bf16.mxu0 0
        %6192 = vmatmul.mubr.bf16.gmra.mrb[0].mxu0 %v6093
        %v6193 = vpop.f32.mrb[0].mxu0
        %v6194 = vadd.f32 0.0, %v6193
        %v6195 = vpop.f32.mrb[0].mxu0
        %v6196 = vpop.f32.mrb[0].mxu0
        %v6197 = vadd.f32 0.0, %v6196
        %v6198 = vpop.f32.mrb[0].mxu0
        %6199 = vdwg.mxu0
        %v6200 = vadd.f32 %v6039, %v6194
        %v6201 = vadd.f32 %v6040, %v6197
        %s6202 = scalar_lea.vmem %s4, 120
        %v6203 = vld [vmem:[%s6202] sm:$0xf]
        %v6204 = vld [vmem:[%s6202 + $0x4] sm:$0xf]
        %v6207 = vunpack.c.l.b16 %v6203
        %v6208 = vunpack.c.l.b16 %v6204
        %v6209 = vpack.c.b16 %v6208, %v6207
        %v6211 = vsel %vm3799, %v6209, 0
        %6213 = vmatprep.subr.bf16.mxu0 0
        %6214 = vmatpush1.bf16.msra.mxu0 %v3788
        %6215 = vmatprep.subr.bf16.mxu0 0
        %6216 = vmatpush1.bf16.msra.mxu0 %v3789
        %6217 = vmatprep.subr.bf16.mxu0 0
        %6218 = vmatpush1.bf16.msra.mxu0 %v3790
        %6219 = vmatprep.subr.bf16.mxu0 0
        %6220 = vmatpush1.bf16.msra.mxu0 %v3791
        %6221 = vmatprep.subr.bf16.mxu0 0
        %6222 = vmatpush1.bf16.msra.mxu0 0
        %6223 = vmatprep.subr.bf16.mxu0 0
        %6224 = vmatpush1.bf16.msra.mxu0 0
        %6225 = vmatprep.subr.bf16.mxu0 0
        %6226 = vmatpush1.bf16.msra.mxu0 0
        %6227 = vmatprep.subr.bf16.mxu0 0
        %6228 = vmatpush1.bf16.msra.mxu0 0
        %6229 = vmatprep.subr.bf16.mxu0 0
        %6230 = vmatpush1.bf16.msra.mxu0 0
        %6231 = vmatprep.subr.bf16.mxu0 0
        %6232 = vmatpush1.bf16.msra.mxu0 0
        %6233 = vmatprep.subr.bf16.mxu0 0
        %6234 = vmatpush1.bf16.msra.mxu0 0
        %6235 = vmatprep.subr.bf16.mxu0 0
        %6236 = vmatpush1.bf16.msra.mxu0 0
        %6237 = vmatprep.subr.bf16.mxu0 0
        %6238 = vmatpush1.bf16.msra.mxu0 0
        %6239 = vmatprep.subr.bf16.mxu0 0
        %6240 = vmatpush1.bf16.msra.mxu0 0
        %6241 = vmatprep.subr.bf16.mxu0 0
        %6242 = vmatpush1.bf16.msra.mxu0 0
        %6243 = vmatprep.subr.bf16.mxu0 0
        %6244 = vmatpush1.bf16.msra.mxu0 0
        %6245 = vmatprep.mubr.bf16.mxu0 0
        %6246 = vmatmul.mubr.bf16.gmra.mrb[0].mxu0 %v6211
        %v6247 = vpop.f32.mrb[0].mxu0
        %v6248 = vadd.f32 0.0, %v6247
        %v6249 = vpop.f32.mrb[0].mxu0
        %v6250 = vpop.f32.mrb[0].mxu0
        %v6251 = vadd.f32 0.0, %v6250
        %v6252 = vpop.f32.mrb[0].mxu0
        %6253 = vdwg.mxu0
        %v6254 = vpack.c.bf16 %v6251, %v6248
        %s6255 = scalar_lea.vmem [#allocation4], 960
        %v6256 = vld [vmem:[%s6255] sm:$0xf]
        %v6257 = vld [vmem:[%s6255 + $0x4] sm:$0xf]
        %v6258 = vld [vmem:[%s6255 + $0x8] sm:$0xf]
        %v6259 = vld [vmem:[%s6255 + $0xc] sm:$0xf]
        %v6260 = vld [vmem:[%s6255 + $0x10] sm:$0xf]
        %v6261 = vld [vmem:[%s6255 + $0x14] sm:$0xf]
        %v6262 = vld [vmem:[%s6255 + $0x18] sm:$0xf]
        %v6263 = vld [vmem:[%s6255 + $0x1c] sm:$0xf]
        %v6264 = vld [vmem:[%s6255 + $0x20] sm:$0xf]
        %v6265 = vld [vmem:[%s6255 + $0x24] sm:$0xf]
        %v6266 = vld [vmem:[%s6255 + $0x28] sm:$0xf]
        %v6267 = vld [vmem:[%s6255 + $0x2c] sm:$0xf]
        %v6268 = vld [vmem:[%s6255 + $0x30] sm:$0xf]
        %v6269 = vld [vmem:[%s6255 + $0x34] sm:$0xf]
        %v6270 = vld [vmem:[%s6255 + $0x38] sm:$0xf]
        %v6271 = vld [vmem:[%s6255 + $0x3c] sm:$0xf]
        %v6288 = vunpack.c.l.b16 %v6256
        %v6289 = vunpack.c.l.b16 %v6257
        %v6290 = vunpack.c.l.b16 %v6258
        %v6291 = vunpack.c.l.b16 %v6259
        %v6292 = vunpack.c.l.b16 %v6260
        %v6293 = vunpack.c.l.b16 %v6261
        %v6294 = vunpack.c.l.b16 %v6262
        %v6295 = vunpack.c.l.b16 %v6263
        %v6296 = vunpack.c.l.b16 %v6264
        %v6297 = vunpack.c.l.b16 %v6265
        %v6298 = vunpack.c.l.b16 %v6266
        %v6299 = vunpack.c.l.b16 %v6267
        %v6300 = vunpack.c.l.b16 %v6268
        %v6301 = vunpack.c.l.b16 %v6269
        %v6302 = vunpack.c.l.b16 %v6270
        %v6303 = vunpack.c.l.b16 %v6271
        %v6304 = vpack.c.b16 %v6289, %v6288
        %v6305 = vpack.c.b16 %v6291, %v6290
        %v6306 = vpack.c.b16 %v6293, %v6292
        %v6307 = vpack.c.b16 %v6295, %v6294
        %v6308 = vpack.c.b16 %v6297, %v6296
        %v6309 = vpack.c.b16 %v6299, %v6298
        %v6310 = vpack.c.b16 %v6301, %v6300
        %v6311 = vpack.c.b16 %v6303, %v6302
        %6320 = vmatprep.subr.bf16.mxu0 0
        %6321 = vmatpush1.bf16.msra.mxu0 %v6304
        %6322 = vmatprep.subr.bf16.mxu0 0
        %6323 = vmatpush1.bf16.msra.mxu0 %v6305
        %6324 = vmatprep.subr.bf16.mxu0 0
        %6325 = vmatpush1.bf16.msra.mxu0 %v6306
        %6326 = vmatprep.subr.bf16.mxu0 0
        %6327 = vmatpush1.bf16.msra.mxu0 %v6307
        %6328 = vmatprep.subr.bf16.mxu0 0
        %6329 = vmatpush1.bf16.msra.mxu0 %v6308
        %6330 = vmatprep.subr.bf16.mxu0 0
        %6331 = vmatpush1.bf16.msra.mxu0 %v6309
        %6332 = vmatprep.subr.bf16.mxu0 0
        %6333 = vmatpush1.bf16.msra.mxu0 %v6310
        %6334 = vmatprep.subr.bf16.mxu0 0
        %6335 = vmatpush1.bf16.msra.mxu0 %v6311
        %6336 = vmatprep.subr.bf16.mxu0 0
        %6337 = vmatpush1.bf16.msra.mxu0 0
        %6338 = vmatprep.subr.bf16.mxu0 0
        %6339 = vmatpush1.bf16.msra.mxu0 0
        %6340 = vmatprep.subr.bf16.mxu0 0
        %6341 = vmatpush1.bf16.msra.mxu0 0
        %6342 = vmatprep.subr.bf16.mxu0 0
        %6343 = vmatpush1.bf16.msra.mxu0 0
        %6344 = vmatprep.subr.bf16.mxu0 0
        %6345 = vmatpush1.bf16.msra.mxu0 0
        %6346 = vmatprep.subr.bf16.mxu0 0
        %6347 = vmatpush1.bf16.msra.mxu0 0
        %6348 = vmatprep.subr.bf16.mxu0 0
        %6349 = vmatpush1.bf16.msra.mxu0 0
        %6350 = vmatprep.subr.bf16.mxu0 0
        %6351 = vmatpush1.bf16.msra.mxu0 0
        %6352 = vmatprep.mubr.bf16.mxu0 0
        %6353 = vmatmul.mubr.bf16.gmra.mrb[0].mxu0 %v6254
        %v6354 = vpop.f32.mrb[0].mxu0
        %v6355 = vadd.f32 0.0, %v6354
        %v6356 = vpop.f32.mrb[0].mxu0
        %v6357 = vpop.f32.mrb[0].mxu0
        %v6358 = vadd.f32 0.0, %v6357
        %v6359 = vpop.f32.mrb[0].mxu0
        %6360 = vdwg.mxu0
        %v6361 = vadd.f32 %v6200, %v6355
        %v6362 = vadd.f32 %v6201, %v6358
        %v6363 = vld [vmem:[%s6] sm:$0x1]
        %v6365 = vlaneseq
        %v6366 = vshrl.u32 %v6365, 7
        %v6367 = vsub.s32 0, %v6366
        %v6368 = vrot.slane %v6363, %v6367
        %v6370 = vadd.f32 %v6361, %v6368
        %v6371 = vadd.f32 %v6362, %v6368
        %v6372 = vmax.f32 %v6370, 0.0
        %v6373 = vmax.f32 %v6371, 0.0
        %v6374 = vpack.c.bf16 %v6373, %v6372
        %v6375 = vld [vmem:[%s7] sm:$0x3]
        %vm6376 = vcmask 130048
        %v6378 = vsel %vm6376, %v6375, 0
        %6380 = vmatprep.subr.bf16.mxu0 0
        %6381 = vmatpush1.bf16.msra.mxu0 %v6374
        %6382 = vmatprep.subr.bf16.mxu0 0
        %6383 = vmatpush1.bf16.msra.mxu0 0
        %6384 = vmatprep.subr.bf16.mxu0 0
        %6385 = vmatpush1.bf16.msra.mxu0 0
        %6386 = vmatprep.subr.bf16.mxu0 0
        %6387 = vmatpush1.bf16.msra.mxu0 0
        %6388 = vmatprep.subr.bf16.mxu0 0
        %6389 = vmatpush1.bf16.msra.mxu0 0
        %6390 = vmatprep.subr.bf16.mxu0 0
        %6391 = vmatpush1.bf16.msra.mxu0 0
        %6392 = vmatprep.subr.bf16.mxu0 0
        %6393 = vmatpush1.bf16.msra.mxu0 0
        %6394 = vmatprep.subr.bf16.mxu0 0
        %6395 = vmatpush1.bf16.msra.mxu0 0
        %6396 = vmatprep.subr.bf16.mxu0 0
        %6397 = vmatpush1.bf16.msra.mxu0 0
        %6398 = vmatprep.subr.bf16.mxu0 0
        %6399 = vmatpush1.bf16.msra.mxu0 0
        %6400 = vmatprep.subr.bf16.mxu0 0
        %6401 = vmatpush1.bf16.msra.mxu0 0
        %6402 = vmatprep.subr.bf16.mxu0 0
        %6403 = vmatpush1.bf16.msra.mxu0 0
        %6404 = vmatprep.subr.bf16.mxu0 0
        %6405 = vmatpush1.bf16.msra.mxu0 0
        %6406 = vmatprep.subr.bf16.mxu0 0
        %6407 = vmatpush1.bf16.msra.mxu0 0
        %6408 = vmatprep.subr.bf16.mxu0 0
        %6409 = vmatpush1.bf16.msra.mxu0 0
        %6410 = vmatprep.subr.bf16.mxu0 0
        %6411 = vmatpush1.bf16.msra.mxu0 0
        %6412 = vmatprep.mubr.bf16.mxu0 0
        %6413 = vmatmul.mubr.bf16.gmra.mrb[0].mxu0 %v6378
        %v6414 = vpop.f32.mrb[0].mxu0
        %v6415 = vadd.f32 0.0, %v6414
        %v6416 = vpop.f32.mrb[0].mxu0
        %v6417 = vpop.f32.mrb[0].mxu0
        %v6418 = vpop.f32.mrb[0].mxu0
        %6419 = vdwg.mxu0
        %v6420 = vpack.c.bf16 %v6415, %v6415
        %v6421 = vld [vmem:[#allocation6] sm:$0xff]
        %v6422 = vld [vmem:[#allocation6 + $0x8] sm:$0xff]
        %v6423 = vld [vmem:[#allocation6 + $0x10] sm:$0xff]
        %v6424 = vld [vmem:[#allocation6 + $0x18] sm:$0xff]
        %v6425 = vld [vmem:[#allocation6 + $0x20] sm:$0xff]
        %v6426 = vld [vmem:[#allocation6 + $0x28] sm:$0xff]
        %v6427 = vld [vmem:[#allocation6 + $0x30] sm:$0xff]
        %v6428 = vld [vmem:[#allocation6 + $0x38] sm:$0xff]
        %v6429 = vld [vmem:[#allocation6 + $0x40] sm:$0xff]
        %v6430 = vld [vmem:[#allocation6 + $0x48] sm:$0xff]
        %v6431 = vld [vmem:[#allocation6 + $0x50] sm:$0xff]
        %v6432 = vld [vmem:[#allocation6 + $0x58] sm:$0xff]
        %v6433 = vld [vmem:[#allocation6 + $0x60] sm:$0xff]
        %v6434 = vld [vmem:[#allocation6 + $0x68] sm:$0xff]
        %v6435 = vld [vmem:[#allocation6 + $0x70] sm:$0xff]
        %v6436 = vld [vmem:[#allocation6 + $0x78] sm:$0xff]
        %s6437 = scalar_lea.vmem %s7, 2
        %v6438 = vld [vmem:[%s6437] sm:$0x3]
        %v6440 = vsel %vm6376, %v6438, 0
        %6442 = vmatprep.subr.bf16.mxu0 0
        %6443 = vmatpush1.bf16.msra.mxu0 %v6374
        %6444 = vmatprep.subr.bf16.mxu0 0
        %6445 = vmatpush1.bf16.msra.mxu0 0
        %6446 = vmatprep.subr.bf16.mxu0 0
        %6447 = vmatpush1.bf16.msra.mxu0 0
        %6448 = vmatprep.subr.bf16.mxu0 0
        %6449 = vmatpush1.bf16.msra.mxu0 0
        %6450 = vmatprep.subr.bf16.mxu0 0
        %6451 = vmatpush1.bf16.msra.mxu0 0
        %6452 = vmatprep.subr.bf16.mxu0 0
        %6453 = vmatpush1.bf16.msra.mxu0 0
        %6454 = vmatprep.subr.bf16.mxu0 0
        %6455 = vmatpush1.bf16.msra.mxu0 0
        %6456 = vmatprep.subr.bf16.mxu0 0
        %6457 = vmatpush1.bf16.msra.mxu0 0
        %6458 = vmatprep.subr.bf16.mxu0 0
        %6459 = vmatpush1.bf16.msra.mxu0 0
        %6460 = vmatprep.subr.bf16.mxu0 0
        %6461 = vmatpush1.bf16.msra.mxu0 0
        %6462 = vmatprep.subr.bf16.mxu0 0
        %6463 = vmatpush1.bf16.msra.mxu0 0
        %6464 = vmatprep.subr.bf16.mxu0 0
        %6465 = vmatpush1.bf16.msra.mxu0 0
        %6466 = vmatprep.subr.bf16.mxu0 0
        %6467 = vmatpush1.bf16.msra.mxu0 0
        %6468 = vmatprep.subr.bf16.mxu0 0
        %6469 = vmatpush1.bf16.msra.mxu0 0
        %6470 = vmatprep.subr.bf16.mxu0 0
        %6471 = vmatpush1.bf16.msra.mxu0 0
        %6472 = vmatprep.subr.bf16.mxu0 0
        %6473 = vmatpush1.bf16.msra.mxu0 0
        %6474 = vmatprep.mubr.bf16.mxu0 0
        %6475 = vmatmul.mubr.bf16.gmra.mrb[0].mxu0 %v6440
        %v6476 = vpop.f32.mrb[0].mxu0
        %v6477 = vadd.f32 0.0, %v6476
        %v6478 = vpop.f32.mrb[0].mxu0
        %v6479 = vpop.f32.mrb[0].mxu0
        %v6480 = vpop.f32.mrb[0].mxu0
        %6481 = vdwg.mxu0
        %v6482 = vpack.c.bf16 %v6477, %v6477
        %s6483 = scalar_lea.vmem [#allocation6], 128
        %v6484 = vld [vmem:[%s6483] sm:$0xff]
        %v6485 = vld [vmem:[%s6483 + $0x8] sm:$0xff]
        %v6486 = vld [vmem:[%s6483 + $0x10] sm:$0xff]
        %v6487 = vld [vmem:[%s6483 + $0x18] sm:$0xff]
        %v6488 = vld [vmem:[%s6483 + $0x20] sm:$0xff]
        %v6489 = vld [vmem:[%s6483 + $0x28] sm:$0xff]
        %v6490 = vld [vmem:[%s6483 + $0x30] sm:$0xff]
        %v6491 = vld [vmem:[%s6483 + $0x38] sm:$0xff]
        %v6492 = vld [vmem:[%s6483 + $0x40] sm:$0xff]
        %v6493 = vld [vmem:[%s6483 + $0x48] sm:$0xff]
        %v6494 = vld [vmem:[%s6483 + $0x50] sm:$0xff]
        %v6495 = vld [vmem:[%s6483 + $0x58] sm:$0xff]
        %v6496 = vld [vmem:[%s6483 + $0x60] sm:$0xff]
        %v6497 = vld [vmem:[%s6483 + $0x68] sm:$0xff]
        %v6498 = vld [vmem:[%s6483 + $0x70] sm:$0xff]
        %v6499 = vld [vmem:[%s6483 + $0x78] sm:$0xff]
        %v6516 = vunpack.c.l.b16 %v6484
        %v6517 = vunpack.c.h.b16 %v6484
        %v6518 = vunpack.c.l.b16 %v6485
        %v6519 = vunpack.c.h.b16 %v6485
        %v6520 = vunpack.c.l.b16 %v6486
        %v6521 = vunpack.c.h.b16 %v6486
        %v6522 = vunpack.c.l.b16 %v6487
        %v6523 = vunpack.c.h.b16 %v6487
        %v6524 = vunpack.c.l.b16 %v6488
        %v6525 = vunpack.c.h.b16 %v6488
        %v6526 = vunpack.c.l.b16 %v6489
        %v6527 = vunpack.c.h.b16 %v6489
        %v6528 = vunpack.c.l.b16 %v6490
        %v6529 = vunpack.c.h.b16 %v6490
        %v6530 = vunpack.c.l.b16 %v6491
        %v6531 = vunpack.c.h.b16 %v6491
        %v6532 = vunpack.c.l.b16 %v6492
        %v6533 = vunpack.c.h.b16 %v6492
        %v6534 = vunpack.c.l.b16 %v6493
        %v6535 = vunpack.c.h.b16 %v6493
        %v6536 = vunpack.c.l.b16 %v6494
        %v6537 = vunpack.c.h.b16 %v6494
        %v6538 = vunpack.c.l.b16 %v6495
        %v6539 = vunpack.c.h.b16 %v6495
        %v6540 = vunpack.c.l.b16 %v6496
        %v6541 = vunpack.c.h.b16 %v6496
        %v6542 = vunpack.c.l.b16 %v6497
        %v6543 = vunpack.c.h.b16 %v6497
        %v6544 = vunpack.c.l.b16 %v6498
        %v6545 = vunpack.c.h.b16 %v6498
        %v6546 = vunpack.c.l.b16 %v6499
        %v6547 = vunpack.c.h.b16 %v6499
        %v6548 = vpack.c.b16 %v6518, %v6516
        %v6549 = vpack.c.b16 %v6519, %v6517
        %v6550 = vpack.c.b16 %v6522, %v6520
        %v6551 = vpack.c.b16 %v6523, %v6521
        %v6552 = vpack.c.b16 %v6526, %v6524
        %v6553 = vpack.c.b16 %v6527, %v6525
        %v6554 = vpack.c.b16 %v6530, %v6528
        %v6555 = vpack.c.b16 %v6531, %v6529
        %v6556 = vpack.c.b16 %v6534, %v6532
        %v6557 = vpack.c.b16 %v6535, %v6533
        %v6558 = vpack.c.b16 %v6538, %v6536
        %v6559 = vpack.c.b16 %v6539, %v6537
        %v6560 = vpack.c.b16 %v6542, %v6540
        %v6561 = vpack.c.b16 %v6543, %v6541
        %v6562 = vpack.c.b16 %v6546, %v6544
        %v6563 = vpack.c.b16 %v6547, %v6545
        %6580 = vmatprep.subr.bf16.mxu0 %v6549
        %6581 = vmatpush1.bf16.msra.mxu0 %v6548
        %6582 = vmatprep.subr.bf16.mxu0 %v6551
        %6583 = vmatpush1.bf16.msra.mxu0 %v6550
        %6584 = vmatprep.subr.bf16.mxu0 %v6553
        %6585 = vmatpush1.bf16.msra.mxu0 %v6552
        %6586 = vmatprep.subr.bf16.mxu0 %v6555
        %6587 = vmatpush1.bf16.msra.mxu0 %v6554
        %6588 = vmatprep.subr.bf16.mxu0 %v6557
        %6589 = vmatpush1.bf16.msra.mxu0 %v6556
        %6590 = vmatprep.subr.bf16.mxu0 %v6559
        %6591 = vmatpush1.bf16.msra.mxu0 %v6558
        %6592 = vmatprep.subr.bf16.mxu0 %v6561
        %6593 = vmatpush1.bf16.msra.mxu0 %v6560
        %6594 = vmatprep.subr.bf16.mxu0 %v6563
        %6595 = vmatpush1.bf16.msra.mxu0 %v6562
        %6596 = vmatprep.subr.bf16.mxu0 0
        %6597 = vmatpush1.bf16.msra.mxu0 0
        %6598 = vmatprep.subr.bf16.mxu0 0
        %6599 = vmatpush1.bf16.msra.mxu0 0
        %6600 = vmatprep.subr.bf16.mxu0 0
        %6601 = vmatpush1.bf16.msra.mxu0 0
        %6602 = vmatprep.subr.bf16.mxu0 0
        %6603 = vmatpush1.bf16.msra.mxu0 0
        %6604 = vmatprep.subr.bf16.mxu0 0
        %6605 = vmatpush1.bf16.msra.mxu0 0
        %6606 = vmatprep.subr.bf16.mxu0 0
        %6607 = vmatpush1.bf16.msra.mxu0 0
        %6608 = vmatprep.subr.bf16.mxu0 0
        %6609 = vmatpush1.bf16.msra.mxu0 0
        %6610 = vmatprep.subr.bf16.mxu0 0
        %6611 = vmatpush1.bf16.msra.mxu0 0
        %6612 = vmatprep.mubr.bf16.mxu0 0
        %6613 = vmatmul.mubr.bf16.gmra.mrb[0].mxu0 %v6482
        %v6614 = vpop.f32.mrb[0].mxu0
        %v6615 = vadd.f32 0.0, %v6614
        %v6616 = vpop.f32.mrb[0].mxu0
        %v6617 = vadd.f32 0.0, %v6616
        %v6618 = vpop.f32.mrb[0].mxu0
        %v6619 = vpop.f32.mrb[0].mxu0
        %6620 = vdwg.mxu0
        %v6637 = vunpack.c.l.b16 %v6421
        %v6638 = vunpack.c.h.b16 %v6421
        %v6639 = vunpack.c.l.b16 %v6422
        %v6640 = vunpack.c.h.b16 %v6422
        %v6641 = vunpack.c.l.b16 %v6423
        %v6642 = vunpack.c.h.b16 %v6423
        %v6643 = vunpack.c.l.b16 %v6424
        %v6644 = vunpack.c.h.b16 %v6424
        %v6645 = vunpack.c.l.b16 %v6425
        %v6646 = vunpack.c.h.b16 %v6425
        %v6647 = vunpack.c.l.b16 %v6426
        %v6648 = vunpack.c.h.b16 %v6426
        %v6649 = vunpack.c.l.b16 %v6427
        %v6650 = vunpack.c.h.b16 %v6427
        %v6651 = vunpack.c.l.b16 %v6428
        %v6652 = vunpack.c.h.b16 %v6428
        %v6653 = vunpack.c.l.b16 %v6429
        %v6654 = vunpack.c.h.b16 %v6429
        %v6655 = vunpack.c.l.b16 %v6430
        %v6656 = vunpack.c.h.b16 %v6430
        %v6657 = vunpack.c.l.b16 %v6431
        %v6658 = vunpack.c.h.b16 %v6431
        %v6659 = vunpack.c.l.b16 %v6432
        %v6660 = vunpack.c.h.b16 %v6432
        %v6661 = vunpack.c.l.b16 %v6433
        %v6662 = vunpack.c.h.b16 %v6433
        %v6663 = vunpack.c.l.b16 %v6434
        %v6664 = vunpack.c.h.b16 %v6434
        %v6665 = vunpack.c.l.b16 %v6435
        %v6666 = vunpack.c.h.b16 %v6435
        %v6667 = vunpack.c.l.b16 %v6436
        %v6668 = vunpack.c.h.b16 %v6436
        %v6669 = vpack.c.b16 %v6639, %v6637
        %v6670 = vpack.c.b16 %v6640, %v6638
        %v6671 = vpack.c.b16 %v6643, %v6641
        %v6672 = vpack.c.b16 %v6644, %v6642
        %v6673 = vpack.c.b16 %v6647, %v6645
        %v6674 = vpack.c.b16 %v6648, %v6646
        %v6675 = vpack.c.b16 %v6651, %v6649
        %v6676 = vpack.c.b16 %v6652, %v6650
        %v6677 = vpack.c.b16 %v6655, %v6653
        %v6678 = vpack.c.b16 %v6656, %v6654
        %v6679 = vpack.c.b16 %v6659, %v6657
        %v6680 = vpack.c.b16 %v6660, %v6658
        %v6681 = vpack.c.b16 %v6663, %v6661
        %v6682 = vpack.c.b16 %v6664, %v6662
        %v6683 = vpack.c.b16 %v6667, %v6665
        %v6684 = vpack.c.b16 %v6668, %v6666
        %6701 = vmatprep.subr.bf16.mxu0 %v6670
        %6702 = vmatpush1.bf16.msra.mxu0 %v6669
        %6703 = vmatprep.subr.bf16.mxu0 %v6672
        %6704 = vmatpush1.bf16.msra.mxu0 %v6671
        %6705 = vmatprep.subr.bf16.mxu0 %v6674
        %6706 = vmatpush1.bf16.msra.mxu0 %v6673
        %6707 = vmatprep.subr.bf16.mxu0 %v6676
        %6708 = vmatpush1.bf16.msra.mxu0 %v6675
        %6709 = vmatprep.subr.bf16.mxu0 %v6678
        %6710 = vmatpush1.bf16.msra.mxu0 %v6677
        %6711 = vmatprep.subr.bf16.mxu0 %v6680
        %6712 = vmatpush1.bf16.msra.mxu0 %v6679
        %6713 = vmatprep.subr.bf16.mxu0 %v6682
        %6714 = vmatpush1.bf16.msra.mxu0 %v6681
        %6715 = vmatprep.subr.bf16.mxu0 %v6684
        %6716 = vmatpush1.bf16.msra.mxu0 %v6683
        %6717 = vmatprep.subr.bf16.mxu0 0
        %6718 = vmatpush1.bf16.msra.mxu0 0
        %6719 = vmatprep.subr.bf16.mxu0 0
        %6720 = vmatpush1.bf16.msra.mxu0 0
        %6721 = vmatprep.subr.bf16.mxu0 0
        %6722 = vmatpush1.bf16.msra.mxu0 0
        %6723 = vmatprep.subr.bf16.mxu0 0
        %6724 = vmatpush1.bf16.msra.mxu0 0
        %6725 = vmatprep.subr.bf16.mxu0 0
        %6726 = vmatpush1.bf16.msra.mxu0 0
        %6727 = vmatprep.subr.bf16.mxu0 0
        %6728 = vmatpush1.bf16.msra.mxu0 0
        %6729 = vmatprep.subr.bf16.mxu0 0
        %6730 = vmatpush1.bf16.msra.mxu0 0
        %6731 = vmatprep.subr.bf16.mxu0 0
        %6732 = vmatpush1.bf16.msra.mxu0 0
        %6733 = vmatprep.mubr.bf16.mxu0 0
        %6734 = vmatmul.mubr.bf16.gmra.mrb[0].mxu0 %v6420
        %v6735 = vpop.f32.mrb[0].mxu0
        %v6736 = vadd.f32 %v6615, %v6735
        %v6737 = vpop.f32.mrb[0].mxu0
        %v6738 = vadd.f32 %v6617, %v6737
        %v6739 = vpop.f32.mrb[0].mxu0
        %v6740 = vpop.f32.mrb[0].mxu0
        %6741 = vdwg.mxu0
        %s6742 = scalar_lea.vmem %s7, 4
        %v6743 = vld [vmem:[%s6742] sm:$0x3]
        %v6745 = vsel %vm6376, %v6743, 0
        %6747 = vmatprep.subr.bf16.mxu0 0
        %6748 = vmatpush1.bf16.msra.mxu0 %v6374
        %6749 = vmatprep.subr.bf16.mxu0 0
        %6750 = vmatpush1.bf16.msra.mxu0 0
        %6751 = vmatprep.subr.bf16.mxu0 0
        %6752 = vmatpush1.bf16.msra.mxu0 0
        %6753 = vmatprep.subr.bf16.mxu0 0
        %6754 = vmatpush1.bf16.msra.mxu0 0
        %6755 = vmatprep.subr.bf16.mxu0 0
        %6756 = vmatpush1.bf16.msra.mxu0 0
        %6757 = vmatprep.subr.bf16.mxu0 0
        %6758 = vmatpush1.bf16.msra.mxu0 0
        %6759 = vmatprep.subr.bf16.mxu0 0
        %6760 = vmatpush1.bf16.msra.mxu0 0
        %6761 = vmatprep.subr.bf16.mxu0 0
        %6762 = vmatpush1.bf16.msra.mxu0 0
        %6763 = vmatprep.subr.bf16.mxu0 0
        %6764 = vmatpush1.bf16.msra.mxu0 0
        %6765 = vmatprep.subr.bf16.mxu0 0
        %6766 = vmatpush1.bf16.msra.mxu0 0
        %6767 = vmatprep.subr.bf16.mxu0 0
        %6768 = vmatpush1.bf16.msra.mxu0 0
        %6769 = vmatprep.subr.bf16.mxu0 0
        %6770 = vmatpush1.bf16.msra.mxu0 0
        %6771 = vmatprep.subr.bf16.mxu0 0
        %6772 = vmatpush1.bf16.msra.mxu0 0
        %6773 = vmatprep.subr.bf16.mxu0 0
        %6774 = vmatpush1.bf16.msra.mxu0 0
        %6775 = vmatprep.subr.bf16.mxu0 0
        %6776 = vmatpush1.bf16.msra.mxu0 0
        %6777 = vmatprep.subr.bf16.mxu0 0
        %6778 = vmatpush1.bf16.msra.mxu0 0
        %6779 = vmatprep.mubr.bf16.mxu0 0
        %6780 = vmatmul.mubr.bf16.gmra.mrb[0].mxu0 %v6745
        %v6781 = vpop.f32.mrb[0].mxu0
        %v6782 = vadd.f32 0.0, %v6781
        %v6783 = vpop.f32.mrb[0].mxu0
        %v6784 = vpop.f32.mrb[0].mxu0
        %v6785 = vpop.f32.mrb[0].mxu0
        %6786 = vdwg.mxu0
        %v6787 = vpack.c.bf16 %v6782, %v6782
        %s6788 = scalar_lea.vmem [#allocation6], 256
        %v6789 = vld [vmem:[%s6788] sm:$0xff]
        %v6790 = vld [vmem:[%s6788 + $0x8] sm:$0xff]
        %v6791 = vld [vmem:[%s6788 + $0x10] sm:$0xff]
        %v6792 = vld [vmem:[%s6788 + $0x18] sm:$0xff]
        %v6793 = vld [vmem:[%s6788 + $0x20] sm:$0xff]
        %v6794 = vld [vmem:[%s6788 + $0x28] sm:$0xff]
        %v6795 = vld [vmem:[%s6788 + $0x30] sm:$0xff]
        %v6796 = vld [vmem:[%s6788 + $0x38] sm:$0xff]
        %v6797 = vld [vmem:[%s6788 + $0x40] sm:$0xff]
        %v6798 = vld [vmem:[%s6788 + $0x48] sm:$0xff]
        %v6799 = vld [vmem:[%s6788 + $0x50] sm:$0xff]
        %v6800 = vld [vmem:[%s6788 + $0x58] sm:$0xff]
        %v6801 = vld [vmem:[%s6788 + $0x60] sm:$0xff]
        %v6802 = vld [vmem:[%s6788 + $0x68] sm:$0xff]
        %v6803 = vld [vmem:[%s6788 + $0x70] sm:$0xff]
        %v6804 = vld [vmem:[%s6788 + $0x78] sm:$0xff]
        %v6821 = vunpack.c.l.b16 %v6789
        %v6822 = vunpack.c.h.b16 %v6789
        %v6823 = vunpack.c.l.b16 %v6790
        %v6824 = vunpack.c.h.b16 %v6790
        %v6825 = vunpack.c.l.b16 %v6791
        %v6826 = vunpack.c.h.b16 %v6791
        %v6827 = vunpack.c.l.b16 %v6792
        %v6828 = vunpack.c.h.b16 %v6792
        %v6829 = vunpack.c.l.b16 %v6793
        %v6830 = vunpack.c.h.b16 %v6793
        %v6831 = vunpack.c.l.b16 %v6794
        %v6832 = vunpack.c.h.b16 %v6794
        %v6833 = vunpack.c.l.b16 %v6795
        %v6834 = vunpack.c.h.b16 %v6795
        %v6835 = vunpack.c.l.b16 %v6796
        %v6836 = vunpack.c.h.b16 %v6796
        %v6837 = vunpack.c.l.b16 %v6797
        %v6838 = vunpack.c.h.b16 %v6797
        %v6839 = vunpack.c.l.b16 %v6798
        %v6840 = vunpack.c.h.b16 %v6798
        %v6841 = vunpack.c.l.b16 %v6799
        %v6842 = vunpack.c.h.b16 %v6799
        %v6843 = vunpack.c.l.b16 %v6800
        %v6844 = vunpack.c.h.b16 %v6800
        %v6845 = vunpack.c.l.b16 %v6801
        %v6846 = vunpack.c.h.b16 %v6801
        %v6847 = vunpack.c.l.b16 %v6802
        %v6848 = vunpack.c.h.b16 %v6802
        %v6849 = vunpack.c.l.b16 %v6803
        %v6850 = vunpack.c.h.b16 %v6803
        %v6851 = vunpack.c.l.b16 %v6804
        %v6852 = vunpack.c.h.b16 %v6804
        %v6853 = vpack.c.b16 %v6823, %v6821
        %v6854 = vpack.c.b16 %v6824, %v6822
        %v6855 = vpack.c.b16 %v6827, %v6825
        %v6856 = vpack.c.b16 %v6828, %v6826
        %v6857 = vpack.c.b16 %v6831, %v6829
        %v6858 = vpack.c.b16 %v6832, %v6830
        %v6859 = vpack.c.b16 %v6835, %v6833
        %v6860 = vpack.c.b16 %v6836, %v6834
        %v6861 = vpack.c.b16 %v6839, %v6837
        %v6862 = vpack.c.b16 %v6840, %v6838
        %v6863 = vpack.c.b16 %v6843, %v6841
        %v6864 = vpack.c.b16 %v6844, %v6842
        %v6865 = vpack.c.b16 %v6847, %v6845
        %v6866 = vpack.c.b16 %v6848, %v6846
        %v6867 = vpack.c.b16 %v6851, %v6849
        %v6868 = vpack.c.b16 %v6852, %v6850
        %6885 = vmatprep.subr.bf16.mxu0 %v6854
        %6886 = vmatpush1.bf16.msra.mxu0 %v6853
        %6887 = vmatprep.subr.bf16.mxu0 %v6856
        %6888 = vmatpush1.bf16.msra.mxu0 %v6855
        %6889 = vmatprep.subr.bf16.mxu0 %v6858
        %6890 = vmatpush1.bf16.msra.mxu0 %v6857
        %6891 = vmatprep.subr.bf16.mxu0 %v6860
        %6892 = vmatpush1.bf16.msra.mxu0 %v6859
        %6893 = vmatprep.subr.bf16.mxu0 %v6862
        %6894 = vmatpush1.bf16.msra.mxu0 %v6861
        %6895 = vmatprep.subr.bf16.mxu0 %v6864
        %6896 = vmatpush1.bf16.msra.mxu0 %v6863
        %6897 = vmatprep.subr.bf16.mxu0 %v6866
        %6898 = vmatpush1.bf16.msra.mxu0 %v6865
        %6899 = vmatprep.subr.bf16.mxu0 %v6868
        %6900 = vmatpush1.bf16.msra.mxu0 %v6867
        %6901 = vmatprep.subr.bf16.mxu0 0
        %6902 = vmatpush1.bf16.msra.mxu0 0
        %6903 = vmatprep.subr.bf16.mxu0 0
        %6904 = vmatpush1.bf16.msra.mxu0 0
        %6905 = vmatprep.subr.bf16.mxu0 0
        %6906 = vmatpush1.bf16.msra.mxu0 0
        %6907 = vmatprep.subr.bf16.mxu0 0
        %6908 = vmatpush1.bf16.msra.mxu0 0
        %6909 = vmatprep.subr.bf16.mxu0 0
        %6910 = vmatpush1.bf16.msra.mxu0 0
        %6911 = vmatprep.subr.bf16.mxu0 0
        %6912 = vmatpush1.bf16.msra.mxu0 0
        %6913 = vmatprep.subr.bf16.mxu0 0
        %6914 = vmatpush1.bf16.msra.mxu0 0
        %6915 = vmatprep.subr.bf16.mxu0 0
        %6916 = vmatpush1.bf16.msra.mxu0 0
        %6917 = vmatprep.mubr.bf16.mxu0 0
        %6918 = vmatmul.mubr.bf16.gmra.mrb[0].mxu0 %v6787
        %v6919 = vpop.f32.mrb[0].mxu0
        %v6920 = vadd.f32 0.0, %v6919
        %v6921 = vpop.f32.mrb[0].mxu0
        %v6922 = vadd.f32 0.0, %v6921
        %v6923 = vpop.f32.mrb[0].mxu0
        %v6924 = vpop.f32.mrb[0].mxu0
        %6925 = vdwg.mxu0
        %v6926 = vadd.f32 %v6736, %v6920
        %v6927 = vadd.f32 %v6738, %v6922
        %s6928 = scalar_lea.vmem %s7, 6
        %v6929 = vld [vmem:[%s6928] sm:$0x3]
        %v6931 = vsel %vm6376, %v6929, 0
        %6933 = vmatprep.subr.bf16.mxu0 0
        %6934 = vmatpush1.bf16.msra.mxu0 %v6374
        %6935 = vmatprep.subr.bf16.mxu0 0
        %6936 = vmatpush1.bf16.msra.mxu0 0
        %6937 = vmatprep.subr.bf16.mxu0 0
        %6938 = vmatpush1.bf16.msra.mxu0 0
        %6939 = vmatprep.subr.bf16.mxu0 0
        %6940 = vmatpush1.bf16.msra.mxu0 0
        %6941 = vmatprep.subr.bf16.mxu0 0
        %6942 = vmatpush1.bf16.msra.mxu0 0
        %6943 = vmatprep.subr.bf16.mxu0 0
        %6944 = vmatpush1.bf16.msra.mxu0 0
        %6945 = vmatprep.subr.bf16.mxu0 0
        %6946 = vmatpush1.bf16.msra.mxu0 0
        %6947 = vmatprep.subr.bf16.mxu0 0
        %6948 = vmatpush1.bf16.msra.mxu0 0
        %6949 = vmatprep.subr.bf16.mxu0 0
        %6950 = vmatpush1.bf16.msra.mxu0 0
        %6951 = vmatprep.subr.bf16.mxu0 0
        %6952 = vmatpush1.bf16.msra.mxu0 0
        %6953 = vmatprep.subr.bf16.mxu0 0
        %6954 = vmatpush1.bf16.msra.mxu0 0
        %6955 = vmatprep.subr.bf16.mxu0 0
        %6956 = vmatpush1.bf16.msra.mxu0 0
        %6957 = vmatprep.subr.bf16.mxu0 0
        %6958 = vmatpush1.bf16.msra.mxu0 0
        %6959 = vmatprep.subr.bf16.mxu0 0
        %6960 = vmatpush1.bf16.msra.mxu0 0
        %6961 = vmatprep.subr.bf16.mxu0 0
        %6962 = vmatpush1.bf16.msra.mxu0 0
        %6963 = vmatprep.subr.bf16.mxu0 0
        %6964 = vmatpush1.bf16.msra.mxu0 0
        %6965 = vmatprep.mubr.bf16.mxu0 0
        %6966 = vmatmul.mubr.bf16.gmra.mrb[0].mxu0 %v6931
        %v6967 = vpop.f32.mrb[0].mxu0
        %v6968 = vadd.f32 0.0, %v6967
        %v6969 = vpop.f32.mrb[0].mxu0
        %v6970 = vpop.f32.mrb[0].mxu0
        %v6971 = vpop.f32.mrb[0].mxu0
        %6972 = vdwg.mxu0
        %v6973 = vpack.c.bf16 %v6968, %v6968
        %s6974 = scalar_lea.vmem [#allocation6], 384
        %v6975 = vld [vmem:[%s6974] sm:$0xff]
        %v6976 = vld [vmem:[%s6974 + $0x8] sm:$0xff]
        %v6977 = vld [vmem:[%s6974 + $0x10] sm:$0xff]
        %v6978 = vld [vmem:[%s6974 + $0x18] sm:$0xff]
        %v6979 = vld [vmem:[%s6974 + $0x20] sm:$0xff]
        %v6980 = vld [vmem:[%s6974 + $0x28] sm:$0xff]
        %v6981 = vld [vmem:[%s6974 + $0x30] sm:$0xff]
        %v6982 = vld [vmem:[%s6974 + $0x38] sm:$0xff]
        %v6983 = vld [vmem:[%s6974 + $0x40] sm:$0xff]
        %v6984 = vld [vmem:[%s6974 + $0x48] sm:$0xff]
        %v6985 = vld [vmem:[%s6974 + $0x50] sm:$0xff]
        %v6986 = vld [vmem:[%s6974 + $0x58] sm:$0xff]
        %v6987 = vld [vmem:[%s6974 + $0x60] sm:$0xff]
        %v6988 = vld [vmem:[%s6974 + $0x68] sm:$0xff]
        %v6989 = vld [vmem:[%s6974 + $0x70] sm:$0xff]
        %v6990 = vld [vmem:[%s6974 + $0x78] sm:$0xff]
        %v7007 = vunpack.c.l.b16 %v6975
        %v7008 = vunpack.c.h.b16 %v6975
        %v7009 = vunpack.c.l.b16 %v6976
        %v7010 = vunpack.c.h.b16 %v6976
        %v7011 = vunpack.c.l.b16 %v6977
        %v7012 = vunpack.c.h.b16 %v6977
        %v7013 = vunpack.c.l.b16 %v6978
        %v7014 = vunpack.c.h.b16 %v6978
        %v7015 = vunpack.c.l.b16 %v6979
        %v7016 = vunpack.c.h.b16 %v6979
        %v7017 = vunpack.c.l.b16 %v6980
        %v7018 = vunpack.c.h.b16 %v6980
        %v7019 = vunpack.c.l.b16 %v6981
        %v7020 = vunpack.c.h.b16 %v6981
        %v7021 = vunpack.c.l.b16 %v6982
        %v7022 = vunpack.c.h.b16 %v6982
        %v7023 = vunpack.c.l.b16 %v6983
        %v7024 = vunpack.c.h.b16 %v6983
        %v7025 = vunpack.c.l.b16 %v6984
        %v7026 = vunpack.c.h.b16 %v6984
        %v7027 = vunpack.c.l.b16 %v6985
        %v7028 = vunpack.c.h.b16 %v6985
        %v7029 = vunpack.c.l.b16 %v6986
        %v7030 = vunpack.c.h.b16 %v6986
        %v7031 = vunpack.c.l.b16 %v6987
        %v7032 = vunpack.c.h.b16 %v6987
        %v7033 = vunpack.c.l.b16 %v6988
        %v7034 = vunpack.c.h.b16 %v6988
        %v7035 = vunpack.c.l.b16 %v6989
        %v7036 = vunpack.c.h.b16 %v6989
        %v7037 = vunpack.c.l.b16 %v6990
        %v7038 = vunpack.c.h.b16 %v6990
        %v7039 = vpack.c.b16 %v7009, %v7007
        %v7040 = vpack.c.b16 %v7010, %v7008
        %v7041 = vpack.c.b16 %v7013, %v7011
        %v7042 = vpack.c.b16 %v7014, %v7012
        %v7043 = vpack.c.b16 %v7017, %v7015
        %v7044 = vpack.c.b16 %v7018, %v7016
        %v7045 = vpack.c.b16 %v7021, %v7019
        %v7046 = vpack.c.b16 %v7022, %v7020
        %v7047 = vpack.c.b16 %v7025, %v7023
        %v7048 = vpack.c.b16 %v7026, %v7024
        %v7049 = vpack.c.b16 %v7029, %v7027
        %v7050 = vpack.c.b16 %v7030, %v7028
        %v7051 = vpack.c.b16 %v7033, %v7031
        %v7052 = vpack.c.b16 %v7034, %v7032
        %v7053 = vpack.c.b16 %v7037, %v7035
        %v7054 = vpack.c.b16 %v7038, %v7036
        %7071 = vmatprep.subr.bf16.mxu0 %v7040
        %7072 = vmatpush1.bf16.msra.mxu0 %v7039
        %7073 = vmatprep.subr.bf16.mxu0 %v7042
        %7074 = vmatpush1.bf16.msra.mxu0 %v7041
        %7075 = vmatprep.subr.bf16.mxu0 %v7044
        %7076 = vmatpush1.bf16.msra.mxu0 %v7043
        %7077 = vmatprep.subr.bf16.mxu0 %v7046
        %7078 = vmatpush1.bf16.msra.mxu0 %v7045
        %7079 = vmatprep.subr.bf16.mxu0 %v7048
        %7080 = vmatpush1.bf16.msra.mxu0 %v7047
        %7081 = vmatprep.subr.bf16.mxu0 %v7050
        %7082 = vmatpush1.bf16.msra.mxu0 %v7049
        %7083 = vmatprep.subr.bf16.mxu0 %v7052
        %7084 = vmatpush1.bf16.msra.mxu0 %v7051
        %7085 = vmatprep.subr.bf16.mxu0 %v7054
        %7086 = vmatpush1.bf16.msra.mxu0 %v7053
        %7087 = vmatprep.subr.bf16.mxu0 0
        %7088 = vmatpush1.bf16.msra.mxu0 0
        %7089 = vmatprep.subr.bf16.mxu0 0
        %7090 = vmatpush1.bf16.msra.mxu0 0
        %7091 = vmatprep.subr.bf16.mxu0 0
        %7092 = vmatpush1.bf16.msra.mxu0 0
        %7093 = vmatprep.subr.bf16.mxu0 0
        %7094 = vmatpush1.bf16.msra.mxu0 0
        %7095 = vmatprep.subr.bf16.mxu0 0
        %7096 = vmatpush1.bf16.msra.mxu0 0
        %7097 = vmatprep.subr.bf16.mxu0 0
        %7098 = vmatpush1.bf16.msra.mxu0 0
        %7099 = vmatprep.subr.bf16.mxu0 0
        %7100 = vmatpush1.bf16.msra.mxu0 0
        %7101 = vmatprep.subr.bf16.mxu0 0
        %7102 = vmatpush1.bf16.msra.mxu0 0
        %7103 = vmatprep.mubr.bf16.mxu0 0
        %7104 = vmatmul.mubr.bf16.gmra.mrb[0].mxu0 %v6973
        %v7105 = vpop.f32.mrb[0].mxu0
        %v7106 = vadd.f32 0.0, %v7105
        %v7107 = vpop.f32.mrb[0].mxu0
        %v7108 = vadd.f32 0.0, %v7107
        %v7109 = vpop.f32.mrb[0].mxu0
        %v7110 = vpop.f32.mrb[0].mxu0
        %7111 = vdwg.mxu0
        %v7112 = vadd.f32 %v6926, %v7106
        %v7113 = vadd.f32 %v6927, %v7108
        %s7114 = scalar_lea.vmem %s7, 8
        %v7115 = vld [vmem:[%s7114] sm:$0x3]
        %v7117 = vsel %vm6376, %v7115, 0
        %7119 = vmatprep.subr.bf16.mxu0 0
        %7120 = vmatpush1.bf16.msra.mxu0 %v6374
        %7121 = vmatprep.subr.bf16.mxu0 0
        %7122 = vmatpush1.bf16.msra.mxu0 0
        %7123 = vmatprep.subr.bf16.mxu0 0
        %7124 = vmatpush1.bf16.msra.mxu0 0
        %7125 = vmatprep.subr.bf16.mxu0 0
        %7126 = vmatpush1.bf16.msra.mxu0 0
        %7127 = vmatprep.subr.bf16.mxu0 0
        %7128 = vmatpush1.bf16.msra.mxu0 0
        %7129 = vmatprep.subr.bf16.mxu0 0
        %7130 = vmatpush1.bf16.msra.mxu0 0
        %7131 = vmatprep.subr.bf16.mxu0 0
        %7132 = vmatpush1.bf16.msra.mxu0 0
        %7133 = vmatprep.subr.bf16.mxu0 0
        %7134 = vmatpush1.bf16.msra.mxu0 0
        %7135 = vmatprep.subr.bf16.mxu0 0
        %7136 = vmatpush1.bf16.msra.mxu0 0
        %7137 = vmatprep.subr.bf16.mxu0 0
        %7138 = vmatpush1.bf16.msra.mxu0 0
        %7139 = vmatprep.subr.bf16.mxu0 0
        %7140 = vmatpush1.bf16.msra.mxu0 0
        %7141 = vmatprep.subr.bf16.mxu0 0
        %7142 = vmatpush1.bf16.msra.mxu0 0
        %7143 = vmatprep.subr.bf16.mxu0 0
        %7144 = vmatpush1.bf16.msra.mxu0 0
        %7145 = vmatprep.subr.bf16.mxu0 0
        %7146 = vmatpush1.bf16.msra.mxu0 0
        %7147 = vmatprep.subr.bf16.mxu0 0
        %7148 = vmatpush1.bf16.msra.mxu0 0
        %7149 = vmatprep.subr.bf16.mxu0 0
        %7150 = vmatpush1.bf16.msra.mxu0 0
        %7151 = vmatprep.mubr.bf16.mxu0 0
        %7152 = vmatmul.mubr.bf16.gmra.mrb[0].mxu0 %v7117
        %v7153 = vpop.f32.mrb[0].mxu0
        %v7154 = vadd.f32 0.0, %v7153
        %v7155 = vpop.f32.mrb[0].mxu0
        %v7156 = vpop.f32.mrb[0].mxu0
        %v7157 = vpop.f32.mrb[0].mxu0
        %7158 = vdwg.mxu0
        %v7159 = vpack.c.bf16 %v7154, %v7154
        %s7160 = scalar_lea.vmem [#allocation6], 512
        %v7161 = vld [vmem:[%s7160] sm:$0xff]
        %v7162 = vld [vmem:[%s7160 + $0x8] sm:$0xff]
        %v7163 = vld [vmem:[%s7160 + $0x10] sm:$0xff]
        %v7164 = vld [vmem:[%s7160 + $0x18] sm:$0xff]
        %v7165 = vld [vmem:[%s7160 + $0x20] sm:$0xff]
        %v7166 = vld [vmem:[%s7160 + $0x28] sm:$0xff]
        %v7167 = vld [vmem:[%s7160 + $0x30] sm:$0xff]
        %v7168 = vld [vmem:[%s7160 + $0x38] sm:$0xff]
        %v7169 = vld [vmem:[%s7160 + $0x40] sm:$0xff]
        %v7170 = vld [vmem:[%s7160 + $0x48] sm:$0xff]
        %v7171 = vld [vmem:[%s7160 + $0x50] sm:$0xff]
        %v7172 = vld [vmem:[%s7160 + $0x58] sm:$0xff]
        %v7173 = vld [vmem:[%s7160 + $0x60] sm:$0xff]
        %v7174 = vld [vmem:[%s7160 + $0x68] sm:$0xff]
        %v7175 = vld [vmem:[%s7160 + $0x70] sm:$0xff]
        %v7176 = vld [vmem:[%s7160 + $0x78] sm:$0xff]
        %v7193 = vunpack.c.l.b16 %v7161
        %v7194 = vunpack.c.h.b16 %v7161
        %v7195 = vunpack.c.l.b16 %v7162
        %v7196 = vunpack.c.h.b16 %v7162
        %v7197 = vunpack.c.l.b16 %v7163
        %v7198 = vunpack.c.h.b16 %v7163
        %v7199 = vunpack.c.l.b16 %v7164
        %v7200 = vunpack.c.h.b16 %v7164
        %v7201 = vunpack.c.l.b16 %v7165
        %v7202 = vunpack.c.h.b16 %v7165
        %v7203 = vunpack.c.l.b16 %v7166
        %v7204 = vunpack.c.h.b16 %v7166
        %v7205 = vunpack.c.l.b16 %v7167
        %v7206 = vunpack.c.h.b16 %v7167
        %v7207 = vunpack.c.l.b16 %v7168
        %v7208 = vunpack.c.h.b16 %v7168
        %v7209 = vunpack.c.l.b16 %v7169
        %v7210 = vunpack.c.h.b16 %v7169
        %v7211 = vunpack.c.l.b16 %v7170
        %v7212 = vunpack.c.h.b16 %v7170
        %v7213 = vunpack.c.l.b16 %v7171
        %v7214 = vunpack.c.h.b16 %v7171
        %v7215 = vunpack.c.l.b16 %v7172
        %v7216 = vunpack.c.h.b16 %v7172
        %v7217 = vunpack.c.l.b16 %v7173
        %v7218 = vunpack.c.h.b16 %v7173
        %v7219 = vunpack.c.l.b16 %v7174
        %v7220 = vunpack.c.h.b16 %v7174
        %v7221 = vunpack.c.l.b16 %v7175
        %v7222 = vunpack.c.h.b16 %v7175
        %v7223 = vunpack.c.l.b16 %v7176
        %v7224 = vunpack.c.h.b16 %v7176
        %v7225 = vpack.c.b16 %v7195, %v7193
        %v7226 = vpack.c.b16 %v7196, %v7194
        %v7227 = vpack.c.b16 %v7199, %v7197
        %v7228 = vpack.c.b16 %v7200, %v7198
        %v7229 = vpack.c.b16 %v7203, %v7201
        %v7230 = vpack.c.b16 %v7204, %v7202
        %v7231 = vpack.c.b16 %v7207, %v7205
        %v7232 = vpack.c.b16 %v7208, %v7206
        %v7233 = vpack.c.b16 %v7211, %v7209
        %v7234 = vpack.c.b16 %v7212, %v7210
        %v7235 = vpack.c.b16 %v7215, %v7213
        %v7236 = vpack.c.b16 %v7216, %v7214
        %v7237 = vpack.c.b16 %v7219, %v7217
        %v7238 = vpack.c.b16 %v7220, %v7218
        %v7239 = vpack.c.b16 %v7223, %v7221
        %v7240 = vpack.c.b16 %v7224, %v7222
        %7257 = vmatprep.subr.bf16.mxu0 %v7226
        %7258 = vmatpush1.bf16.msra.mxu0 %v7225
        %7259 = vmatprep.subr.bf16.mxu0 %v7228
        %7260 = vmatpush1.bf16.msra.mxu0 %v7227
        %7261 = vmatprep.subr.bf16.mxu0 %v7230
        %7262 = vmatpush1.bf16.msra.mxu0 %v7229
        %7263 = vmatprep.subr.bf16.mxu0 %v7232
        %7264 = vmatpush1.bf16.msra.mxu0 %v7231
        %7265 = vmatprep.subr.bf16.mxu0 %v7234
        %7266 = vmatpush1.bf16.msra.mxu0 %v7233
        %7267 = vmatprep.subr.bf16.mxu0 %v7236
        %7268 = vmatpush1.bf16.msra.mxu0 %v7235
        %7269 = vmatprep.subr.bf16.mxu0 %v7238
        %7270 = vmatpush1.bf16.msra.mxu0 %v7237
        %7271 = vmatprep.subr.bf16.mxu0 %v7240
        %7272 = vmatpush1.bf16.msra.mxu0 %v7239
        %7273 = vmatprep.subr.bf16.mxu0 0
        %7274 = vmatpush1.bf16.msra.mxu0 0
        %7275 = vmatprep.subr.bf16.mxu0 0
        %7276 = vmatpush1.bf16.msra.mxu0 0
        %7277 = vmatprep.subr.bf16.mxu0 0
        %7278 = vmatpush1.bf16.msra.mxu0 0
        %7279 = vmatprep.subr.bf16.mxu0 0
        %7280 = vmatpush1.bf16.msra.mxu0 0
        %7281 = vmatprep.subr.bf16.mxu0 0
        %7282 = vmatpush1.bf16.msra.mxu0 0
        %7283 = vmatprep.subr.bf16.mxu0 0
        %7284 = vmatpush1.bf16.msra.mxu0 0
        %7285 = vmatprep.subr.bf16.mxu0 0
        %7286 = vmatpush1.bf16.msra.mxu0 0
        %7287 = vmatprep.subr.bf16.mxu0 0
        %7288 = vmatpush1.bf16.msra.mxu0 0
        %7289 = vmatprep.mubr.bf16.mxu0 0
        %7290 = vmatmul.mubr.bf16.gmra.mrb[0].mxu0 %v7159
        %v7291 = vpop.f32.mrb[0].mxu0
        %v7292 = vadd.f32 0.0, %v7291
        %v7293 = vpop.f32.mrb[0].mxu0
        %v7294 = vadd.f32 0.0, %v7293
        %v7295 = vpop.f32.mrb[0].mxu0
        %v7296 = vpop.f32.mrb[0].mxu0
        %7297 = vdwg.mxu0
        %v7298 = vadd.f32 %v7112, %v7292
        %v7299 = vadd.f32 %v7113, %v7294
        %s7300 = scalar_lea.vmem %s7, 10
        %v7301 = vld [vmem:[%s7300] sm:$0x3]
        %v7303 = vsel %vm6376, %v7301, 0
        %7305 = vmatprep.subr.bf16.mxu0 0
        %7306 = vmatpush1.bf16.msra.mxu0 %v6374
        %7307 = vmatprep.subr.bf16.mxu0 0
        %7308 = vmatpush1.bf16.msra.mxu0 0
        %7309 = vmatprep.subr.bf16.mxu0 0
        %7310 = vmatpush1.bf16.msra.mxu0 0
        %7311 = vmatprep.subr.bf16.mxu0 0
        %7312 = vmatpush1.bf16.msra.mxu0 0
        %7313 = vmatprep.subr.bf16.mxu0 0
        %7314 = vmatpush1.bf16.msra.mxu0 0
        %7315 = vmatprep.subr.bf16.mxu0 0
        %7316 = vmatpush1.bf16.msra.mxu0 0
        %7317 = vmatprep.subr.bf16.mxu0 0
        %7318 = vmatpush1.bf16.msra.mxu0 0
        %7319 = vmatprep.subr.bf16.mxu0 0
        %7320 = vmatpush1.bf16.msra.mxu0 0
        %7321 = vmatprep.subr.bf16.mxu0 0
        %7322 = vmatpush1.bf16.msra.mxu0 0
        %7323 = vmatprep.subr.bf16.mxu0 0
        %7324 = vmatpush1.bf16.msra.mxu0 0
        %7325 = vmatprep.subr.bf16.mxu0 0
        %7326 = vmatpush1.bf16.msra.mxu0 0
        %7327 = vmatprep.subr.bf16.mxu0 0
        %7328 = vmatpush1.bf16.msra.mxu0 0
        %7329 = vmatprep.subr.bf16.mxu0 0
        %7330 = vmatpush1.bf16.msra.mxu0 0
        %7331 = vmatprep.subr.bf16.mxu0 0
        %7332 = vmatpush1.bf16.msra.mxu0 0
        %7333 = vmatprep.subr.bf16.mxu0 0
        %7334 = vmatpush1.bf16.msra.mxu0 0
        %7335 = vmatprep.subr.bf16.mxu0 0
        %7336 = vmatpush1.bf16.msra.mxu0 0
        %7337 = vmatprep.mubr.bf16.mxu0 0
        %7338 = vmatmul.mubr.bf16.gmra.mrb[0].mxu0 %v7303
        %v7339 = vpop.f32.mrb[0].mxu0
        %v7340 = vadd.f32 0.0, %v7339
        %v7341 = vpop.f32.mrb[0].mxu0
        %v7342 = vpop.f32.mrb[0].mxu0
        %v7343 = vpop.f32.mrb[0].mxu0
        %7344 = vdwg.mxu0
        %v7345 = vpack.c.bf16 %v7340, %v7340
        %s7346 = scalar_lea.vmem [#allocation6], 640
        %v7347 = vld [vmem:[%s7346] sm:$0xff]
        %v7348 = vld [vmem:[%s7346 + $0x8] sm:$0xff]
        %v7349 = vld [vmem:[%s7346 + $0x10] sm:$0xff]
        %v7350 = vld [vmem:[%s7346 + $0x18] sm:$0xff]
        %v7351 = vld [vmem:[%s7346 + $0x20] sm:$0xff]
        %v7352 = vld [vmem:[%s7346 + $0x28] sm:$0xff]
        %v7353 = vld [vmem:[%s7346 + $0x30] sm:$0xff]
        %v7354 = vld [vmem:[%s7346 + $0x38] sm:$0xff]
        %v7355 = vld [vmem:[%s7346 + $0x40] sm:$0xff]
        %v7356 = vld [vmem:[%s7346 + $0x48] sm:$0xff]
        %v7357 = vld [vmem:[%s7346 + $0x50] sm:$0xff]
        %v7358 = vld [vmem:[%s7346 + $0x58] sm:$0xff]
        %v7359 = vld [vmem:[%s7346 + $0x60] sm:$0xff]
        %v7360 = vld [vmem:[%s7346 + $0x68] sm:$0xff]
        %v7361 = vld [vmem:[%s7346 + $0x70] sm:$0xff]
        %v7362 = vld [vmem:[%s7346 + $0x78] sm:$0xff]
        %v7379 = vunpack.c.l.b16 %v7347
        %v7380 = vunpack.c.h.b16 %v7347
        %v7381 = vunpack.c.l.b16 %v7348
        %v7382 = vunpack.c.h.b16 %v7348
        %v7383 = vunpack.c.l.b16 %v7349
        %v7384 = vunpack.c.h.b16 %v7349
        %v7385 = vunpack.c.l.b16 %v7350
        %v7386 = vunpack.c.h.b16 %v7350
        %v7387 = vunpack.c.l.b16 %v7351
        %v7388 = vunpack.c.h.b16 %v7351
        %v7389 = vunpack.c.l.b16 %v7352
        %v7390 = vunpack.c.h.b16 %v7352
        %v7391 = vunpack.c.l.b16 %v7353
        %v7392 = vunpack.c.h.b16 %v7353
        %v7393 = vunpack.c.l.b16 %v7354
        %v7394 = vunpack.c.h.b16 %v7354
        %v7395 = vunpack.c.l.b16 %v7355
        %v7396 = vunpack.c.h.b16 %v7355
        %v7397 = vunpack.c.l.b16 %v7356
        %v7398 = vunpack.c.h.b16 %v7356
        %v7399 = vunpack.c.l.b16 %v7357
        %v7400 = vunpack.c.h.b16 %v7357
        %v7401 = vunpack.c.l.b16 %v7358
        %v7402 = vunpack.c.h.b16 %v7358
        %v7403 = vunpack.c.l.b16 %v7359
        %v7404 = vunpack.c.h.b16 %v7359
        %v7405 = vunpack.c.l.b16 %v7360
        %v7406 = vunpack.c.h.b16 %v7360
        %v7407 = vunpack.c.l.b16 %v7361
        %v7408 = vunpack.c.h.b16 %v7361
        %v7409 = vunpack.c.l.b16 %v7362
        %v7410 = vunpack.c.h.b16 %v7362
        %v7411 = vpack.c.b16 %v7381, %v7379
        %v7412 = vpack.c.b16 %v7382, %v7380
        %v7413 = vpack.c.b16 %v7385, %v7383
        %v7414 = vpack.c.b16 %v7386, %v7384
        %v7415 = vpack.c.b16 %v7389, %v7387
        %v7416 = vpack.c.b16 %v7390, %v7388
        %v7417 = vpack.c.b16 %v7393, %v7391
        %v7418 = vpack.c.b16 %v7394, %v7392
        %v7419 = vpack.c.b16 %v7397, %v7395
        %v7420 = vpack.c.b16 %v7398, %v7396
        %v7421 = vpack.c.b16 %v7401, %v7399
        %v7422 = vpack.c.b16 %v7402, %v7400
        %v7423 = vpack.c.b16 %v7405, %v7403
        %v7424 = vpack.c.b16 %v7406, %v7404
        %v7425 = vpack.c.b16 %v7409, %v7407
        %v7426 = vpack.c.b16 %v7410, %v7408
        %7443 = vmatprep.subr.bf16.mxu0 %v7412
        %7444 = vmatpush1.bf16.msra.mxu0 %v7411
        %7445 = vmatprep.subr.bf16.mxu0 %v7414
        %7446 = vmatpush1.bf16.msra.mxu0 %v7413
        %7447 = vmatprep.subr.bf16.mxu0 %v7416
        %7448 = vmatpush1.bf16.msra.mxu0 %v7415
        %7449 = vmatprep.subr.bf16.mxu0 %v7418
        %7450 = vmatpush1.bf16.msra.mxu0 %v7417
        %7451 = vmatprep.subr.bf16.mxu0 %v7420
        %7452 = vmatpush1.bf16.msra.mxu0 %v7419
        %7453 = vmatprep.subr.bf16.mxu0 %v7422
        %7454 = vmatpush1.bf16.msra.mxu0 %v7421
        %7455 = vmatprep.subr.bf16.mxu0 %v7424
        %7456 = vmatpush1.bf16.msra.mxu0 %v7423
        %7457 = vmatprep.subr.bf16.mxu0 %v7426
        %7458 = vmatpush1.bf16.msra.mxu0 %v7425
        %7459 = vmatprep.subr.bf16.mxu0 0
        %7460 = vmatpush1.bf16.msra.mxu0 0
        %7461 = vmatprep.subr.bf16.mxu0 0
        %7462 = vmatpush1.bf16.msra.mxu0 0
        %7463 = vmatprep.subr.bf16.mxu0 0
        %7464 = vmatpush1.bf16.msra.mxu0 0
        %7465 = vmatprep.subr.bf16.mxu0 0
        %7466 = vmatpush1.bf16.msra.mxu0 0
        %7467 = vmatprep.subr.bf16.mxu0 0
        %7468 = vmatpush1.bf16.msra.mxu0 0
        %7469 = vmatprep.subr.bf16.mxu0 0
        %7470 = vmatpush1.bf16.msra.mxu0 0
        %7471 = vmatprep.subr.bf16.mxu0 0
        %7472 = vmatpush1.bf16.msra.mxu0 0
        %7473 = vmatprep.subr.bf16.mxu0 0
        %7474 = vmatpush1.bf16.msra.mxu0 0
        %7475 = vmatprep.mubr.bf16.mxu0 0
        %7476 = vmatmul.mubr.bf16.gmra.mrb[0].mxu0 %v7345
        %v7477 = vpop.f32.mrb[0].mxu0
        %v7478 = vadd.f32 0.0, %v7477
        %v7479 = vpop.f32.mrb[0].mxu0
        %v7480 = vadd.f32 0.0, %v7479
        %v7481 = vpop.f32.mrb[0].mxu0
        %v7482 = vpop.f32.mrb[0].mxu0
        %7483 = vdwg.mxu0
        %v7484 = vadd.f32 %v7298, %v7478
        %v7485 = vadd.f32 %v7299, %v7480
        %s7486 = scalar_lea.vmem %s7, 12
        %v7487 = vld [vmem:[%s7486] sm:$0x3]
        %v7489 = vsel %vm6376, %v7487, 0
        %7491 = vmatprep.subr.bf16.mxu0 0
        %7492 = vmatpush1.bf16.msra.mxu0 %v6374
        %7493 = vmatprep.subr.bf16.mxu0 0
        %7494 = vmatpush1.bf16.msra.mxu0 0
        %7495 = vmatprep.subr.bf16.mxu0 0
        %7496 = vmatpush1.bf16.msra.mxu0 0
        %7497 = vmatprep.subr.bf16.mxu0 0
        %7498 = vmatpush1.bf16.msra.mxu0 0
        %7499 = vmatprep.subr.bf16.mxu0 0
        %7500 = vmatpush1.bf16.msra.mxu0 0
        %7501 = vmatprep.subr.bf16.mxu0 0
        %7502 = vmatpush1.bf16.msra.mxu0 0
        %7503 = vmatprep.subr.bf16.mxu0 0
        %7504 = vmatpush1.bf16.msra.mxu0 0
        %7505 = vmatprep.subr.bf16.mxu0 0
        %7506 = vmatpush1.bf16.msra.mxu0 0
        %7507 = vmatprep.subr.bf16.mxu0 0
        %7508 = vmatpush1.bf16.msra.mxu0 0
        %7509 = vmatprep.subr.bf16.mxu0 0
        %7510 = vmatpush1.bf16.msra.mxu0 0
        %7511 = vmatprep.subr.bf16.mxu0 0
        %7512 = vmatpush1.bf16.msra.mxu0 0
        %7513 = vmatprep.subr.bf16.mxu0 0
        %7514 = vmatpush1.bf16.msra.mxu0 0
        %7515 = vmatprep.subr.bf16.mxu0 0
        %7516 = vmatpush1.bf16.msra.mxu0 0
        %7517 = vmatprep.subr.bf16.mxu0 0
        %7518 = vmatpush1.bf16.msra.mxu0 0
        %7519 = vmatprep.subr.bf16.mxu0 0
        %7520 = vmatpush1.bf16.msra.mxu0 0
        %7521 = vmatprep.subr.bf16.mxu0 0
        %7522 = vmatpush1.bf16.msra.mxu0 0
        %7523 = vmatprep.mubr.bf16.mxu0 0
        %7524 = vmatmul.mubr.bf16.gmra.mrb[0].mxu0 %v7489
        %v7525 = vpop.f32.mrb[0].mxu0
        %v7526 = vadd.f32 0.0, %v7525
        %v7527 = vpop.f32.mrb[0].mxu0
        %v7528 = vpop.f32.mrb[0].mxu0
        %v7529 = vpop.f32.mrb[0].mxu0
        %7530 = vdwg.mxu0
        %v7531 = vpack.c.bf16 %v7526, %v7526
        %s7532 = scalar_lea.vmem [#allocation6], 768
        %v7533 = vld [vmem:[%s7532] sm:$0xff]
        %v7534 = vld [vmem:[%s7532 + $0x8] sm:$0xff]
        %v7535 = vld [vmem:[%s7532 + $0x10] sm:$0xff]
        %v7536 = vld [vmem:[%s7532 + $0x18] sm:$0xff]
        %v7537 = vld [vmem:[%s7532 + $0x20] sm:$0xff]
        %v7538 = vld [vmem:[%s7532 + $0x28] sm:$0xff]
        %v7539 = vld [vmem:[%s7532 + $0x30] sm:$0xff]
        %v7540 = vld [vmem:[%s7532 + $0x38] sm:$0xff]
        %v7541 = vld [vmem:[%s7532 + $0x40] sm:$0xff]
        %v7542 = vld [vmem:[%s7532 + $0x48] sm:$0xff]
        %v7543 = vld [vmem:[%s7532 + $0x50] sm:$0xff]
        %v7544 = vld [vmem:[%s7532 + $0x58] sm:$0xff]
        %v7545 = vld [vmem:[%s7532 + $0x60] sm:$0xff]
        %v7546 = vld [vmem:[%s7532 + $0x68] sm:$0xff]
        %v7547 = vld [vmem:[%s7532 + $0x70] sm:$0xff]
        %v7548 = vld [vmem:[%s7532 + $0x78] sm:$0xff]
        %v7565 = vunpack.c.l.b16 %v7533
        %v7566 = vunpack.c.h.b16 %v7533
        %v7567 = vunpack.c.l.b16 %v7534
        %v7568 = vunpack.c.h.b16 %v7534
        %v7569 = vunpack.c.l.b16 %v7535
        %v7570 = vunpack.c.h.b16 %v7535
        %v7571 = vunpack.c.l.b16 %v7536
        %v7572 = vunpack.c.h.b16 %v7536
        %v7573 = vunpack.c.l.b16 %v7537
        %v7574 = vunpack.c.h.b16 %v7537
        %v7575 = vunpack.c.l.b16 %v7538
        %v7576 = vunpack.c.h.b16 %v7538
        %v7577 = vunpack.c.l.b16 %v7539
        %v7578 = vunpack.c.h.b16 %v7539
        %v7579 = vunpack.c.l.b16 %v7540
        %v7580 = vunpack.c.h.b16 %v7540
        %v7581 = vunpack.c.l.b16 %v7541
        %v7582 = vunpack.c.h.b16 %v7541
        %v7583 = vunpack.c.l.b16 %v7542
        %v7584 = vunpack.c.h.b16 %v7542
        %v7585 = vunpack.c.l.b16 %v7543
        %v7586 = vunpack.c.h.b16 %v7543
        %v7587 = vunpack.c.l.b16 %v7544
        %v7588 = vunpack.c.h.b16 %v7544
        %v7589 = vunpack.c.l.b16 %v7545
        %v7590 = vunpack.c.h.b16 %v7545
        %v7591 = vunpack.c.l.b16 %v7546
        %v7592 = vunpack.c.h.b16 %v7546
        %v7593 = vunpack.c.l.b16 %v7547
        %v7594 = vunpack.c.h.b16 %v7547
        %v7595 = vunpack.c.l.b16 %v7548
        %v7596 = vunpack.c.h.b16 %v7548
        %v7597 = vpack.c.b16 %v7567, %v7565
        %v7598 = vpack.c.b16 %v7568, %v7566
        %v7599 = vpack.c.b16 %v7571, %v7569
        %v7600 = vpack.c.b16 %v7572, %v7570
        %v7601 = vpack.c.b16 %v7575, %v7573
        %v7602 = vpack.c.b16 %v7576, %v7574
        %v7603 = vpack.c.b16 %v7579, %v7577
        %v7604 = vpack.c.b16 %v7580, %v7578
        %v7605 = vpack.c.b16 %v7583, %v7581
        %v7606 = vpack.c.b16 %v7584, %v7582
        %v7607 = vpack.c.b16 %v7587, %v7585
        %v7608 = vpack.c.b16 %v7588, %v7586
        %v7609 = vpack.c.b16 %v7591, %v7589
        %v7610 = vpack.c.b16 %v7592, %v7590
        %v7611 = vpack.c.b16 %v7595, %v7593
        %v7612 = vpack.c.b16 %v7596, %v7594
        %7629 = vmatprep.subr.bf16.mxu0 %v7598
        %7630 = vmatpush1.bf16.msra.mxu0 %v7597
        %7631 = vmatprep.subr.bf16.mxu0 %v7600
        %7632 = vmatpush1.bf16.msra.mxu0 %v7599
        %7633 = vmatprep.subr.bf16.mxu0 %v7602
        %7634 = vmatpush1.bf16.msra.mxu0 %v7601
        %7635 = vmatprep.subr.bf16.mxu0 %v7604
        %7636 = vmatpush1.bf16.msra.mxu0 %v7603
        %7637 = vmatprep.subr.bf16.mxu0 %v7606
        %7638 = vmatpush1.bf16.msra.mxu0 %v7605
        %7639 = vmatprep.subr.bf16.mxu0 %v7608
        %7640 = vmatpush1.bf16.msra.mxu0 %v7607
        %7641 = vmatprep.subr.bf16.mxu0 %v7610
        %7642 = vmatpush1.bf16.msra.mxu0 %v7609
        %7643 = vmatprep.subr.bf16.mxu0 %v7612
        %7644 = vmatpush1.bf16.msra.mxu0 %v7611
        %7645 = vmatprep.subr.bf16.mxu0 0
        %7646 = vmatpush1.bf16.msra.mxu0 0
        %7647 = vmatprep.subr.bf16.mxu0 0
        %7648 = vmatpush1.bf16.msra.mxu0 0
        %7649 = vmatprep.subr.bf16.mxu0 0
        %7650 = vmatpush1.bf16.msra.mxu0 0
        %7651 = vmatprep.subr.bf16.mxu0 0
        %7652 = vmatpush1.bf16.msra.mxu0 0
        %7653 = vmatprep.subr.bf16.mxu0 0
        %7654 = vmatpush1.bf16.msra.mxu0 0
        %7655 = vmatprep.subr.bf16.mxu0 0
        %7656 = vmatpush1.bf16.msra.mxu0 0
        %7657 = vmatprep.subr.bf16.mxu0 0
        %7658 = vmatpush1.bf16.msra.mxu0 0
        %7659 = vmatprep.subr.bf16.mxu0 0
        %7660 = vmatpush1.bf16.msra.mxu0 0
        %7661 = vmatprep.mubr.bf16.mxu0 0
        %7662 = vmatmul.mubr.bf16.gmra.mrb[0].mxu0 %v7531
        %v7663 = vpop.f32.mrb[0].mxu0
        %v7664 = vadd.f32 0.0, %v7663
        %v7665 = vpop.f32.mrb[0].mxu0
        %v7666 = vadd.f32 0.0, %v7665
        %v7667 = vpop.f32.mrb[0].mxu0
        %v7668 = vpop.f32.mrb[0].mxu0
        %7669 = vdwg.mxu0
        %v7670 = vadd.f32 %v7484, %v7664
        %v7671 = vadd.f32 %v7485, %v7666
        %s7672 = scalar_lea.vmem %s7, 14
        %v7673 = vld [vmem:[%s7672] sm:$0x3]
        %v7675 = vsel %vm6376, %v7673, 0
        %7677 = vmatprep.subr.bf16.mxu0 0
        %7678 = vmatpush1.bf16.msra.mxu0 %v6374
        %7679 = vmatprep.subr.bf16.mxu0 0
        %7680 = vmatpush1.bf16.msra.mxu0 0
        %7681 = vmatprep.subr.bf16.mxu0 0
        %7682 = vmatpush1.bf16.msra.mxu0 0
        %7683 = vmatprep.subr.bf16.mxu0 0
        %7684 = vmatpush1.bf16.msra.mxu0 0
        %7685 = vmatprep.subr.bf16.mxu0 0
        %7686 = vmatpush1.bf16.msra.mxu0 0
        %7687 = vmatprep.subr.bf16.mxu0 0
        %7688 = vmatpush1.bf16.msra.mxu0 0
        %7689 = vmatprep.subr.bf16.mxu0 0
        %7690 = vmatpush1.bf16.msra.mxu0 0
        %7691 = vmatprep.subr.bf16.mxu0 0
        %7692 = vmatpush1.bf16.msra.mxu0 0
        %7693 = vmatprep.subr.bf16.mxu0 0
        %7694 = vmatpush1.bf16.msra.mxu0 0
        %7695 = vmatprep.subr.bf16.mxu0 0
        %7696 = vmatpush1.bf16.msra.mxu0 0
        %7697 = vmatprep.subr.bf16.mxu0 0
        %7698 = vmatpush1.bf16.msra.mxu0 0
        %7699 = vmatprep.subr.bf16.mxu0 0
        %7700 = vmatpush1.bf16.msra.mxu0 0
        %7701 = vmatprep.subr.bf16.mxu0 0
        %7702 = vmatpush1.bf16.msra.mxu0 0
        %7703 = vmatprep.subr.bf16.mxu0 0
        %7704 = vmatpush1.bf16.msra.mxu0 0
        %7705 = vmatprep.subr.bf16.mxu0 0
        %7706 = vmatpush1.bf16.msra.mxu0 0
        %7707 = vmatprep.subr.bf16.mxu0 0
        %7708 = vmatpush1.bf16.msra.mxu0 0
        %7709 = vmatprep.mubr.bf16.mxu0 0
        %7710 = vmatmul.mubr.bf16.gmra.mrb[0].mxu0 %v7675
        %v7711 = vpop.f32.mrb[0].mxu0
        %v7712 = vadd.f32 0.0, %v7711
        %v7713 = vpop.f32.mrb[0].mxu0
        %v7714 = vpop.f32.mrb[0].mxu0
        %v7715 = vpop.f32.mrb[0].mxu0
        %7716 = vdwg.mxu0
        %v7717 = vpack.c.bf16 %v7712, %v7712
        %s7718 = scalar_lea.vmem [#allocation6], 896
        %v7719 = vld [vmem:[%s7718] sm:$0xff]
        %v7720 = vld [vmem:[%s7718 + $0x8] sm:$0xff]
        %v7721 = vld [vmem:[%s7718 + $0x10] sm:$0xff]
        %v7722 = vld [vmem:[%s7718 + $0x18] sm:$0xff]
        %v7723 = vld [vmem:[%s7718 + $0x20] sm:$0xff]
        %v7724 = vld [vmem:[%s7718 + $0x28] sm:$0xff]
        %v7725 = vld [vmem:[%s7718 + $0x30] sm:$0xff]
        %v7726 = vld [vmem:[%s7718 + $0x38] sm:$0xff]
        %v7727 = vld [vmem:[%s7718 + $0x40] sm:$0xff]
        %v7728 = vld [vmem:[%s7718 + $0x48] sm:$0xff]
        %v7729 = vld [vmem:[%s7718 + $0x50] sm:$0xff]
        %v7730 = vld [vmem:[%s7718 + $0x58] sm:$0xff]
        %v7731 = vld [vmem:[%s7718 + $0x60] sm:$0xff]
        %v7732 = vld [vmem:[%s7718 + $0x68] sm:$0xff]
        %v7733 = vld [vmem:[%s7718 + $0x70] sm:$0xff]
        %v7734 = vld [vmem:[%s7718 + $0x78] sm:$0xff]
        %v7751 = vunpack.c.l.b16 %v7719
        %v7752 = vunpack.c.h.b16 %v7719
        %v7753 = vunpack.c.l.b16 %v7720
        %v7754 = vunpack.c.h.b16 %v7720
        %v7755 = vunpack.c.l.b16 %v7721
        %v7756 = vunpack.c.h.b16 %v7721
        %v7757 = vunpack.c.l.b16 %v7722
        %v7758 = vunpack.c.h.b16 %v7722
        %v7759 = vunpack.c.l.b16 %v7723
        %v7760 = vunpack.c.h.b16 %v7723
        %v7761 = vunpack.c.l.b16 %v7724
        %v7762 = vunpack.c.h.b16 %v7724
        %v7763 = vunpack.c.l.b16 %v7725
        %v7764 = vunpack.c.h.b16 %v7725
        %v7765 = vunpack.c.l.b16 %v7726
        %v7766 = vunpack.c.h.b16 %v7726
        %v7767 = vunpack.c.l.b16 %v7727
        %v7768 = vunpack.c.h.b16 %v7727
        %v7769 = vunpack.c.l.b16 %v7728
        %v7770 = vunpack.c.h.b16 %v7728
        %v7771 = vunpack.c.l.b16 %v7729
        %v7772 = vunpack.c.h.b16 %v7729
        %v7773 = vunpack.c.l.b16 %v7730
        %v7774 = vunpack.c.h.b16 %v7730
        %v7775 = vunpack.c.l.b16 %v7731
        %v7776 = vunpack.c.h.b16 %v7731
        %v7777 = vunpack.c.l.b16 %v7732
        %v7778 = vunpack.c.h.b16 %v7732
        %v7779 = vunpack.c.l.b16 %v7733
        %v7780 = vunpack.c.h.b16 %v7733
        %v7781 = vunpack.c.l.b16 %v7734
        %v7782 = vunpack.c.h.b16 %v7734
        %v7783 = vpack.c.b16 %v7753, %v7751
        %v7784 = vpack.c.b16 %v7754, %v7752
        %v7785 = vpack.c.b16 %v7757, %v7755
        %v7786 = vpack.c.b16 %v7758, %v7756
        %v7787 = vpack.c.b16 %v7761, %v7759
        %v7788 = vpack.c.b16 %v7762, %v7760
        %v7789 = vpack.c.b16 %v7765, %v7763
        %v7790 = vpack.c.b16 %v7766, %v7764
        %v7791 = vpack.c.b16 %v7769, %v7767
        %v7792 = vpack.c.b16 %v7770, %v7768
        %v7793 = vpack.c.b16 %v7773, %v7771
        %v7794 = vpack.c.b16 %v7774, %v7772
        %v7795 = vpack.c.b16 %v7777, %v7775
        %v7796 = vpack.c.b16 %v7778, %v7776
        %v7797 = vpack.c.b16 %v7781, %v7779
        %v7798 = vpack.c.b16 %v7782, %v7780
        %7815 = vmatprep.subr.bf16.mxu0 %v7784
        %7816 = vmatpush1.bf16.msra.mxu0 %v7783
        %7817 = vmatprep.subr.bf16.mxu0 %v7786
        %7818 = vmatpush1.bf16.msra.mxu0 %v7785
        %7819 = vmatprep.subr.bf16.mxu0 %v7788
        %7820 = vmatpush1.bf16.msra.mxu0 %v7787
        %7821 = vmatprep.subr.bf16.mxu0 %v7790
        %7822 = vmatpush1.bf16.msra.mxu0 %v7789
        %7823 = vmatprep.subr.bf16.mxu0 %v7792
        %7824 = vmatpush1.bf16.msra.mxu0 %v7791
        %7825 = vmatprep.subr.bf16.mxu0 %v7794
        %7826 = vmatpush1.bf16.msra.mxu0 %v7793
        %7827 = vmatprep.subr.bf16.mxu0 %v7796
        %7828 = vmatpush1.bf16.msra.mxu0 %v7795
        %7829 = vmatprep.subr.bf16.mxu0 %v7798
        %7830 = vmatpush1.bf16.msra.mxu0 %v7797
        %7831 = vmatprep.subr.bf16.mxu0 0
        %7832 = vmatpush1.bf16.msra.mxu0 0
        %7833 = vmatprep.subr.bf16.mxu0 0
        %7834 = vmatpush1.bf16.msra.mxu0 0
        %7835 = vmatprep.subr.bf16.mxu0 0
        %7836 = vmatpush1.bf16.msra.mxu0 0
        %7837 = vmatprep.subr.bf16.mxu0 0
        %7838 = vmatpush1.bf16.msra.mxu0 0
        %7839 = vmatprep.subr.bf16.mxu0 0
        %7840 = vmatpush1.bf16.msra.mxu0 0
        %7841 = vmatprep.subr.bf16.mxu0 0
        %7842 = vmatpush1.bf16.msra.mxu0 0
        %7843 = vmatprep.subr.bf16.mxu0 0
        %7844 = vmatpush1.bf16.msra.mxu0 0
        %7845 = vmatprep.subr.bf16.mxu0 0
        %7846 = vmatpush1.bf16.msra.mxu0 0
        %7847 = vmatprep.mubr.bf16.mxu0 0
        %7848 = vmatmul.mubr.bf16.gmra.mrb[0].mxu0 %v7717
        %v7849 = vpop.f32.mrb[0].mxu0
        %v7850 = vadd.f32 0.0, %v7849
        %v7851 = vpop.f32.mrb[0].mxu0
        %v7852 = vadd.f32 0.0, %v7851
        %v7853 = vpop.f32.mrb[0].mxu0
        %v7854 = vpop.f32.mrb[0].mxu0
        %7855 = vdwg.mxu0
        %v7856 = vadd.f32 %v7670, %v7850
        %v7857 = vadd.f32 %v7671, %v7852
        %s7858 = scalar_lea.vmem %s7, 16
        %v7859 = vld [vmem:[%s7858] sm:$0x3]
        %v7861 = vsel %vm6376, %v7859, 0
        %7863 = vmatprep.subr.bf16.mxu0 0
        %7864 = vmatpush1.bf16.msra.mxu0 %v6374
        %7865 = vmatprep.subr.bf16.mxu0 0
        %7866 = vmatpush1.bf16.msra.mxu0 0
        %7867 = vmatprep.subr.bf16.mxu0 0
        %7868 = vmatpush1.bf16.msra.mxu0 0
        %7869 = vmatprep.subr.bf16.mxu0 0
        %7870 = vmatpush1.bf16.msra.mxu0 0
        %7871 = vmatprep.subr.bf16.mxu0 0
        %7872 = vmatpush1.bf16.msra.mxu0 0
        %7873 = vmatprep.subr.bf16.mxu0 0
        %7874 = vmatpush1.bf16.msra.mxu0 0
        %7875 = vmatprep.subr.bf16.mxu0 0
        %7876 = vmatpush1.bf16.msra.mxu0 0
        %7877 = vmatprep.subr.bf16.mxu0 0
        %7878 = vmatpush1.bf16.msra.mxu0 0
        %7879 = vmatprep.subr.bf16.mxu0 0
        %7880 = vmatpush1.bf16.msra.mxu0 0
        %7881 = vmatprep.subr.bf16.mxu0 0
        %7882 = vmatpush1.bf16.msra.mxu0 0
        %7883 = vmatprep.subr.bf16.mxu0 0
        %7884 = vmatpush1.bf16.msra.mxu0 0
        %7885 = vmatprep.subr.bf16.mxu0 0
        %7886 = vmatpush1.bf16.msra.mxu0 0
        %7887 = vmatprep.subr.bf16.mxu0 0
        %7888 = vmatpush1.bf16.msra.mxu0 0
        %7889 = vmatprep.subr.bf16.mxu0 0
        %7890 = vmatpush1.bf16.msra.mxu0 0
        %7891 = vmatprep.subr.bf16.mxu0 0
        %7892 = vmatpush1.bf16.msra.mxu0 0
        %7893 = vmatprep.subr.bf16.mxu0 0
        %7894 = vmatpush1.bf16.msra.mxu0 0
        %7895 = vmatprep.mubr.bf16.mxu0 0
        %7896 = vmatmul.mubr.bf16.gmra.mrb[0].mxu0 %v7861
        %v7897 = vpop.f32.mrb[0].mxu0
        %v7898 = vadd.f32 0.0, %v7897
        %v7899 = vpop.f32.mrb[0].mxu0
        %v7900 = vpop.f32.mrb[0].mxu0
        %v7901 = vpop.f32.mrb[0].mxu0
        %7902 = vdwg.mxu0
        %v7903 = vpack.c.bf16 %v7898, %v7898
        %s7904 = scalar_lea.vmem [#allocation6], 1024
        %v7905 = vld [vmem:[%s7904] sm:$0xff]
        %v7906 = vld [vmem:[%s7904 + $0x8] sm:$0xff]
        %v7907 = vld [vmem:[%s7904 + $0x10] sm:$0xff]
        %v7908 = vld [vmem:[%s7904 + $0x18] sm:$0xff]
        %v7909 = vld [vmem:[%s7904 + $0x20] sm:$0xff]
        %v7910 = vld [vmem:[%s7904 + $0x28] sm:$0xff]
        %v7911 = vld [vmem:[%s7904 + $0x30] sm:$0xff]
        %v7912 = vld [vmem:[%s7904 + $0x38] sm:$0xff]
        %v7913 = vld [vmem:[%s7904 + $0x40] sm:$0xff]
        %v7914 = vld [vmem:[%s7904 + $0x48] sm:$0xff]
        %v7915 = vld [vmem:[%s7904 + $0x50] sm:$0xff]
        %v7916 = vld [vmem:[%s7904 + $0x58] sm:$0xff]
        %v7917 = vld [vmem:[%s7904 + $0x60] sm:$0xff]
        %v7918 = vld [vmem:[%s7904 + $0x68] sm:$0xff]
        %v7919 = vld [vmem:[%s7904 + $0x70] sm:$0xff]
        %v7920 = vld [vmem:[%s7904 + $0x78] sm:$0xff]
        %v7937 = vunpack.c.l.b16 %v7905
        %v7938 = vunpack.c.h.b16 %v7905
        %v7939 = vunpack.c.l.b16 %v7906
        %v7940 = vunpack.c.h.b16 %v7906
        %v7941 = vunpack.c.l.b16 %v7907
        %v7942 = vunpack.c.h.b16 %v7907
        %v7943 = vunpack.c.l.b16 %v7908
        %v7944 = vunpack.c.h.b16 %v7908
        %v7945 = vunpack.c.l.b16 %v7909
        %v7946 = vunpack.c.h.b16 %v7909
        %v7947 = vunpack.c.l.b16 %v7910
        %v7948 = vunpack.c.h.b16 %v7910
        %v7949 = vunpack.c.l.b16 %v7911
        %v7950 = vunpack.c.h.b16 %v7911
        %v7951 = vunpack.c.l.b16 %v7912
        %v7952 = vunpack.c.h.b16 %v7912
        %v7953 = vunpack.c.l.b16 %v7913
        %v7954 = vunpack.c.h.b16 %v7913
        %v7955 = vunpack.c.l.b16 %v7914
        %v7956 = vunpack.c.h.b16 %v7914
        %v7957 = vunpack.c.l.b16 %v7915
        %v7958 = vunpack.c.h.b16 %v7915
        %v7959 = vunpack.c.l.b16 %v7916
        %v7960 = vunpack.c.h.b16 %v7916
        %v7961 = vunpack.c.l.b16 %v7917
        %v7962 = vunpack.c.h.b16 %v7917
        %v7963 = vunpack.c.l.b16 %v7918
        %v7964 = vunpack.c.h.b16 %v7918
        %v7965 = vunpack.c.l.b16 %v7919
        %v7966 = vunpack.c.h.b16 %v7919
        %v7967 = vunpack.c.l.b16 %v7920
        %v7968 = vunpack.c.h.b16 %v7920
        %v7969 = vpack.c.b16 %v7939, %v7937
        %v7970 = vpack.c.b16 %v7940, %v7938
        %v7971 = vpack.c.b16 %v7943, %v7941
        %v7972 = vpack.c.b16 %v7944, %v7942
        %v7973 = vpack.c.b16 %v7947, %v7945
        %v7974 = vpack.c.b16 %v7948, %v7946
        %v7975 = vpack.c.b16 %v7951, %v7949
        %v7976 = vpack.c.b16 %v7952, %v7950
        %v7977 = vpack.c.b16 %v7955, %v7953
        %v7978 = vpack.c.b16 %v7956, %v7954
        %v7979 = vpack.c.b16 %v7959, %v7957
        %v7980 = vpack.c.b16 %v7960, %v7958
        %v7981 = vpack.c.b16 %v7963, %v7961
        %v7982 = vpack.c.b16 %v7964, %v7962
        %v7983 = vpack.c.b16 %v7967, %v7965
        %v7984 = vpack.c.b16 %v7968, %v7966
        %8001 = vmatprep.subr.bf16.mxu0 %v7970
        %8002 = vmatpush1.bf16.msra.mxu0 %v7969
        %8003 = vmatprep.subr.bf16.mxu0 %v7972
        %8004 = vmatpush1.bf16.msra.mxu0 %v7971
        %8005 = vmatprep.subr.bf16.mxu0 %v7974
        %8006 = vmatpush1.bf16.msra.mxu0 %v7973
        %8007 = vmatprep.subr.bf16.mxu0 %v7976
        %8008 = vmatpush1.bf16.msra.mxu0 %v7975
        %8009 = vmatprep.subr.bf16.mxu0 %v7978
        %8010 = vmatpush1.bf16.msra.mxu0 %v7977
        %8011 = vmatprep.subr.bf16.mxu0 %v7980
        %8012 = vmatpush1.bf16.msra.mxu0 %v7979
        %8013 = vmatprep.subr.bf16.mxu0 %v7982
        %8014 = vmatpush1.bf16.msra.mxu0 %v7981
        %8015 = vmatprep.subr.bf16.mxu0 %v7984
        %8016 = vmatpush1.bf16.msra.mxu0 %v7983
        %8017 = vmatprep.subr.bf16.mxu0 0
        %8018 = vmatpush1.bf16.msra.mxu0 0
        %8019 = vmatprep.subr.bf16.mxu0 0
        %8020 = vmatpush1.bf16.msra.mxu0 0
        %8021 = vmatprep.subr.bf16.mxu0 0
        %8022 = vmatpush1.bf16.msra.mxu0 0
        %8023 = vmatprep.subr.bf16.mxu0 0
        %8024 = vmatpush1.bf16.msra.mxu0 0
        %8025 = vmatprep.subr.bf16.mxu0 0
        %8026 = vmatpush1.bf16.msra.mxu0 0
        %8027 = vmatprep.subr.bf16.mxu0 0
        %8028 = vmatpush1.bf16.msra.mxu0 0
        %8029 = vmatprep.subr.bf16.mxu0 0
        %8030 = vmatpush1.bf16.msra.mxu0 0
        %8031 = vmatprep.subr.bf16.mxu0 0
        %8032 = vmatpush1.bf16.msra.mxu0 0
        %8033 = vmatprep.mubr.bf16.mxu0 0
        %8034 = vmatmul.mubr.bf16.gmra.mrb[0].mxu0 %v7903
        %v8035 = vpop.f32.mrb[0].mxu0
        %v8036 = vadd.f32 0.0, %v8035
        %v8037 = vpop.f32.mrb[0].mxu0
        %v8038 = vadd.f32 0.0, %v8037
        %v8039 = vpop.f32.mrb[0].mxu0
        %v8040 = vpop.f32.mrb[0].mxu0
        %8041 = vdwg.mxu0
        %v8042 = vadd.f32 %v7856, %v8036
        %v8043 = vadd.f32 %v7857, %v8038
        %s8044 = scalar_lea.vmem %s7, 18
        %v8045 = vld [vmem:[%s8044] sm:$0x3]
        %v8047 = vsel %vm6376, %v8045, 0
        %8049 = vmatprep.subr.bf16.mxu0 0
        %8050 = vmatpush1.bf16.msra.mxu0 %v6374
        %8051 = vmatprep.subr.bf16.mxu0 0
        %8052 = vmatpush1.bf16.msra.mxu0 0
        %8053 = vmatprep.subr.bf16.mxu0 0
        %8054 = vmatpush1.bf16.msra.mxu0 0
        %8055 = vmatprep.subr.bf16.mxu0 0
        %8056 = vmatpush1.bf16.msra.mxu0 0
        %8057 = vmatprep.subr.bf16.mxu0 0
        %8058 = vmatpush1.bf16.msra.mxu0 0
        %8059 = vmatprep.subr.bf16.mxu0 0
        %8060 = vmatpush1.bf16.msra.mxu0 0
        %8061 = vmatprep.subr.bf16.mxu0 0
        %8062 = vmatpush1.bf16.msra.mxu0 0
        %8063 = vmatprep.subr.bf16.mxu0 0
        %8064 = vmatpush1.bf16.msra.mxu0 0
        %8065 = vmatprep.subr.bf16.mxu0 0
        %8066 = vmatpush1.bf16.msra.mxu0 0
        %8067 = vmatprep.subr.bf16.mxu0 0
        %8068 = vmatpush1.bf16.msra.mxu0 0
        %8069 = vmatprep.subr.bf16.mxu0 0
        %8070 = vmatpush1.bf16.msra.mxu0 0
        %8071 = vmatprep.subr.bf16.mxu0 0
        %8072 = vmatpush1.bf16.msra.mxu0 0
        %8073 = vmatprep.subr.bf16.mxu0 0
        %8074 = vmatpush1.bf16.msra.mxu0 0
        %8075 = vmatprep.subr.bf16.mxu0 0
        %8076 = vmatpush1.bf16.msra.mxu0 0
        %8077 = vmatprep.subr.bf16.mxu0 0
        %8078 = vmatpush1.bf16.msra.mxu0 0
        %8079 = vmatprep.subr.bf16.mxu0 0
        %8080 = vmatpush1.bf16.msra.mxu0 0
        %8081 = vmatprep.mubr.bf16.mxu0 0
        %8082 = vmatmul.mubr.bf16.gmra.mrb[0].mxu0 %v8047
        %v8083 = vpop.f32.mrb[0].mxu0
        %v8084 = vadd.f32 0.0, %v8083
        %v8085 = vpop.f32.mrb[0].mxu0
        %v8086 = vpop.f32.mrb[0].mxu0
        %v8087 = vpop.f32.mrb[0].mxu0
        %8088 = vdwg.mxu0
        %v8089 = vpack.c.bf16 %v8084, %v8084
        %s8090 = scalar_lea.vmem [#allocation6], 1152
        %v8091 = vld [vmem:[%s8090] sm:$0xff]
        %v8092 = vld [vmem:[%s8090 + $0x8] sm:$0xff]
        %v8093 = vld [vmem:[%s8090 + $0x10] sm:$0xff]
        %v8094 = vld [vmem:[%s8090 + $0x18] sm:$0xff]
        %v8095 = vld [vmem:[%s8090 + $0x20] sm:$0xff]
        %v8096 = vld [vmem:[%s8090 + $0x28] sm:$0xff]
        %v8097 = vld [vmem:[%s8090 + $0x30] sm:$0xff]
        %v8098 = vld [vmem:[%s8090 + $0x38] sm:$0xff]
        %v8099 = vld [vmem:[%s8090 + $0x40] sm:$0xff]
        %v8100 = vld [vmem:[%s8090 + $0x48] sm:$0xff]
        %v8101 = vld [vmem:[%s8090 + $0x50] sm:$0xff]
        %v8102 = vld [vmem:[%s8090 + $0x58] sm:$0xff]
        %v8103 = vld [vmem:[%s8090 + $0x60] sm:$0xff]
        %v8104 = vld [vmem:[%s8090 + $0x68] sm:$0xff]
        %v8105 = vld [vmem:[%s8090 + $0x70] sm:$0xff]
        %v8106 = vld [vmem:[%s8090 + $0x78] sm:$0xff]
        %v8123 = vunpack.c.l.b16 %v8091
        %v8124 = vunpack.c.h.b16 %v8091
        %v8125 = vunpack.c.l.b16 %v8092
        %v8126 = vunpack.c.h.b16 %v8092
        %v8127 = vunpack.c.l.b16 %v8093
        %v8128 = vunpack.c.h.b16 %v8093
        %v8129 = vunpack.c.l.b16 %v8094
        %v8130 = vunpack.c.h.b16 %v8094
        %v8131 = vunpack.c.l.b16 %v8095
        %v8132 = vunpack.c.h.b16 %v8095
        %v8133 = vunpack.c.l.b16 %v8096
        %v8134 = vunpack.c.h.b16 %v8096
        %v8135 = vunpack.c.l.b16 %v8097
        %v8136 = vunpack.c.h.b16 %v8097
        %v8137 = vunpack.c.l.b16 %v8098
        %v8138 = vunpack.c.h.b16 %v8098
        %v8139 = vunpack.c.l.b16 %v8099
        %v8140 = vunpack.c.h.b16 %v8099
        %v8141 = vunpack.c.l.b16 %v8100
        %v8142 = vunpack.c.h.b16 %v8100
        %v8143 = vunpack.c.l.b16 %v8101
        %v8144 = vunpack.c.h.b16 %v8101
        %v8145 = vunpack.c.l.b16 %v8102
        %v8146 = vunpack.c.h.b16 %v8102
        %v8147 = vunpack.c.l.b16 %v8103
        %v8148 = vunpack.c.h.b16 %v8103
        %v8149 = vunpack.c.l.b16 %v8104
        %v8150 = vunpack.c.h.b16 %v8104
        %v8151 = vunpack.c.l.b16 %v8105
        %v8152 = vunpack.c.h.b16 %v8105
        %v8153 = vunpack.c.l.b16 %v8106
        %v8154 = vunpack.c.h.b16 %v8106
        %v8155 = vpack.c.b16 %v8125, %v8123
        %v8156 = vpack.c.b16 %v8126, %v8124
        %v8157 = vpack.c.b16 %v8129, %v8127
        %v8158 = vpack.c.b16 %v8130, %v8128
        %v8159 = vpack.c.b16 %v8133, %v8131
        %v8160 = vpack.c.b16 %v8134, %v8132
        %v8161 = vpack.c.b16 %v8137, %v8135
        %v8162 = vpack.c.b16 %v8138, %v8136
        %v8163 = vpack.c.b16 %v8141, %v8139
        %v8164 = vpack.c.b16 %v8142, %v8140
        %v8165 = vpack.c.b16 %v8145, %v8143
        %v8166 = vpack.c.b16 %v8146, %v8144
        %v8167 = vpack.c.b16 %v8149, %v8147
        %v8168 = vpack.c.b16 %v8150, %v8148
        %v8169 = vpack.c.b16 %v8153, %v8151
        %v8170 = vpack.c.b16 %v8154, %v8152
        %8187 = vmatprep.subr.bf16.mxu0 %v8156
        %8188 = vmatpush1.bf16.msra.mxu0 %v8155
        %8189 = vmatprep.subr.bf16.mxu0 %v8158
        %8190 = vmatpush1.bf16.msra.mxu0 %v8157
        %8191 = vmatprep.subr.bf16.mxu0 %v8160
        %8192 = vmatpush1.bf16.msra.mxu0 %v8159
        %8193 = vmatprep.subr.bf16.mxu0 %v8162
        %8194 = vmatpush1.bf16.msra.mxu0 %v8161
        %8195 = vmatprep.subr.bf16.mxu0 %v8164
        %8196 = vmatpush1.bf16.msra.mxu0 %v8163
        %8197 = vmatprep.subr.bf16.mxu0 %v8166
        %8198 = vmatpush1.bf16.msra.mxu0 %v8165
        %8199 = vmatprep.subr.bf16.mxu0 %v8168
        %8200 = vmatpush1.bf16.msra.mxu0 %v8167
        %8201 = vmatprep.subr.bf16.mxu0 %v8170
        %8202 = vmatpush1.bf16.msra.mxu0 %v8169
        %8203 = vmatprep.subr.bf16.mxu0 0
        %8204 = vmatpush1.bf16.msra.mxu0 0
        %8205 = vmatprep.subr.bf16.mxu0 0
        %8206 = vmatpush1.bf16.msra.mxu0 0
        %8207 = vmatprep.subr.bf16.mxu0 0
        %8208 = vmatpush1.bf16.msra.mxu0 0
        %8209 = vmatprep.subr.bf16.mxu0 0
        %8210 = vmatpush1.bf16.msra.mxu0 0
        %8211 = vmatprep.subr.bf16.mxu0 0
        %8212 = vmatpush1.bf16.msra.mxu0 0
        %8213 = vmatprep.subr.bf16.mxu0 0
        %8214 = vmatpush1.bf16.msra.mxu0 0
        %8215 = vmatprep.subr.bf16.mxu0 0
        %8216 = vmatpush1.bf16.msra.mxu0 0
        %8217 = vmatprep.subr.bf16.mxu0 0
        %8218 = vmatpush1.bf16.msra.mxu0 0
        %8219 = vmatprep.mubr.bf16.mxu0 0
        %8220 = vmatmul.mubr.bf16.gmra.mrb[0].mxu0 %v8089
        %v8221 = vpop.f32.mrb[0].mxu0
        %v8222 = vadd.f32 0.0, %v8221
        %v8223 = vpop.f32.mrb[0].mxu0
        %v8224 = vadd.f32 0.0, %v8223
        %v8225 = vpop.f32.mrb[0].mxu0
        %v8226 = vpop.f32.mrb[0].mxu0
        %8227 = vdwg.mxu0
        %v8228 = vadd.f32 %v8042, %v8222
        %v8229 = vadd.f32 %v8043, %v8224
        %s8230 = scalar_lea.vmem %s7, 20
        %v8231 = vld [vmem:[%s8230] sm:$0x3]
        %v8233 = vsel %vm6376, %v8231, 0
        %8235 = vmatprep.subr.bf16.mxu0 0
        %8236 = vmatpush1.bf16.msra.mxu0 %v6374
        %8237 = vmatprep.subr.bf16.mxu0 0
        %8238 = vmatpush1.bf16.msra.mxu0 0
        %8239 = vmatprep.subr.bf16.mxu0 0
        %8240 = vmatpush1.bf16.msra.mxu0 0
        %8241 = vmatprep.subr.bf16.mxu0 0
        %8242 = vmatpush1.bf16.msra.mxu0 0
        %8243 = vmatprep.subr.bf16.mxu0 0
        %8244 = vmatpush1.bf16.msra.mxu0 0
        %8245 = vmatprep.subr.bf16.mxu0 0
        %8246 = vmatpush1.bf16.msra.mxu0 0
        %8247 = vmatprep.subr.bf16.mxu0 0
        %8248 = vmatpush1.bf16.msra.mxu0 0
        %8249 = vmatprep.subr.bf16.mxu0 0
        %8250 = vmatpush1.bf16.msra.mxu0 0
        %8251 = vmatprep.subr.bf16.mxu0 0
        %8252 = vmatpush1.bf16.msra.mxu0 0
        %8253 = vmatprep.subr.bf16.mxu0 0
        %8254 = vmatpush1.bf16.msra.mxu0 0
        %8255 = vmatprep.subr.bf16.mxu0 0
        %8256 = vmatpush1.bf16.msra.mxu0 0
        %8257 = vmatprep.subr.bf16.mxu0 0
        %8258 = vmatpush1.bf16.msra.mxu0 0
        %8259 = vmatprep.subr.bf16.mxu0 0
        %8260 = vmatpush1.bf16.msra.mxu0 0
        %8261 = vmatprep.subr.bf16.mxu0 0
        %8262 = vmatpush1.bf16.msra.mxu0 0
        %8263 = vmatprep.subr.bf16.mxu0 0
        %8264 = vmatpush1.bf16.msra.mxu0 0
        %8265 = vmatprep.subr.bf16.mxu0 0
        %8266 = vmatpush1.bf16.msra.mxu0 0
        %8267 = vmatprep.mubr.bf16.mxu0 0
        %8268 = vmatmul.mubr.bf16.gmra.mrb[0].mxu0 %v8233
        %v8269 = vpop.f32.mrb[0].mxu0
        %v8270 = vadd.f32 0.0, %v8269
        %v8271 = vpop.f32.mrb[0].mxu0
        %v8272 = vpop.f32.mrb[0].mxu0
        %v8273 = vpop.f32.mrb[0].mxu0
        %8274 = vdwg.mxu0
        %v8275 = vpack.c.bf16 %v8270, %v8270
        %s8276 = scalar_lea.vmem [#allocation6], 1280
        %v8277 = vld [vmem:[%s8276] sm:$0xff]
        %v8278 = vld [vmem:[%s8276 + $0x8] sm:$0xff]
        %v8279 = vld [vmem:[%s8276 + $0x10] sm:$0xff]
        %v8280 = vld [vmem:[%s8276 + $0x18] sm:$0xff]
        %v8281 = vld [vmem:[%s8276 + $0x20] sm:$0xff]
        %v8282 = vld [vmem:[%s8276 + $0x28] sm:$0xff]
        %v8283 = vld [vmem:[%s8276 + $0x30] sm:$0xff]
        %v8284 = vld [vmem:[%s8276 + $0x38] sm:$0xff]
        %v8285 = vld [vmem:[%s8276 + $0x40] sm:$0xff]
        %v8286 = vld [vmem:[%s8276 + $0x48] sm:$0xff]
        %v8287 = vld [vmem:[%s8276 + $0x50] sm:$0xff]
        %v8288 = vld [vmem:[%s8276 + $0x58] sm:$0xff]
        %v8289 = vld [vmem:[%s8276 + $0x60] sm:$0xff]
        %v8290 = vld [vmem:[%s8276 + $0x68] sm:$0xff]
        %v8291 = vld [vmem:[%s8276 + $0x70] sm:$0xff]
        %v8292 = vld [vmem:[%s8276 + $0x78] sm:$0xff]
        %v8309 = vunpack.c.l.b16 %v8277
        %v8310 = vunpack.c.h.b16 %v8277
        %v8311 = vunpack.c.l.b16 %v8278
        %v8312 = vunpack.c.h.b16 %v8278
        %v8313 = vunpack.c.l.b16 %v8279
        %v8314 = vunpack.c.h.b16 %v8279
        %v8315 = vunpack.c.l.b16 %v8280
        %v8316 = vunpack.c.h.b16 %v8280
        %v8317 = vunpack.c.l.b16 %v8281
        %v8318 = vunpack.c.h.b16 %v8281
        %v8319 = vunpack.c.l.b16 %v8282
        %v8320 = vunpack.c.h.b16 %v8282
        %v8321 = vunpack.c.l.b16 %v8283
        %v8322 = vunpack.c.h.b16 %v8283
        %v8323 = vunpack.c.l.b16 %v8284
        %v8324 = vunpack.c.h.b16 %v8284
        %v8325 = vunpack.c.l.b16 %v8285
        %v8326 = vunpack.c.h.b16 %v8285
        %v8327 = vunpack.c.l.b16 %v8286
        %v8328 = vunpack.c.h.b16 %v8286
        %v8329 = vunpack.c.l.b16 %v8287
        %v8330 = vunpack.c.h.b16 %v8287
        %v8331 = vunpack.c.l.b16 %v8288
        %v8332 = vunpack.c.h.b16 %v8288
        %v8333 = vunpack.c.l.b16 %v8289
        %v8334 = vunpack.c.h.b16 %v8289
        %v8335 = vunpack.c.l.b16 %v8290
        %v8336 = vunpack.c.h.b16 %v8290
        %v8337 = vunpack.c.l.b16 %v8291
        %v8338 = vunpack.c.h.b16 %v8291
        %v8339 = vunpack.c.l.b16 %v8292
        %v8340 = vunpack.c.h.b16 %v8292
        %v8341 = vpack.c.b16 %v8311, %v8309
        %v8342 = vpack.c.b16 %v8312, %v8310
        %v8343 = vpack.c.b16 %v8315, %v8313
        %v8344 = vpack.c.b16 %v8316, %v8314
        %v8345 = vpack.c.b16 %v8319, %v8317
        %v8346 = vpack.c.b16 %v8320, %v8318
        %v8347 = vpack.c.b16 %v8323, %v8321
        %v8348 = vpack.c.b16 %v8324, %v8322
        %v8349 = vpack.c.b16 %v8327, %v8325
        %v8350 = vpack.c.b16 %v8328, %v8326
        %v8351 = vpack.c.b16 %v8331, %v8329
        %v8352 = vpack.c.b16 %v8332, %v8330
        %v8353 = vpack.c.b16 %v8335, %v8333
        %v8354 = vpack.c.b16 %v8336, %v8334
        %v8355 = vpack.c.b16 %v8339, %v8337
        %v8356 = vpack.c.b16 %v8340, %v8338
        %8373 = vmatprep.subr.bf16.mxu0 %v8342
        %8374 = vmatpush1.bf16.msra.mxu0 %v8341
        %8375 = vmatprep.subr.bf16.mxu0 %v8344
        %8376 = vmatpush1.bf16.msra.mxu0 %v8343
        %8377 = vmatprep.subr.bf16.mxu0 %v8346
        %8378 = vmatpush1.bf16.msra.mxu0 %v8345
        %8379 = vmatprep.subr.bf16.mxu0 %v8348
        %8380 = vmatpush1.bf16.msra.mxu0 %v8347
        %8381 = vmatprep.subr.bf16.mxu0 %v8350
        %8382 = vmatpush1.bf16.msra.mxu0 %v8349
        %8383 = vmatprep.subr.bf16.mxu0 %v8352
        %8384 = vmatpush1.bf16.msra.mxu0 %v8351
        %8385 = vmatprep.subr.bf16.mxu0 %v8354
        %8386 = vmatpush1.bf16.msra.mxu0 %v8353
        %8387 = vmatprep.subr.bf16.mxu0 %v8356
        %8388 = vmatpush1.bf16.msra.mxu0 %v8355
        %8389 = vmatprep.subr.bf16.mxu0 0
        %8390 = vmatpush1.bf16.msra.mxu0 0
        %8391 = vmatprep.subr.bf16.mxu0 0
        %8392 = vmatpush1.bf16.msra.mxu0 0
        %8393 = vmatprep.subr.bf16.mxu0 0
        %8394 = vmatpush1.bf16.msra.mxu0 0
        %8395 = vmatprep.subr.bf16.mxu0 0
        %8396 = vmatpush1.bf16.msra.mxu0 0
        %8397 = vmatprep.subr.bf16.mxu0 0
        %8398 = vmatpush1.bf16.msra.mxu0 0
        %8399 = vmatprep.subr.bf16.mxu0 0
        %8400 = vmatpush1.bf16.msra.mxu0 0
        %8401 = vmatprep.subr.bf16.mxu0 0
        %8402 = vmatpush1.bf16.msra.mxu0 0
        %8403 = vmatprep.subr.bf16.mxu0 0
        %8404 = vmatpush1.bf16.msra.mxu0 0
        %8405 = vmatprep.mubr.bf16.mxu0 0
        %8406 = vmatmul.mubr.bf16.gmra.mrb[0].mxu0 %v8275
        %v8407 = vpop.f32.mrb[0].mxu0
        %v8408 = vadd.f32 0.0, %v8407
        %v8409 = vpop.f32.mrb[0].mxu0
        %v8410 = vadd.f32 0.0, %v8409
        %v8411 = vpop.f32.mrb[0].mxu0
        %v8412 = vpop.f32.mrb[0].mxu0
        %8413 = vdwg.mxu0
        %v8414 = vadd.f32 %v8228, %v8408
        %v8415 = vadd.f32 %v8229, %v8410
        %s8416 = scalar_lea.vmem %s7, 22
        %v8417 = vld [vmem:[%s8416] sm:$0x3]
        %v8419 = vsel %vm6376, %v8417, 0
        %8421 = vmatprep.subr.bf16.mxu0 0
        %8422 = vmatpush1.bf16.msra.mxu0 %v6374
        %8423 = vmatprep.subr.bf16.mxu0 0
        %8424 = vmatpush1.bf16.msra.mxu0 0
        %8425 = vmatprep.subr.bf16.mxu0 0
        %8426 = vmatpush1.bf16.msra.mxu0 0
        %8427 = vmatprep.subr.bf16.mxu0 0
        %8428 = vmatpush1.bf16.msra.mxu0 0
        %8429 = vmatprep.subr.bf16.mxu0 0
        %8430 = vmatpush1.bf16.msra.mxu0 0
        %8431 = vmatprep.subr.bf16.mxu0 0
        %8432 = vmatpush1.bf16.msra.mxu0 0
        %8433 = vmatprep.subr.bf16.mxu0 0
        %8434 = vmatpush1.bf16.msra.mxu0 0
        %8435 = vmatprep.subr.bf16.mxu0 0
        %8436 = vmatpush1.bf16.msra.mxu0 0
        %8437 = vmatprep.subr.bf16.mxu0 0
        %8438 = vmatpush1.bf16.msra.mxu0 0
        %8439 = vmatprep.subr.bf16.mxu0 0
        %8440 = vmatpush1.bf16.msra.mxu0 0
        %8441 = vmatprep.subr.bf16.mxu0 0
        %8442 = vmatpush1.bf16.msra.mxu0 0
        %8443 = vmatprep.subr.bf16.mxu0 0
        %8444 = vmatpush1.bf16.msra.mxu0 0
        %8445 = vmatprep.subr.bf16.mxu0 0
        %8446 = vmatpush1.bf16.msra.mxu0 0
        %8447 = vmatprep.subr.bf16.mxu0 0
        %8448 = vmatpush1.bf16.msra.mxu0 0
        %8449 = vmatprep.subr.bf16.mxu0 0
        %8450 = vmatpush1.bf16.msra.mxu0 0
        %8451 = vmatprep.subr.bf16.mxu0 0
        %8452 = vmatpush1.bf16.msra.mxu0 0
        %8453 = vmatprep.mubr.bf16.mxu0 0
        %8454 = vmatmul.mubr.bf16.gmra.mrb[0].mxu0 %v8419
        %v8455 = vpop.f32.mrb[0].mxu0
        %v8456 = vadd.f32 0.0, %v8455
        %v8457 = vpop.f32.mrb[0].mxu0
        %v8458 = vpop.f32.mrb[0].mxu0
        %v8459 = vpop.f32.mrb[0].mxu0
        %8460 = vdwg.mxu0
        %v8461 = vpack.c.bf16 %v8456, %v8456
        %s8462 = scalar_lea.vmem [#allocation6], 1408
        %v8463 = vld [vmem:[%s8462] sm:$0xff]
        %v8464 = vld [vmem:[%s8462 + $0x8] sm:$0xff]
        %v8465 = vld [vmem:[%s8462 + $0x10] sm:$0xff]
        %v8466 = vld [vmem:[%s8462 + $0x18] sm:$0xff]
        %v8467 = vld [vmem:[%s8462 + $0x20] sm:$0xff]
        %v8468 = vld [vmem:[%s8462 + $0x28] sm:$0xff]
        %v8469 = vld [vmem:[%s8462 + $0x30] sm:$0xff]
        %v8470 = vld [vmem:[%s8462 + $0x38] sm:$0xff]
        %v8471 = vld [vmem:[%s8462 + $0x40] sm:$0xff]
        %v8472 = vld [vmem:[%s8462 + $0x48] sm:$0xff]
        %v8473 = vld [vmem:[%s8462 + $0x50] sm:$0xff]
        %v8474 = vld [vmem:[%s8462 + $0x58] sm:$0xff]
        %v8475 = vld [vmem:[%s8462 + $0x60] sm:$0xff]
        %v8476 = vld [vmem:[%s8462 + $0x68] sm:$0xff]
        %v8477 = vld [vmem:[%s8462 + $0x70] sm:$0xff]
        %v8478 = vld [vmem:[%s8462 + $0x78] sm:$0xff]
        %v8495 = vunpack.c.l.b16 %v8463
        %v8496 = vunpack.c.h.b16 %v8463
        %v8497 = vunpack.c.l.b16 %v8464
        %v8498 = vunpack.c.h.b16 %v8464
        %v8499 = vunpack.c.l.b16 %v8465
        %v8500 = vunpack.c.h.b16 %v8465
        %v8501 = vunpack.c.l.b16 %v8466
        %v8502 = vunpack.c.h.b16 %v8466
        %v8503 = vunpack.c.l.b16 %v8467
        %v8504 = vunpack.c.h.b16 %v8467
        %v8505 = vunpack.c.l.b16 %v8468
        %v8506 = vunpack.c.h.b16 %v8468
        %v8507 = vunpack.c.l.b16 %v8469
        %v8508 = vunpack.c.h.b16 %v8469
        %v8509 = vunpack.c.l.b16 %v8470
        %v8510 = vunpack.c.h.b16 %v8470
        %v8511 = vunpack.c.l.b16 %v8471
        %v8512 = vunpack.c.h.b16 %v8471
        %v8513 = vunpack.c.l.b16 %v8472
        %v8514 = vunpack.c.h.b16 %v8472
        %v8515 = vunpack.c.l.b16 %v8473
        %v8516 = vunpack.c.h.b16 %v8473
        %v8517 = vunpack.c.l.b16 %v8474
        %v8518 = vunpack.c.h.b16 %v8474
        %v8519 = vunpack.c.l.b16 %v8475
        %v8520 = vunpack.c.h.b16 %v8475
        %v8521 = vunpack.c.l.b16 %v8476
        %v8522 = vunpack.c.h.b16 %v8476
        %v8523 = vunpack.c.l.b16 %v8477
        %v8524 = vunpack.c.h.b16 %v8477
        %v8525 = vunpack.c.l.b16 %v8478
        %v8526 = vunpack.c.h.b16 %v8478
        %v8527 = vpack.c.b16 %v8497, %v8495
        %v8528 = vpack.c.b16 %v8498, %v8496
        %v8529 = vpack.c.b16 %v8501, %v8499
        %v8530 = vpack.c.b16 %v8502, %v8500
        %v8531 = vpack.c.b16 %v8505, %v8503
        %v8532 = vpack.c.b16 %v8506, %v8504
        %v8533 = vpack.c.b16 %v8509, %v8507
        %v8534 = vpack.c.b16 %v8510, %v8508
        %v8535 = vpack.c.b16 %v8513, %v8511
        %v8536 = vpack.c.b16 %v8514, %v8512
        %v8537 = vpack.c.b16 %v8517, %v8515
        %v8538 = vpack.c.b16 %v8518, %v8516
        %v8539 = vpack.c.b16 %v8521, %v8519
        %v8540 = vpack.c.b16 %v8522, %v8520
        %v8541 = vpack.c.b16 %v8525, %v8523
        %v8542 = vpack.c.b16 %v8526, %v8524
        %8559 = vmatprep.subr.bf16.mxu0 %v8528
        %8560 = vmatpush1.bf16.msra.mxu0 %v8527
        %8561 = vmatprep.subr.bf16.mxu0 %v8530
        %8562 = vmatpush1.bf16.msra.mxu0 %v8529
        %8563 = vmatprep.subr.bf16.mxu0 %v8532
        %8564 = vmatpush1.bf16.msra.mxu0 %v8531
        %8565 = vmatprep.subr.bf16.mxu0 %v8534
        %8566 = vmatpush1.bf16.msra.mxu0 %v8533
        %8567 = vmatprep.subr.bf16.mxu0 %v8536
        %8568 = vmatpush1.bf16.msra.mxu0 %v8535
        %8569 = vmatprep.subr.bf16.mxu0 %v8538
        %8570 = vmatpush1.bf16.msra.mxu0 %v8537
        %8571 = vmatprep.subr.bf16.mxu0 %v8540
        %8572 = vmatpush1.bf16.msra.mxu0 %v8539
        %8573 = vmatprep.subr.bf16.mxu0 %v8542
        %8574 = vmatpush1.bf16.msra.mxu0 %v8541
        %8575 = vmatprep.subr.bf16.mxu0 0
        %8576 = vmatpush1.bf16.msra.mxu0 0
        %8577 = vmatprep.subr.bf16.mxu0 0
        %8578 = vmatpush1.bf16.msra.mxu0 0
        %8579 = vmatprep.subr.bf16.mxu0 0
        %8580 = vmatpush1.bf16.msra.mxu0 0
        %8581 = vmatprep.subr.bf16.mxu0 0
        %8582 = vmatpush1.bf16.msra.mxu0 0
        %8583 = vmatprep.subr.bf16.mxu0 0
        %8584 = vmatpush1.bf16.msra.mxu0 0
        %8585 = vmatprep.subr.bf16.mxu0 0
        %8586 = vmatpush1.bf16.msra.mxu0 0
        %8587 = vmatprep.subr.bf16.mxu0 0
        %8588 = vmatpush1.bf16.msra.mxu0 0
        %8589 = vmatprep.subr.bf16.mxu0 0
        %8590 = vmatpush1.bf16.msra.mxu0 0
        %8591 = vmatprep.mubr.bf16.mxu0 0
        %8592 = vmatmul.mubr.bf16.gmra.mrb[0].mxu0 %v8461
        %v8593 = vpop.f32.mrb[0].mxu0
        %v8594 = vadd.f32 0.0, %v8593
        %v8595 = vpop.f32.mrb[0].mxu0
        %v8596 = vadd.f32 0.0, %v8595
        %v8597 = vpop.f32.mrb[0].mxu0
        %v8598 = vpop.f32.mrb[0].mxu0
        %8599 = vdwg.mxu0
        %v8600 = vadd.f32 %v8414, %v8594
        %v8601 = vadd.f32 %v8415, %v8596
        %s8602 = scalar_lea.vmem %s7, 24
        %v8603 = vld [vmem:[%s8602] sm:$0x3]
        %v8605 = vsel %vm6376, %v8603, 0
        %8607 = vmatprep.subr.bf16.mxu0 0
        %8608 = vmatpush1.bf16.msra.mxu0 %v6374
        %8609 = vmatprep.subr.bf16.mxu0 0
        %8610 = vmatpush1.bf16.msra.mxu0 0
        %8611 = vmatprep.subr.bf16.mxu0 0
        %8612 = vmatpush1.bf16.msra.mxu0 0
        %8613 = vmatprep.subr.bf16.mxu0 0
        %8614 = vmatpush1.bf16.msra.mxu0 0
        %8615 = vmatprep.subr.bf16.mxu0 0
        %8616 = vmatpush1.bf16.msra.mxu0 0
        %8617 = vmatprep.subr.bf16.mxu0 0
        %8618 = vmatpush1.bf16.msra.mxu0 0
        %8619 = vmatprep.subr.bf16.mxu0 0
        %8620 = vmatpush1.bf16.msra.mxu0 0
        %8621 = vmatprep.subr.bf16.mxu0 0
        %8622 = vmatpush1.bf16.msra.mxu0 0
        %8623 = vmatprep.subr.bf16.mxu0 0
        %8624 = vmatpush1.bf16.msra.mxu0 0
        %8625 = vmatprep.subr.bf16.mxu0 0
        %8626 = vmatpush1.bf16.msra.mxu0 0
        %8627 = vmatprep.subr.bf16.mxu0 0
        %8628 = vmatpush1.bf16.msra.mxu0 0
        %8629 = vmatprep.subr.bf16.mxu0 0
        %8630 = vmatpush1.bf16.msra.mxu0 0
        %8631 = vmatprep.subr.bf16.mxu0 0
        %8632 = vmatpush1.bf16.msra.mxu0 0
        %8633 = vmatprep.subr.bf16.mxu0 0
        %8634 = vmatpush1.bf16.msra.mxu0 0
        %8635 = vmatprep.subr.bf16.mxu0 0
        %8636 = vmatpush1.bf16.msra.mxu0 0
        %8637 = vmatprep.subr.bf16.mxu0 0
        %8638 = vmatpush1.bf16.msra.mxu0 0
        %8639 = vmatprep.mubr.bf16.mxu0 0
        %8640 = vmatmul.mubr.bf16.gmra.mrb[0].mxu0 %v8605
        %v8641 = vpop.f32.mrb[0].mxu0
        %v8642 = vadd.f32 0.0, %v8641
        %v8643 = vpop.f32.mrb[0].mxu0
        %v8644 = vpop.f32.mrb[0].mxu0
        %v8645 = vpop.f32.mrb[0].mxu0
        %8646 = vdwg.mxu0
        %v8647 = vpack.c.bf16 %v8642, %v8642
        %s8648 = scalar_lea.vmem [#allocation6], 1536
        %v8649 = vld [vmem:[%s8648] sm:$0xff]
        %v8650 = vld [vmem:[%s8648 + $0x8] sm:$0xff]
        %v8651 = vld [vmem:[%s8648 + $0x10] sm:$0xff]
        %v8652 = vld [vmem:[%s8648 + $0x18] sm:$0xff]
        %v8653 = vld [vmem:[%s8648 + $0x20] sm:$0xff]
        %v8654 = vld [vmem:[%s8648 + $0x28] sm:$0xff]
        %v8655 = vld [vmem:[%s8648 + $0x30] sm:$0xff]
        %v8656 = vld [vmem:[%s8648 + $0x38] sm:$0xff]
        %v8657 = vld [vmem:[%s8648 + $0x40] sm:$0xff]
        %v8658 = vld [vmem:[%s8648 + $0x48] sm:$0xff]
        %v8659 = vld [vmem:[%s8648 + $0x50] sm:$0xff]
        %v8660 = vld [vmem:[%s8648 + $0x58] sm:$0xff]
        %v8661 = vld [vmem:[%s8648 + $0x60] sm:$0xff]
        %v8662 = vld [vmem:[%s8648 + $0x68] sm:$0xff]
        %v8663 = vld [vmem:[%s8648 + $0x70] sm:$0xff]
        %v8664 = vld [vmem:[%s8648 + $0x78] sm:$0xff]
        %v8681 = vunpack.c.l.b16 %v8649
        %v8682 = vunpack.c.h.b16 %v8649
        %v8683 = vunpack.c.l.b16 %v8650
        %v8684 = vunpack.c.h.b16 %v8650
        %v8685 = vunpack.c.l.b16 %v8651
        %v8686 = vunpack.c.h.b16 %v8651
        %v8687 = vunpack.c.l.b16 %v8652
        %v8688 = vunpack.c.h.b16 %v8652
        %v8689 = vunpack.c.l.b16 %v8653
        %v8690 = vunpack.c.h.b16 %v8653
        %v8691 = vunpack.c.l.b16 %v8654
        %v8692 = vunpack.c.h.b16 %v8654
        %v8693 = vunpack.c.l.b16 %v8655
        %v8694 = vunpack.c.h.b16 %v8655
        %v8695 = vunpack.c.l.b16 %v8656
        %v8696 = vunpack.c.h.b16 %v8656
        %v8697 = vunpack.c.l.b16 %v8657
        %v8698 = vunpack.c.h.b16 %v8657
        %v8699 = vunpack.c.l.b16 %v8658
        %v8700 = vunpack.c.h.b16 %v8658
        %v8701 = vunpack.c.l.b16 %v8659
        %v8702 = vunpack.c.h.b16 %v8659
        %v8703 = vunpack.c.l.b16 %v8660
        %v8704 = vunpack.c.h.b16 %v8660
        %v8705 = vunpack.c.l.b16 %v8661
        %v8706 = vunpack.c.h.b16 %v8661
        %v8707 = vunpack.c.l.b16 %v8662
        %v8708 = vunpack.c.h.b16 %v8662
        %v8709 = vunpack.c.l.b16 %v8663
        %v8710 = vunpack.c.h.b16 %v8663
        %v8711 = vunpack.c.l.b16 %v8664
        %v8712 = vunpack.c.h.b16 %v8664
        %v8713 = vpack.c.b16 %v8683, %v8681
        %v8714 = vpack.c.b16 %v8684, %v8682
        %v8715 = vpack.c.b16 %v8687, %v8685
        %v8716 = vpack.c.b16 %v8688, %v8686
        %v8717 = vpack.c.b16 %v8691, %v8689
        %v8718 = vpack.c.b16 %v8692, %v8690
        %v8719 = vpack.c.b16 %v8695, %v8693
        %v8720 = vpack.c.b16 %v8696, %v8694
        %v8721 = vpack.c.b16 %v8699, %v8697
        %v8722 = vpack.c.b16 %v8700, %v8698
        %v8723 = vpack.c.b16 %v8703, %v8701
        %v8724 = vpack.c.b16 %v8704, %v8702
        %v8725 = vpack.c.b16 %v8707, %v8705
        %v8726 = vpack.c.b16 %v8708, %v8706
        %v8727 = vpack.c.b16 %v8711, %v8709
        %v8728 = vpack.c.b16 %v8712, %v8710
        %8745 = vmatprep.subr.bf16.mxu0 %v8714
        %8746 = vmatpush1.bf16.msra.mxu0 %v8713
        %8747 = vmatprep.subr.bf16.mxu0 %v8716
        %8748 = vmatpush1.bf16.msra.mxu0 %v8715
        %8749 = vmatprep.subr.bf16.mxu0 %v8718
        %8750 = vmatpush1.bf16.msra.mxu0 %v8717
        %8751 = vmatprep.subr.bf16.mxu0 %v8720
        %8752 = vmatpush1.bf16.msra.mxu0 %v8719
        %8753 = vmatprep.subr.bf16.mxu0 %v8722
        %8754 = vmatpush1.bf16.msra.mxu0 %v8721
        %8755 = vmatprep.subr.bf16.mxu0 %v8724
        %8756 = vmatpush1.bf16.msra.mxu0 %v8723
        %8757 = vmatprep.subr.bf16.mxu0 %v8726
        %8758 = vmatpush1.bf16.msra.mxu0 %v8725
        %8759 = vmatprep.subr.bf16.mxu0 %v8728
        %8760 = vmatpush1.bf16.msra.mxu0 %v8727
        %8761 = vmatprep.subr.bf16.mxu0 0
        %8762 = vmatpush1.bf16.msra.mxu0 0
        %8763 = vmatprep.subr.bf16.mxu0 0
        %8764 = vmatpush1.bf16.msra.mxu0 0
        %8765 = vmatprep.subr.bf16.mxu0 0
        %8766 = vmatpush1.bf16.msra.mxu0 0
        %8767 = vmatprep.subr.bf16.mxu0 0
        %8768 = vmatpush1.bf16.msra.mxu0 0
        %8769 = vmatprep.subr.bf16.mxu0 0
        %8770 = vmatpush1.bf16.msra.mxu0 0
        %8771 = vmatprep.subr.bf16.mxu0 0
        %8772 = vmatpush1.bf16.msra.mxu0 0
        %8773 = vmatprep.subr.bf16.mxu0 0
        %8774 = vmatpush1.bf16.msra.mxu0 0
        %8775 = vmatprep.subr.bf16.mxu0 0
        %8776 = vmatpush1.bf16.msra.mxu0 0
        %8777 = vmatprep.mubr.bf16.mxu0 0
        %8778 = vmatmul.mubr.bf16.gmra.mrb[0].mxu0 %v8647
        %v8779 = vpop.f32.mrb[0].mxu0
        %v8780 = vadd.f32 0.0, %v8779
        %v8781 = vpop.f32.mrb[0].mxu0
        %v8782 = vadd.f32 0.0, %v8781
        %v8783 = vpop.f32.mrb[0].mxu0
        %v8784 = vpop.f32.mrb[0].mxu0
        %8785 = vdwg.mxu0
        %v8786 = vadd.f32 %v8600, %v8780
        %v8787 = vadd.f32 %v8601, %v8782
        %s8788 = scalar_lea.vmem %s7, 26
        %v8789 = vld [vmem:[%s8788] sm:$0x3]
        %v8791 = vsel %vm6376, %v8789, 0
        %8793 = vmatprep.subr.bf16.mxu0 0
        %8794 = vmatpush1.bf16.msra.mxu0 %v6374
        %8795 = vmatprep.subr.bf16.mxu0 0
        %8796 = vmatpush1.bf16.msra.mxu0 0
        %8797 = vmatprep.subr.bf16.mxu0 0
        %8798 = vmatpush1.bf16.msra.mxu0 0
        %8799 = vmatprep.subr.bf16.mxu0 0
        %8800 = vmatpush1.bf16.msra.mxu0 0
        %8801 = vmatprep.subr.bf16.mxu0 0
        %8802 = vmatpush1.bf16.msra.mxu0 0
        %8803 = vmatprep.subr.bf16.mxu0 0
        %8804 = vmatpush1.bf16.msra.mxu0 0
        %8805 = vmatprep.subr.bf16.mxu0 0
        %8806 = vmatpush1.bf16.msra.mxu0 0
        %8807 = vmatprep.subr.bf16.mxu0 0
        %8808 = vmatpush1.bf16.msra.mxu0 0
        %8809 = vmatprep.subr.bf16.mxu0 0
        %8810 = vmatpush1.bf16.msra.mxu0 0
        %8811 = vmatprep.subr.bf16.mxu0 0
        %8812 = vmatpush1.bf16.msra.mxu0 0
        %8813 = vmatprep.subr.bf16.mxu0 0
        %8814 = vmatpush1.bf16.msra.mxu0 0
        %8815 = vmatprep.subr.bf16.mxu0 0
        %8816 = vmatpush1.bf16.msra.mxu0 0
        %8817 = vmatprep.subr.bf16.mxu0 0
        %8818 = vmatpush1.bf16.msra.mxu0 0
        %8819 = vmatprep.subr.bf16.mxu0 0
        %8820 = vmatpush1.bf16.msra.mxu0 0
        %8821 = vmatprep.subr.bf16.mxu0 0
        %8822 = vmatpush1.bf16.msra.mxu0 0
        %8823 = vmatprep.subr.bf16.mxu0 0
        %8824 = vmatpush1.bf16.msra.mxu0 0
        %8825 = vmatprep.mubr.bf16.mxu0 0
        %8826 = vmatmul.mubr.bf16.gmra.mrb[0].mxu0 %v8791
        %v8827 = vpop.f32.mrb[0].mxu0
        %v8828 = vadd.f32 0.0, %v8827
        %v8829 = vpop.f32.mrb[0].mxu0
        %v8830 = vpop.f32.mrb[0].mxu0
        %v8831 = vpop.f32.mrb[0].mxu0
        %8832 = vdwg.mxu0
        %v8833 = vpack.c.bf16 %v8828, %v8828
        %s8834 = scalar_lea.vmem [#allocation6], 1664
        %v8835 = vld [vmem:[%s8834] sm:$0xff]
        %v8836 = vld [vmem:[%s8834 + $0x8] sm:$0xff]
        %v8837 = vld [vmem:[%s8834 + $0x10] sm:$0xff]
        %v8838 = vld [vmem:[%s8834 + $0x18] sm:$0xff]
        %v8839 = vld [vmem:[%s8834 + $0x20] sm:$0xff]
        %v8840 = vld [vmem:[%s8834 + $0x28] sm:$0xff]
        %v8841 = vld [vmem:[%s8834 + $0x30] sm:$0xff]
        %v8842 = vld [vmem:[%s8834 + $0x38] sm:$0xff]
        %v8843 = vld [vmem:[%s8834 + $0x40] sm:$0xff]
        %v8844 = vld [vmem:[%s8834 + $0x48] sm:$0xff]
        %v8845 = vld [vmem:[%s8834 + $0x50] sm:$0xff]
        %v8846 = vld [vmem:[%s8834 + $0x58] sm:$0xff]
        %v8847 = vld [vmem:[%s8834 + $0x60] sm:$0xff]
        %v8848 = vld [vmem:[%s8834 + $0x68] sm:$0xff]
        %v8849 = vld [vmem:[%s8834 + $0x70] sm:$0xff]
        %v8850 = vld [vmem:[%s8834 + $0x78] sm:$0xff]
        %v8867 = vunpack.c.l.b16 %v8835
        %v8868 = vunpack.c.h.b16 %v8835
        %v8869 = vunpack.c.l.b16 %v8836
        %v8870 = vunpack.c.h.b16 %v8836
        %v8871 = vunpack.c.l.b16 %v8837
        %v8872 = vunpack.c.h.b16 %v8837
        %v8873 = vunpack.c.l.b16 %v8838
        %v8874 = vunpack.c.h.b16 %v8838
        %v8875 = vunpack.c.l.b16 %v8839
        %v8876 = vunpack.c.h.b16 %v8839
        %v8877 = vunpack.c.l.b16 %v8840
        %v8878 = vunpack.c.h.b16 %v8840
        %v8879 = vunpack.c.l.b16 %v8841
        %v8880 = vunpack.c.h.b16 %v8841
        %v8881 = vunpack.c.l.b16 %v8842
        %v8882 = vunpack.c.h.b16 %v8842
        %v8883 = vunpack.c.l.b16 %v8843
        %v8884 = vunpack.c.h.b16 %v8843
        %v8885 = vunpack.c.l.b16 %v8844
        %v8886 = vunpack.c.h.b16 %v8844
        %v8887 = vunpack.c.l.b16 %v8845
        %v8888 = vunpack.c.h.b16 %v8845
        %v8889 = vunpack.c.l.b16 %v8846
        %v8890 = vunpack.c.h.b16 %v8846
        %v8891 = vunpack.c.l.b16 %v8847
        %v8892 = vunpack.c.h.b16 %v8847
        %v8893 = vunpack.c.l.b16 %v8848
        %v8894 = vunpack.c.h.b16 %v8848
        %v8895 = vunpack.c.l.b16 %v8849
        %v8896 = vunpack.c.h.b16 %v8849
        %v8897 = vunpack.c.l.b16 %v8850
        %v8898 = vunpack.c.h.b16 %v8850
        %v8899 = vpack.c.b16 %v8869, %v8867
        %v8900 = vpack.c.b16 %v8870, %v8868
        %v8901 = vpack.c.b16 %v8873, %v8871
        %v8902 = vpack.c.b16 %v8874, %v8872
        %v8903 = vpack.c.b16 %v8877, %v8875
        %v8904 = vpack.c.b16 %v8878, %v8876
        %v8905 = vpack.c.b16 %v8881, %v8879
        %v8906 = vpack.c.b16 %v8882, %v8880
        %v8907 = vpack.c.b16 %v8885, %v8883
        %v8908 = vpack.c.b16 %v8886, %v8884
        %v8909 = vpack.c.b16 %v8889, %v8887
        %v8910 = vpack.c.b16 %v8890, %v8888
        %v8911 = vpack.c.b16 %v8893, %v8891
        %v8912 = vpack.c.b16 %v8894, %v8892
        %v8913 = vpack.c.b16 %v8897, %v8895
        %v8914 = vpack.c.b16 %v8898, %v8896
        %8931 = vmatprep.subr.bf16.mxu0 %v8900
        %8932 = vmatpush1.bf16.msra.mxu0 %v8899
        %8933 = vmatprep.subr.bf16.mxu0 %v8902
        %8934 = vmatpush1.bf16.msra.mxu0 %v8901
        %8935 = vmatprep.subr.bf16.mxu0 %v8904
        %8936 = vmatpush1.bf16.msra.mxu0 %v8903
        %8937 = vmatprep.subr.bf16.mxu0 %v8906
        %8938 = vmatpush1.bf16.msra.mxu0 %v8905
        %8939 = vmatprep.subr.bf16.mxu0 %v8908
        %8940 = vmatpush1.bf16.msra.mxu0 %v8907
        %8941 = vmatprep.subr.bf16.mxu0 %v8910
        %8942 = vmatpush1.bf16.msra.mxu0 %v8909
        %8943 = vmatprep.subr.bf16.mxu0 %v8912
        %8944 = vmatpush1.bf16.msra.mxu0 %v8911
        %8945 = vmatprep.subr.bf16.mxu0 %v8914
        %8946 = vmatpush1.bf16.msra.mxu0 %v8913
        %8947 = vmatprep.subr.bf16.mxu0 0
        %8948 = vmatpush1.bf16.msra.mxu0 0
        %8949 = vmatprep.subr.bf16.mxu0 0
        %8950 = vmatpush1.bf16.msra.mxu0 0
        %8951 = vmatprep.subr.bf16.mxu0 0
        %8952 = vmatpush1.bf16.msra.mxu0 0
        %8953 = vmatprep.subr.bf16.mxu0 0
        %8954 = vmatpush1.bf16.msra.mxu0 0
        %8955 = vmatprep.subr.bf16.mxu0 0
        %8956 = vmatpush1.bf16.msra.mxu0 0
        %8957 = vmatprep.subr.bf16.mxu0 0
        %8958 = vmatpush1.bf16.msra.mxu0 0
        %8959 = vmatprep.subr.bf16.mxu0 0
        %8960 = vmatpush1.bf16.msra.mxu0 0
        %8961 = vmatprep.subr.bf16.mxu0 0
        %8962 = vmatpush1.bf16.msra.mxu0 0
        %8963 = vmatprep.mubr.bf16.mxu0 0
        %8964 = vmatmul.mubr.bf16.gmra.mrb[0].mxu0 %v8833
        %v8965 = vpop.f32.mrb[0].mxu0
        %v8966 = vadd.f32 0.0, %v8965
        %v8967 = vpop.f32.mrb[0].mxu0
        %v8968 = vadd.f32 0.0, %v8967
        %v8969 = vpop.f32.mrb[0].mxu0
        %v8970 = vpop.f32.mrb[0].mxu0
        %8971 = vdwg.mxu0
        %v8972 = vadd.f32 %v8786, %v8966
        %v8973 = vadd.f32 %v8787, %v8968
        %s8974 = scalar_lea.vmem %s7, 28
        %v8975 = vld [vmem:[%s8974] sm:$0x3]
        %v8977 = vsel %vm6376, %v8975, 0
        %8979 = vmatprep.subr.bf16.mxu0 0
        %8980 = vmatpush1.bf16.msra.mxu0 %v6374
        %8981 = vmatprep.subr.bf16.mxu0 0
        %8982 = vmatpush1.bf16.msra.mxu0 0
        %8983 = vmatprep.subr.bf16.mxu0 0
        %8984 = vmatpush1.bf16.msra.mxu0 0
        %8985 = vmatprep.subr.bf16.mxu0 0
        %8986 = vmatpush1.bf16.msra.mxu0 0
        %8987 = vmatprep.subr.bf16.mxu0 0
        %8988 = vmatpush1.bf16.msra.mxu0 0
        %8989 = vmatprep.subr.bf16.mxu0 0
        %8990 = vmatpush1.bf16.msra.mxu0 0
        %8991 = vmatprep.subr.bf16.mxu0 0
        %8992 = vmatpush1.bf16.msra.mxu0 0
        %8993 = vmatprep.subr.bf16.mxu0 0
        %8994 = vmatpush1.bf16.msra.mxu0 0
        %8995 = vmatprep.subr.bf16.mxu0 0
        %8996 = vmatpush1.bf16.msra.mxu0 0
        %8997 = vmatprep.subr.bf16.mxu0 0
        %8998 = vmatpush1.bf16.msra.mxu0 0
        %8999 = vmatprep.subr.bf16.mxu0 0
        %9000 = vmatpush1.bf16.msra.mxu0 0
        %9001 = vmatprep.subr.bf16.mxu0 0
        %9002 = vmatpush1.bf16.msra.mxu0 0
        %9003 = vmatprep.subr.bf16.mxu0 0
        %9004 = vmatpush1.bf16.msra.mxu0 0
        %9005 = vmatprep.subr.bf16.mxu0 0
        %9006 = vmatpush1.bf16.msra.mxu0 0
        %9007 = vmatprep.subr.bf16.mxu0 0
        %9008 = vmatpush1.bf16.msra.mxu0 0
        %9009 = vmatprep.subr.bf16.mxu0 0
        %9010 = vmatpush1.bf16.msra.mxu0 0
        %9011 = vmatprep.mubr.bf16.mxu0 0
        %9012 = vmatmul.mubr.bf16.gmra.mrb[0].mxu0 %v8977
        %v9013 = vpop.f32.mrb[0].mxu0
        %v9014 = vadd.f32 0.0, %v9013
        %v9015 = vpop.f32.mrb[0].mxu0
        %v9016 = vpop.f32.mrb[0].mxu0
        %v9017 = vpop.f32.mrb[0].mxu0
        %9018 = vdwg.mxu0
        %v9019 = vpack.c.bf16 %v9014, %v9014
        %s9020 = scalar_lea.vmem [#allocation6], 1792
        %v9021 = vld [vmem:[%s9020] sm:$0xff]
        %v9022 = vld [vmem:[%s9020 + $0x8] sm:$0xff]
        %v9023 = vld [vmem:[%s9020 + $0x10] sm:$0xff]
        %v9024 = vld [vmem:[%s9020 + $0x18] sm:$0xff]
        %v9025 = vld [vmem:[%s9020 + $0x20] sm:$0xff]
        %v9026 = vld [vmem:[%s9020 + $0x28] sm:$0xff]
        %v9027 = vld [vmem:[%s9020 + $0x30] sm:$0xff]
        %v9028 = vld [vmem:[%s9020 + $0x38] sm:$0xff]
        %v9029 = vld [vmem:[%s9020 + $0x40] sm:$0xff]
        %v9030 = vld [vmem:[%s9020 + $0x48] sm:$0xff]
        %v9031 = vld [vmem:[%s9020 + $0x50] sm:$0xff]
        %v9032 = vld [vmem:[%s9020 + $0x58] sm:$0xff]
        %v9033 = vld [vmem:[%s9020 + $0x60] sm:$0xff]
        %v9034 = vld [vmem:[%s9020 + $0x68] sm:$0xff]
        %v9035 = vld [vmem:[%s9020 + $0x70] sm:$0xff]
        %v9036 = vld [vmem:[%s9020 + $0x78] sm:$0xff]
        %v9053 = vunpack.c.l.b16 %v9021
        %v9054 = vunpack.c.h.b16 %v9021
        %v9055 = vunpack.c.l.b16 %v9022
        %v9056 = vunpack.c.h.b16 %v9022
        %v9057 = vunpack.c.l.b16 %v9023
        %v9058 = vunpack.c.h.b16 %v9023
        %v9059 = vunpack.c.l.b16 %v9024
        %v9060 = vunpack.c.h.b16 %v9024
        %v9061 = vunpack.c.l.b16 %v9025
        %v9062 = vunpack.c.h.b16 %v9025
        %v9063 = vunpack.c.l.b16 %v9026
        %v9064 = vunpack.c.h.b16 %v9026
        %v9065 = vunpack.c.l.b16 %v9027
        %v9066 = vunpack.c.h.b16 %v9027
        %v9067 = vunpack.c.l.b16 %v9028
        %v9068 = vunpack.c.h.b16 %v9028
        %v9069 = vunpack.c.l.b16 %v9029
        %v9070 = vunpack.c.h.b16 %v9029
        %v9071 = vunpack.c.l.b16 %v9030
        %v9072 = vunpack.c.h.b16 %v9030
        %v9073 = vunpack.c.l.b16 %v9031
        %v9074 = vunpack.c.h.b16 %v9031
        %v9075 = vunpack.c.l.b16 %v9032
        %v9076 = vunpack.c.h.b16 %v9032
        %v9077 = vunpack.c.l.b16 %v9033
        %v9078 = vunpack.c.h.b16 %v9033
        %v9079 = vunpack.c.l.b16 %v9034
        %v9080 = vunpack.c.h.b16 %v9034
        %v9081 = vunpack.c.l.b16 %v9035
        %v9082 = vunpack.c.h.b16 %v9035
        %v9083 = vunpack.c.l.b16 %v9036
        %v9084 = vunpack.c.h.b16 %v9036
        %v9085 = vpack.c.b16 %v9055, %v9053
        %v9086 = vpack.c.b16 %v9056, %v9054
        %v9087 = vpack.c.b16 %v9059, %v9057
        %v9088 = vpack.c.b16 %v9060, %v9058
        %v9089 = vpack.c.b16 %v9063, %v9061
        %v9090 = vpack.c.b16 %v9064, %v9062
        %v9091 = vpack.c.b16 %v9067, %v9065
        %v9092 = vpack.c.b16 %v9068, %v9066
        %v9093 = vpack.c.b16 %v9071, %v9069
        %v9094 = vpack.c.b16 %v9072, %v9070
        %v9095 = vpack.c.b16 %v9075, %v9073
        %v9096 = vpack.c.b16 %v9076, %v9074
        %v9097 = vpack.c.b16 %v9079, %v9077
        %v9098 = vpack.c.b16 %v9080, %v9078
        %v9099 = vpack.c.b16 %v9083, %v9081
        %v9100 = vpack.c.b16 %v9084, %v9082
        %9117 = vmatprep.subr.bf16.mxu0 %v9086
        %9118 = vmatpush1.bf16.msra.mxu0 %v9085
        %9119 = vmatprep.subr.bf16.mxu0 %v9088
        %9120 = vmatpush1.bf16.msra.mxu0 %v9087
        %9121 = vmatprep.subr.bf16.mxu0 %v9090
        %9122 = vmatpush1.bf16.msra.mxu0 %v9089
        %9123 = vmatprep.subr.bf16.mxu0 %v9092
        %9124 = vmatpush1.bf16.msra.mxu0 %v9091
        %9125 = vmatprep.subr.bf16.mxu0 %v9094
        %9126 = vmatpush1.bf16.msra.mxu0 %v9093
        %9127 = vmatprep.subr.bf16.mxu0 %v9096
        %9128 = vmatpush1.bf16.msra.mxu0 %v9095
        %9129 = vmatprep.subr.bf16.mxu0 %v9098
        %9130 = vmatpush1.bf16.msra.mxu0 %v9097
        %9131 = vmatprep.subr.bf16.mxu0 %v9100
        %9132 = vmatpush1.bf16.msra.mxu0 %v9099
        %9133 = vmatprep.subr.bf16.mxu0 0
        %9134 = vmatpush1.bf16.msra.mxu0 0
        %9135 = vmatprep.subr.bf16.mxu0 0
        %9136 = vmatpush1.bf16.msra.mxu0 0
        %9137 = vmatprep.subr.bf16.mxu0 0
        %9138 = vmatpush1.bf16.msra.mxu0 0
        %9139 = vmatprep.subr.bf16.mxu0 0
        %9140 = vmatpush1.bf16.msra.mxu0 0
        %9141 = vmatprep.subr.bf16.mxu0 0
        %9142 = vmatpush1.bf16.msra.mxu0 0
        %9143 = vmatprep.subr.bf16.mxu0 0
        %9144 = vmatpush1.bf16.msra.mxu0 0
        %9145 = vmatprep.subr.bf16.mxu0 0
        %9146 = vmatpush1.bf16.msra.mxu0 0
        %9147 = vmatprep.subr.bf16.mxu0 0
        %9148 = vmatpush1.bf16.msra.mxu0 0
        %9149 = vmatprep.mubr.bf16.mxu0 0
        %9150 = vmatmul.mubr.bf16.gmra.mrb[0].mxu0 %v9019
        %v9151 = vpop.f32.mrb[0].mxu0
        %v9152 = vadd.f32 0.0, %v9151
        %v9153 = vpop.f32.mrb[0].mxu0
        %v9154 = vadd.f32 0.0, %v9153
        %v9155 = vpop.f32.mrb[0].mxu0
        %v9156 = vpop.f32.mrb[0].mxu0
        %9157 = vdwg.mxu0
        %v9158 = vadd.f32 %v8972, %v9152
        %v9159 = vadd.f32 %v8973, %v9154
        %s9160 = scalar_lea.vmem %s7, 30
        %v9161 = vld [vmem:[%s9160] sm:$0x3]
        %v9163 = vsel %vm6376, %v9161, 0
        %9165 = vmatprep.subr.bf16.mxu0 0
        %9166 = vmatpush1.bf16.msra.mxu0 %v6374
        %9167 = vmatprep.subr.bf16.mxu0 0
        %9168 = vmatpush1.bf16.msra.mxu0 0
        %9169 = vmatprep.subr.bf16.mxu0 0
        %9170 = vmatpush1.bf16.msra.mxu0 0
        %9171 = vmatprep.subr.bf16.mxu0 0
        %9172 = vmatpush1.bf16.msra.mxu0 0
        %9173 = vmatprep.subr.bf16.mxu0 0
        %9174 = vmatpush1.bf16.msra.mxu0 0
        %9175 = vmatprep.subr.bf16.mxu0 0
        %9176 = vmatpush1.bf16.msra.mxu0 0
        %9177 = vmatprep.subr.bf16.mxu0 0
        %9178 = vmatpush1.bf16.msra.mxu0 0
        %9179 = vmatprep.subr.bf16.mxu0 0
        %9180 = vmatpush1.bf16.msra.mxu0 0
        %9181 = vmatprep.subr.bf16.mxu0 0
        %9182 = vmatpush1.bf16.msra.mxu0 0
        %9183 = vmatprep.subr.bf16.mxu0 0
        %9184 = vmatpush1.bf16.msra.mxu0 0
        %9185 = vmatprep.subr.bf16.mxu0 0
        %9186 = vmatpush1.bf16.msra.mxu0 0
        %9187 = vmatprep.subr.bf16.mxu0 0
        %9188 = vmatpush1.bf16.msra.mxu0 0
        %9189 = vmatprep.subr.bf16.mxu0 0
        %9190 = vmatpush1.bf16.msra.mxu0 0
        %9191 = vmatprep.subr.bf16.mxu0 0
        %9192 = vmatpush1.bf16.msra.mxu0 0
        %9193 = vmatprep.subr.bf16.mxu0 0
        %9194 = vmatpush1.bf16.msra.mxu0 0
        %9195 = vmatprep.subr.bf16.mxu0 0
        %9196 = vmatpush1.bf16.msra.mxu0 0
        %9197 = vmatprep.mubr.bf16.mxu0 0
        %9198 = vmatmul.mubr.bf16.gmra.mrb[0].mxu0 %v9163
        %v9199 = vpop.f32.mrb[0].mxu0
        %v9200 = vadd.f32 0.0, %v9199
        %v9201 = vpop.f32.mrb[0].mxu0
        %v9202 = vpop.f32.mrb[0].mxu0
        %v9203 = vpop.f32.mrb[0].mxu0
        %9204 = vdwg.mxu0
        %v9205 = vpack.c.bf16 %v9200, %v9200
        %s9206 = scalar_lea.vmem [#allocation6], 1920
        %v9207 = vld [vmem:[%s9206] sm:$0xff]
        %v9208 = vld [vmem:[%s9206 + $0x8] sm:$0xff]
        %v9209 = vld [vmem:[%s9206 + $0x10] sm:$0xff]
        %v9210 = vld [vmem:[%s9206 + $0x18] sm:$0xff]
        %v9211 = vld [vmem:[%s9206 + $0x20] sm:$0xff]
        %v9212 = vld [vmem:[%s9206 + $0x28] sm:$0xff]
        %v9213 = vld [vmem:[%s9206 + $0x30] sm:$0xff]
        %v9214 = vld [vmem:[%s9206 + $0x38] sm:$0xff]
        %v9215 = vld [vmem:[%s9206 + $0x40] sm:$0xff]
        %v9216 = vld [vmem:[%s9206 + $0x48] sm:$0xff]
        %v9217 = vld [vmem:[%s9206 + $0x50] sm:$0xff]
        %v9218 = vld [vmem:[%s9206 + $0x58] sm:$0xff]
        %v9219 = vld [vmem:[%s9206 + $0x60] sm:$0xff]
        %v9220 = vld [vmem:[%s9206 + $0x68] sm:$0xff]
        %v9221 = vld [vmem:[%s9206 + $0x70] sm:$0xff]
        %v9222 = vld [vmem:[%s9206 + $0x78] sm:$0xff]
        %v9239 = vunpack.c.l.b16 %v9207
        %v9240 = vunpack.c.h.b16 %v9207
        %v9241 = vunpack.c.l.b16 %v9208
        %v9242 = vunpack.c.h.b16 %v9208
        %v9243 = vunpack.c.l.b16 %v9209
        %v9244 = vunpack.c.h.b16 %v9209
        %v9245 = vunpack.c.l.b16 %v9210
        %v9246 = vunpack.c.h.b16 %v9210
        %v9247 = vunpack.c.l.b16 %v9211
        %v9248 = vunpack.c.h.b16 %v9211
        %v9249 = vunpack.c.l.b16 %v9212
        %v9250 = vunpack.c.h.b16 %v9212
        %v9251 = vunpack.c.l.b16 %v9213
        %v9252 = vunpack.c.h.b16 %v9213
        %v9253 = vunpack.c.l.b16 %v9214
        %v9254 = vunpack.c.h.b16 %v9214
        %v9255 = vunpack.c.l.b16 %v9215
        %v9256 = vunpack.c.h.b16 %v9215
        %v9257 = vunpack.c.l.b16 %v9216
        %v9258 = vunpack.c.h.b16 %v9216
        %v9259 = vunpack.c.l.b16 %v9217
        %v9260 = vunpack.c.h.b16 %v9217
        %v9261 = vunpack.c.l.b16 %v9218
        %v9262 = vunpack.c.h.b16 %v9218
        %v9263 = vunpack.c.l.b16 %v9219
        %v9264 = vunpack.c.h.b16 %v9219
        %v9265 = vunpack.c.l.b16 %v9220
        %v9266 = vunpack.c.h.b16 %v9220
        %v9267 = vunpack.c.l.b16 %v9221
        %v9268 = vunpack.c.h.b16 %v9221
        %v9269 = vunpack.c.l.b16 %v9222
        %v9270 = vunpack.c.h.b16 %v9222
        %v9271 = vpack.c.b16 %v9241, %v9239
        %v9272 = vpack.c.b16 %v9242, %v9240
        %v9273 = vpack.c.b16 %v9245, %v9243
        %v9274 = vpack.c.b16 %v9246, %v9244
        %v9275 = vpack.c.b16 %v9249, %v9247
        %v9276 = vpack.c.b16 %v9250, %v9248
        %v9277 = vpack.c.b16 %v9253, %v9251
        %v9278 = vpack.c.b16 %v9254, %v9252
        %v9279 = vpack.c.b16 %v9257, %v9255
        %v9280 = vpack.c.b16 %v9258, %v9256
        %v9281 = vpack.c.b16 %v9261, %v9259
        %v9282 = vpack.c.b16 %v9262, %v9260
        %v9283 = vpack.c.b16 %v9265, %v9263
        %v9284 = vpack.c.b16 %v9266, %v9264
        %v9285 = vpack.c.b16 %v9269, %v9267
        %v9286 = vpack.c.b16 %v9270, %v9268
        %9303 = vmatprep.subr.bf16.mxu0 %v9272
        %9304 = vmatpush1.bf16.msra.mxu0 %v9271
        %9305 = vmatprep.subr.bf16.mxu0 %v9274
        %9306 = vmatpush1.bf16.msra.mxu0 %v9273
        %9307 = vmatprep.subr.bf16.mxu0 %v9276
        %9308 = vmatpush1.bf16.msra.mxu0 %v9275
        %9309 = vmatprep.subr.bf16.mxu0 %v9278
        %9310 = vmatpush1.bf16.msra.mxu0 %v9277
        %9311 = vmatprep.subr.bf16.mxu0 %v9280
        %9312 = vmatpush1.bf16.msra.mxu0 %v9279
        %9313 = vmatprep.subr.bf16.mxu0 %v9282
        %9314 = vmatpush1.bf16.msra.mxu0 %v9281
        %9315 = vmatprep.subr.bf16.mxu0 %v9284
        %9316 = vmatpush1.bf16.msra.mxu0 %v9283
        %9317 = vmatprep.subr.bf16.mxu0 %v9286
        %9318 = vmatpush1.bf16.msra.mxu0 %v9285
        %9319 = vmatprep.subr.bf16.mxu0 0
        %9320 = vmatpush1.bf16.msra.mxu0 0
        %9321 = vmatprep.subr.bf16.mxu0 0
        %9322 = vmatpush1.bf16.msra.mxu0 0
        %9323 = vmatprep.subr.bf16.mxu0 0
        %9324 = vmatpush1.bf16.msra.mxu0 0
        %9325 = vmatprep.subr.bf16.mxu0 0
        %9326 = vmatpush1.bf16.msra.mxu0 0
        %9327 = vmatprep.subr.bf16.mxu0 0
        %9328 = vmatpush1.bf16.msra.mxu0 0
        %9329 = vmatprep.subr.bf16.mxu0 0
        %9330 = vmatpush1.bf16.msra.mxu0 0
        %9331 = vmatprep.subr.bf16.mxu0 0
        %9332 = vmatpush1.bf16.msra.mxu0 0
        %9333 = vmatprep.subr.bf16.mxu0 0
        %9334 = vmatpush1.bf16.msra.mxu0 0
        %9335 = vmatprep.mubr.bf16.mxu0 0
        %9336 = vmatmul.mubr.bf16.gmra.mrb[0].mxu0 %v9205
        %v9337 = vpop.f32.mrb[0].mxu0
        %v9338 = vadd.f32 0.0, %v9337
        %v9339 = vpop.f32.mrb[0].mxu0
        %v9340 = vadd.f32 0.0, %v9339
        %v9341 = vpop.f32.mrb[0].mxu0
        %v9342 = vpop.f32.mrb[0].mxu0
        %9343 = vdwg.mxu0
        %v9344 = vadd.f32 %v9158, %v9338
        %v9345 = vadd.f32 %v9159, %v9340
        %v9346 = vld [vmem:[%s9] sm:$0x3]
        %v9348 = vlaneseq
        %v9349 = vshrl.u32 %v9348, 7
        %v9350 = vsub.s32 0, %v9349
        %v9351 = vrot.slane %v9346, %v9350
        %v9352 = vlaneseq
        %v9353 = vshrl.u32 %v9352, 7
        %v9354 = vsub.s32 1, %v9353
        %v9355 = vrot.slane %v9346, %v9354
        %v9358 = vadd.f32 %v9344, %v9351
        %v9359 = vadd.f32 %v9345, %v9355
        %v9360 = vmax.f32 %v9358, 0.0
        %v9361 = vmax.f32 %v9359, 0.0
        %v9364 = vcombine.low %v9360, %v9361
        %9366 = vst [vmem:[%s403] sm:$0xff] %v9364
        %p9367 = scmp.lt.s32.totalorder %s23, 1
        %s9368 = scalar_select %p9367, %s23, 1
        %s9369 = smul.addr %s9368, 2
        %s9370 = smul.addr %s9369, 4
        %s9371 = scalar_lea.vmem %s10, %s9370
        // Predicated region
        $region73: #{encoder_forward.1} parent=59 // pred_check
          %p9372 = pneg %p256
        $region74: #{encoder_forward.1} parent=59 // pred_check_branch
          %9374 = sbr.rel (%p9372) target = $region76
        $region75: #{encoder_forward.1} parent=59 // pred_region
          _
        $region76: #{encoder_forward.1} parent=59 // pred_fallthru
          _
      $region60: #{encoder_forward.1} parent=5 // pred_fallthru
        _
      %p9375 = scmp.le.s32.totalorder 2, %s18
      // Predicated region
      $region77: #{encoder_forward.1} parent=5 // pred_check
        %p9376 = pneg %p9375
      $region78: #{encoder_forward.1} parent=5 // pred_check_branch
        %9378 = sbr.rel (%p9376) target = $region80
      $region79: #{encoder_forward.1} parent=5 // pred_region
        %s9379 = ssub.s32 %s18, 2
        // Predicated region
        $region81: #{encoder_forward.1} parent=79 // pred_check
          %p9380 = pneg %p262
        $region82: #{encoder_forward.1} parent=79 // pred_check_branch
          %9382 = sbr.rel (%p9380) target = $region84
        $region83: #{encoder_forward.1} parent=79 // pred_region
          %p9383 = scmp.lt.s32.totalorder %s24, 1
          %s9384 = scalar_select %p9383, %s24, 1
          %s9385 = smul.addr %s9384, 2
          %s9386 = smul.addr %s9385, 4
          %s9387 = scalar_lea.vmem %s10, %s9386
        $region84: #{encoder_forward.1} parent=79 // pred_fallthru
          _
      $region80: #{encoder_forward.1} parent=5 // pred_fallthru
        _
    $region6: #{encoder_forward.1} parent=1 // loop_footer
      %s22 = sadd.s32 1, %s18
    $region7: #{encoder_forward.1} parent=1 // loop_footer_branch
      %17 = sbr.rel target = $region3
    $region8: #{encoder_forward.1} parent=1 // loop_exit
      _
    %9388 = vsyncpa [#allocation3], 1
    %s9389 = scalar_lea.sflag [#allocation3], 1
    %9390 = vsyncpa %s9389, 1
    %9391 = vsyncpa [#allocation5], 1

</llo_original>
